<compile_context>
chip_gen: v7x
topology: tpu7x:2x2x1
jax: 0.10.0
libtpu: 0.0.40
codegen_flags: <defaults>
</compile_context>

<pallas_src>
import functools
import math

import jax
import jax.numpy as jnp
from jax import lax
from jax.experimental import pallas as pl
from jax.experimental.pallas import tpu as pltpu

NEG_INF = -1e30      # additive mask value (exp underflows to exactly 0)
LN_EPS = 1e-5        # nn.LayerNorm default
LANE = 128           # lane width for lane-dense output slabs


# ----------------------------- in-kernel helpers ----------------------------

def _layer_norm(y, g, b):
    """LayerNorm over last dim in f32 (eps=1e-5).  g/b broadcastable to y."""
    mean = jnp.mean(y, axis=-1, keepdims=True)
    var = jnp.mean(jnp.square(y - mean), axis=-1, keepdims=True)
    return (y - mean) * lax.rsqrt(var + LN_EPS) * g + b


def _softmax_rows(s):
    """Row softmax in f32; divide moved to the EUP via approx reciprocal."""
    m = jnp.max(s, axis=-1, keepdims=True)
    p = jnp.exp(s - m)
    return p * pl.reciprocal(jnp.sum(p, axis=-1, keepdims=True), approx=True)


def _heads_attention(q, k, v, bias, num_heads):
    """Scaled-dot-product attention with heads split via static lane slices.

    q: (Sq, E) f32, k/v: (Sk, E) f32 (per-head features concatenated on lanes).
    bias: None or f32 additive mask broadcastable to (Sq, Sk).
    Returns (Sq, E) f32 (heads re-concatenated on lanes).
    """
    E = q.shape[-1]
    H = num_heads
    Dh = E // H
    scale = 1.0 / math.sqrt(Dh)
    outs = []
    for h in range(H):                                   # unrolled; H is small
        qh = q[:, h * Dh:(h + 1) * Dh].astype(jnp.bfloat16)
        kh = k[:, h * Dh:(h + 1) * Dh].astype(jnp.bfloat16)
        vh = v[:, h * Dh:(h + 1) * Dh].astype(jnp.bfloat16)
        s = lax.dot_general(qh, kh, (((1,), (1,)), ((), ())),
                            preferred_element_type=jnp.float32) * scale
        if bias is not None:
            s = s + bias
        p = _softmax_rows(s)
        outs.append(jnp.dot(p.astype(jnp.bfloat16), vh,
                            preferred_element_type=jnp.float32))
    return jnp.concatenate(outs, axis=-1)                # (Sq, E)


def _self_attention(x_flat, wqkv, bqkv, wo, bo, biases, batch, seq, num_heads):
    """Self-attention on a flattened (B*S, E) activation.

    One wide QKV matmul for the whole batch, per-batch SxS attention, one wide
    output projection.  biases: list of length B of additive masks (or Nones).
    """
    E = x_flat.shape[-1]
    qkv = jnp.dot(x_flat.astype(jnp.bfloat16), wqkv,
                  preferred_element_type=jnp.float32) + bqkv        # (B*S, 3E)
    per_b = []
    for b in range(batch):                                          # unrolled
        blk = qkv[b * seq:(b + 1) * seq]
        per_b.append(_heads_attention(blk[:, 0:E], blk[:, E:2 * E],
                                      blk[:, 2 * E:3 * E], biases[b], num_heads))
    attn = jnp.concatenate(per_b, axis=0)                           # (B*S, E)
    return jnp.dot(attn.astype(jnp.bfloat16), wo,
                   preferred_element_type=jnp.float32) + bo


def _cross_attention(y_flat, mem_flat, wq, bq, wkv, bkv, wo, bo,
                     batch, sq, sk, num_heads):
    """Cross-attention: Q from decoder stream, K/V from encoder memory."""
    E = y_flat.shape[-1]
    q_all = jnp.dot(y_flat.astype(jnp.bfloat16), wq,
                    preferred_element_type=jnp.float32) + bq        # (B*Sq, E)
    kv_all = jnp.dot(mem_flat.astype(jnp.bfloat16), wkv,
                     preferred_element_type=jnp.float32) + bkv      # (B*Sk, 2E)
    per_b = []
    for b in range(batch):
        qb = q_all[b * sq:(b + 1) * sq]
        kvb = kv_all[b * sk:(b + 1) * sk]
        per_b.append(_heads_attention(qb, kvb[:, 0:E], kvb[:, E:2 * E],
                                      None, num_heads))
    attn = jnp.concatenate(per_b, axis=0)
    return jnp.dot(attn.astype(jnp.bfloat16), wo,
                   preferred_element_type=jnp.float32) + bo


def _ffn(y, w1, b1, w2, b2):
    """Linear -> ReLU -> Linear (post-norm residual handled by caller)."""
    h = jnp.dot(y.astype(jnp.bfloat16), w1,
                preferred_element_type=jnp.float32) + b1
    h = jnp.maximum(h, 0.0)
    return jnp.dot(h.astype(jnp.bfloat16), w2,
                   preferred_element_type=jnp.float32) + b2


# ------------------------------ fused kernel --------------------------------

def _seq2seq_kernel(
        src_ref, tgt_ref, padb_ref,
        # encoder layers (stacked on leading layer axis)
        e_wqkv, e_bqkv, e_wo, e_bo, e_ln1g, e_ln1b,
        e_w1, e_b1, e_w2, e_b2, e_ln2g, e_ln2b,
        encn_g, encn_b,
        # decoder layers (stacked on leading layer axis)
        d_sa_wqkv, d_sa_bqkv, d_sa_wo, d_sa_bo, d_ln1g, d_ln1b,
        d_ca_wq, d_ca_bq, d_ca_wkv, d_ca_bkv, d_ca_wo, d_ca_bo, d_ln2g, d_ln2b,
        d_w1, d_b1, d_w2, d_b2, d_ln3g, d_ln3b,
        decn_g, decn_b, fc_w, fc_b,
        # outputs
        logits_ref, pred_ref,
        *, num_heads):
    B, Sx, E = src_ref.shape
    Sy = tgt_ref.shape[1]
    Le = e_wqkv.shape[0]
    Ld = d_sa_wqkv.shape[0]
    H = num_heads

    # Flatten batch onto sublanes: all projections / LN / FFN run on (B*S, E).
    x = src_ref[...].reshape(B * Sx, E)                             # encoder stream
    y = tgt_ref[...].reshape(B * Sy, E)                             # decoder stream

    # per-sequence key-padding bias (tiny, (1, Sx) each) for encoder self-attn
    pad_biases = [padb_ref[b] for b in range(B)]

    # ----- encoder stack (post-norm) -----
    for l in range(Le):                                             # unrolled
        sa = _self_attention(x, e_wqkv[l], e_bqkv[l], e_wo[l], e_bo[l],
                             pad_biases, B, Sx, H)
        x = _layer_norm(x + sa, e_ln1g[l], e_ln1b[l])
        ff = _ffn(x, e_w1[l], e_b1[l], e_w2[l], e_b2[l])
        x = _layer_norm(x + ff, e_ln2g[l], e_ln2b[l])
    mem = _layer_norm(x, encn_g[...], encn_b[...])                  # encoder final LN

    # causal (generate_square_subsequent_mask) additive bias, built in-kernel once
    row = lax.broadcasted_iota(jnp.int32, (Sy, Sy), 0)
    col = lax.broadcasted_iota(jnp.int32, (Sy, Sy), 1)
    causal = jnp.where(col > row, NEG_INF, 0.0).astype(jnp.float32)
    causal_biases = [causal] * B

    # ----- decoder stack (post-norm) -----
    # NOTE: memory_key_padding_mask is None in the PyTorch reference, so cross-
    # attention intentionally carries no bias.
    for l in range(Ld):                                             # unrolled
        sa = _self_attention(y, d_sa_wqkv[l], d_sa_bqkv[l], d_sa_wo[l], d_sa_bo[l],
                             causal_biases, B, Sy, H)
        y = _layer_norm(y + sa, d_ln1g[l], d_ln1b[l])
        ca = _cross_attention(y, mem, d_ca_wq[l], d_ca_bq[l], d_ca_wkv[l],
                              d_ca_bkv[l], d_ca_wo[l], d_ca_bo[l], B, Sy, Sx, H)
        y = _layer_norm(y + ca, d_ln2g[l], d_ln2b[l])
        ff = _ffn(y, d_w1[l], d_b1[l], d_w2[l], d_b2[l])
        y = _layer_norm(y + ff, d_ln3g[l], d_ln3b[l])

    # ----- decoder final LN + fc_out (lane-dense, Vpad cols) + argmax -----
    y = _layer_norm(y, decn_g[...], decn_b[...])
    logits = jnp.dot(y.astype(jnp.bfloat16), fc_w[...],
                     preferred_element_type=jnp.float32) + fc_b[...]  # (B*Sy, Vpad)

    vpad = logits.shape[-1]
    mx = jnp.max(logits, axis=-1, keepdims=True)
    iota = lax.broadcasted_iota(jnp.int32, logits.shape, 1)
    cand = jnp.where(logits == mx, iota, jnp.int32(vpad))
    idx = jnp.min(cand, axis=-1, keepdims=True)                     # first max index

    for b in range(B):
        logits_ref[b] = logits[b * Sy:(b + 1) * Sy]
        pred_ref[b] = jnp.broadcast_to(idx[b * Sy:(b + 1) * Sy], (Sy, LANE))


# ------------------------------ host wrapper ---------------------------------

def seq2seq_transformer_forward(params, cfg, x, lengths_x, y, lengths_y):
    del lengths_x, lengths_y  # unused in the reference forward as well
    B, Sx = x.shape
    _, Sy = y.shape
    H = cfg['num_heads']
    V = cfg['vocab_out_size']

    # Embedding lookups (gathers) stay in plain JAX.
    # TODO(synk): nn.Dropout layers treated as identity (inference / p=0 behaviour).
    embed_in = params['word_emb_in'][x] + params['pos_emb_in'][jnp.arange(Sx)][None]
    embed_out = params['word_emb_out'][y] + params['pos_emb_out'][jnp.arange(Sy)][None]

    # src key-padding mask -> tiny (B, 1, Sx) additive bias (never a (B*H,S,S) tensor)
    pad_bias = jnp.where(x == cfg['src_pad_idx'], NEG_INF, 0.0).astype(jnp.float32)
    pad_bias = pad_bias[:, None, :]

    enc, dec = params['enc'], params['dec']
    inputs = (
        embed_in.astype(jnp.float32), embed_out.astype(jnp.float32), pad_bias,
        enc['wqkv'], enc['bqkv'], enc['wo'], enc['bo'], enc['ln1_g'], enc['ln1_b'],
        enc['w1'], enc['b1'], enc['w2'], enc['b2'], enc['ln2_g'], enc['ln2_b'],
        params['enc_norm_g'], params['enc_norm_b'],
        dec['sa_wqkv'], dec['sa_bqkv'], dec['sa_wo'], dec['sa_bo'],
        dec['ln1_g'], dec['ln1_b'],
        dec['ca_wq'], dec['ca_bq'], dec['ca_wkv'], dec['ca_bkv'],
        dec['ca_wo'], dec['ca_bo'], dec['ln2_g'], dec['ln2_b'],
        dec['w1'], dec['b1'], dec['w2'], dec['b2'], dec['ln3_g'], dec['ln3_b'],
        params['dec_norm_g'], params['dec_norm_b'],
        params['fc_out_w'], params['fc_out_b'],
    )

    vpad = params['fc_out_w'].shape[1]
    vmem_spec = pl.BlockSpec(memory_space=pltpu.MemorySpace.VMEM)
    kern = functools.partial(_seq2seq_kernel, num_heads=H)

    # Single fused pallas_call, no grid: the whole model state fits in VMEM.
    logits_pad, pred_pad = pl.pallas_call(
        kern,
        out_shape=(jax.ShapeDtypeStruct((B, Sy, vpad), jnp.float32),
                   jax.ShapeDtypeStruct((B, Sy, LANE), jnp.int32)),
        in_specs=[vmem_spec] * len(inputs),
        out_specs=(vmem_spec, vmem_spec),
        compiler_params=pltpu.CompilerParams(vmem_limit_bytes=32 * 1024 * 1024),
    )(*inputs)

    return logits_pad[..., :V], pred_pad[..., 0]


# ---------------------------- parameter init --------------------------------

def init_params(key, cfg):
    E = cfg['embedding_size']
    F = cfg['forward_expansion']   # nn.Transformer uses this as dim_feedforward
    Le = cfg['num_encoder_layers']
    Ld = cfg['num_decoder_layers']
    Vin, Vout = cfg['vocab_in_size'], cfg['vocab_out_size']
    max_len = cfg['max_len']
    Vpad = ((Vout + LANE - 1) // LANE) * LANE   # lane-dense fc_out width

    keys = iter(jax.random.split(key, 1024))
    nk = lambda: next(keys)

    def wmat(shape):   # MXU operands stored bf16 (native dtype, half the weight bytes)
        return (0.02 * jax.random.normal(nk(), shape)).astype(jnp.bfloat16)

    def vec(shape):    # biases / embeddings stay f32
        return (0.02 * jax.random.normal(nk(), shape)).astype(jnp.float32)

    def ones(shape):
        return jnp.ones(shape, jnp.float32)

    def zeros(shape):
        return jnp.zeros(shape, jnp.float32)

    # Per-layer weights stacked on a leading layer axis; QKV fused to one wide matrix.
    enc = dict(
        wqkv=wmat((Le, E, 3 * E)), bqkv=vec((Le, 1, 3 * E)),
        wo=wmat((Le, E, E)), bo=vec((Le, 1, E)),
        ln1_g=ones((Le, 1, E)), ln1_b=zeros((Le, 1, E)),
        w1=wmat((Le, E, F)), b1=vec((Le, 1, F)),
        w2=wmat((Le, F, E)), b2=vec((Le, 1, E)),
        ln2_g=ones((Le, 1, E)), ln2_b=zeros((Le, 1, E)),
    )
    dec = dict(
        sa_wqkv=wmat((Ld, E, 3 * E)), sa_bqkv=vec((Ld, 1, 3 * E)),
        sa_wo=wmat((Ld, E, E)), sa_bo=vec((Ld, 1, E)),
        ln1_g=ones((Ld, 1, E)), ln1_b=zeros((Ld, 1, E)),
        ca_wq=wmat((Ld, E, E)), ca_bq=vec((Ld, 1, E)),
        ca_wkv=wmat((Ld, E, 2 * E)), ca_bkv=vec((Ld, 1, 2 * E)),
        ca_wo=wmat((Ld, E, E)), ca_bo=vec((Ld, 1, E)),
        ln2_g=ones((Ld, 1, E)), ln2_b=zeros((Ld, 1, E)),
        w1=wmat((Ld, E, F)), b1=vec((Ld, 1, F)),
        w2=wmat((Ld, F, E)), b2=vec((Ld, 1, E)),
        ln3_g=ones((Ld, 1, E)), ln3_b=zeros((Ld, 1, E)),
    )

    # fc_out zero-padded to Vpad lanes; pad columns of the bias get -1e30 so the
    # in-kernel argmax can never select a padded column.
    fc_w = jnp.zeros((E, Vpad), jnp.float32)
    fc_w = fc_w.at[:, :Vout].set(0.02 * jax.random.normal(nk(), (E, Vout)))
    fc_w = fc_w.astype(jnp.bfloat16)
    fc_b = jnp.full((1, Vpad), NEG_INF, jnp.float32)
    fc_b = fc_b.at[:, :Vout].set(0.02 * jax.random.normal(nk(), (1, Vout)))

    return dict(
        word_emb_in=vec((Vin, E)),
        pos_emb_in=vec((max_len, E)),
        word_emb_out=vec((Vout, E)),
        pos_emb_out=vec((max_len, E)),
        enc=enc, enc_norm_g=ones((1, E)), enc_norm_b=zeros((1, E)),
        dec=dec, dec_norm_g=ones((1, E)), dec_norm_b=zeros((1, E)),
        fc_out_w=fc_w, fc_out_b=fc_b,
    )


# ---------------------------------- main ------------------------------------

if __name__ == "__main__":
    cfg = dict(embedding_size=32, vocab_in_size=50, vocab_out_size=40,
               src_pad_idx=0, num_heads=4, num_encoder_layers=2,
               num_decoder_layers=2, forward_expansion=64, dropout=0.0,
               max_len=200)

    key = jax.random.PRNGKey(0)
    kp, kx, ky = jax.random.split(key, 3)
    params = init_params(kp, cfg)

    B, Sx, Sy = 2, 8, 8
    x = jax.random.randint(kx, (B, Sx), 1, cfg['vocab_in_size']).astype(jnp.int32)
    y = jax.random.randint(ky, (B, Sy), 1, cfg['vocab_out_size']).astype(jnp.int32)
    lengths_x = jnp.array([Sx, 5], dtype=jnp.int32)
    lengths_y = jnp.array([Sy, 6], dtype=jnp.int32)
    # pad the tail of the second source sequence with src_pad_idx
    x = x.at[1, 5:].set(cfg['src_pad_idx'])

    fwd = jax.jit(lambda p, xx, lx, yy, ly:
                  seq2seq_transformer_forward(p, cfg, xx, lx, yy, ly))
    y_hat, y_pred = fwd(params, x, lengths_x, y, lengths_y)
    jax.block_until_ready((y_hat, y_pred))

    assert y_hat.shape == (B, Sy, cfg['vocab_out_size'])
    assert y_pred.shape == (B, Sy)
    assert bool(jnp.all(jnp.isfinite(y_hat)))
    print("KERNEL_OK")
</pallas_src>

<mosaic_0001>
module attributes {stable_mosaic.version = 11 : i64} {
  func.func @_seq2seq_kernel(%arg0: memref<2x8x32xf32, #tpu.memory_space<vmem>>, %arg1: memref<2x8x32xf32, #tpu.memory_space<vmem>>, %arg2: memref<2x1x8xf32, #tpu.memory_space<vmem>>, %arg3: memref<2x32x96xbf16, #tpu.memory_space<vmem>>, %arg4: memref<2x1x96xf32, #tpu.memory_space<vmem>>, %arg5: memref<2x32x32xbf16, #tpu.memory_space<vmem>>, %arg6: memref<2x1x32xf32, #tpu.memory_space<vmem>>, %arg7: memref<2x1x32xf32, #tpu.memory_space<vmem>>, %arg8: memref<2x1x32xf32, #tpu.memory_space<vmem>>, %arg9: memref<2x32x64xbf16, #tpu.memory_space<vmem>>, %arg10: memref<2x1x64xf32, #tpu.memory_space<vmem>>, %arg11: memref<2x64x32xbf16, #tpu.memory_space<vmem>>, %arg12: memref<2x1x32xf32, #tpu.memory_space<vmem>>, %arg13: memref<2x1x32xf32, #tpu.memory_space<vmem>>, %arg14: memref<2x1x32xf32, #tpu.memory_space<vmem>>, %arg15: memref<1x32xf32, #tpu.memory_space<vmem>>, %arg16: memref<1x32xf32, #tpu.memory_space<vmem>>, %arg17: memref<2x32x96xbf16, #tpu.memory_space<vmem>>, %arg18: memref<2x1x96xf32, #tpu.memory_space<vmem>>, %arg19: memref<2x32x32xbf16, #tpu.memory_space<vmem>>, %arg20: memref<2x1x32xf32, #tpu.memory_space<vmem>>, %arg21: memref<2x1x32xf32, #tpu.memory_space<vmem>>, %arg22: memref<2x1x32xf32, #tpu.memory_space<vmem>>, %arg23: memref<2x32x32xbf16, #tpu.memory_space<vmem>>, %arg24: memref<2x1x32xf32, #tpu.memory_space<vmem>>, %arg25: memref<2x32x64xbf16, #tpu.memory_space<vmem>>, %arg26: memref<2x1x64xf32, #tpu.memory_space<vmem>>, %arg27: memref<2x32x32xbf16, #tpu.memory_space<vmem>>, %arg28: memref<2x1x32xf32, #tpu.memory_space<vmem>>, %arg29: memref<2x1x32xf32, #tpu.memory_space<vmem>>, %arg30: memref<2x1x32xf32, #tpu.memory_space<vmem>>, %arg31: memref<2x32x64xbf16, #tpu.memory_space<vmem>>, %arg32: memref<2x1x64xf32, #tpu.memory_space<vmem>>, %arg33: memref<2x64x32xbf16, #tpu.memory_space<vmem>>, %arg34: memref<2x1x32xf32, #tpu.memory_space<vmem>>, %arg35: memref<2x1x32xf32, #tpu.memory_space<vmem>>, %arg36: memref<2x1x32xf32, #tpu.memory_space<vmem>>, %arg37: memref<1x32xf32, #tpu.memory_space<vmem>>, %arg38: memref<1x32xf32, #tpu.memory_space<vmem>>, %arg39: memref<32x128xbf16, #tpu.memory_space<vmem>>, %arg40: memref<1x128xf32, #tpu.memory_space<vmem>>, %arg41: memref<2x8x128xf32, #tpu.memory_space<vmem>>, %arg42: memref<2x8x128xi32, #tpu.memory_space<vmem>>) attributes {dimension_semantics = [], scalar_prefetch = 0 : i64, scratch_operands = 0 : i64, tpu.core_type = #tpu.core_type<tc>} {
    %c0 = arith.constant 0 : index
    %c0_0 = arith.constant 0 : index
    %c0_1 = arith.constant 0 : index
    %0 = vector.load %arg0[%c0, %c0_0, %c0_1] : memref<2x8x32xf32, #tpu.memory_space<vmem>>, vector<2x8x32xf32>
    %1 = vector.shape_cast %0 : vector<2x8x32xf32> to vector<16x32xf32>
    %c0_2 = arith.constant 0 : index
    %c0_3 = arith.constant 0 : index
    %c0_4 = arith.constant 0 : index
    %2 = vector.load %arg1[%c0_2, %c0_3, %c0_4] : memref<2x8x32xf32, #tpu.memory_space<vmem>>, vector<2x8x32xf32>
    %3 = vector.shape_cast %2 : vector<2x8x32xf32> to vector<16x32xf32>
    %c0_5 = arith.constant 0 : index
    %c0_6 = arith.constant 0 : index
    %c0_7 = arith.constant 0 : index
    %4 = vector.load %arg2[%c0_5, %c0_6, %c0_7] : memref<2x1x8xf32, #tpu.memory_space<vmem>>, vector<1x1x8xf32>
    %5 = vector.shape_cast %4 : vector<1x1x8xf32> to vector<1x8xf32>
    %c1 = arith.constant 1 : index
    %c0_8 = arith.constant 0 : index
    %c0_9 = arith.constant 0 : index
    %6 = vector.load %arg2[%c1, %c0_8, %c0_9] : memref<2x1x8xf32, #tpu.memory_space<vmem>>, vector<1x1x8xf32>
    %7 = vector.shape_cast %6 : vector<1x1x8xf32> to vector<1x8xf32>
    %c0_10 = arith.constant 0 : index
    %c0_11 = arith.constant 0 : index
    %c0_12 = arith.constant 0 : index
    %8 = vector.load %arg3[%c0_10, %c0_11, %c0_12] : memref<2x32x96xbf16, #tpu.memory_space<vmem>>, vector<1x32x96xbf16>
    %9 = vector.shape_cast %8 : vector<1x32x96xbf16> to vector<32x96xbf16>
    %c0_13 = arith.constant 0 : index
    %c0_14 = arith.constant 0 : index
    %c0_15 = arith.constant 0 : index
    %10 = vector.load %arg4[%c0_13, %c0_14, %c0_15] : memref<2x1x96xf32, #tpu.memory_space<vmem>>, vector<1x1x96xf32>
    %11 = vector.shape_cast %10 : vector<1x1x96xf32> to vector<1x96xf32>
    %c0_16 = arith.constant 0 : index
    %c0_17 = arith.constant 0 : index
    %c0_18 = arith.constant 0 : index
    %12 = vector.load %arg5[%c0_16, %c0_17, %c0_18] : memref<2x32x32xbf16, #tpu.memory_space<vmem>>, vector<1x32x32xbf16>
    %13 = vector.shape_cast %12 : vector<1x32x32xbf16> to vector<32x32xbf16>
    %c0_19 = arith.constant 0 : index
    %c0_20 = arith.constant 0 : index
    %c0_21 = arith.constant 0 : index
    %14 = vector.load %arg6[%c0_19, %c0_20, %c0_21] : memref<2x1x32xf32, #tpu.memory_space<vmem>>, vector<1x1x32xf32>
    %15 = vector.shape_cast %14 : vector<1x1x32xf32> to vector<1x32xf32>
    %16 = arith.truncf %1 : vector<16x32xf32> to vector<16x32xbf16>
    %cst = arith.constant dense<0.000000e+00> : vector<16x96xf32>
    %17 = tpu.matmul %16, %9, %cst {dimension_numbers = #tpu.dot_dimension_numbers<[1], [0], [0], [1], [0, 0, 1, 1], [], []>} : vector<16x32xbf16>, vector<32x96xbf16>, vector<16x96xf32> -> vector<16x96xf32>
    %18 = vector.broadcast %11 : vector<1x96xf32> to vector<16x96xf32>
    %19 = arith.addf %17, %18 : vector<16x96xf32>
    %20 = vector.extract_strided_slice %19 {offsets = [0, 0], sizes = [8, 96], strides = [1, 1]} : vector<16x96xf32> to vector<8x96xf32>
    %21 = vector.extract_strided_slice %20 {offsets = [0, 0], sizes = [8, 32], strides = [1, 1]} : vector<8x96xf32> to vector<8x32xf32>
    %22 = vector.extract_strided_slice %20 {offsets = [0, 32], sizes = [8, 32], strides = [1, 1]} : vector<8x96xf32> to vector<8x32xf32>
    %23 = vector.extract_strided_slice %20 {offsets = [0, 64], sizes = [8, 32], strides = [1, 1]} : vector<8x96xf32> to vector<8x32xf32>
    %24 = vector.extract_strided_slice %21 {offsets = [0, 0], sizes = [8, 8], strides = [1, 1]} : vector<8x32xf32> to vector<8x8xf32>
    %25 = arith.truncf %24 : vector<8x8xf32> to vector<8x8xbf16>
    %26 = vector.extract_strided_slice %22 {offsets = [0, 0], sizes = [8, 8], strides = [1, 1]} : vector<8x32xf32> to vector<8x8xf32>
    %27 = arith.truncf %26 : vector<8x8xf32> to vector<8x8xbf16>
    %28 = vector.extract_strided_slice %23 {offsets = [0, 0], sizes = [8, 8], strides = [1, 1]} : vector<8x32xf32> to vector<8x8xf32>
    %29 = arith.truncf %28 : vector<8x8xf32> to vector<8x8xbf16>
    %cst_22 = arith.constant dense<0.000000e+00> : vector<8x8xf32>
    %30 = tpu.matmul %25, %27, %cst_22 {dimension_numbers = #tpu.dot_dimension_numbers<[1], [1], [0], [0], [0, 0, 1, 0], [], []>} : vector<8x8xbf16>, vector<8x8xbf16>, vector<8x8xf32> -> vector<8x8xf32>
    %cst_23 = arith.constant 0.353553385 : f32
    %31 = vector.broadcast %cst_23 : f32 to vector<8x8xf32>
    %32 = arith.mulf %30, %31 : vector<8x8xf32>
    %33 = vector.broadcast %5 : vector<1x8xf32> to vector<8x8xf32>
    %34 = arith.addf %32, %33 : vector<8x8xf32>
    %cst_24 = arith.constant dense<0xFF800000> : vector<8xf32>
    %35 = vector.multi_reduction <maximumf>, %34, %cst_24 [1] : vector<8x8xf32> to vector<8xf32>
    %36 = vector.shape_cast %35 : vector<8xf32> to vector<8x1xf32>
    %37 = vector.broadcast %36 : vector<8x1xf32> to vector<8x8xf32>
    %38 = arith.subf %34, %37 : vector<8x8xf32>
    %39 = math.exp %38 : vector<8x8xf32>
    %cst_25 = arith.constant dense<0.000000e+00> : vector<8xf32>
    %40 = vector.multi_reduction <add>, %39, %cst_25 [1] : vector<8x8xf32> to vector<8xf32>
    %41 = vector.shape_cast %40 : vector<8xf32> to vector<8x1xf32>
    %42 = tpu.reciprocal %41 {approx = true} : vector<8x1xf32> -> vector<8x1xf32>
    %43 = vector.broadcast %42 : vector<8x1xf32> to vector<8x8xf32>
    %44 = arith.mulf %39, %43 : vector<8x8xf32>
    %45 = arith.truncf %44 : vector<8x8xf32> to vector<8x8xbf16>
    %cst_26 = arith.constant dense<0.000000e+00> : vector<8x8xf32>
    %46 = tpu.matmul %45, %29, %cst_26 {dimension_numbers = #tpu.dot_dimension_numbers<[1], [0], [0], [1], [0, 0, 1, 1], [], []>} : vector<8x8xbf16>, vector<8x8xbf16>, vector<8x8xf32> -> vector<8x8xf32>
    %47 = vector.extract_strided_slice %21 {offsets = [0, 8], sizes = [8, 8], strides = [1, 1]} : vector<8x32xf32> to vector<8x8xf32>
    %48 = arith.truncf %47 : vector<8x8xf32> to vector<8x8xbf16>
    %49 = vector.extract_strided_slice %22 {offsets = [0, 8], sizes = [8, 8], strides = [1, 1]} : vector<8x32xf32> to vector<8x8xf32>
    %50 = arith.truncf %49 : vector<8x8xf32> to vector<8x8xbf16>
    %51 = vector.extract_strided_slice %23 {offsets = [0, 8], sizes = [8, 8], strides = [1, 1]} : vector<8x32xf32> to vector<8x8xf32>
    %52 = arith.truncf %51 : vector<8x8xf32> to vector<8x8xbf16>
    %cst_27 = arith.constant dense<0.000000e+00> : vector<8x8xf32>
    %53 = tpu.matmul %48, %50, %cst_27 {dimension_numbers = #tpu.dot_dimension_numbers<[1], [1], [0], [0], [0, 0, 1, 0], [], []>} : vector<8x8xbf16>, vector<8x8xbf16>, vector<8x8xf32> -> vector<8x8xf32>
    %cst_28 = arith.constant 0.353553385 : f32
    %54 = vector.broadcast %cst_28 : f32 to vector<8x8xf32>
    %55 = arith.mulf %53, %54 : vector<8x8xf32>
    %56 = vector.broadcast %5 : vector<1x8xf32> to vector<8x8xf32>
    %57 = arith.addf %55, %56 : vector<8x8xf32>
    %cst_29 = arith.constant dense<0xFF800000> : vector<8xf32>
    %58 = vector.multi_reduction <maximumf>, %57, %cst_29 [1] : vector<8x8xf32> to vector<8xf32>
    %59 = vector.shape_cast %58 : vector<8xf32> to vector<8x1xf32>
    %60 = vector.broadcast %59 : vector<8x1xf32> to vector<8x8xf32>
    %61 = arith.subf %57, %60 : vector<8x8xf32>
    %62 = math.exp %61 : vector<8x8xf32>
    %cst_30 = arith.constant dense<0.000000e+00> : vector<8xf32>
    %63 = vector.multi_reduction <add>, %62, %cst_30 [1] : vector<8x8xf32> to vector<8xf32>
    %64 = vector.shape_cast %63 : vector<8xf32> to vector<8x1xf32>
    %65 = tpu.reciprocal %64 {approx = true} : vector<8x1xf32> -> vector<8x1xf32>
    %66 = vector.broadcast %65 : vector<8x1xf32> to vector<8x8xf32>
    %67 = arith.mulf %62, %66 : vector<8x8xf32>
    %68 = arith.truncf %67 : vector<8x8xf32> to vector<8x8xbf16>
    %cst_31 = arith.constant dense<0.000000e+00> : vector<8x8xf32>
    %69 = tpu.matmul %68, %52, %cst_31 {dimension_numbers = #tpu.dot_dimension_numbers<[1], [0], [0], [1], [0, 0, 1, 1], [], []>} : vector<8x8xbf16>, vector<8x8xbf16>, vector<8x8xf32> -> vector<8x8xf32>
    %70 = vector.extract_strided_slice %21 {offsets = [0, 16], sizes = [8, 8], strides = [1, 1]} : vector<8x32xf32> to vector<8x8xf32>
    %71 = arith.truncf %70 : vector<8x8xf32> to vector<8x8xbf16>
    %72 = vector.extract_strided_slice %22 {offsets = [0, 16], sizes = [8, 8], strides = [1, 1]} : vector<8x32xf32> to vector<8x8xf32>
    %73 = arith.truncf %72 : vector<8x8xf32> to vector<8x8xbf16>
    %74 = vector.extract_strided_slice %23 {offsets = [0, 16], sizes = [8, 8], strides = [1, 1]} : vector<8x32xf32> to vector<8x8xf32>
    %75 = arith.truncf %74 : vector<8x8xf32> to vector<8x8xbf16>
    %cst_32 = arith.constant dense<0.000000e+00> : vector<8x8xf32>
    %76 = tpu.matmul %71, %73, %cst_32 {dimension_numbers = #tpu.dot_dimension_numbers<[1], [1], [0], [0], [0, 0, 1, 0], [], []>} : vector<8x8xbf16>, vector<8x8xbf16>, vector<8x8xf32> -> vector<8x8xf32>
    %cst_33 = arith.constant 0.353553385 : f32
    %77 = vector.broadcast %cst_33 : f32 to vector<8x8xf32>
    %78 = arith.mulf %76, %77 : vector<8x8xf32>
    %79 = vector.broadcast %5 : vector<1x8xf32> to vector<8x8xf32>
    %80 = arith.addf %78, %79 : vector<8x8xf32>
    %cst_34 = arith.constant dense<0xFF800000> : vector<8xf32>
    %81 = vector.multi_reduction <maximumf>, %80, %cst_34 [1] : vector<8x8xf32> to vector<8xf32>
    %82 = vector.shape_cast %81 : vector<8xf32> to vector<8x1xf32>
    %83 = vector.broadcast %82 : vector<8x1xf32> to vector<8x8xf32>
    %84 = arith.subf %80, %83 : vector<8x8xf32>
    %85 = math.exp %84 : vector<8x8xf32>
    %cst_35 = arith.constant dense<0.000000e+00> : vector<8xf32>
    %86 = vector.multi_reduction <add>, %85, %cst_35 [1] : vector<8x8xf32> to vector<8xf32>
    %87 = vector.shape_cast %86 : vector<8xf32> to vector<8x1xf32>
    %88 = tpu.reciprocal %87 {approx = true} : vector<8x1xf32> -> vector<8x1xf32>
    %89 = vector.broadcast %88 : vector<8x1xf32> to vector<8x8xf32>
    %90 = arith.mulf %85, %89 : vector<8x8xf32>
    %91 = arith.truncf %90 : vector<8x8xf32> to vector<8x8xbf16>
    %cst_36 = arith.constant dense<0.000000e+00> : vector<8x8xf32>
    %92 = tpu.matmul %91, %75, %cst_36 {dimension_numbers = #tpu.dot_dimension_numbers<[1], [0], [0], [1], [0, 0, 1, 1], [], []>} : vector<8x8xbf16>, vector<8x8xbf16>, vector<8x8xf32> -> vector<8x8xf32>
    %93 = vector.extract_strided_slice %21 {offsets = [0, 24], sizes = [8, 8], strides = [1, 1]} : vector<8x32xf32> to vector<8x8xf32>
    %94 = arith.truncf %93 : vector<8x8xf32> to vector<8x8xbf16>
    %95 = vector.extract_strided_slice %22 {offsets = [0, 24], sizes = [8, 8], strides = [1, 1]} : vector<8x32xf32> to vector<8x8xf32>
    %96 = arith.truncf %95 : vector<8x8xf32> to vector<8x8xbf16>
    %97 = vector.extract_strided_slice %23 {offsets = [0, 24], sizes = [8, 8], strides = [1, 1]} : vector<8x32xf32> to vector<8x8xf32>
    %98 = arith.truncf %97 : vector<8x8xf32> to vector<8x8xbf16>
    %cst_37 = arith.constant dense<0.000000e+00> : vector<8x8xf32>
    %99 = tpu.matmul %94, %96, %cst_37 {dimension_numbers = #tpu.dot_dimension_numbers<[1], [1], [0], [0], [0, 0, 1, 0], [], []>} : vector<8x8xbf16>, vector<8x8xbf16>, vector<8x8xf32> -> vector<8x8xf32>
    %cst_38 = arith.constant 0.353553385 : f32
    %100 = vector.broadcast %cst_38 : f32 to vector<8x8xf32>
    %101 = arith.mulf %99, %100 : vector<8x8xf32>
    %102 = vector.broadcast %5 : vector<1x8xf32> to vector<8x8xf32>
    %103 = arith.addf %101, %102 : vector<8x8xf32>
    %cst_39 = arith.constant dense<0xFF800000> : vector<8xf32>
    %104 = vector.multi_reduction <maximumf>, %103, %cst_39 [1] : vector<8x8xf32> to vector<8xf32>
    %105 = vector.shape_cast %104 : vector<8xf32> to vector<8x1xf32>
    %106 = vector.broadcast %105 : vector<8x1xf32> to vector<8x8xf32>
    %107 = arith.subf %103, %106 : vector<8x8xf32>
    %108 = math.exp %107 : vector<8x8xf32>
    %cst_40 = arith.constant dense<0.000000e+00> : vector<8xf32>
    %109 = vector.multi_reduction <add>, %108, %cst_40 [1] : vector<8x8xf32> to vector<8xf32>
    %110 = vector.shape_cast %109 : vector<8xf32> to vector<8x1xf32>
    %111 = tpu.reciprocal %110 {approx = true} : vector<8x1xf32> -> vector<8x1xf32>
    %112 = vector.broadcast %111 : vector<8x1xf32> to vector<8x8xf32>
    %113 = arith.mulf %108, %112 : vector<8x8xf32>
    %114 = arith.truncf %113 : vector<8x8xf32> to vector<8x8xbf16>
    %cst_41 = arith.constant dense<0.000000e+00> : vector<8x8xf32>
    %115 = tpu.matmul %114, %98, %cst_41 {dimension_numbers = #tpu.dot_dimension_numbers<[1], [0], [0], [1], [0, 0, 1, 1], [], []>} : vector<8x8xbf16>, vector<8x8xbf16>, vector<8x8xf32> -> vector<8x8xf32>
    %116 = tpu.concatenate %46, %69, %92, %115 in 1 : vector<8x8xf32>, vector<8x8xf32>, vector<8x8xf32>, vector<8x8xf32> -> vector<8x32xf32>
    %117 = vector.extract_strided_slice %19 {offsets = [8, 0], sizes = [8, 96], strides = [1, 1]} : vector<16x96xf32> to vector<8x96xf32>
    %118 = vector.extract_strided_slice %117 {offsets = [0, 0], sizes = [8, 32], strides = [1, 1]} : vector<8x96xf32> to vector<8x32xf32>
    %119 = vector.extract_strided_slice %117 {offsets = [0, 32], sizes = [8, 32], strides = [1, 1]} : vector<8x96xf32> to vector<8x32xf32>
    %120 = vector.extract_strided_slice %117 {offsets = [0, 64], sizes = [8, 32], strides = [1, 1]} : vector<8x96xf32> to vector<8x32xf32>
    %121 = vector.extract_strided_slice %118 {offsets = [0, 0], sizes = [8, 8], strides = [1, 1]} : vector<8x32xf32> to vector<8x8xf32>
    %122 = arith.truncf %121 : vector<8x8xf32> to vector<8x8xbf16>
    %123 = vector.extract_strided_slice %119 {offsets = [0, 0], sizes = [8, 8], strides = [1, 1]} : vector<8x32xf32> to vector<8x8xf32>
    %124 = arith.truncf %123 : vector<8x8xf32> to vector<8x8xbf16>
    %125 = vector.extract_strided_slice %120 {offsets = [0, 0], sizes = [8, 8], strides = [1, 1]} : vector<8x32xf32> to vector<8x8xf32>
    %126 = arith.truncf %125 : vector<8x8xf32> to vector<8x8xbf16>
    %cst_42 = arith.constant dense<0.000000e+00> : vector<8x8xf32>
    %127 = tpu.matmul %122, %124, %cst_42 {dimension_numbers = #tpu.dot_dimension_numbers<[1], [1], [0], [0], [0, 0, 1, 0], [], []>} : vector<8x8xbf16>, vector<8x8xbf16>, vector<8x8xf32> -> vector<8x8xf32>
    %cst_43 = arith.constant 0.353553385 : f32
    %128 = vector.broadcast %cst_43 : f32 to vector<8x8xf32>
    %129 = arith.mulf %127, %128 : vector<8x8xf32>
    %130 = vector.broadcast %7 : vector<1x8xf32> to vector<8x8xf32>
    %131 = arith.addf %129, %130 : vector<8x8xf32>
    %cst_44 = arith.constant dense<0xFF800000> : vector<8xf32>
    %132 = vector.multi_reduction <maximumf>, %131, %cst_44 [1] : vector<8x8xf32> to vector<8xf32>
    %133 = vector.shape_cast %132 : vector<8xf32> to vector<8x1xf32>
    %134 = vector.broadcast %133 : vector<8x1xf32> to vector<8x8xf32>
    %135 = arith.subf %131, %134 : vector<8x8xf32>
    %136 = math.exp %135 : vector<8x8xf32>
    %cst_45 = arith.constant dense<0.000000e+00> : vector<8xf32>
    %137 = vector.multi_reduction <add>, %136, %cst_45 [1] : vector<8x8xf32> to vector<8xf32>
    %138 = vector.shape_cast %137 : vector<8xf32> to vector<8x1xf32>
    %139 = tpu.reciprocal %138 {approx = true} : vector<8x1xf32> -> vector<8x1xf32>
    %140 = vector.broadcast %139 : vector<8x1xf32> to vector<8x8xf32>
    %141 = arith.mulf %136, %140 : vector<8x8xf32>
    %142 = arith.truncf %141 : vector<8x8xf32> to vector<8x8xbf16>
    %cst_46 = arith.constant dense<0.000000e+00> : vector<8x8xf32>
    %143 = tpu.matmul %142, %126, %cst_46 {dimension_numbers = #tpu.dot_dimension_numbers<[1], [0], [0], [1], [0, 0, 1, 1], [], []>} : vector<8x8xbf16>, vector<8x8xbf16>, vector<8x8xf32> -> vector<8x8xf32>
    %144 = vector.extract_strided_slice %118 {offsets = [0, 8], sizes = [8, 8], strides = [1, 1]} : vector<8x32xf32> to vector<8x8xf32>
    %145 = arith.truncf %144 : vector<8x8xf32> to vector<8x8xbf16>
    %146 = vector.extract_strided_slice %119 {offsets = [0, 8], sizes = [8, 8], strides = [1, 1]} : vector<8x32xf32> to vector<8x8xf32>
    %147 = arith.truncf %146 : vector<8x8xf32> to vector<8x8xbf16>
    %148 = vector.extract_strided_slice %120 {offsets = [0, 8], sizes = [8, 8], strides = [1, 1]} : vector<8x32xf32> to vector<8x8xf32>
    %149 = arith.truncf %148 : vector<8x8xf32> to vector<8x8xbf16>
    %cst_47 = arith.constant dense<0.000000e+00> : vector<8x8xf32>
    %150 = tpu.matmul %145, %147, %cst_47 {dimension_numbers = #tpu.dot_dimension_numbers<[1], [1], [0], [0], [0, 0, 1, 0], [], []>} : vector<8x8xbf16>, vector<8x8xbf16>, vector<8x8xf32> -> vector<8x8xf32>
    %cst_48 = arith.constant 0.353553385 : f32
    %151 = vector.broadcast %cst_48 : f32 to vector<8x8xf32>
    %152 = arith.mulf %150, %151 : vector<8x8xf32>
    %153 = vector.broadcast %7 : vector<1x8xf32> to vector<8x8xf32>
    %154 = arith.addf %152, %153 : vector<8x8xf32>
    %cst_49 = arith.constant dense<0xFF800000> : vector<8xf32>
    %155 = vector.multi_reduction <maximumf>, %154, %cst_49 [1] : vector<8x8xf32> to vector<8xf32>
    %156 = vector.shape_cast %155 : vector<8xf32> to vector<8x1xf32>
    %157 = vector.broadcast %156 : vector<8x1xf32> to vector<8x8xf32>
    %158 = arith.subf %154, %157 : vector<8x8xf32>
    %159 = math.exp %158 : vector<8x8xf32>
    %cst_50 = arith.constant dense<0.000000e+00> : vector<8xf32>
    %160 = vector.multi_reduction <add>, %159, %cst_50 [1] : vector<8x8xf32> to vector<8xf32>
    %161 = vector.shape_cast %160 : vector<8xf32> to vector<8x1xf32>
    %162 = tpu.reciprocal %161 {approx = true} : vector<8x1xf32> -> vector<8x1xf32>
    %163 = vector.broadcast %162 : vector<8x1xf32> to vector<8x8xf32>
    %164 = arith.mulf %159, %163 : vector<8x8xf32>
    %165 = arith.truncf %164 : vector<8x8xf32> to vector<8x8xbf16>
    %cst_51 = arith.constant dense<0.000000e+00> : vector<8x8xf32>
    %166 = tpu.matmul %165, %149, %cst_51 {dimension_numbers = #tpu.dot_dimension_numbers<[1], [0], [0], [1], [0, 0, 1, 1], [], []>} : vector<8x8xbf16>, vector<8x8xbf16>, vector<8x8xf32> -> vector<8x8xf32>
    %167 = vector.extract_strided_slice %118 {offsets = [0, 16], sizes = [8, 8], strides = [1, 1]} : vector<8x32xf32> to vector<8x8xf32>
    %168 = arith.truncf %167 : vector<8x8xf32> to vector<8x8xbf16>
    %169 = vector.extract_strided_slice %119 {offsets = [0, 16], sizes = [8, 8], strides = [1, 1]} : vector<8x32xf32> to vector<8x8xf32>
    %170 = arith.truncf %169 : vector<8x8xf32> to vector<8x8xbf16>
    %171 = vector.extract_strided_slice %120 {offsets = [0, 16], sizes = [8, 8], strides = [1, 1]} : vector<8x32xf32> to vector<8x8xf32>
    %172 = arith.truncf %171 : vector<8x8xf32> to vector<8x8xbf16>
    %cst_52 = arith.constant dense<0.000000e+00> : vector<8x8xf32>
    %173 = tpu.matmul %168, %170, %cst_52 {dimension_numbers = #tpu.dot_dimension_numbers<[1], [1], [0], [0], [0, 0, 1, 0], [], []>} : vector<8x8xbf16>, vector<8x8xbf16>, vector<8x8xf32> -> vector<8x8xf32>
    %cst_53 = arith.constant 0.353553385 : f32
    %174 = vector.broadcast %cst_53 : f32 to vector<8x8xf32>
    %175 = arith.mulf %173, %174 : vector<8x8xf32>
    %176 = vector.broadcast %7 : vector<1x8xf32> to vector<8x8xf32>
    %177 = arith.addf %175, %176 : vector<8x8xf32>
    %cst_54 = arith.constant dense<0xFF800000> : vector<8xf32>
    %178 = vector.multi_reduction <maximumf>, %177, %cst_54 [1] : vector<8x8xf32> to vector<8xf32>
    %179 = vector.shape_cast %178 : vector<8xf32> to vector<8x1xf32>
    %180 = vector.broadcast %179 : vector<8x1xf32> to vector<8x8xf32>
    %181 = arith.subf %177, %180 : vector<8x8xf32>
    %182 = math.exp %181 : vector<8x8xf32>
    %cst_55 = arith.constant dense<0.000000e+00> : vector<8xf32>
    %183 = vector.multi_reduction <add>, %182, %cst_55 [1] : vector<8x8xf32> to vector<8xf32>
    %184 = vector.shape_cast %183 : vector<8xf32> to vector<8x1xf32>
    %185 = tpu.reciprocal %184 {approx = true} : vector<8x1xf32> -> vector<8x1xf32>
    %186 = vector.broadcast %185 : vector<8x1xf32> to vector<8x8xf32>
    %187 = arith.mulf %182, %186 : vector<8x8xf32>
    %188 = arith.truncf %187 : vector<8x8xf32> to vector<8x8xbf16>
    %cst_56 = arith.constant dense<0.000000e+00> : vector<8x8xf32>
    %189 = tpu.matmul %188, %172, %cst_56 {dimension_numbers = #tpu.dot_dimension_numbers<[1], [0], [0], [1], [0, 0, 1, 1], [], []>} : vector<8x8xbf16>, vector<8x8xbf16>, vector<8x8xf32> -> vector<8x8xf32>
    %190 = vector.extract_strided_slice %118 {offsets = [0, 24], sizes = [8, 8], strides = [1, 1]} : vector<8x32xf32> to vector<8x8xf32>
    %191 = arith.truncf %190 : vector<8x8xf32> to vector<8x8xbf16>
    %192 = vector.extract_strided_slice %119 {offsets = [0, 24], sizes = [8, 8], strides = [1, 1]} : vector<8x32xf32> to vector<8x8xf32>
    %193 = arith.truncf %192 : vector<8x8xf32> to vector<8x8xbf16>
    %194 = vector.extract_strided_slice %120 {offsets = [0, 24], sizes = [8, 8], strides = [1, 1]} : vector<8x32xf32> to vector<8x8xf32>
    %195 = arith.truncf %194 : vector<8x8xf32> to vector<8x8xbf16>
    %cst_57 = arith.constant dense<0.000000e+00> : vector<8x8xf32>
    %196 = tpu.matmul %191, %193, %cst_57 {dimension_numbers = #tpu.dot_dimension_numbers<[1], [1], [0], [0], [0, 0, 1, 0], [], []>} : vector<8x8xbf16>, vector<8x8xbf16>, vector<8x8xf32> -> vector<8x8xf32>
    %cst_58 = arith.constant 0.353553385 : f32
    %197 = vector.broadcast %cst_58 : f32 to vector<8x8xf32>
    %198 = arith.mulf %196, %197 : vector<8x8xf32>
    %199 = vector.broadcast %7 : vector<1x8xf32> to vector<8x8xf32>
    %200 = arith.addf %198, %199 : vector<8x8xf32>
    %cst_59 = arith.constant dense<0xFF800000> : vector<8xf32>
    %201 = vector.multi_reduction <maximumf>, %200, %cst_59 [1] : vector<8x8xf32> to vector<8xf32>
    %202 = vector.shape_cast %201 : vector<8xf32> to vector<8x1xf32>
    %203 = vector.broadcast %202 : vector<8x1xf32> to vector<8x8xf32>
    %204 = arith.subf %200, %203 : vector<8x8xf32>
    %205 = math.exp %204 : vector<8x8xf32>
    %cst_60 = arith.constant dense<0.000000e+00> : vector<8xf32>
    %206 = vector.multi_reduction <add>, %205, %cst_60 [1] : vector<8x8xf32> to vector<8xf32>
    %207 = vector.shape_cast %206 : vector<8xf32> to vector<8x1xf32>
    %208 = tpu.reciprocal %207 {approx = true} : vector<8x1xf32> -> vector<8x1xf32>
    %209 = vector.broadcast %208 : vector<8x1xf32> to vector<8x8xf32>
    %210 = arith.mulf %205, %209 : vector<8x8xf32>
    %211 = arith.truncf %210 : vector<8x8xf32> to vector<8x8xbf16>
    %cst_61 = arith.constant dense<0.000000e+00> : vector<8x8xf32>
    %212 = tpu.matmul %211, %195, %cst_61 {dimension_numbers = #tpu.dot_dimension_numbers<[1], [0], [0], [1], [0, 0, 1, 1], [], []>} : vector<8x8xbf16>, vector<8x8xbf16>, vector<8x8xf32> -> vector<8x8xf32>
    %213 = tpu.concatenate %143, %166, %189, %212 in 1 : vector<8x8xf32>, vector<8x8xf32>, vector<8x8xf32>, vector<8x8xf32> -> vector<8x32xf32>
    %214 = tpu.concatenate %116, %213 in 0 : vector<8x32xf32>, vector<8x32xf32> -> vector<16x32xf32>
    %215 = arith.truncf %214 : vector<16x32xf32> to vector<16x32xbf16>
    %cst_62 = arith.constant dense<0.000000e+00> : vector<16x32xf32>
    %216 = tpu.matmul %215, %13, %cst_62 {dimension_numbers = #tpu.dot_dimension_numbers<[1], [0], [0], [1], [0, 0, 1, 1], [], []>} : vector<16x32xbf16>, vector<32x32xbf16>, vector<16x32xf32> -> vector<16x32xf32>
    %217 = vector.broadcast %15 : vector<1x32xf32> to vector<16x32xf32>
    %218 = arith.addf %216, %217 : vector<16x32xf32>
    %219 = arith.addf %1, %218 : vector<16x32xf32>
    %c0_63 = arith.constant 0 : index
    %c0_64 = arith.constant 0 : index
    %c0_65 = arith.constant 0 : index
    %220 = vector.load %arg7[%c0_63, %c0_64, %c0_65] : memref<2x1x32xf32, #tpu.memory_space<vmem>>, vector<1x1x32xf32>
    %221 = vector.shape_cast %220 : vector<1x1x32xf32> to vector<1x32xf32>
    %c0_66 = arith.constant 0 : index
    %c0_67 = arith.constant 0 : index
    %c0_68 = arith.constant 0 : index
    %222 = vector.load %arg8[%c0_66, %c0_67, %c0_68] : memref<2x1x32xf32, #tpu.memory_space<vmem>>, vector<1x1x32xf32>
    %223 = vector.shape_cast %222 : vector<1x1x32xf32> to vector<1x32xf32>
    %cst_69 = arith.constant dense<0.000000e+00> : vector<16xf32>
    %224 = vector.multi_reduction <add>, %219, %cst_69 [1] : vector<16x32xf32> to vector<16xf32>
    %225 = vector.shape_cast %224 : vector<16xf32> to vector<16x1xf32>
    %cst_70 = arith.constant 3.200000e+01 : f32
    %226 = vector.broadcast %cst_70 : f32 to vector<16x1xf32>
    %227 = arith.divf %225, %226 : vector<16x1xf32>
    %228 = vector.broadcast %227 : vector<16x1xf32> to vector<16x32xf32>
    %229 = arith.subf %219, %228 : vector<16x32xf32>
    %230 = arith.mulf %229, %229 : vector<16x32xf32>
    %cst_71 = arith.constant dense<0.000000e+00> : vector<16xf32>
    %231 = vector.multi_reduction <add>, %230, %cst_71 [1] : vector<16x32xf32> to vector<16xf32>
    %232 = vector.shape_cast %231 : vector<16xf32> to vector<16x1xf32>
    %cst_72 = arith.constant 3.200000e+01 : f32
    %233 = vector.broadcast %cst_72 : f32 to vector<16x1xf32>
    %234 = arith.divf %232, %233 : vector<16x1xf32>
    %235 = vector.broadcast %227 : vector<16x1xf32> to vector<16x32xf32>
    %236 = arith.subf %219, %235 : vector<16x32xf32>
    %cst_73 = arith.constant 9.99999974E-6 : f32
    %237 = vector.broadcast %cst_73 : f32 to vector<16x1xf32>
    %238 = arith.addf %234, %237 : vector<16x1xf32>
    %239 = math.rsqrt %238 : vector<16x1xf32>
    %240 = vector.broadcast %239 : vector<16x1xf32> to vector<16x32xf32>
    %241 = arith.mulf %236, %240 : vector<16x32xf32>
    %242 = vector.broadcast %221 : vector<1x32xf32> to vector<16x32xf32>
    %243 = arith.mulf %241, %242 : vector<16x32xf32>
    %244 = vector.broadcast %223 : vector<1x32xf32> to vector<16x32xf32>
    %245 = arith.addf %243, %244 : vector<16x32xf32>
    %c0_74 = arith.constant 0 : index
    %c0_75 = arith.constant 0 : index
    %c0_76 = arith.constant 0 : index
    %246 = vector.load %arg9[%c0_74, %c0_75, %c0_76] : memref<2x32x64xbf16, #tpu.memory_space<vmem>>, vector<1x32x64xbf16>
    %247 = vector.shape_cast %246 : vector<1x32x64xbf16> to vector<32x64xbf16>
    %c0_77 = arith.constant 0 : index
    %c0_78 = arith.constant 0 : index
    %c0_79 = arith.constant 0 : index
    %248 = vector.load %arg10[%c0_77, %c0_78, %c0_79] : memref<2x1x64xf32, #tpu.memory_space<vmem>>, vector<1x1x64xf32>
    %249 = vector.shape_cast %248 : vector<1x1x64xf32> to vector<1x64xf32>
    %c0_80 = arith.constant 0 : index
    %c0_81 = arith.constant 0 : index
    %c0_82 = arith.constant 0 : index
    %250 = vector.load %arg11[%c0_80, %c0_81, %c0_82] : memref<2x64x32xbf16, #tpu.memory_space<vmem>>, vector<1x64x32xbf16>
    %251 = vector.shape_cast %250 : vector<1x64x32xbf16> to vector<64x32xbf16>
    %c0_83 = arith.constant 0 : index
    %c0_84 = arith.constant 0 : index
    %c0_85 = arith.constant 0 : index
    %252 = vector.load %arg12[%c0_83, %c0_84, %c0_85] : memref<2x1x32xf32, #tpu.memory_space<vmem>>, vector<1x1x32xf32>
    %253 = vector.shape_cast %252 : vector<1x1x32xf32> to vector<1x32xf32>
    %254 = arith.truncf %245 : vector<16x32xf32> to vector<16x32xbf16>
    %cst_86 = arith.constant dense<0.000000e+00> : vector<16x64xf32>
    %255 = tpu.matmul %254, %247, %cst_86 {dimension_numbers = #tpu.dot_dimension_numbers<[1], [0], [0], [1], [0, 0, 1, 1], [], []>} : vector<16x32xbf16>, vector<32x64xbf16>, vector<16x64xf32> -> vector<16x64xf32>
    %256 = vector.broadcast %249 : vector<1x64xf32> to vector<16x64xf32>
    %257 = arith.addf %255, %256 : vector<16x64xf32>
    %cst_87 = arith.constant 0.000000e+00 : f32
    %258 = vector.broadcast %cst_87 : f32 to vector<16x64xf32>
    %259 = arith.maximumf %257, %258 : vector<16x64xf32>
    %260 = arith.truncf %259 : vector<16x64xf32> to vector<16x64xbf16>
    %cst_88 = arith.constant dense<0.000000e+00> : vector<16x32xf32>
    %261 = tpu.matmul %260, %251, %cst_88 {dimension_numbers = #tpu.dot_dimension_numbers<[1], [0], [0], [1], [0, 0, 1, 1], [], []>} : vector<16x64xbf16>, vector<64x32xbf16>, vector<16x32xf32> -> vector<16x32xf32>
    %262 = vector.broadcast %253 : vector<1x32xf32> to vector<16x32xf32>
    %263 = arith.addf %261, %262 : vector<16x32xf32>
    %264 = arith.addf %245, %263 : vector<16x32xf32>
    %c0_89 = arith.constant 0 : index
    %c0_90 = arith.constant 0 : index
    %c0_91 = arith.constant 0 : index
    %265 = vector.load %arg13[%c0_89, %c0_90, %c0_91] : memref<2x1x32xf32, #tpu.memory_space<vmem>>, vector<1x1x32xf32>
    %266 = vector.shape_cast %265 : vector<1x1x32xf32> to vector<1x32xf32>
    %c0_92 = arith.constant 0 : index
    %c0_93 = arith.constant 0 : index
    %c0_94 = arith.constant 0 : index
    %267 = vector.load %arg14[%c0_92, %c0_93, %c0_94] : memref<2x1x32xf32, #tpu.memory_space<vmem>>, vector<1x1x32xf32>
    %268 = vector.shape_cast %267 : vector<1x1x32xf32> to vector<1x32xf32>
    %cst_95 = arith.constant dense<0.000000e+00> : vector<16xf32>
    %269 = vector.multi_reduction <add>, %264, %cst_95 [1] : vector<16x32xf32> to vector<16xf32>
    %270 = vector.shape_cast %269 : vector<16xf32> to vector<16x1xf32>
    %cst_96 = arith.constant 3.200000e+01 : f32
    %271 = vector.broadcast %cst_96 : f32 to vector<16x1xf32>
    %272 = arith.divf %270, %271 : vector<16x1xf32>
    %273 = vector.broadcast %272 : vector<16x1xf32> to vector<16x32xf32>
    %274 = arith.subf %264, %273 : vector<16x32xf32>
    %275 = arith.mulf %274, %274 : vector<16x32xf32>
    %cst_97 = arith.constant dense<0.000000e+00> : vector<16xf32>
    %276 = vector.multi_reduction <add>, %275, %cst_97 [1] : vector<16x32xf32> to vector<16xf32>
    %277 = vector.shape_cast %276 : vector<16xf32> to vector<16x1xf32>
    %cst_98 = arith.constant 3.200000e+01 : f32
    %278 = vector.broadcast %cst_98 : f32 to vector<16x1xf32>
    %279 = arith.divf %277, %278 : vector<16x1xf32>
    %280 = vector.broadcast %272 : vector<16x1xf32> to vector<16x32xf32>
    %281 = arith.subf %264, %280 : vector<16x32xf32>
    %cst_99 = arith.constant 9.99999974E-6 : f32
    %282 = vector.broadcast %cst_99 : f32 to vector<16x1xf32>
    %283 = arith.addf %279, %282 : vector<16x1xf32>
    %284 = math.rsqrt %283 : vector<16x1xf32>
    %285 = vector.broadcast %284 : vector<16x1xf32> to vector<16x32xf32>
    %286 = arith.mulf %281, %285 : vector<16x32xf32>
    %287 = vector.broadcast %266 : vector<1x32xf32> to vector<16x32xf32>
    %288 = arith.mulf %286, %287 : vector<16x32xf32>
    %289 = vector.broadcast %268 : vector<1x32xf32> to vector<16x32xf32>
    %290 = arith.addf %288, %289 : vector<16x32xf32>
    %c1_100 = arith.constant 1 : index
    %c0_101 = arith.constant 0 : index
    %c0_102 = arith.constant 0 : index
    %291 = vector.load %arg3[%c1_100, %c0_101, %c0_102] : memref<2x32x96xbf16, #tpu.memory_space<vmem>>, vector<1x32x96xbf16>
    %292 = vector.shape_cast %291 : vector<1x32x96xbf16> to vector<32x96xbf16>
    %c1_103 = arith.constant 1 : index
    %c0_104 = arith.constant 0 : index
    %c0_105 = arith.constant 0 : index
    %293 = vector.load %arg4[%c1_103, %c0_104, %c0_105] : memref<2x1x96xf32, #tpu.memory_space<vmem>>, vector<1x1x96xf32>
    %294 = vector.shape_cast %293 : vector<1x1x96xf32> to vector<1x96xf32>
    %c1_106 = arith.constant 1 : index
    %c0_107 = arith.constant 0 : index
    %c0_108 = arith.constant 0 : index
    %295 = vector.load %arg5[%c1_106, %c0_107, %c0_108] : memref<2x32x32xbf16, #tpu.memory_space<vmem>>, vector<1x32x32xbf16>
    %296 = vector.shape_cast %295 : vector<1x32x32xbf16> to vector<32x32xbf16>
    %c1_109 = arith.constant 1 : index
    %c0_110 = arith.constant 0 : index
    %c0_111 = arith.constant 0 : index
    %297 = vector.load %arg6[%c1_109, %c0_110, %c0_111] : memref<2x1x32xf32, #tpu.memory_space<vmem>>, vector<1x1x32xf32>
    %298 = vector.shape_cast %297 : vector<1x1x32xf32> to vector<1x32xf32>
    %299 = arith.truncf %290 : vector<16x32xf32> to vector<16x32xbf16>
    %cst_112 = arith.constant dense<0.000000e+00> : vector<16x96xf32>
    %300 = tpu.matmul %299, %292, %cst_112 {dimension_numbers = #tpu.dot_dimension_numbers<[1], [0], [0], [1], [0, 0, 1, 1], [], []>} : vector<16x32xbf16>, vector<32x96xbf16>, vector<16x96xf32> -> vector<16x96xf32>
    %301 = vector.broadcast %294 : vector<1x96xf32> to vector<16x96xf32>
    %302 = arith.addf %300, %301 : vector<16x96xf32>
    %303 = vector.extract_strided_slice %302 {offsets = [0, 0], sizes = [8, 96], strides = [1, 1]} : vector<16x96xf32> to vector<8x96xf32>
    %304 = vector.extract_strided_slice %303 {offsets = [0, 0], sizes = [8, 32], strides = [1, 1]} : vector<8x96xf32> to vector<8x32xf32>
    %305 = vector.extract_strided_slice %303 {offsets = [0, 32], sizes = [8, 32], strides = [1, 1]} : vector<8x96xf32> to vector<8x32xf32>
    %306 = vector.extract_strided_slice %303 {offsets = [0, 64], sizes = [8, 32], strides = [1, 1]} : vector<8x96xf32> to vector<8x32xf32>
    %307 = vector.extract_strided_slice %304 {offsets = [0, 0], sizes = [8, 8], strides = [1, 1]} : vector<8x32xf32> to vector<8x8xf32>
    %308 = arith.truncf %307 : vector<8x8xf32> to vector<8x8xbf16>
    %309 = vector.extract_strided_slice %305 {offsets = [0, 0], sizes = [8, 8], strides = [1, 1]} : vector<8x32xf32> to vector<8x8xf32>
    %310 = arith.truncf %309 : vector<8x8xf32> to vector<8x8xbf16>
    %311 = vector.extract_strided_slice %306 {offsets = [0, 0], sizes = [8, 8], strides = [1, 1]} : vector<8x32xf32> to vector<8x8xf32>
    %312 = arith.truncf %311 : vector<8x8xf32> to vector<8x8xbf16>
    %cst_113 = arith.constant dense<0.000000e+00> : vector<8x8xf32>
    %313 = tpu.matmul %308, %310, %cst_113 {dimension_numbers = #tpu.dot_dimension_numbers<[1], [1], [0], [0], [0, 0, 1, 0], [], []>} : vector<8x8xbf16>, vector<8x8xbf16>, vector<8x8xf32> -> vector<8x8xf32>
    %cst_114 = arith.constant 0.353553385 : f32
    %314 = vector.broadcast %cst_114 : f32 to vector<8x8xf32>
    %315 = arith.mulf %313, %314 : vector<8x8xf32>
    %316 = vector.broadcast %5 : vector<1x8xf32> to vector<8x8xf32>
    %317 = arith.addf %315, %316 : vector<8x8xf32>
    %cst_115 = arith.constant dense<0xFF800000> : vector<8xf32>
    %318 = vector.multi_reduction <maximumf>, %317, %cst_115 [1] : vector<8x8xf32> to vector<8xf32>
    %319 = vector.shape_cast %318 : vector<8xf32> to vector<8x1xf32>
    %320 = vector.broadcast %319 : vector<8x1xf32> to vector<8x8xf32>
    %321 = arith.subf %317, %320 : vector<8x8xf32>
    %322 = math.exp %321 : vector<8x8xf32>
    %cst_116 = arith.constant dense<0.000000e+00> : vector<8xf32>
    %323 = vector.multi_reduction <add>, %322, %cst_116 [1] : vector<8x8xf32> to vector<8xf32>
    %324 = vector.shape_cast %323 : vector<8xf32> to vector<8x1xf32>
    %325 = tpu.reciprocal %324 {approx = true} : vector<8x1xf32> -> vector<8x1xf32>
    %326 = vector.broadcast %325 : vector<8x1xf32> to vector<8x8xf32>
    %327 = arith.mulf %322, %326 : vector<8x8xf32>
    %328 = arith.truncf %327 : vector<8x8xf32> to vector<8x8xbf16>
    %cst_117 = arith.constant dense<0.000000e+00> : vector<8x8xf32>
    %329 = tpu.matmul %328, %312, %cst_117 {dimension_numbers = #tpu.dot_dimension_numbers<[1], [0], [0], [1], [0, 0, 1, 1], [], []>} : vector<8x8xbf16>, vector<8x8xbf16>, vector<8x8xf32> -> vector<8x8xf32>
    %330 = vector.extract_strided_slice %304 {offsets = [0, 8], sizes = [8, 8], strides = [1, 1]} : vector<8x32xf32> to vector<8x8xf32>
    %331 = arith.truncf %330 : vector<8x8xf32> to vector<8x8xbf16>
    %332 = vector.extract_strided_slice %305 {offsets = [0, 8], sizes = [8, 8], strides = [1, 1]} : vector<8x32xf32> to vector<8x8xf32>
    %333 = arith.truncf %332 : vector<8x8xf32> to vector<8x8xbf16>
    %334 = vector.extract_strided_slice %306 {offsets = [0, 8], sizes = [8, 8], strides = [1, 1]} : vector<8x32xf32> to vector<8x8xf32>
    %335 = arith.truncf %334 : vector<8x8xf32> to vector<8x8xbf16>
    %cst_118 = arith.constant dense<0.000000e+00> : vector<8x8xf32>
    %336 = tpu.matmul %331, %333, %cst_118 {dimension_numbers = #tpu.dot_dimension_numbers<[1], [1], [0], [0], [0, 0, 1, 0], [], []>} : vector<8x8xbf16>, vector<8x8xbf16>, vector<8x8xf32> -> vector<8x8xf32>
    %cst_119 = arith.constant 0.353553385 : f32
    %337 = vector.broadcast %cst_119 : f32 to vector<8x8xf32>
    %338 = arith.mulf %336, %337 : vector<8x8xf32>
    %339 = vector.broadcast %5 : vector<1x8xf32> to vector<8x8xf32>
    %340 = arith.addf %338, %339 : vector<8x8xf32>
    %cst_120 = arith.constant dense<0xFF800000> : vector<8xf32>
    %341 = vector.multi_reduction <maximumf>, %340, %cst_120 [1] : vector<8x8xf32> to vector<8xf32>
    %342 = vector.shape_cast %341 : vector<8xf32> to vector<8x1xf32>
    %343 = vector.broadcast %342 : vector<8x1xf32> to vector<8x8xf32>
    %344 = arith.subf %340, %343 : vector<8x8xf32>
    %345 = math.exp %344 : vector<8x8xf32>
    %cst_121 = arith.constant dense<0.000000e+00> : vector<8xf32>
    %346 = vector.multi_reduction <add>, %345, %cst_121 [1] : vector<8x8xf32> to vector<8xf32>
    %347 = vector.shape_cast %346 : vector<8xf32> to vector<8x1xf32>
    %348 = tpu.reciprocal %347 {approx = true} : vector<8x1xf32> -> vector<8x1xf32>
    %349 = vector.broadcast %348 : vector<8x1xf32> to vector<8x8xf32>
    %350 = arith.mulf %345, %349 : vector<8x8xf32>
    %351 = arith.truncf %350 : vector<8x8xf32> to vector<8x8xbf16>
    %cst_122 = arith.constant dense<0.000000e+00> : vector<8x8xf32>
    %352 = tpu.matmul %351, %335, %cst_122 {dimension_numbers = #tpu.dot_dimension_numbers<[1], [0], [0], [1], [0, 0, 1, 1], [], []>} : vector<8x8xbf16>, vector<8x8xbf16>, vector<8x8xf32> -> vector<8x8xf32>
    %353 = vector.extract_strided_slice %304 {offsets = [0, 16], sizes = [8, 8], strides = [1, 1]} : vector<8x32xf32> to vector<8x8xf32>
    %354 = arith.truncf %353 : vector<8x8xf32> to vector<8x8xbf16>
    %355 = vector.extract_strided_slice %305 {offsets = [0, 16], sizes = [8, 8], strides = [1, 1]} : vector<8x32xf32> to vector<8x8xf32>
    %356 = arith.truncf %355 : vector<8x8xf32> to vector<8x8xbf16>
    %357 = vector.extract_strided_slice %306 {offsets = [0, 16], sizes = [8, 8], strides = [1, 1]} : vector<8x32xf32> to vector<8x8xf32>
    %358 = arith.truncf %357 : vector<8x8xf32> to vector<8x8xbf16>
    %cst_123 = arith.constant dense<0.000000e+00> : vector<8x8xf32>
    %359 = tpu.matmul %354, %356, %cst_123 {dimension_numbers = #tpu.dot_dimension_numbers<[1], [1], [0], [0], [0, 0, 1, 0], [], []>} : vector<8x8xbf16>, vector<8x8xbf16>, vector<8x8xf32> -> vector<8x8xf32>
    %cst_124 = arith.constant 0.353553385 : f32
    %360 = vector.broadcast %cst_124 : f32 to vector<8x8xf32>
    %361 = arith.mulf %359, %360 : vector<8x8xf32>
    %362 = vector.broadcast %5 : vector<1x8xf32> to vector<8x8xf32>
    %363 = arith.addf %361, %362 : vector<8x8xf32>
    %cst_125 = arith.constant dense<0xFF800000> : vector<8xf32>
    %364 = vector.multi_reduction <maximumf>, %363, %cst_125 [1] : vector<8x8xf32> to vector<8xf32>
    %365 = vector.shape_cast %364 : vector<8xf32> to vector<8x1xf32>
    %366 = vector.broadcast %365 : vector<8x1xf32> to vector<8x8xf32>
    %367 = arith.subf %363, %366 : vector<8x8xf32>
    %368 = math.exp %367 : vector<8x8xf32>
    %cst_126 = arith.constant dense<0.000000e+00> : vector<8xf32>
    %369 = vector.multi_reduction <add>, %368, %cst_126 [1] : vector<8x8xf32> to vector<8xf32>
    %370 = vector.shape_cast %369 : vector<8xf32> to vector<8x1xf32>
    %371 = tpu.reciprocal %370 {approx = true} : vector<8x1xf32> -> vector<8x1xf32>
    %372 = vector.broadcast %371 : vector<8x1xf32> to vector<8x8xf32>
    %373 = arith.mulf %368, %372 : vector<8x8xf32>
    %374 = arith.truncf %373 : vector<8x8xf32> to vector<8x8xbf16>
    %cst_127 = arith.constant dense<0.000000e+00> : vector<8x8xf32>
    %375 = tpu.matmul %374, %358, %cst_127 {dimension_numbers = #tpu.dot_dimension_numbers<[1], [0], [0], [1], [0, 0, 1, 1], [], []>} : vector<8x8xbf16>, vector<8x8xbf16>, vector<8x8xf32> -> vector<8x8xf32>
    %376 = vector.extract_strided_slice %304 {offsets = [0, 24], sizes = [8, 8], strides = [1, 1]} : vector<8x32xf32> to vector<8x8xf32>
    %377 = arith.truncf %376 : vector<8x8xf32> to vector<8x8xbf16>
    %378 = vector.extract_strided_slice %305 {offsets = [0, 24], sizes = [8, 8], strides = [1, 1]} : vector<8x32xf32> to vector<8x8xf32>
    %379 = arith.truncf %378 : vector<8x8xf32> to vector<8x8xbf16>
    %380 = vector.extract_strided_slice %306 {offsets = [0, 24], sizes = [8, 8], strides = [1, 1]} : vector<8x32xf32> to vector<8x8xf32>
    %381 = arith.truncf %380 : vector<8x8xf32> to vector<8x8xbf16>
    %cst_128 = arith.constant dense<0.000000e+00> : vector<8x8xf32>
    %382 = tpu.matmul %377, %379, %cst_128 {dimension_numbers = #tpu.dot_dimension_numbers<[1], [1], [0], [0], [0, 0, 1, 0], [], []>} : vector<8x8xbf16>, vector<8x8xbf16>, vector<8x8xf32> -> vector<8x8xf32>
    %cst_129 = arith.constant 0.353553385 : f32
    %383 = vector.broadcast %cst_129 : f32 to vector<8x8xf32>
    %384 = arith.mulf %382, %383 : vector<8x8xf32>
    %385 = vector.broadcast %5 : vector<1x8xf32> to vector<8x8xf32>
    %386 = arith.addf %384, %385 : vector<8x8xf32>
    %cst_130 = arith.constant dense<0xFF800000> : vector<8xf32>
    %387 = vector.multi_reduction <maximumf>, %386, %cst_130 [1] : vector<8x8xf32> to vector<8xf32>
    %388 = vector.shape_cast %387 : vector<8xf32> to vector<8x1xf32>
    %389 = vector.broadcast %388 : vector<8x1xf32> to vector<8x8xf32>
    %390 = arith.subf %386, %389 : vector<8x8xf32>
    %391 = math.exp %390 : vector<8x8xf32>
    %cst_131 = arith.constant dense<0.000000e+00> : vector<8xf32>
    %392 = vector.multi_reduction <add>, %391, %cst_131 [1] : vector<8x8xf32> to vector<8xf32>
    %393 = vector.shape_cast %392 : vector<8xf32> to vector<8x1xf32>
    %394 = tpu.reciprocal %393 {approx = true} : vector<8x1xf32> -> vector<8x1xf32>
    %395 = vector.broadcast %394 : vector<8x1xf32> to vector<8x8xf32>
    %396 = arith.mulf %391, %395 : vector<8x8xf32>
    %397 = arith.truncf %396 : vector<8x8xf32> to vector<8x8xbf16>
    %cst_132 = arith.constant dense<0.000000e+00> : vector<8x8xf32>
    %398 = tpu.matmul %397, %381, %cst_132 {dimension_numbers = #tpu.dot_dimension_numbers<[1], [0], [0], [1], [0, 0, 1, 1], [], []>} : vector<8x8xbf16>, vector<8x8xbf16>, vector<8x8xf32> -> vector<8x8xf32>
    %399 = tpu.concatenate %329, %352, %375, %398 in 1 : vector<8x8xf32>, vector<8x8xf32>, vector<8x8xf32>, vector<8x8xf32> -> vector<8x32xf32>
    %400 = vector.extract_strided_slice %302 {offsets = [8, 0], sizes = [8, 96], strides = [1, 1]} : vector<16x96xf32> to vector<8x96xf32>
    %401 = vector.extract_strided_slice %400 {offsets = [0, 0], sizes = [8, 32], strides = [1, 1]} : vector<8x96xf32> to vector<8x32xf32>
    %402 = vector.extract_strided_slice %400 {offsets = [0, 32], sizes = [8, 32], strides = [1, 1]} : vector<8x96xf32> to vector<8x32xf32>
    %403 = vector.extract_strided_slice %400 {offsets = [0, 64], sizes = [8, 32], strides = [1, 1]} : vector<8x96xf32> to vector<8x32xf32>
    %404 = vector.extract_strided_slice %401 {offsets = [0, 0], sizes = [8, 8], strides = [1, 1]} : vector<8x32xf32> to vector<8x8xf32>
    %405 = arith.truncf %404 : vector<8x8xf32> to vector<8x8xbf16>
    %406 = vector.extract_strided_slice %402 {offsets = [0, 0], sizes = [8, 8], strides = [1, 1]} : vector<8x32xf32> to vector<8x8xf32>
    %407 = arith.truncf %406 : vector<8x8xf32> to vector<8x8xbf16>
    %408 = vector.extract_strided_slice %403 {offsets = [0, 0], sizes = [8, 8], strides = [1, 1]} : vector<8x32xf32> to vector<8x8xf32>
    %409 = arith.truncf %408 : vector<8x8xf32> to vector<8x8xbf16>
    %cst_133 = arith.constant dense<0.000000e+00> : vector<8x8xf32>
    %410 = tpu.matmul %405, %407, %cst_133 {dimension_numbers = #tpu.dot_dimension_numbers<[1], [1], [0], [0], [0, 0, 1, 0], [], []>} : vector<8x8xbf16>, vector<8x8xbf16>, vector<8x8xf32> -> vector<8x8xf32>
    %cst_134 = arith.constant 0.353553385 : f32
    %411 = vector.broadcast %cst_134 : f32 to vector<8x8xf32>
    %412 = arith.mulf %410, %411 : vector<8x8xf32>
    %413 = vector.broadcast %7 : vector<1x8xf32> to vector<8x8xf32>
    %414 = arith.addf %412, %413 : vector<8x8xf32>
    %cst_135 = arith.constant dense<0xFF800000> : vector<8xf32>
    %415 = vector.multi_reduction <maximumf>, %414, %cst_135 [1] : vector<8x8xf32> to vector<8xf32>
    %416 = vector.shape_cast %415 : vector<8xf32> to vector<8x1xf32>
    %417 = vector.broadcast %416 : vector<8x1xf32> to vector<8x8xf32>
    %418 = arith.subf %414, %417 : vector<8x8xf32>
    %419 = math.exp %418 : vector<8x8xf32>
    %cst_136 = arith.constant dense<0.000000e+00> : vector<8xf32>
    %420 = vector.multi_reduction <add>, %419, %cst_136 [1] : vector<8x8xf32> to vector<8xf32>
    %421 = vector.shape_cast %420 : vector<8xf32> to vector<8x1xf32>
    %422 = tpu.reciprocal %421 {approx = true} : vector<8x1xf32> -> vector<8x1xf32>
    %423 = vector.broadcast %422 : vector<8x1xf32> to vector<8x8xf32>
    %424 = arith.mulf %419, %423 : vector<8x8xf32>
    %425 = arith.truncf %424 : vector<8x8xf32> to vector<8x8xbf16>
    %cst_137 = arith.constant dense<0.000000e+00> : vector<8x8xf32>
    %426 = tpu.matmul %425, %409, %cst_137 {dimension_numbers = #tpu.dot_dimension_numbers<[1], [0], [0], [1], [0, 0, 1, 1], [], []>} : vector<8x8xbf16>, vector<8x8xbf16>, vector<8x8xf32> -> vector<8x8xf32>
    %427 = vector.extract_strided_slice %401 {offsets = [0, 8], sizes = [8, 8], strides = [1, 1]} : vector<8x32xf32> to vector<8x8xf32>
    %428 = arith.truncf %427 : vector<8x8xf32> to vector<8x8xbf16>
    %429 = vector.extract_strided_slice %402 {offsets = [0, 8], sizes = [8, 8], strides = [1, 1]} : vector<8x32xf32> to vector<8x8xf32>
    %430 = arith.truncf %429 : vector<8x8xf32> to vector<8x8xbf16>
    %431 = vector.extract_strided_slice %403 {offsets = [0, 8], sizes = [8, 8], strides = [1, 1]} : vector<8x32xf32> to vector<8x8xf32>
    %432 = arith.truncf %431 : vector<8x8xf32> to vector<8x8xbf16>
    %cst_138 = arith.constant dense<0.000000e+00> : vector<8x8xf32>
    %433 = tpu.matmul %428, %430, %cst_138 {dimension_numbers = #tpu.dot_dimension_numbers<[1], [1], [0], [0], [0, 0, 1, 0], [], []>} : vector<8x8xbf16>, vector<8x8xbf16>, vector<8x8xf32> -> vector<8x8xf32>
    %cst_139 = arith.constant 0.353553385 : f32
    %434 = vector.broadcast %cst_139 : f32 to vector<8x8xf32>
    %435 = arith.mulf %433, %434 : vector<8x8xf32>
    %436 = vector.broadcast %7 : vector<1x8xf32> to vector<8x8xf32>
    %437 = arith.addf %435, %436 : vector<8x8xf32>
    %cst_140 = arith.constant dense<0xFF800000> : vector<8xf32>
    %438 = vector.multi_reduction <maximumf>, %437, %cst_140 [1] : vector<8x8xf32> to vector<8xf32>
    %439 = vector.shape_cast %438 : vector<8xf32> to vector<8x1xf32>
    %440 = vector.broadcast %439 : vector<8x1xf32> to vector<8x8xf32>
    %441 = arith.subf %437, %440 : vector<8x8xf32>
    %442 = math.exp %441 : vector<8x8xf32>
    %cst_141 = arith.constant dense<0.000000e+00> : vector<8xf32>
    %443 = vector.multi_reduction <add>, %442, %cst_141 [1] : vector<8x8xf32> to vector<8xf32>
    %444 = vector.shape_cast %443 : vector<8xf32> to vector<8x1xf32>
    %445 = tpu.reciprocal %444 {approx = true} : vector<8x1xf32> -> vector<8x1xf32>
    %446 = vector.broadcast %445 : vector<8x1xf32> to vector<8x8xf32>
    %447 = arith.mulf %442, %446 : vector<8x8xf32>
    %448 = arith.truncf %447 : vector<8x8xf32> to vector<8x8xbf16>
    %cst_142 = arith.constant dense<0.000000e+00> : vector<8x8xf32>
    %449 = tpu.matmul %448, %432, %cst_142 {dimension_numbers = #tpu.dot_dimension_numbers<[1], [0], [0], [1], [0, 0, 1, 1], [], []>} : vector<8x8xbf16>, vector<8x8xbf16>, vector<8x8xf32> -> vector<8x8xf32>
    %450 = vector.extract_strided_slice %401 {offsets = [0, 16], sizes = [8, 8], strides = [1, 1]} : vector<8x32xf32> to vector<8x8xf32>
    %451 = arith.truncf %450 : vector<8x8xf32> to vector<8x8xbf16>
    %452 = vector.extract_strided_slice %402 {offsets = [0, 16], sizes = [8, 8], strides = [1, 1]} : vector<8x32xf32> to vector<8x8xf32>
    %453 = arith.truncf %452 : vector<8x8xf32> to vector<8x8xbf16>
    %454 = vector.extract_strided_slice %403 {offsets = [0, 16], sizes = [8, 8], strides = [1, 1]} : vector<8x32xf32> to vector<8x8xf32>
    %455 = arith.truncf %454 : vector<8x8xf32> to vector<8x8xbf16>
    %cst_143 = arith.constant dense<0.000000e+00> : vector<8x8xf32>
    %456 = tpu.matmul %451, %453, %cst_143 {dimension_numbers = #tpu.dot_dimension_numbers<[1], [1], [0], [0], [0, 0, 1, 0], [], []>} : vector<8x8xbf16>, vector<8x8xbf16>, vector<8x8xf32> -> vector<8x8xf32>
    %cst_144 = arith.constant 0.353553385 : f32
    %457 = vector.broadcast %cst_144 : f32 to vector<8x8xf32>
    %458 = arith.mulf %456, %457 : vector<8x8xf32>
    %459 = vector.broadcast %7 : vector<1x8xf32> to vector<8x8xf32>
    %460 = arith.addf %458, %459 : vector<8x8xf32>
    %cst_145 = arith.constant dense<0xFF800000> : vector<8xf32>
    %461 = vector.multi_reduction <maximumf>, %460, %cst_145 [1] : vector<8x8xf32> to vector<8xf32>
    %462 = vector.shape_cast %461 : vector<8xf32> to vector<8x1xf32>
    %463 = vector.broadcast %462 : vector<8x1xf32> to vector<8x8xf32>
    %464 = arith.subf %460, %463 : vector<8x8xf32>
    %465 = math.exp %464 : vector<8x8xf32>
    %cst_146 = arith.constant dense<0.000000e+00> : vector<8xf32>
    %466 = vector.multi_reduction <add>, %465, %cst_146 [1] : vector<8x8xf32> to vector<8xf32>
    %467 = vector.shape_cast %466 : vector<8xf32> to vector<8x1xf32>
    %468 = tpu.reciprocal %467 {approx = true} : vector<8x1xf32> -> vector<8x1xf32>
    %469 = vector.broadcast %468 : vector<8x1xf32> to vector<8x8xf32>
    %470 = arith.mulf %465, %469 : vector<8x8xf32>
    %471 = arith.truncf %470 : vector<8x8xf32> to vector<8x8xbf16>
    %cst_147 = arith.constant dense<0.000000e+00> : vector<8x8xf32>
    %472 = tpu.matmul %471, %455, %cst_147 {dimension_numbers = #tpu.dot_dimension_numbers<[1], [0], [0], [1], [0, 0, 1, 1], [], []>} : vector<8x8xbf16>, vector<8x8xbf16>, vector<8x8xf32> -> vector<8x8xf32>
    %473 = vector.extract_strided_slice %401 {offsets = [0, 24], sizes = [8, 8], strides = [1, 1]} : vector<8x32xf32> to vector<8x8xf32>
    %474 = arith.truncf %473 : vector<8x8xf32> to vector<8x8xbf16>
    %475 = vector.extract_strided_slice %402 {offsets = [0, 24], sizes = [8, 8], strides = [1, 1]} : vector<8x32xf32> to vector<8x8xf32>
    %476 = arith.truncf %475 : vector<8x8xf32> to vector<8x8xbf16>
    %477 = vector.extract_strided_slice %403 {offsets = [0, 24], sizes = [8, 8], strides = [1, 1]} : vector<8x32xf32> to vector<8x8xf32>
    %478 = arith.truncf %477 : vector<8x8xf32> to vector<8x8xbf16>
    %cst_148 = arith.constant dense<0.000000e+00> : vector<8x8xf32>
    %479 = tpu.matmul %474, %476, %cst_148 {dimension_numbers = #tpu.dot_dimension_numbers<[1], [1], [0], [0], [0, 0, 1, 0], [], []>} : vector<8x8xbf16>, vector<8x8xbf16>, vector<8x8xf32> -> vector<8x8xf32>
    %cst_149 = arith.constant 0.353553385 : f32
    %480 = vector.broadcast %cst_149 : f32 to vector<8x8xf32>
    %481 = arith.mulf %479, %480 : vector<8x8xf32>
    %482 = vector.broadcast %7 : vector<1x8xf32> to vector<8x8xf32>
    %483 = arith.addf %481, %482 : vector<8x8xf32>
    %cst_150 = arith.constant dense<0xFF800000> : vector<8xf32>
    %484 = vector.multi_reduction <maximumf>, %483, %cst_150 [1] : vector<8x8xf32> to vector<8xf32>
    %485 = vector.shape_cast %484 : vector<8xf32> to vector<8x1xf32>
    %486 = vector.broadcast %485 : vector<8x1xf32> to vector<8x8xf32>
    %487 = arith.subf %483, %486 : vector<8x8xf32>
    %488 = math.exp %487 : vector<8x8xf32>
    %cst_151 = arith.constant dense<0.000000e+00> : vector<8xf32>
    %489 = vector.multi_reduction <add>, %488, %cst_151 [1] : vector<8x8xf32> to vector<8xf32>
    %490 = vector.shape_cast %489 : vector<8xf32> to vector<8x1xf32>
    %491 = tpu.reciprocal %490 {approx = true} : vector<8x1xf32> -> vector<8x1xf32>
    %492 = vector.broadcast %491 : vector<8x1xf32> to vector<8x8xf32>
    %493 = arith.mulf %488, %492 : vector<8x8xf32>
    %494 = arith.truncf %493 : vector<8x8xf32> to vector<8x8xbf16>
    %cst_152 = arith.constant dense<0.000000e+00> : vector<8x8xf32>
    %495 = tpu.matmul %494, %478, %cst_152 {dimension_numbers = #tpu.dot_dimension_numbers<[1], [0], [0], [1], [0, 0, 1, 1], [], []>} : vector<8x8xbf16>, vector<8x8xbf16>, vector<8x8xf32> -> vector<8x8xf32>
    %496 = tpu.concatenate %426, %449, %472, %495 in 1 : vector<8x8xf32>, vector<8x8xf32>, vector<8x8xf32>, vector<8x8xf32> -> vector<8x32xf32>
    %497 = tpu.concatenate %399, %496 in 0 : vector<8x32xf32>, vector<8x32xf32> -> vector<16x32xf32>
    %498 = arith.truncf %497 : vector<16x32xf32> to vector<16x32xbf16>
    %cst_153 = arith.constant dense<0.000000e+00> : vector<16x32xf32>
    %499 = tpu.matmul %498, %296, %cst_153 {dimension_numbers = #tpu.dot_dimension_numbers<[1], [0], [0], [1], [0, 0, 1, 1], [], []>} : vector<16x32xbf16>, vector<32x32xbf16>, vector<16x32xf32> -> vector<16x32xf32>
    %500 = vector.broadcast %298 : vector<1x32xf32> to vector<16x32xf32>
    %501 = arith.addf %499, %500 : vector<16x32xf32>
    %502 = arith.addf %290, %501 : vector<16x32xf32>
    %c1_154 = arith.constant 1 : index
    %c0_155 = arith.constant 0 : index
    %c0_156 = arith.constant 0 : index
    %503 = vector.load %arg7[%c1_154, %c0_155, %c0_156] : memref<2x1x32xf32, #tpu.memory_space<vmem>>, vector<1x1x32xf32>
    %504 = vector.shape_cast %503 : vector<1x1x32xf32> to vector<1x32xf32>
    %c1_157 = arith.constant 1 : index
    %c0_158 = arith.constant 0 : index
    %c0_159 = arith.constant 0 : index
    %505 = vector.load %arg8[%c1_157, %c0_158, %c0_159] : memref<2x1x32xf32, #tpu.memory_space<vmem>>, vector<1x1x32xf32>
    %506 = vector.shape_cast %505 : vector<1x1x32xf32> to vector<1x32xf32>
    %cst_160 = arith.constant dense<0.000000e+00> : vector<16xf32>
    %507 = vector.multi_reduction <add>, %502, %cst_160 [1] : vector<16x32xf32> to vector<16xf32>
    %508 = vector.shape_cast %507 : vector<16xf32> to vector<16x1xf32>
    %cst_161 = arith.constant 3.200000e+01 : f32
    %509 = vector.broadcast %cst_161 : f32 to vector<16x1xf32>
    %510 = arith.divf %508, %509 : vector<16x1xf32>
    %511 = vector.broadcast %510 : vector<16x1xf32> to vector<16x32xf32>
    %512 = arith.subf %502, %511 : vector<16x32xf32>
    %513 = arith.mulf %512, %512 : vector<16x32xf32>
    %cst_162 = arith.constant dense<0.000000e+00> : vector<16xf32>
    %514 = vector.multi_reduction <add>, %513, %cst_162 [1] : vector<16x32xf32> to vector<16xf32>
    %515 = vector.shape_cast %514 : vector<16xf32> to vector<16x1xf32>
    %cst_163 = arith.constant 3.200000e+01 : f32
    %516 = vector.broadcast %cst_163 : f32 to vector<16x1xf32>
    %517 = arith.divf %515, %516 : vector<16x1xf32>
    %518 = vector.broadcast %510 : vector<16x1xf32> to vector<16x32xf32>
    %519 = arith.subf %502, %518 : vector<16x32xf32>
    %cst_164 = arith.constant 9.99999974E-6 : f32
    %520 = vector.broadcast %cst_164 : f32 to vector<16x1xf32>
    %521 = arith.addf %517, %520 : vector<16x1xf32>
    %522 = math.rsqrt %521 : vector<16x1xf32>
    %523 = vector.broadcast %522 : vector<16x1xf32> to vector<16x32xf32>
    %524 = arith.mulf %519, %523 : vector<16x32xf32>
    %525 = vector.broadcast %504 : vector<1x32xf32> to vector<16x32xf32>
    %526 = arith.mulf %524, %525 : vector<16x32xf32>
    %527 = vector.broadcast %506 : vector<1x32xf32> to vector<16x32xf32>
    %528 = arith.addf %526, %527 : vector<16x32xf32>
    %c1_165 = arith.constant 1 : index
    %c0_166 = arith.constant 0 : index
    %c0_167 = arith.constant 0 : index
    %529 = vector.load %arg9[%c1_165, %c0_166, %c0_167] : memref<2x32x64xbf16, #tpu.memory_space<vmem>>, vector<1x32x64xbf16>
    %530 = vector.shape_cast %529 : vector<1x32x64xbf16> to vector<32x64xbf16>
    %c1_168 = arith.constant 1 : index
    %c0_169 = arith.constant 0 : index
    %c0_170 = arith.constant 0 : index
    %531 = vector.load %arg10[%c1_168, %c0_169, %c0_170] : memref<2x1x64xf32, #tpu.memory_space<vmem>>, vector<1x1x64xf32>
    %532 = vector.shape_cast %531 : vector<1x1x64xf32> to vector<1x64xf32>
    %c1_171 = arith.constant 1 : index
    %c0_172 = arith.constant 0 : index
    %c0_173 = arith.constant 0 : index
    %533 = vector.load %arg11[%c1_171, %c0_172, %c0_173] : memref<2x64x32xbf16, #tpu.memory_space<vmem>>, vector<1x64x32xbf16>
    %534 = vector.shape_cast %533 : vector<1x64x32xbf16> to vector<64x32xbf16>
    %c1_174 = arith.constant 1 : index
    %c0_175 = arith.constant 0 : index
    %c0_176 = arith.constant 0 : index
    %535 = vector.load %arg12[%c1_174, %c0_175, %c0_176] : memref<2x1x32xf32, #tpu.memory_space<vmem>>, vector<1x1x32xf32>
    %536 = vector.shape_cast %535 : vector<1x1x32xf32> to vector<1x32xf32>
    %537 = arith.truncf %528 : vector<16x32xf32> to vector<16x32xbf16>
    %cst_177 = arith.constant dense<0.000000e+00> : vector<16x64xf32>
    %538 = tpu.matmul %537, %530, %cst_177 {dimension_numbers = #tpu.dot_dimension_numbers<[1], [0], [0], [1], [0, 0, 1, 1], [], []>} : vector<16x32xbf16>, vector<32x64xbf16>, vector<16x64xf32> -> vector<16x64xf32>
    %539 = vector.broadcast %532 : vector<1x64xf32> to vector<16x64xf32>
    %540 = arith.addf %538, %539 : vector<16x64xf32>
    %cst_178 = arith.constant 0.000000e+00 : f32
    %541 = vector.broadcast %cst_178 : f32 to vector<16x64xf32>
    %542 = arith.maximumf %540, %541 : vector<16x64xf32>
    %543 = arith.truncf %542 : vector<16x64xf32> to vector<16x64xbf16>
    %cst_179 = arith.constant dense<0.000000e+00> : vector<16x32xf32>
    %544 = tpu.matmul %543, %534, %cst_179 {dimension_numbers = #tpu.dot_dimension_numbers<[1], [0], [0], [1], [0, 0, 1, 1], [], []>} : vector<16x64xbf16>, vector<64x32xbf16>, vector<16x32xf32> -> vector<16x32xf32>
    %545 = vector.broadcast %536 : vector<1x32xf32> to vector<16x32xf32>
    %546 = arith.addf %544, %545 : vector<16x32xf32>
    %547 = arith.addf %528, %546 : vector<16x32xf32>
    %c1_180 = arith.constant 1 : index
    %c0_181 = arith.constant 0 : index
    %c0_182 = arith.constant 0 : index
    %548 = vector.load %arg13[%c1_180, %c0_181, %c0_182] : memref<2x1x32xf32, #tpu.memory_space<vmem>>, vector<1x1x32xf32>
    %549 = vector.shape_cast %548 : vector<1x1x32xf32> to vector<1x32xf32>
    %c1_183 = arith.constant 1 : index
    %c0_184 = arith.constant 0 : index
    %c0_185 = arith.constant 0 : index
    %550 = vector.load %arg14[%c1_183, %c0_184, %c0_185] : memref<2x1x32xf32, #tpu.memory_space<vmem>>, vector<1x1x32xf32>
    %551 = vector.shape_cast %550 : vector<1x1x32xf32> to vector<1x32xf32>
    %cst_186 = arith.constant dense<0.000000e+00> : vector<16xf32>
    %552 = vector.multi_reduction <add>, %547, %cst_186 [1] : vector<16x32xf32> to vector<16xf32>
    %553 = vector.shape_cast %552 : vector<16xf32> to vector<16x1xf32>
    %cst_187 = arith.constant 3.200000e+01 : f32
    %554 = vector.broadcast %cst_187 : f32 to vector<16x1xf32>
    %555 = arith.divf %553, %554 : vector<16x1xf32>
    %556 = vector.broadcast %555 : vector<16x1xf32> to vector<16x32xf32>
    %557 = arith.subf %547, %556 : vector<16x32xf32>
    %558 = arith.mulf %557, %557 : vector<16x32xf32>
    %cst_188 = arith.constant dense<0.000000e+00> : vector<16xf32>
    %559 = vector.multi_reduction <add>, %558, %cst_188 [1] : vector<16x32xf32> to vector<16xf32>
    %560 = vector.shape_cast %559 : vector<16xf32> to vector<16x1xf32>
    %cst_189 = arith.constant 3.200000e+01 : f32
    %561 = vector.broadcast %cst_189 : f32 to vector<16x1xf32>
    %562 = arith.divf %560, %561 : vector<16x1xf32>
    %563 = vector.broadcast %555 : vector<16x1xf32> to vector<16x32xf32>
    %564 = arith.subf %547, %563 : vector<16x32xf32>
    %cst_190 = arith.constant 9.99999974E-6 : f32
    %565 = vector.broadcast %cst_190 : f32 to vector<16x1xf32>
    %566 = arith.addf %562, %565 : vector<16x1xf32>
    %567 = math.rsqrt %566 : vector<16x1xf32>
    %568 = vector.broadcast %567 : vector<16x1xf32> to vector<16x32xf32>
    %569 = arith.mulf %564, %568 : vector<16x32xf32>
    %570 = vector.broadcast %549 : vector<1x32xf32> to vector<16x32xf32>
    %571 = arith.mulf %569, %570 : vector<16x32xf32>
    %572 = vector.broadcast %551 : vector<1x32xf32> to vector<16x32xf32>
    %573 = arith.addf %571, %572 : vector<16x32xf32>
    %c0_191 = arith.constant 0 : index
    %c0_192 = arith.constant 0 : index
    %574 = vector.load %arg15[%c0_191, %c0_192] : memref<1x32xf32, #tpu.memory_space<vmem>>, vector<1x32xf32>
    %c0_193 = arith.constant 0 : index
    %c0_194 = arith.constant 0 : index
    %575 = vector.load %arg16[%c0_193, %c0_194] : memref<1x32xf32, #tpu.memory_space<vmem>>, vector<1x32xf32>
    %cst_195 = arith.constant dense<0.000000e+00> : vector<16xf32>
    %576 = vector.multi_reduction <add>, %573, %cst_195 [1] : vector<16x32xf32> to vector<16xf32>
    %577 = vector.shape_cast %576 : vector<16xf32> to vector<16x1xf32>
    %cst_196 = arith.constant 3.200000e+01 : f32
    %578 = vector.broadcast %cst_196 : f32 to vector<16x1xf32>
    %579 = arith.divf %577, %578 : vector<16x1xf32>
    %580 = vector.broadcast %579 : vector<16x1xf32> to vector<16x32xf32>
    %581 = arith.subf %573, %580 : vector<16x32xf32>
    %582 = arith.mulf %581, %581 : vector<16x32xf32>
    %cst_197 = arith.constant dense<0.000000e+00> : vector<16xf32>
    %583 = vector.multi_reduction <add>, %582, %cst_197 [1] : vector<16x32xf32> to vector<16xf32>
    %584 = vector.shape_cast %583 : vector<16xf32> to vector<16x1xf32>
    %cst_198 = arith.constant 3.200000e+01 : f32
    %585 = vector.broadcast %cst_198 : f32 to vector<16x1xf32>
    %586 = arith.divf %584, %585 : vector<16x1xf32>
    %587 = vector.broadcast %579 : vector<16x1xf32> to vector<16x32xf32>
    %588 = arith.subf %573, %587 : vector<16x32xf32>
    %cst_199 = arith.constant 9.99999974E-6 : f32
    %589 = vector.broadcast %cst_199 : f32 to vector<16x1xf32>
    %590 = arith.addf %586, %589 : vector<16x1xf32>
    %591 = math.rsqrt %590 : vector<16x1xf32>
    %592 = vector.broadcast %591 : vector<16x1xf32> to vector<16x32xf32>
    %593 = arith.mulf %588, %592 : vector<16x32xf32>
    %594 = vector.broadcast %574 : vector<1x32xf32> to vector<16x32xf32>
    %595 = arith.mulf %593, %594 : vector<16x32xf32>
    %596 = vector.broadcast %575 : vector<1x32xf32> to vector<16x32xf32>
    %597 = arith.addf %595, %596 : vector<16x32xf32>
    %598 = tpu.iota {dimensions = array<i32: 0>} : vector<8x8xi32>
    %599 = tpu.iota {dimensions = array<i32: 1>} : vector<8x8xi32>
    %600 = arith.cmpi sgt, %599, %598 : vector<8x8xi32>
    %cst_200 = arith.constant -1.000000e+30 : f32
    %cst_201 = arith.constant 0.000000e+00 : f32
    %601 = vector.broadcast %cst_200 : f32 to vector<8x8xf32>
    %602 = vector.broadcast %cst_201 : f32 to vector<8x8xf32>
    %603 = arith.select %600, %601, %602 : vector<8x8xi1>, vector<8x8xf32>
    %c0_202 = arith.constant 0 : index
    %c0_203 = arith.constant 0 : index
    %c0_204 = arith.constant 0 : index
    %604 = vector.load %arg17[%c0_202, %c0_203, %c0_204] : memref<2x32x96xbf16, #tpu.memory_space<vmem>>, vector<1x32x96xbf16>
    %605 = vector.shape_cast %604 : vector<1x32x96xbf16> to vector<32x96xbf16>
    %c0_205 = arith.constant 0 : index
    %c0_206 = arith.constant 0 : index
    %c0_207 = arith.constant 0 : index
    %606 = vector.load %arg18[%c0_205, %c0_206, %c0_207] : memref<2x1x96xf32, #tpu.memory_space<vmem>>, vector<1x1x96xf32>
    %607 = vector.shape_cast %606 : vector<1x1x96xf32> to vector<1x96xf32>
    %c0_208 = arith.constant 0 : index
    %c0_209 = arith.constant 0 : index
    %c0_210 = arith.constant 0 : index
    %608 = vector.load %arg19[%c0_208, %c0_209, %c0_210] : memref<2x32x32xbf16, #tpu.memory_space<vmem>>, vector<1x32x32xbf16>
    %609 = vector.shape_cast %608 : vector<1x32x32xbf16> to vector<32x32xbf16>
    %c0_211 = arith.constant 0 : index
    %c0_212 = arith.constant 0 : index
    %c0_213 = arith.constant 0 : index
    %610 = vector.load %arg20[%c0_211, %c0_212, %c0_213] : memref<2x1x32xf32, #tpu.memory_space<vmem>>, vector<1x1x32xf32>
    %611 = vector.shape_cast %610 : vector<1x1x32xf32> to vector<1x32xf32>
    %612 = arith.truncf %3 : vector<16x32xf32> to vector<16x32xbf16>
    %cst_214 = arith.constant dense<0.000000e+00> : vector<16x96xf32>
    %613 = tpu.matmul %612, %605, %cst_214 {dimension_numbers = #tpu.dot_dimension_numbers<[1], [0], [0], [1], [0, 0, 1, 1], [], []>} : vector<16x32xbf16>, vector<32x96xbf16>, vector<16x96xf32> -> vector<16x96xf32>
    %614 = vector.broadcast %607 : vector<1x96xf32> to vector<16x96xf32>
    %615 = arith.addf %613, %614 : vector<16x96xf32>
    %616 = vector.extract_strided_slice %615 {offsets = [0, 0], sizes = [8, 96], strides = [1, 1]} : vector<16x96xf32> to vector<8x96xf32>
    %617 = vector.extract_strided_slice %616 {offsets = [0, 0], sizes = [8, 32], strides = [1, 1]} : vector<8x96xf32> to vector<8x32xf32>
    %618 = vector.extract_strided_slice %616 {offsets = [0, 32], sizes = [8, 32], strides = [1, 1]} : vector<8x96xf32> to vector<8x32xf32>
    %619 = vector.extract_strided_slice %616 {offsets = [0, 64], sizes = [8, 32], strides = [1, 1]} : vector<8x96xf32> to vector<8x32xf32>
    %620 = vector.extract_strided_slice %617 {offsets = [0, 0], sizes = [8, 8], strides = [1, 1]} : vector<8x32xf32> to vector<8x8xf32>
    %621 = arith.truncf %620 : vector<8x8xf32> to vector<8x8xbf16>
    %622 = vector.extract_strided_slice %618 {offsets = [0, 0], sizes = [8, 8], strides = [1, 1]} : vector<8x32xf32> to vector<8x8xf32>
    %623 = arith.truncf %622 : vector<8x8xf32> to vector<8x8xbf16>
    %624 = vector.extract_strided_slice %619 {offsets = [0, 0], sizes = [8, 8], strides = [1, 1]} : vector<8x32xf32> to vector<8x8xf32>
    %625 = arith.truncf %624 : vector<8x8xf32> to vector<8x8xbf16>
    %cst_215 = arith.constant dense<0.000000e+00> : vector<8x8xf32>
    %626 = tpu.matmul %621, %623, %cst_215 {dimension_numbers = #tpu.dot_dimension_numbers<[1], [1], [0], [0], [0, 0, 1, 0], [], []>} : vector<8x8xbf16>, vector<8x8xbf16>, vector<8x8xf32> -> vector<8x8xf32>
    %cst_216 = arith.constant 0.353553385 : f32
    %627 = vector.broadcast %cst_216 : f32 to vector<8x8xf32>
    %628 = arith.mulf %626, %627 : vector<8x8xf32>
    %629 = arith.addf %628, %603 : vector<8x8xf32>
    %cst_217 = arith.constant dense<0xFF800000> : vector<8xf32>
    %630 = vector.multi_reduction <maximumf>, %629, %cst_217 [1] : vector<8x8xf32> to vector<8xf32>
    %631 = vector.shape_cast %630 : vector<8xf32> to vector<8x1xf32>
    %632 = vector.broadcast %631 : vector<8x1xf32> to vector<8x8xf32>
    %633 = arith.subf %629, %632 : vector<8x8xf32>
    %634 = math.exp %633 : vector<8x8xf32>
    %cst_218 = arith.constant dense<0.000000e+00> : vector<8xf32>
    %635 = vector.multi_reduction <add>, %634, %cst_218 [1] : vector<8x8xf32> to vector<8xf32>
    %636 = vector.shape_cast %635 : vector<8xf32> to vector<8x1xf32>
    %637 = tpu.reciprocal %636 {approx = true} : vector<8x1xf32> -> vector<8x1xf32>
    %638 = vector.broadcast %637 : vector<8x1xf32> to vector<8x8xf32>
    %639 = arith.mulf %634, %638 : vector<8x8xf32>
    %640 = arith.truncf %639 : vector<8x8xf32> to vector<8x8xbf16>
    %cst_219 = arith.constant dense<0.000000e+00> : vector<8x8xf32>
    %641 = tpu.matmul %640, %625, %cst_219 {dimension_numbers = #tpu.dot_dimension_numbers<[1], [0], [0], [1], [0, 0, 1, 1], [], []>} : vector<8x8xbf16>, vector<8x8xbf16>, vector<8x8xf32> -> vector<8x8xf32>
    %642 = vector.extract_strided_slice %617 {offsets = [0, 8], sizes = [8, 8], strides = [1, 1]} : vector<8x32xf32> to vector<8x8xf32>
    %643 = arith.truncf %642 : vector<8x8xf32> to vector<8x8xbf16>
    %644 = vector.extract_strided_slice %618 {offsets = [0, 8], sizes = [8, 8], strides = [1, 1]} : vector<8x32xf32> to vector<8x8xf32>
    %645 = arith.truncf %644 : vector<8x8xf32> to vector<8x8xbf16>
    %646 = vector.extract_strided_slice %619 {offsets = [0, 8], sizes = [8, 8], strides = [1, 1]} : vector<8x32xf32> to vector<8x8xf32>
    %647 = arith.truncf %646 : vector<8x8xf32> to vector<8x8xbf16>
    %cst_220 = arith.constant dense<0.000000e+00> : vector<8x8xf32>
    %648 = tpu.matmul %643, %645, %cst_220 {dimension_numbers = #tpu.dot_dimension_numbers<[1], [1], [0], [0], [0, 0, 1, 0], [], []>} : vector<8x8xbf16>, vector<8x8xbf16>, vector<8x8xf32> -> vector<8x8xf32>
    %cst_221 = arith.constant 0.353553385 : f32
    %649 = vector.broadcast %cst_221 : f32 to vector<8x8xf32>
    %650 = arith.mulf %648, %649 : vector<8x8xf32>
    %651 = arith.addf %650, %603 : vector<8x8xf32>
    %cst_222 = arith.constant dense<0xFF800000> : vector<8xf32>
    %652 = vector.multi_reduction <maximumf>, %651, %cst_222 [1] : vector<8x8xf32> to vector<8xf32>
    %653 = vector.shape_cast %652 : vector<8xf32> to vector<8x1xf32>
    %654 = vector.broadcast %653 : vector<8x1xf32> to vector<8x8xf32>
    %655 = arith.subf %651, %654 : vector<8x8xf32>
    %656 = math.exp %655 : vector<8x8xf32>
    %cst_223 = arith.constant dense<0.000000e+00> : vector<8xf32>
    %657 = vector.multi_reduction <add>, %656, %cst_223 [1] : vector<8x8xf32> to vector<8xf32>
    %658 = vector.shape_cast %657 : vector<8xf32> to vector<8x1xf32>
    %659 = tpu.reciprocal %658 {approx = true} : vector<8x1xf32> -> vector<8x1xf32>
    %660 = vector.broadcast %659 : vector<8x1xf32> to vector<8x8xf32>
    %661 = arith.mulf %656, %660 : vector<8x8xf32>
    %662 = arith.truncf %661 : vector<8x8xf32> to vector<8x8xbf16>
    %cst_224 = arith.constant dense<0.000000e+00> : vector<8x8xf32>
    %663 = tpu.matmul %662, %647, %cst_224 {dimension_numbers = #tpu.dot_dimension_numbers<[1], [0], [0], [1], [0, 0, 1, 1], [], []>} : vector<8x8xbf16>, vector<8x8xbf16>, vector<8x8xf32> -> vector<8x8xf32>
    %664 = vector.extract_strided_slice %617 {offsets = [0, 16], sizes = [8, 8], strides = [1, 1]} : vector<8x32xf32> to vector<8x8xf32>
    %665 = arith.truncf %664 : vector<8x8xf32> to vector<8x8xbf16>
    %666 = vector.extract_strided_slice %618 {offsets = [0, 16], sizes = [8, 8], strides = [1, 1]} : vector<8x32xf32> to vector<8x8xf32>
    %667 = arith.truncf %666 : vector<8x8xf32> to vector<8x8xbf16>
    %668 = vector.extract_strided_slice %619 {offsets = [0, 16], sizes = [8, 8], strides = [1, 1]} : vector<8x32xf32> to vector<8x8xf32>
    %669 = arith.truncf %668 : vector<8x8xf32> to vector<8x8xbf16>
    %cst_225 = arith.constant dense<0.000000e+00> : vector<8x8xf32>
    %670 = tpu.matmul %665, %667, %cst_225 {dimension_numbers = #tpu.dot_dimension_numbers<[1], [1], [0], [0], [0, 0, 1, 0], [], []>} : vector<8x8xbf16>, vector<8x8xbf16>, vector<8x8xf32> -> vector<8x8xf32>
    %cst_226 = arith.constant 0.353553385 : f32
    %671 = vector.broadcast %cst_226 : f32 to vector<8x8xf32>
    %672 = arith.mulf %670, %671 : vector<8x8xf32>
    %673 = arith.addf %672, %603 : vector<8x8xf32>
    %cst_227 = arith.constant dense<0xFF800000> : vector<8xf32>
    %674 = vector.multi_reduction <maximumf>, %673, %cst_227 [1] : vector<8x8xf32> to vector<8xf32>
    %675 = vector.shape_cast %674 : vector<8xf32> to vector<8x1xf32>
    %676 = vector.broadcast %675 : vector<8x1xf32> to vector<8x8xf32>
    %677 = arith.subf %673, %676 : vector<8x8xf32>
    %678 = math.exp %677 : vector<8x8xf32>
    %cst_228 = arith.constant dense<0.000000e+00> : vector<8xf32>
    %679 = vector.multi_reduction <add>, %678, %cst_228 [1] : vector<8x8xf32> to vector<8xf32>
    %680 = vector.shape_cast %679 : vector<8xf32> to vector<8x1xf32>
    %681 = tpu.reciprocal %680 {approx = true} : vector<8x1xf32> -> vector<8x1xf32>
    %682 = vector.broadcast %681 : vector<8x1xf32> to vector<8x8xf32>
    %683 = arith.mulf %678, %682 : vector<8x8xf32>
    %684 = arith.truncf %683 : vector<8x8xf32> to vector<8x8xbf16>
    %cst_229 = arith.constant dense<0.000000e+00> : vector<8x8xf32>
    %685 = tpu.matmul %684, %669, %cst_229 {dimension_numbers = #tpu.dot_dimension_numbers<[1], [0], [0], [1], [0, 0, 1, 1], [], []>} : vector<8x8xbf16>, vector<8x8xbf16>, vector<8x8xf32> -> vector<8x8xf32>
    %686 = vector.extract_strided_slice %617 {offsets = [0, 24], sizes = [8, 8], strides = [1, 1]} : vector<8x32xf32> to vector<8x8xf32>
    %687 = arith.truncf %686 : vector<8x8xf32> to vector<8x8xbf16>
    %688 = vector.extract_strided_slice %618 {offsets = [0, 24], sizes = [8, 8], strides = [1, 1]} : vector<8x32xf32> to vector<8x8xf32>
    %689 = arith.truncf %688 : vector<8x8xf32> to vector<8x8xbf16>
    %690 = vector.extract_strided_slice %619 {offsets = [0, 24], sizes = [8, 8], strides = [1, 1]} : vector<8x32xf32> to vector<8x8xf32>
    %691 = arith.truncf %690 : vector<8x8xf32> to vector<8x8xbf16>
    %cst_230 = arith.constant dense<0.000000e+00> : vector<8x8xf32>
    %692 = tpu.matmul %687, %689, %cst_230 {dimension_numbers = #tpu.dot_dimension_numbers<[1], [1], [0], [0], [0, 0, 1, 0], [], []>} : vector<8x8xbf16>, vector<8x8xbf16>, vector<8x8xf32> -> vector<8x8xf32>
    %cst_231 = arith.constant 0.353553385 : f32
    %693 = vector.broadcast %cst_231 : f32 to vector<8x8xf32>
    %694 = arith.mulf %692, %693 : vector<8x8xf32>
    %695 = arith.addf %694, %603 : vector<8x8xf32>
    %cst_232 = arith.constant dense<0xFF800000> : vector<8xf32>
    %696 = vector.multi_reduction <maximumf>, %695, %cst_232 [1] : vector<8x8xf32> to vector<8xf32>
    %697 = vector.shape_cast %696 : vector<8xf32> to vector<8x1xf32>
    %698 = vector.broadcast %697 : vector<8x1xf32> to vector<8x8xf32>
    %699 = arith.subf %695, %698 : vector<8x8xf32>
    %700 = math.exp %699 : vector<8x8xf32>
    %cst_233 = arith.constant dense<0.000000e+00> : vector<8xf32>
    %701 = vector.multi_reduction <add>, %700, %cst_233 [1] : vector<8x8xf32> to vector<8xf32>
    %702 = vector.shape_cast %701 : vector<8xf32> to vector<8x1xf32>
    %703 = tpu.reciprocal %702 {approx = true} : vector<8x1xf32> -> vector<8x1xf32>
    %704 = vector.broadcast %703 : vector<8x1xf32> to vector<8x8xf32>
    %705 = arith.mulf %700, %704 : vector<8x8xf32>
    %706 = arith.truncf %705 : vector<8x8xf32> to vector<8x8xbf16>
    %cst_234 = arith.constant dense<0.000000e+00> : vector<8x8xf32>
    %707 = tpu.matmul %706, %691, %cst_234 {dimension_numbers = #tpu.dot_dimension_numbers<[1], [0], [0], [1], [0, 0, 1, 1], [], []>} : vector<8x8xbf16>, vector<8x8xbf16>, vector<8x8xf32> -> vector<8x8xf32>
    %708 = tpu.concatenate %641, %663, %685, %707 in 1 : vector<8x8xf32>, vector<8x8xf32>, vector<8x8xf32>, vector<8x8xf32> -> vector<8x32xf32>
    %709 = vector.extract_strided_slice %615 {offsets = [8, 0], sizes = [8, 96], strides = [1, 1]} : vector<16x96xf32> to vector<8x96xf32>
    %710 = vector.extract_strided_slice %709 {offsets = [0, 0], sizes = [8, 32], strides = [1, 1]} : vector<8x96xf32> to vector<8x32xf32>
    %711 = vector.extract_strided_slice %709 {offsets = [0, 32], sizes = [8, 32], strides = [1, 1]} : vector<8x96xf32> to vector<8x32xf32>
    %712 = vector.extract_strided_slice %709 {offsets = [0, 64], sizes = [8, 32], strides = [1, 1]} : vector<8x96xf32> to vector<8x32xf32>
    %713 = vector.extract_strided_slice %710 {offsets = [0, 0], sizes = [8, 8], strides = [1, 1]} : vector<8x32xf32> to vector<8x8xf32>
    %714 = arith.truncf %713 : vector<8x8xf32> to vector<8x8xbf16>
    %715 = vector.extract_strided_slice %711 {offsets = [0, 0], sizes = [8, 8], strides = [1, 1]} : vector<8x32xf32> to vector<8x8xf32>
    %716 = arith.truncf %715 : vector<8x8xf32> to vector<8x8xbf16>
    %717 = vector.extract_strided_slice %712 {offsets = [0, 0], sizes = [8, 8], strides = [1, 1]} : vector<8x32xf32> to vector<8x8xf32>
    %718 = arith.truncf %717 : vector<8x8xf32> to vector<8x8xbf16>
    %cst_235 = arith.constant dense<0.000000e+00> : vector<8x8xf32>
    %719 = tpu.matmul %714, %716, %cst_235 {dimension_numbers = #tpu.dot_dimension_numbers<[1], [1], [0], [0], [0, 0, 1, 0], [], []>} : vector<8x8xbf16>, vector<8x8xbf16>, vector<8x8xf32> -> vector<8x8xf32>
    %cst_236 = arith.constant 0.353553385 : f32
    %720 = vector.broadcast %cst_236 : f32 to vector<8x8xf32>
    %721 = arith.mulf %719, %720 : vector<8x8xf32>
    %722 = arith.addf %721, %603 : vector<8x8xf32>
    %cst_237 = arith.constant dense<0xFF800000> : vector<8xf32>
    %723 = vector.multi_reduction <maximumf>, %722, %cst_237 [1] : vector<8x8xf32> to vector<8xf32>
    %724 = vector.shape_cast %723 : vector<8xf32> to vector<8x1xf32>
    %725 = vector.broadcast %724 : vector<8x1xf32> to vector<8x8xf32>
    %726 = arith.subf %722, %725 : vector<8x8xf32>
    %727 = math.exp %726 : vector<8x8xf32>
    %cst_238 = arith.constant dense<0.000000e+00> : vector<8xf32>
    %728 = vector.multi_reduction <add>, %727, %cst_238 [1] : vector<8x8xf32> to vector<8xf32>
    %729 = vector.shape_cast %728 : vector<8xf32> to vector<8x1xf32>
    %730 = tpu.reciprocal %729 {approx = true} : vector<8x1xf32> -> vector<8x1xf32>
    %731 = vector.broadcast %730 : vector<8x1xf32> to vector<8x8xf32>
    %732 = arith.mulf %727, %731 : vector<8x8xf32>
    %733 = arith.truncf %732 : vector<8x8xf32> to vector<8x8xbf16>
    %cst_239 = arith.constant dense<0.000000e+00> : vector<8x8xf32>
    %734 = tpu.matmul %733, %718, %cst_239 {dimension_numbers = #tpu.dot_dimension_numbers<[1], [0], [0], [1], [0, 0, 1, 1], [], []>} : vector<8x8xbf16>, vector<8x8xbf16>, vector<8x8xf32> -> vector<8x8xf32>
    %735 = vector.extract_strided_slice %710 {offsets = [0, 8], sizes = [8, 8], strides = [1, 1]} : vector<8x32xf32> to vector<8x8xf32>
    %736 = arith.truncf %735 : vector<8x8xf32> to vector<8x8xbf16>
    %737 = vector.extract_strided_slice %711 {offsets = [0, 8], sizes = [8, 8], strides = [1, 1]} : vector<8x32xf32> to vector<8x8xf32>
    %738 = arith.truncf %737 : vector<8x8xf32> to vector<8x8xbf16>
    %739 = vector.extract_strided_slice %712 {offsets = [0, 8], sizes = [8, 8], strides = [1, 1]} : vector<8x32xf32> to vector<8x8xf32>
    %740 = arith.truncf %739 : vector<8x8xf32> to vector<8x8xbf16>
    %cst_240 = arith.constant dense<0.000000e+00> : vector<8x8xf32>
    %741 = tpu.matmul %736, %738, %cst_240 {dimension_numbers = #tpu.dot_dimension_numbers<[1], [1], [0], [0], [0, 0, 1, 0], [], []>} : vector<8x8xbf16>, vector<8x8xbf16>, vector<8x8xf32> -> vector<8x8xf32>
    %cst_241 = arith.constant 0.353553385 : f32
    %742 = vector.broadcast %cst_241 : f32 to vector<8x8xf32>
    %743 = arith.mulf %741, %742 : vector<8x8xf32>
    %744 = arith.addf %743, %603 : vector<8x8xf32>
    %cst_242 = arith.constant dense<0xFF800000> : vector<8xf32>
    %745 = vector.multi_reduction <maximumf>, %744, %cst_242 [1] : vector<8x8xf32> to vector<8xf32>
    %746 = vector.shape_cast %745 : vector<8xf32> to vector<8x1xf32>
    %747 = vector.broadcast %746 : vector<8x1xf32> to vector<8x8xf32>
    %748 = arith.subf %744, %747 : vector<8x8xf32>
    %749 = math.exp %748 : vector<8x8xf32>
    %cst_243 = arith.constant dense<0.000000e+00> : vector<8xf32>
    %750 = vector.multi_reduction <add>, %749, %cst_243 [1] : vector<8x8xf32> to vector<8xf32>
    %751 = vector.shape_cast %750 : vector<8xf32> to vector<8x1xf32>
    %752 = tpu.reciprocal %751 {approx = true} : vector<8x1xf32> -> vector<8x1xf32>
    %753 = vector.broadcast %752 : vector<8x1xf32> to vector<8x8xf32>
    %754 = arith.mulf %749, %753 : vector<8x8xf32>
    %755 = arith.truncf %754 : vector<8x8xf32> to vector<8x8xbf16>
    %cst_244 = arith.constant dense<0.000000e+00> : vector<8x8xf32>
    %756 = tpu.matmul %755, %740, %cst_244 {dimension_numbers = #tpu.dot_dimension_numbers<[1], [0], [0], [1], [0, 0, 1, 1], [], []>} : vector<8x8xbf16>, vector<8x8xbf16>, vector<8x8xf32> -> vector<8x8xf32>
    %757 = vector.extract_strided_slice %710 {offsets = [0, 16], sizes = [8, 8], strides = [1, 1]} : vector<8x32xf32> to vector<8x8xf32>
    %758 = arith.truncf %757 : vector<8x8xf32> to vector<8x8xbf16>
    %759 = vector.extract_strided_slice %711 {offsets = [0, 16], sizes = [8, 8], strides = [1, 1]} : vector<8x32xf32> to vector<8x8xf32>
    %760 = arith.truncf %759 : vector<8x8xf32> to vector<8x8xbf16>
    %761 = vector.extract_strided_slice %712 {offsets = [0, 16], sizes = [8, 8], strides = [1, 1]} : vector<8x32xf32> to vector<8x8xf32>
    %762 = arith.truncf %761 : vector<8x8xf32> to vector<8x8xbf16>
    %cst_245 = arith.constant dense<0.000000e+00> : vector<8x8xf32>
    %763 = tpu.matmul %758, %760, %cst_245 {dimension_numbers = #tpu.dot_dimension_numbers<[1], [1], [0], [0], [0, 0, 1, 0], [], []>} : vector<8x8xbf16>, vector<8x8xbf16>, vector<8x8xf32> -> vector<8x8xf32>
    %cst_246 = arith.constant 0.353553385 : f32
    %764 = vector.broadcast %cst_246 : f32 to vector<8x8xf32>
    %765 = arith.mulf %763, %764 : vector<8x8xf32>
    %766 = arith.addf %765, %603 : vector<8x8xf32>
    %cst_247 = arith.constant dense<0xFF800000> : vector<8xf32>
    %767 = vector.multi_reduction <maximumf>, %766, %cst_247 [1] : vector<8x8xf32> to vector<8xf32>
    %768 = vector.shape_cast %767 : vector<8xf32> to vector<8x1xf32>
    %769 = vector.broadcast %768 : vector<8x1xf32> to vector<8x8xf32>
    %770 = arith.subf %766, %769 : vector<8x8xf32>
    %771 = math.exp %770 : vector<8x8xf32>
    %cst_248 = arith.constant dense<0.000000e+00> : vector<8xf32>
    %772 = vector.multi_reduction <add>, %771, %cst_248 [1] : vector<8x8xf32> to vector<8xf32>
    %773 = vector.shape_cast %772 : vector<8xf32> to vector<8x1xf32>
    %774 = tpu.reciprocal %773 {approx = true} : vector<8x1xf32> -> vector<8x1xf32>
    %775 = vector.broadcast %774 : vector<8x1xf32> to vector<8x8xf32>
    %776 = arith.mulf %771, %775 : vector<8x8xf32>
    %777 = arith.truncf %776 : vector<8x8xf32> to vector<8x8xbf16>
    %cst_249 = arith.constant dense<0.000000e+00> : vector<8x8xf32>
    %778 = tpu.matmul %777, %762, %cst_249 {dimension_numbers = #tpu.dot_dimension_numbers<[1], [0], [0], [1], [0, 0, 1, 1], [], []>} : vector<8x8xbf16>, vector<8x8xbf16>, vector<8x8xf32> -> vector<8x8xf32>
    %779 = vector.extract_strided_slice %710 {offsets = [0, 24], sizes = [8, 8], strides = [1, 1]} : vector<8x32xf32> to vector<8x8xf32>
    %780 = arith.truncf %779 : vector<8x8xf32> to vector<8x8xbf16>
    %781 = vector.extract_strided_slice %711 {offsets = [0, 24], sizes = [8, 8], strides = [1, 1]} : vector<8x32xf32> to vector<8x8xf32>
    %782 = arith.truncf %781 : vector<8x8xf32> to vector<8x8xbf16>
    %783 = vector.extract_strided_slice %712 {offsets = [0, 24], sizes = [8, 8], strides = [1, 1]} : vector<8x32xf32> to vector<8x8xf32>
    %784 = arith.truncf %783 : vector<8x8xf32> to vector<8x8xbf16>
    %cst_250 = arith.constant dense<0.000000e+00> : vector<8x8xf32>
    %785 = tpu.matmul %780, %782, %cst_250 {dimension_numbers = #tpu.dot_dimension_numbers<[1], [1], [0], [0], [0, 0, 1, 0], [], []>} : vector<8x8xbf16>, vector<8x8xbf16>, vector<8x8xf32> -> vector<8x8xf32>
    %cst_251 = arith.constant 0.353553385 : f32
    %786 = vector.broadcast %cst_251 : f32 to vector<8x8xf32>
    %787 = arith.mulf %785, %786 : vector<8x8xf32>
    %788 = arith.addf %787, %603 : vector<8x8xf32>
    %cst_252 = arith.constant dense<0xFF800000> : vector<8xf32>
    %789 = vector.multi_reduction <maximumf>, %788, %cst_252 [1] : vector<8x8xf32> to vector<8xf32>
    %790 = vector.shape_cast %789 : vector<8xf32> to vector<8x1xf32>
    %791 = vector.broadcast %790 : vector<8x1xf32> to vector<8x8xf32>
    %792 = arith.subf %788, %791 : vector<8x8xf32>
    %793 = math.exp %792 : vector<8x8xf32>
    %cst_253 = arith.constant dense<0.000000e+00> : vector<8xf32>
    %794 = vector.multi_reduction <add>, %793, %cst_253 [1] : vector<8x8xf32> to vector<8xf32>
    %795 = vector.shape_cast %794 : vector<8xf32> to vector<8x1xf32>
    %796 = tpu.reciprocal %795 {approx = true} : vector<8x1xf32> -> vector<8x1xf32>
    %797 = vector.broadcast %796 : vector<8x1xf32> to vector<8x8xf32>
    %798 = arith.mulf %793, %797 : vector<8x8xf32>
    %799 = arith.truncf %798 : vector<8x8xf32> to vector<8x8xbf16>
    %cst_254 = arith.constant dense<0.000000e+00> : vector<8x8xf32>
    %800 = tpu.matmul %799, %784, %cst_254 {dimension_numbers = #tpu.dot_dimension_numbers<[1], [0], [0], [1], [0, 0, 1, 1], [], []>} : vector<8x8xbf16>, vector<8x8xbf16>, vector<8x8xf32> -> vector<8x8xf32>
    %801 = tpu.concatenate %734, %756, %778, %800 in 1 : vector<8x8xf32>, vector<8x8xf32>, vector<8x8xf32>, vector<8x8xf32> -> vector<8x32xf32>
    %802 = tpu.concatenate %708, %801 in 0 : vector<8x32xf32>, vector<8x32xf32> -> vector<16x32xf32>
    %803 = arith.truncf %802 : vector<16x32xf32> to vector<16x32xbf16>
    %cst_255 = arith.constant dense<0.000000e+00> : vector<16x32xf32>
    %804 = tpu.matmul %803, %609, %cst_255 {dimension_numbers = #tpu.dot_dimension_numbers<[1], [0], [0], [1], [0, 0, 1, 1], [], []>} : vector<16x32xbf16>, vector<32x32xbf16>, vector<16x32xf32> -> vector<16x32xf32>
    %805 = vector.broadcast %611 : vector<1x32xf32> to vector<16x32xf32>
    %806 = arith.addf %804, %805 : vector<16x32xf32>
    %807 = arith.addf %3, %806 : vector<16x32xf32>
    %c0_256 = arith.constant 0 : index
    %c0_257 = arith.constant 0 : index
    %c0_258 = arith.constant 0 : index
    %808 = vector.load %arg21[%c0_256, %c0_257, %c0_258] : memref<2x1x32xf32, #tpu.memory_space<vmem>>, vector<1x1x32xf32>
    %809 = vector.shape_cast %808 : vector<1x1x32xf32> to vector<1x32xf32>
    %c0_259 = arith.constant 0 : index
    %c0_260 = arith.constant 0 : index
    %c0_261 = arith.constant 0 : index
    %810 = vector.load %arg22[%c0_259, %c0_260, %c0_261] : memref<2x1x32xf32, #tpu.memory_space<vmem>>, vector<1x1x32xf32>
    %811 = vector.shape_cast %810 : vector<1x1x32xf32> to vector<1x32xf32>
    %cst_262 = arith.constant dense<0.000000e+00> : vector<16xf32>
    %812 = vector.multi_reduction <add>, %807, %cst_262 [1] : vector<16x32xf32> to vector<16xf32>
    %813 = vector.shape_cast %812 : vector<16xf32> to vector<16x1xf32>
    %cst_263 = arith.constant 3.200000e+01 : f32
    %814 = vector.broadcast %cst_263 : f32 to vector<16x1xf32>
    %815 = arith.divf %813, %814 : vector<16x1xf32>
    %816 = vector.broadcast %815 : vector<16x1xf32> to vector<16x32xf32>
    %817 = arith.subf %807, %816 : vector<16x32xf32>
    %818 = arith.mulf %817, %817 : vector<16x32xf32>
    %cst_264 = arith.constant dense<0.000000e+00> : vector<16xf32>
    %819 = vector.multi_reduction <add>, %818, %cst_264 [1] : vector<16x32xf32> to vector<16xf32>
    %820 = vector.shape_cast %819 : vector<16xf32> to vector<16x1xf32>
    %cst_265 = arith.constant 3.200000e+01 : f32
    %821 = vector.broadcast %cst_265 : f32 to vector<16x1xf32>
    %822 = arith.divf %820, %821 : vector<16x1xf32>
    %823 = vector.broadcast %815 : vector<16x1xf32> to vector<16x32xf32>
    %824 = arith.subf %807, %823 : vector<16x32xf32>
    %cst_266 = arith.constant 9.99999974E-6 : f32
    %825 = vector.broadcast %cst_266 : f32 to vector<16x1xf32>
    %826 = arith.addf %822, %825 : vector<16x1xf32>
    %827 = math.rsqrt %826 : vector<16x1xf32>
    %828 = vector.broadcast %827 : vector<16x1xf32> to vector<16x32xf32>
    %829 = arith.mulf %824, %828 : vector<16x32xf32>
    %830 = vector.broadcast %809 : vector<1x32xf32> to vector<16x32xf32>
    %831 = arith.mulf %829, %830 : vector<16x32xf32>
    %832 = vector.broadcast %811 : vector<1x32xf32> to vector<16x32xf32>
    %833 = arith.addf %831, %832 : vector<16x32xf32>
    %c0_267 = arith.constant 0 : index
    %c0_268 = arith.constant 0 : index
    %c0_269 = arith.constant 0 : index
    %834 = vector.load %arg23[%c0_267, %c0_268, %c0_269] : memref<2x32x32xbf16, #tpu.memory_space<vmem>>, vector<1x32x32xbf16>
    %835 = vector.shape_cast %834 : vector<1x32x32xbf16> to vector<32x32xbf16>
    %c0_270 = arith.constant 0 : index
    %c0_271 = arith.constant 0 : index
    %c0_272 = arith.constant 0 : index
    %836 = vector.load %arg24[%c0_270, %c0_271, %c0_272] : memref<2x1x32xf32, #tpu.memory_space<vmem>>, vector<1x1x32xf32>
    %837 = vector.shape_cast %836 : vector<1x1x32xf32> to vector<1x32xf32>
    %c0_273 = arith.constant 0 : index
    %c0_274 = arith.constant 0 : index
    %c0_275 = arith.constant 0 : index
    %838 = vector.load %arg25[%c0_273, %c0_274, %c0_275] : memref<2x32x64xbf16, #tpu.memory_space<vmem>>, vector<1x32x64xbf16>
    %839 = vector.shape_cast %838 : vector<1x32x64xbf16> to vector<32x64xbf16>
    %c0_276 = arith.constant 0 : index
    %c0_277 = arith.constant 0 : index
    %c0_278 = arith.constant 0 : index
    %840 = vector.load %arg26[%c0_276, %c0_277, %c0_278] : memref<2x1x64xf32, #tpu.memory_space<vmem>>, vector<1x1x64xf32>
    %841 = vector.shape_cast %840 : vector<1x1x64xf32> to vector<1x64xf32>
    %c0_279 = arith.constant 0 : index
    %c0_280 = arith.constant 0 : index
    %c0_281 = arith.constant 0 : index
    %842 = vector.load %arg27[%c0_279, %c0_280, %c0_281] : memref<2x32x32xbf16, #tpu.memory_space<vmem>>, vector<1x32x32xbf16>
    %843 = vector.shape_cast %842 : vector<1x32x32xbf16> to vector<32x32xbf16>
    %c0_282 = arith.constant 0 : index
    %c0_283 = arith.constant 0 : index
    %c0_284 = arith.constant 0 : index
    %844 = vector.load %arg28[%c0_282, %c0_283, %c0_284] : memref<2x1x32xf32, #tpu.memory_space<vmem>>, vector<1x1x32xf32>
    %845 = vector.shape_cast %844 : vector<1x1x32xf32> to vector<1x32xf32>
    %846 = arith.truncf %833 : vector<16x32xf32> to vector<16x32xbf16>
    %cst_285 = arith.constant dense<0.000000e+00> : vector<16x32xf32>
    %847 = tpu.matmul %846, %835, %cst_285 {dimension_numbers = #tpu.dot_dimension_numbers<[1], [0], [0], [1], [0, 0, 1, 1], [], []>} : vector<16x32xbf16>, vector<32x32xbf16>, vector<16x32xf32> -> vector<16x32xf32>
    %848 = vector.broadcast %837 : vector<1x32xf32> to vector<16x32xf32>
    %849 = arith.addf %847, %848 : vector<16x32xf32>
    %850 = arith.truncf %597 : vector<16x32xf32> to vector<16x32xbf16>
    %cst_286 = arith.constant dense<0.000000e+00> : vector<16x64xf32>
    %851 = tpu.matmul %850, %839, %cst_286 {dimension_numbers = #tpu.dot_dimension_numbers<[1], [0], [0], [1], [0, 0, 1, 1], [], []>} : vector<16x32xbf16>, vector<32x64xbf16>, vector<16x64xf32> -> vector<16x64xf32>
    %852 = vector.broadcast %841 : vector<1x64xf32> to vector<16x64xf32>
    %853 = arith.addf %851, %852 : vector<16x64xf32>
    %854 = vector.extract_strided_slice %849 {offsets = [0, 0], sizes = [8, 32], strides = [1, 1]} : vector<16x32xf32> to vector<8x32xf32>
    %855 = vector.extract_strided_slice %853 {offsets = [0, 0], sizes = [8, 64], strides = [1, 1]} : vector<16x64xf32> to vector<8x64xf32>
    %856 = vector.extract_strided_slice %855 {offsets = [0, 0], sizes = [8, 32], strides = [1, 1]} : vector<8x64xf32> to vector<8x32xf32>
    %857 = vector.extract_strided_slice %855 {offsets = [0, 32], sizes = [8, 32], strides = [1, 1]} : vector<8x64xf32> to vector<8x32xf32>
    %858 = vector.extract_strided_slice %854 {offsets = [0, 0], sizes = [8, 8], strides = [1, 1]} : vector<8x32xf32> to vector<8x8xf32>
    %859 = arith.truncf %858 : vector<8x8xf32> to vector<8x8xbf16>
    %860 = vector.extract_strided_slice %856 {offsets = [0, 0], sizes = [8, 8], strides = [1, 1]} : vector<8x32xf32> to vector<8x8xf32>
    %861 = arith.truncf %860 : vector<8x8xf32> to vector<8x8xbf16>
    %862 = vector.extract_strided_slice %857 {offsets = [0, 0], sizes = [8, 8], strides = [1, 1]} : vector<8x32xf32> to vector<8x8xf32>
    %863 = arith.truncf %862 : vector<8x8xf32> to vector<8x8xbf16>
    %cst_287 = arith.constant dense<0.000000e+00> : vector<8x8xf32>
    %864 = tpu.matmul %859, %861, %cst_287 {dimension_numbers = #tpu.dot_dimension_numbers<[1], [1], [0], [0], [0, 0, 1, 0], [], []>} : vector<8x8xbf16>, vector<8x8xbf16>, vector<8x8xf32> -> vector<8x8xf32>
    %cst_288 = arith.constant 0.353553385 : f32
    %865 = vector.broadcast %cst_288 : f32 to vector<8x8xf32>
    %866 = arith.mulf %864, %865 : vector<8x8xf32>
    %cst_289 = arith.constant dense<0xFF800000> : vector<8xf32>
    %867 = vector.multi_reduction <maximumf>, %866, %cst_289 [1] : vector<8x8xf32> to vector<8xf32>
    %868 = vector.shape_cast %867 : vector<8xf32> to vector<8x1xf32>
    %869 = vector.broadcast %868 : vector<8x1xf32> to vector<8x8xf32>
    %870 = arith.subf %866, %869 : vector<8x8xf32>
    %871 = math.exp %870 : vector<8x8xf32>
    %cst_290 = arith.constant dense<0.000000e+00> : vector<8xf32>
    %872 = vector.multi_reduction <add>, %871, %cst_290 [1] : vector<8x8xf32> to vector<8xf32>
    %873 = vector.shape_cast %872 : vector<8xf32> to vector<8x1xf32>
    %874 = tpu.reciprocal %873 {approx = true} : vector<8x1xf32> -> vector<8x1xf32>
    %875 = vector.broadcast %874 : vector<8x1xf32> to vector<8x8xf32>
    %876 = arith.mulf %871, %875 : vector<8x8xf32>
    %877 = arith.truncf %876 : vector<8x8xf32> to vector<8x8xbf16>
    %cst_291 = arith.constant dense<0.000000e+00> : vector<8x8xf32>
    %878 = tpu.matmul %877, %863, %cst_291 {dimension_numbers = #tpu.dot_dimension_numbers<[1], [0], [0], [1], [0, 0, 1, 1], [], []>} : vector<8x8xbf16>, vector<8x8xbf16>, vector<8x8xf32> -> vector<8x8xf32>
    %879 = vector.extract_strided_slice %854 {offsets = [0, 8], sizes = [8, 8], strides = [1, 1]} : vector<8x32xf32> to vector<8x8xf32>
    %880 = arith.truncf %879 : vector<8x8xf32> to vector<8x8xbf16>
    %881 = vector.extract_strided_slice %856 {offsets = [0, 8], sizes = [8, 8], strides = [1, 1]} : vector<8x32xf32> to vector<8x8xf32>
    %882 = arith.truncf %881 : vector<8x8xf32> to vector<8x8xbf16>
    %883 = vector.extract_strided_slice %857 {offsets = [0, 8], sizes = [8, 8], strides = [1, 1]} : vector<8x32xf32> to vector<8x8xf32>
    %884 = arith.truncf %883 : vector<8x8xf32> to vector<8x8xbf16>
    %cst_292 = arith.constant dense<0.000000e+00> : vector<8x8xf32>
    %885 = tpu.matmul %880, %882, %cst_292 {dimension_numbers = #tpu.dot_dimension_numbers<[1], [1], [0], [0], [0, 0, 1, 0], [], []>} : vector<8x8xbf16>, vector<8x8xbf16>, vector<8x8xf32> -> vector<8x8xf32>
    %cst_293 = arith.constant 0.353553385 : f32
    %886 = vector.broadcast %cst_293 : f32 to vector<8x8xf32>
    %887 = arith.mulf %885, %886 : vector<8x8xf32>
    %cst_294 = arith.constant dense<0xFF800000> : vector<8xf32>
    %888 = vector.multi_reduction <maximumf>, %887, %cst_294 [1] : vector<8x8xf32> to vector<8xf32>
    %889 = vector.shape_cast %888 : vector<8xf32> to vector<8x1xf32>
    %890 = vector.broadcast %889 : vector<8x1xf32> to vector<8x8xf32>
    %891 = arith.subf %887, %890 : vector<8x8xf32>
    %892 = math.exp %891 : vector<8x8xf32>
    %cst_295 = arith.constant dense<0.000000e+00> : vector<8xf32>
    %893 = vector.multi_reduction <add>, %892, %cst_295 [1] : vector<8x8xf32> to vector<8xf32>
    %894 = vector.shape_cast %893 : vector<8xf32> to vector<8x1xf32>
    %895 = tpu.reciprocal %894 {approx = true} : vector<8x1xf32> -> vector<8x1xf32>
    %896 = vector.broadcast %895 : vector<8x1xf32> to vector<8x8xf32>
    %897 = arith.mulf %892, %896 : vector<8x8xf32>
    %898 = arith.truncf %897 : vector<8x8xf32> to vector<8x8xbf16>
    %cst_296 = arith.constant dense<0.000000e+00> : vector<8x8xf32>
    %899 = tpu.matmul %898, %884, %cst_296 {dimension_numbers = #tpu.dot_dimension_numbers<[1], [0], [0], [1], [0, 0, 1, 1], [], []>} : vector<8x8xbf16>, vector<8x8xbf16>, vector<8x8xf32> -> vector<8x8xf32>
    %900 = vector.extract_strided_slice %854 {offsets = [0, 16], sizes = [8, 8], strides = [1, 1]} : vector<8x32xf32> to vector<8x8xf32>
    %901 = arith.truncf %900 : vector<8x8xf32> to vector<8x8xbf16>
    %902 = vector.extract_strided_slice %856 {offsets = [0, 16], sizes = [8, 8], strides = [1, 1]} : vector<8x32xf32> to vector<8x8xf32>
    %903 = arith.truncf %902 : vector<8x8xf32> to vector<8x8xbf16>
    %904 = vector.extract_strided_slice %857 {offsets = [0, 16], sizes = [8, 8], strides = [1, 1]} : vector<8x32xf32> to vector<8x8xf32>
    %905 = arith.truncf %904 : vector<8x8xf32> to vector<8x8xbf16>
    %cst_297 = arith.constant dense<0.000000e+00> : vector<8x8xf32>
    %906 = tpu.matmul %901, %903, %cst_297 {dimension_numbers = #tpu.dot_dimension_numbers<[1], [1], [0], [0], [0, 0, 1, 0], [], []>} : vector<8x8xbf16>, vector<8x8xbf16>, vector<8x8xf32> -> vector<8x8xf32>
    %cst_298 = arith.constant 0.353553385 : f32
    %907 = vector.broadcast %cst_298 : f32 to vector<8x8xf32>
    %908 = arith.mulf %906, %907 : vector<8x8xf32>
    %cst_299 = arith.constant dense<0xFF800000> : vector<8xf32>
    %909 = vector.multi_reduction <maximumf>, %908, %cst_299 [1] : vector<8x8xf32> to vector<8xf32>
    %910 = vector.shape_cast %909 : vector<8xf32> to vector<8x1xf32>
    %911 = vector.broadcast %910 : vector<8x1xf32> to vector<8x8xf32>
    %912 = arith.subf %908, %911 : vector<8x8xf32>
    %913 = math.exp %912 : vector<8x8xf32>
    %cst_300 = arith.constant dense<0.000000e+00> : vector<8xf32>
    %914 = vector.multi_reduction <add>, %913, %cst_300 [1] : vector<8x8xf32> to vector<8xf32>
    %915 = vector.shape_cast %914 : vector<8xf32> to vector<8x1xf32>
    %916 = tpu.reciprocal %915 {approx = true} : vector<8x1xf32> -> vector<8x1xf32>
    %917 = vector.broadcast %916 : vector<8x1xf32> to vector<8x8xf32>
    %918 = arith.mulf %913, %917 : vector<8x8xf32>
    %919 = arith.truncf %918 : vector<8x8xf32> to vector<8x8xbf16>
    %cst_301 = arith.constant dense<0.000000e+00> : vector<8x8xf32>
    %920 = tpu.matmul %919, %905, %cst_301 {dimension_numbers = #tpu.dot_dimension_numbers<[1], [0], [0], [1], [0, 0, 1, 1], [], []>} : vector<8x8xbf16>, vector<8x8xbf16>, vector<8x8xf32> -> vector<8x8xf32>
    %921 = vector.extract_strided_slice %854 {offsets = [0, 24], sizes = [8, 8], strides = [1, 1]} : vector<8x32xf32> to vector<8x8xf32>
    %922 = arith.truncf %921 : vector<8x8xf32> to vector<8x8xbf16>
    %923 = vector.extract_strided_slice %856 {offsets = [0, 24], sizes = [8, 8], strides = [1, 1]} : vector<8x32xf32> to vector<8x8xf32>
    %924 = arith.truncf %923 : vector<8x8xf32> to vector<8x8xbf16>
    %925 = vector.extract_strided_slice %857 {offsets = [0, 24], sizes = [8, 8], strides = [1, 1]} : vector<8x32xf32> to vector<8x8xf32>
    %926 = arith.truncf %925 : vector<8x8xf32> to vector<8x8xbf16>
    %cst_302 = arith.constant dense<0.000000e+00> : vector<8x8xf32>
    %927 = tpu.matmul %922, %924, %cst_302 {dimension_numbers = #tpu.dot_dimension_numbers<[1], [1], [0], [0], [0, 0, 1, 0], [], []>} : vector<8x8xbf16>, vector<8x8xbf16>, vector<8x8xf32> -> vector<8x8xf32>
    %cst_303 = arith.constant 0.353553385 : f32
    %928 = vector.broadcast %cst_303 : f32 to vector<8x8xf32>
    %929 = arith.mulf %927, %928 : vector<8x8xf32>
    %cst_304 = arith.constant dense<0xFF800000> : vector<8xf32>
    %930 = vector.multi_reduction <maximumf>, %929, %cst_304 [1] : vector<8x8xf32> to vector<8xf32>
    %931 = vector.shape_cast %930 : vector<8xf32> to vector<8x1xf32>
    %932 = vector.broadcast %931 : vector<8x1xf32> to vector<8x8xf32>
    %933 = arith.subf %929, %932 : vector<8x8xf32>
    %934 = math.exp %933 : vector<8x8xf32>
    %cst_305 = arith.constant dense<0.000000e+00> : vector<8xf32>
    %935 = vector.multi_reduction <add>, %934, %cst_305 [1] : vector<8x8xf32> to vector<8xf32>
    %936 = vector.shape_cast %935 : vector<8xf32> to vector<8x1xf32>
    %937 = tpu.reciprocal %936 {approx = true} : vector<8x1xf32> -> vector<8x1xf32>
    %938 = vector.broadcast %937 : vector<8x1xf32> to vector<8x8xf32>
    %939 = arith.mulf %934, %938 : vector<8x8xf32>
    %940 = arith.truncf %939 : vector<8x8xf32> to vector<8x8xbf16>
    %cst_306 = arith.constant dense<0.000000e+00> : vector<8x8xf32>
    %941 = tpu.matmul %940, %926, %cst_306 {dimension_numbers = #tpu.dot_dimension_numbers<[1], [0], [0], [1], [0, 0, 1, 1], [], []>} : vector<8x8xbf16>, vector<8x8xbf16>, vector<8x8xf32> -> vector<8x8xf32>
    %942 = tpu.concatenate %878, %899, %920, %941 in 1 : vector<8x8xf32>, vector<8x8xf32>, vector<8x8xf32>, vector<8x8xf32> -> vector<8x32xf32>
    %943 = vector.extract_strided_slice %849 {offsets = [8, 0], sizes = [8, 32], strides = [1, 1]} : vector<16x32xf32> to vector<8x32xf32>
    %944 = vector.extract_strided_slice %853 {offsets = [8, 0], sizes = [8, 64], strides = [1, 1]} : vector<16x64xf32> to vector<8x64xf32>
    %945 = vector.extract_strided_slice %944 {offsets = [0, 0], sizes = [8, 32], strides = [1, 1]} : vector<8x64xf32> to vector<8x32xf32>
    %946 = vector.extract_strided_slice %944 {offsets = [0, 32], sizes = [8, 32], strides = [1, 1]} : vector<8x64xf32> to vector<8x32xf32>
    %947 = vector.extract_strided_slice %943 {offsets = [0, 0], sizes = [8, 8], strides = [1, 1]} : vector<8x32xf32> to vector<8x8xf32>
    %948 = arith.truncf %947 : vector<8x8xf32> to vector<8x8xbf16>
    %949 = vector.extract_strided_slice %945 {offsets = [0, 0], sizes = [8, 8], strides = [1, 1]} : vector<8x32xf32> to vector<8x8xf32>
    %950 = arith.truncf %949 : vector<8x8xf32> to vector<8x8xbf16>
    %951 = vector.extract_strided_slice %946 {offsets = [0, 0], sizes = [8, 8], strides = [1, 1]} : vector<8x32xf32> to vector<8x8xf32>
    %952 = arith.truncf %951 : vector<8x8xf32> to vector<8x8xbf16>
    %cst_307 = arith.constant dense<0.000000e+00> : vector<8x8xf32>
    %953 = tpu.matmul %948, %950, %cst_307 {dimension_numbers = #tpu.dot_dimension_numbers<[1], [1], [0], [0], [0, 0, 1, 0], [], []>} : vector<8x8xbf16>, vector<8x8xbf16>, vector<8x8xf32> -> vector<8x8xf32>
    %cst_308 = arith.constant 0.353553385 : f32
    %954 = vector.broadcast %cst_308 : f32 to vector<8x8xf32>
    %955 = arith.mulf %953, %954 : vector<8x8xf32>
    %cst_309 = arith.constant dense<0xFF800000> : vector<8xf32>
    %956 = vector.multi_reduction <maximumf>, %955, %cst_309 [1] : vector<8x8xf32> to vector<8xf32>
    %957 = vector.shape_cast %956 : vector<8xf32> to vector<8x1xf32>
    %958 = vector.broadcast %957 : vector<8x1xf32> to vector<8x8xf32>
    %959 = arith.subf %955, %958 : vector<8x8xf32>
    %960 = math.exp %959 : vector<8x8xf32>
    %cst_310 = arith.constant dense<0.000000e+00> : vector<8xf32>
    %961 = vector.multi_reduction <add>, %960, %cst_310 [1] : vector<8x8xf32> to vector<8xf32>
    %962 = vector.shape_cast %961 : vector<8xf32> to vector<8x1xf32>
    %963 = tpu.reciprocal %962 {approx = true} : vector<8x1xf32> -> vector<8x1xf32>
    %964 = vector.broadcast %963 : vector<8x1xf32> to vector<8x8xf32>
    %965 = arith.mulf %960, %964 : vector<8x8xf32>
    %966 = arith.truncf %965 : vector<8x8xf32> to vector<8x8xbf16>
    %cst_311 = arith.constant dense<0.000000e+00> : vector<8x8xf32>
    %967 = tpu.matmul %966, %952, %cst_311 {dimension_numbers = #tpu.dot_dimension_numbers<[1], [0], [0], [1], [0, 0, 1, 1], [], []>} : vector<8x8xbf16>, vector<8x8xbf16>, vector<8x8xf32> -> vector<8x8xf32>
    %968 = vector.extract_strided_slice %943 {offsets = [0, 8], sizes = [8, 8], strides = [1, 1]} : vector<8x32xf32> to vector<8x8xf32>
    %969 = arith.truncf %968 : vector<8x8xf32> to vector<8x8xbf16>
    %970 = vector.extract_strided_slice %945 {offsets = [0, 8], sizes = [8, 8], strides = [1, 1]} : vector<8x32xf32> to vector<8x8xf32>
    %971 = arith.truncf %970 : vector<8x8xf32> to vector<8x8xbf16>
    %972 = vector.extract_strided_slice %946 {offsets = [0, 8], sizes = [8, 8], strides = [1, 1]} : vector<8x32xf32> to vector<8x8xf32>
    %973 = arith.truncf %972 : vector<8x8xf32> to vector<8x8xbf16>
    %cst_312 = arith.constant dense<0.000000e+00> : vector<8x8xf32>
    %974 = tpu.matmul %969, %971, %cst_312 {dimension_numbers = #tpu.dot_dimension_numbers<[1], [1], [0], [0], [0, 0, 1, 0], [], []>} : vector<8x8xbf16>, vector<8x8xbf16>, vector<8x8xf32> -> vector<8x8xf32>
    %cst_313 = arith.constant 0.353553385 : f32
    %975 = vector.broadcast %cst_313 : f32 to vector<8x8xf32>
    %976 = arith.mulf %974, %975 : vector<8x8xf32>
    %cst_314 = arith.constant dense<0xFF800000> : vector<8xf32>
    %977 = vector.multi_reduction <maximumf>, %976, %cst_314 [1] : vector<8x8xf32> to vector<8xf32>
    %978 = vector.shape_cast %977 : vector<8xf32> to vector<8x1xf32>
    %979 = vector.broadcast %978 : vector<8x1xf32> to vector<8x8xf32>
    %980 = arith.subf %976, %979 : vector<8x8xf32>
    %981 = math.exp %980 : vector<8x8xf32>
    %cst_315 = arith.constant dense<0.000000e+00> : vector<8xf32>
    %982 = vector.multi_reduction <add>, %981, %cst_315 [1] : vector<8x8xf32> to vector<8xf32>
    %983 = vector.shape_cast %982 : vector<8xf32> to vector<8x1xf32>
    %984 = tpu.reciprocal %983 {approx = true} : vector<8x1xf32> -> vector<8x1xf32>
    %985 = vector.broadcast %984 : vector<8x1xf32> to vector<8x8xf32>
    %986 = arith.mulf %981, %985 : vector<8x8xf32>
    %987 = arith.truncf %986 : vector<8x8xf32> to vector<8x8xbf16>
    %cst_316 = arith.constant dense<0.000000e+00> : vector<8x8xf32>
    %988 = tpu.matmul %987, %973, %cst_316 {dimension_numbers = #tpu.dot_dimension_numbers<[1], [0], [0], [1], [0, 0, 1, 1], [], []>} : vector<8x8xbf16>, vector<8x8xbf16>, vector<8x8xf32> -> vector<8x8xf32>
    %989 = vector.extract_strided_slice %943 {offsets = [0, 16], sizes = [8, 8], strides = [1, 1]} : vector<8x32xf32> to vector<8x8xf32>
    %990 = arith.truncf %989 : vector<8x8xf32> to vector<8x8xbf16>
    %991 = vector.extract_strided_slice %945 {offsets = [0, 16], sizes = [8, 8], strides = [1, 1]} : vector<8x32xf32> to vector<8x8xf32>
    %992 = arith.truncf %991 : vector<8x8xf32> to vector<8x8xbf16>
    %993 = vector.extract_strided_slice %946 {offsets = [0, 16], sizes = [8, 8], strides = [1, 1]} : vector<8x32xf32> to vector<8x8xf32>
    %994 = arith.truncf %993 : vector<8x8xf32> to vector<8x8xbf16>
    %cst_317 = arith.constant dense<0.000000e+00> : vector<8x8xf32>
    %995 = tpu.matmul %990, %992, %cst_317 {dimension_numbers = #tpu.dot_dimension_numbers<[1], [1], [0], [0], [0, 0, 1, 0], [], []>} : vector<8x8xbf16>, vector<8x8xbf16>, vector<8x8xf32> -> vector<8x8xf32>
    %cst_318 = arith.constant 0.353553385 : f32
    %996 = vector.broadcast %cst_318 : f32 to vector<8x8xf32>
    %997 = arith.mulf %995, %996 : vector<8x8xf32>
    %cst_319 = arith.constant dense<0xFF800000> : vector<8xf32>
    %998 = vector.multi_reduction <maximumf>, %997, %cst_319 [1] : vector<8x8xf32> to vector<8xf32>
    %999 = vector.shape_cast %998 : vector<8xf32> to vector<8x1xf32>
    %1000 = vector.broadcast %999 : vector<8x1xf32> to vector<8x8xf32>
    %1001 = arith.subf %997, %1000 : vector<8x8xf32>
    %1002 = math.exp %1001 : vector<8x8xf32>
    %cst_320 = arith.constant dense<0.000000e+00> : vector<8xf32>
    %1003 = vector.multi_reduction <add>, %1002, %cst_320 [1] : vector<8x8xf32> to vector<8xf32>
    %1004 = vector.shape_cast %1003 : vector<8xf32> to vector<8x1xf32>
    %1005 = tpu.reciprocal %1004 {approx = true} : vector<8x1xf32> -> vector<8x1xf32>
    %1006 = vector.broadcast %1005 : vector<8x1xf32> to vector<8x8xf32>
    %1007 = arith.mulf %1002, %1006 : vector<8x8xf32>
    %1008 = arith.truncf %1007 : vector<8x8xf32> to vector<8x8xbf16>
    %cst_321 = arith.constant dense<0.000000e+00> : vector<8x8xf32>
    %1009 = tpu.matmul %1008, %994, %cst_321 {dimension_numbers = #tpu.dot_dimension_numbers<[1], [0], [0], [1], [0, 0, 1, 1], [], []>} : vector<8x8xbf16>, vector<8x8xbf16>, vector<8x8xf32> -> vector<8x8xf32>
    %1010 = vector.extract_strided_slice %943 {offsets = [0, 24], sizes = [8, 8], strides = [1, 1]} : vector<8x32xf32> to vector<8x8xf32>
    %1011 = arith.truncf %1010 : vector<8x8xf32> to vector<8x8xbf16>
    %1012 = vector.extract_strided_slice %945 {offsets = [0, 24], sizes = [8, 8], strides = [1, 1]} : vector<8x32xf32> to vector<8x8xf32>
    %1013 = arith.truncf %1012 : vector<8x8xf32> to vector<8x8xbf16>
    %1014 = vector.extract_strided_slice %946 {offsets = [0, 24], sizes = [8, 8], strides = [1, 1]} : vector<8x32xf32> to vector<8x8xf32>
    %1015 = arith.truncf %1014 : vector<8x8xf32> to vector<8x8xbf16>
    %cst_322 = arith.constant dense<0.000000e+00> : vector<8x8xf32>
    %1016 = tpu.matmul %1011, %1013, %cst_322 {dimension_numbers = #tpu.dot_dimension_numbers<[1], [1], [0], [0], [0, 0, 1, 0], [], []>} : vector<8x8xbf16>, vector<8x8xbf16>, vector<8x8xf32> -> vector<8x8xf32>
    %cst_323 = arith.constant 0.353553385 : f32
    %1017 = vector.broadcast %cst_323 : f32 to vector<8x8xf32>
    %1018 = arith.mulf %1016, %1017 : vector<8x8xf32>
    %cst_324 = arith.constant dense<0xFF800000> : vector<8xf32>
    %1019 = vector.multi_reduction <maximumf>, %1018, %cst_324 [1] : vector<8x8xf32> to vector<8xf32>
    %1020 = vector.shape_cast %1019 : vector<8xf32> to vector<8x1xf32>
    %1021 = vector.broadcast %1020 : vector<8x1xf32> to vector<8x8xf32>
    %1022 = arith.subf %1018, %1021 : vector<8x8xf32>
    %1023 = math.exp %1022 : vector<8x8xf32>
    %cst_325 = arith.constant dense<0.000000e+00> : vector<8xf32>
    %1024 = vector.multi_reduction <add>, %1023, %cst_325 [1] : vector<8x8xf32> to vector<8xf32>
    %1025 = vector.shape_cast %1024 : vector<8xf32> to vector<8x1xf32>
    %1026 = tpu.reciprocal %1025 {approx = true} : vector<8x1xf32> -> vector<8x1xf32>
    %1027 = vector.broadcast %1026 : vector<8x1xf32> to vector<8x8xf32>
    %1028 = arith.mulf %1023, %1027 : vector<8x8xf32>
    %1029 = arith.truncf %1028 : vector<8x8xf32> to vector<8x8xbf16>
    %cst_326 = arith.constant dense<0.000000e+00> : vector<8x8xf32>
    %1030 = tpu.matmul %1029, %1015, %cst_326 {dimension_numbers = #tpu.dot_dimension_numbers<[1], [0], [0], [1], [0, 0, 1, 1], [], []>} : vector<8x8xbf16>, vector<8x8xbf16>, vector<8x8xf32> -> vector<8x8xf32>
    %1031 = tpu.concatenate %967, %988, %1009, %1030 in 1 : vector<8x8xf32>, vector<8x8xf32>, vector<8x8xf32>, vector<8x8xf32> -> vector<8x32xf32>
    %1032 = tpu.concatenate %942, %1031 in 0 : vector<8x32xf32>, vector<8x32xf32> -> vector<16x32xf32>
    %1033 = arith.truncf %1032 : vector<16x32xf32> to vector<16x32xbf16>
    %cst_327 = arith.constant dense<0.000000e+00> : vector<16x32xf32>
    %1034 = tpu.matmul %1033, %843, %cst_327 {dimension_numbers = #tpu.dot_dimension_numbers<[1], [0], [0], [1], [0, 0, 1, 1], [], []>} : vector<16x32xbf16>, vector<32x32xbf16>, vector<16x32xf32> -> vector<16x32xf32>
    %1035 = vector.broadcast %845 : vector<1x32xf32> to vector<16x32xf32>
    %1036 = arith.addf %1034, %1035 : vector<16x32xf32>
    %1037 = arith.addf %833, %1036 : vector<16x32xf32>
    %c0_328 = arith.constant 0 : index
    %c0_329 = arith.constant 0 : index
    %c0_330 = arith.constant 0 : index
    %1038 = vector.load %arg29[%c0_328, %c0_329, %c0_330] : memref<2x1x32xf32, #tpu.memory_space<vmem>>, vector<1x1x32xf32>
    %1039 = vector.shape_cast %1038 : vector<1x1x32xf32> to vector<1x32xf32>
    %c0_331 = arith.constant 0 : index
    %c0_332 = arith.constant 0 : index
    %c0_333 = arith.constant 0 : index
    %1040 = vector.load %arg30[%c0_331, %c0_332, %c0_333] : memref<2x1x32xf32, #tpu.memory_space<vmem>>, vector<1x1x32xf32>
    %1041 = vector.shape_cast %1040 : vector<1x1x32xf32> to vector<1x32xf32>
    %cst_334 = arith.constant dense<0.000000e+00> : vector<16xf32>
    %1042 = vector.multi_reduction <add>, %1037, %cst_334 [1] : vector<16x32xf32> to vector<16xf32>
    %1043 = vector.shape_cast %1042 : vector<16xf32> to vector<16x1xf32>
    %cst_335 = arith.constant 3.200000e+01 : f32
    %1044 = vector.broadcast %cst_335 : f32 to vector<16x1xf32>
    %1045 = arith.divf %1043, %1044 : vector<16x1xf32>
    %1046 = vector.broadcast %1045 : vector<16x1xf32> to vector<16x32xf32>
    %1047 = arith.subf %1037, %1046 : vector<16x32xf32>
    %1048 = arith.mulf %1047, %1047 : vector<16x32xf32>
    %cst_336 = arith.constant dense<0.000000e+00> : vector<16xf32>
    %1049 = vector.multi_reduction <add>, %1048, %cst_336 [1] : vector<16x32xf32> to vector<16xf32>
    %1050 = vector.shape_cast %1049 : vector<16xf32> to vector<16x1xf32>
    %cst_337 = arith.constant 3.200000e+01 : f32
    %1051 = vector.broadcast %cst_337 : f32 to vector<16x1xf32>
    %1052 = arith.divf %1050, %1051 : vector<16x1xf32>
    %1053 = vector.broadcast %1045 : vector<16x1xf32> to vector<16x32xf32>
    %1054 = arith.subf %1037, %1053 : vector<16x32xf32>
    %cst_338 = arith.constant 9.99999974E-6 : f32
    %1055 = vector.broadcast %cst_338 : f32 to vector<16x1xf32>
    %1056 = arith.addf %1052, %1055 : vector<16x1xf32>
    %1057 = math.rsqrt %1056 : vector<16x1xf32>
    %1058 = vector.broadcast %1057 : vector<16x1xf32> to vector<16x32xf32>
    %1059 = arith.mulf %1054, %1058 : vector<16x32xf32>
    %1060 = vector.broadcast %1039 : vector<1x32xf32> to vector<16x32xf32>
    %1061 = arith.mulf %1059, %1060 : vector<16x32xf32>
    %1062 = vector.broadcast %1041 : vector<1x32xf32> to vector<16x32xf32>
    %1063 = arith.addf %1061, %1062 : vector<16x32xf32>
    %c0_339 = arith.constant 0 : index
    %c0_340 = arith.constant 0 : index
    %c0_341 = arith.constant 0 : index
    %1064 = vector.load %arg31[%c0_339, %c0_340, %c0_341] : memref<2x32x64xbf16, #tpu.memory_space<vmem>>, vector<1x32x64xbf16>
    %1065 = vector.shape_cast %1064 : vector<1x32x64xbf16> to vector<32x64xbf16>
    %c0_342 = arith.constant 0 : index
    %c0_343 = arith.constant 0 : index
    %c0_344 = arith.constant 0 : index
    %1066 = vector.load %arg32[%c0_342, %c0_343, %c0_344] : memref<2x1x64xf32, #tpu.memory_space<vmem>>, vector<1x1x64xf32>
    %1067 = vector.shape_cast %1066 : vector<1x1x64xf32> to vector<1x64xf32>
    %c0_345 = arith.constant 0 : index
    %c0_346 = arith.constant 0 : index
    %c0_347 = arith.constant 0 : index
    %1068 = vector.load %arg33[%c0_345, %c0_346, %c0_347] : memref<2x64x32xbf16, #tpu.memory_space<vmem>>, vector<1x64x32xbf16>
    %1069 = vector.shape_cast %1068 : vector<1x64x32xbf16> to vector<64x32xbf16>
    %c0_348 = arith.constant 0 : index
    %c0_349 = arith.constant 0 : index
    %c0_350 = arith.constant 0 : index
    %1070 = vector.load %arg34[%c0_348, %c0_349, %c0_350] : memref<2x1x32xf32, #tpu.memory_space<vmem>>, vector<1x1x32xf32>
    %1071 = vector.shape_cast %1070 : vector<1x1x32xf32> to vector<1x32xf32>
    %1072 = arith.truncf %1063 : vector<16x32xf32> to vector<16x32xbf16>
    %cst_351 = arith.constant dense<0.000000e+00> : vector<16x64xf32>
    %1073 = tpu.matmul %1072, %1065, %cst_351 {dimension_numbers = #tpu.dot_dimension_numbers<[1], [0], [0], [1], [0, 0, 1, 1], [], []>} : vector<16x32xbf16>, vector<32x64xbf16>, vector<16x64xf32> -> vector<16x64xf32>
    %1074 = vector.broadcast %1067 : vector<1x64xf32> to vector<16x64xf32>
    %1075 = arith.addf %1073, %1074 : vector<16x64xf32>
    %cst_352 = arith.constant 0.000000e+00 : f32
    %1076 = vector.broadcast %cst_352 : f32 to vector<16x64xf32>
    %1077 = arith.maximumf %1075, %1076 : vector<16x64xf32>
    %1078 = arith.truncf %1077 : vector<16x64xf32> to vector<16x64xbf16>
    %cst_353 = arith.constant dense<0.000000e+00> : vector<16x32xf32>
    %1079 = tpu.matmul %1078, %1069, %cst_353 {dimension_numbers = #tpu.dot_dimension_numbers<[1], [0], [0], [1], [0, 0, 1, 1], [], []>} : vector<16x64xbf16>, vector<64x32xbf16>, vector<16x32xf32> -> vector<16x32xf32>
    %1080 = vector.broadcast %1071 : vector<1x32xf32> to vector<16x32xf32>
    %1081 = arith.addf %1079, %1080 : vector<16x32xf32>
    %1082 = arith.addf %1063, %1081 : vector<16x32xf32>
    %c0_354 = arith.constant 0 : index
    %c0_355 = arith.constant 0 : index
    %c0_356 = arith.constant 0 : index
    %1083 = vector.load %arg35[%c0_354, %c0_355, %c0_356] : memref<2x1x32xf32, #tpu.memory_space<vmem>>, vector<1x1x32xf32>
    %1084 = vector.shape_cast %1083 : vector<1x1x32xf32> to vector<1x32xf32>
    %c0_357 = arith.constant 0 : index
    %c0_358 = arith.constant 0 : index
    %c0_359 = arith.constant 0 : index
    %1085 = vector.load %arg36[%c0_357, %c0_358, %c0_359] : memref<2x1x32xf32, #tpu.memory_space<vmem>>, vector<1x1x32xf32>
    %1086 = vector.shape_cast %1085 : vector<1x1x32xf32> to vector<1x32xf32>
    %cst_360 = arith.constant dense<0.000000e+00> : vector<16xf32>
    %1087 = vector.multi_reduction <add>, %1082, %cst_360 [1] : vector<16x32xf32> to vector<16xf32>
    %1088 = vector.shape_cast %1087 : vector<16xf32> to vector<16x1xf32>
    %cst_361 = arith.constant 3.200000e+01 : f32
    %1089 = vector.broadcast %cst_361 : f32 to vector<16x1xf32>
    %1090 = arith.divf %1088, %1089 : vector<16x1xf32>
    %1091 = vector.broadcast %1090 : vector<16x1xf32> to vector<16x32xf32>
    %1092 = arith.subf %1082, %1091 : vector<16x32xf32>
    %1093 = arith.mulf %1092, %1092 : vector<16x32xf32>
    %cst_362 = arith.constant dense<0.000000e+00> : vector<16xf32>
    %1094 = vector.multi_reduction <add>, %1093, %cst_362 [1] : vector<16x32xf32> to vector<16xf32>
    %1095 = vector.shape_cast %1094 : vector<16xf32> to vector<16x1xf32>
    %cst_363 = arith.constant 3.200000e+01 : f32
    %1096 = vector.broadcast %cst_363 : f32 to vector<16x1xf32>
    %1097 = arith.divf %1095, %1096 : vector<16x1xf32>
    %1098 = vector.broadcast %1090 : vector<16x1xf32> to vector<16x32xf32>
    %1099 = arith.subf %1082, %1098 : vector<16x32xf32>
    %cst_364 = arith.constant 9.99999974E-6 : f32
    %1100 = vector.broadcast %cst_364 : f32 to vector<16x1xf32>
    %1101 = arith.addf %1097, %1100 : vector<16x1xf32>
    %1102 = math.rsqrt %1101 : vector<16x1xf32>
    %1103 = vector.broadcast %1102 : vector<16x1xf32> to vector<16x32xf32>
    %1104 = arith.mulf %1099, %1103 : vector<16x32xf32>
    %1105 = vector.broadcast %1084 : vector<1x32xf32> to vector<16x32xf32>
    %1106 = arith.mulf %1104, %1105 : vector<16x32xf32>
    %1107 = vector.broadcast %1086 : vector<1x32xf32> to vector<16x32xf32>
    %1108 = arith.addf %1106, %1107 : vector<16x32xf32>
    %c1_365 = arith.constant 1 : index
    %c0_366 = arith.constant 0 : index
    %c0_367 = arith.constant 0 : index
    %1109 = vector.load %arg17[%c1_365, %c0_366, %c0_367] : memref<2x32x96xbf16, #tpu.memory_space<vmem>>, vector<1x32x96xbf16>
    %1110 = vector.shape_cast %1109 : vector<1x32x96xbf16> to vector<32x96xbf16>
    %c1_368 = arith.constant 1 : index
    %c0_369 = arith.constant 0 : index
    %c0_370 = arith.constant 0 : index
    %1111 = vector.load %arg18[%c1_368, %c0_369, %c0_370] : memref<2x1x96xf32, #tpu.memory_space<vmem>>, vector<1x1x96xf32>
    %1112 = vector.shape_cast %1111 : vector<1x1x96xf32> to vector<1x96xf32>
    %c1_371 = arith.constant 1 : index
    %c0_372 = arith.constant 0 : index
    %c0_373 = arith.constant 0 : index
    %1113 = vector.load %arg19[%c1_371, %c0_372, %c0_373] : memref<2x32x32xbf16, #tpu.memory_space<vmem>>, vector<1x32x32xbf16>
    %1114 = vector.shape_cast %1113 : vector<1x32x32xbf16> to vector<32x32xbf16>
    %c1_374 = arith.constant 1 : index
    %c0_375 = arith.constant 0 : index
    %c0_376 = arith.constant 0 : index
    %1115 = vector.load %arg20[%c1_374, %c0_375, %c0_376] : memref<2x1x32xf32, #tpu.memory_space<vmem>>, vector<1x1x32xf32>
    %1116 = vector.shape_cast %1115 : vector<1x1x32xf32> to vector<1x32xf32>
    %1117 = arith.truncf %1108 : vector<16x32xf32> to vector<16x32xbf16>
    %cst_377 = arith.constant dense<0.000000e+00> : vector<16x96xf32>
    %1118 = tpu.matmul %1117, %1110, %cst_377 {dimension_numbers = #tpu.dot_dimension_numbers<[1], [0], [0], [1], [0, 0, 1, 1], [], []>} : vector<16x32xbf16>, vector<32x96xbf16>, vector<16x96xf32> -> vector<16x96xf32>
    %1119 = vector.broadcast %1112 : vector<1x96xf32> to vector<16x96xf32>
    %1120 = arith.addf %1118, %1119 : vector<16x96xf32>
    %1121 = vector.extract_strided_slice %1120 {offsets = [0, 0], sizes = [8, 96], strides = [1, 1]} : vector<16x96xf32> to vector<8x96xf32>
    %1122 = vector.extract_strided_slice %1121 {offsets = [0, 0], sizes = [8, 32], strides = [1, 1]} : vector<8x96xf32> to vector<8x32xf32>
    %1123 = vector.extract_strided_slice %1121 {offsets = [0, 32], sizes = [8, 32], strides = [1, 1]} : vector<8x96xf32> to vector<8x32xf32>
    %1124 = vector.extract_strided_slice %1121 {offsets = [0, 64], sizes = [8, 32], strides = [1, 1]} : vector<8x96xf32> to vector<8x32xf32>
    %1125 = vector.extract_strided_slice %1122 {offsets = [0, 0], sizes = [8, 8], strides = [1, 1]} : vector<8x32xf32> to vector<8x8xf32>
    %1126 = arith.truncf %1125 : vector<8x8xf32> to vector<8x8xbf16>
    %1127 = vector.extract_strided_slice %1123 {offsets = [0, 0], sizes = [8, 8], strides = [1, 1]} : vector<8x32xf32> to vector<8x8xf32>
    %1128 = arith.truncf %1127 : vector<8x8xf32> to vector<8x8xbf16>
    %1129 = vector.extract_strided_slice %1124 {offsets = [0, 0], sizes = [8, 8], strides = [1, 1]} : vector<8x32xf32> to vector<8x8xf32>
    %1130 = arith.truncf %1129 : vector<8x8xf32> to vector<8x8xbf16>
    %cst_378 = arith.constant dense<0.000000e+00> : vector<8x8xf32>
    %1131 = tpu.matmul %1126, %1128, %cst_378 {dimension_numbers = #tpu.dot_dimension_numbers<[1], [1], [0], [0], [0, 0, 1, 0], [], []>} : vector<8x8xbf16>, vector<8x8xbf16>, vector<8x8xf32> -> vector<8x8xf32>
    %cst_379 = arith.constant 0.353553385 : f32
    %1132 = vector.broadcast %cst_379 : f32 to vector<8x8xf32>
    %1133 = arith.mulf %1131, %1132 : vector<8x8xf32>
    %1134 = arith.addf %1133, %603 : vector<8x8xf32>
    %cst_380 = arith.constant dense<0xFF800000> : vector<8xf32>
    %1135 = vector.multi_reduction <maximumf>, %1134, %cst_380 [1] : vector<8x8xf32> to vector<8xf32>
    %1136 = vector.shape_cast %1135 : vector<8xf32> to vector<8x1xf32>
    %1137 = vector.broadcast %1136 : vector<8x1xf32> to vector<8x8xf32>
    %1138 = arith.subf %1134, %1137 : vector<8x8xf32>
    %1139 = math.exp %1138 : vector<8x8xf32>
    %cst_381 = arith.constant dense<0.000000e+00> : vector<8xf32>
    %1140 = vector.multi_reduction <add>, %1139, %cst_381 [1] : vector<8x8xf32> to vector<8xf32>
    %1141 = vector.shape_cast %1140 : vector<8xf32> to vector<8x1xf32>
    %1142 = tpu.reciprocal %1141 {approx = true} : vector<8x1xf32> -> vector<8x1xf32>
    %1143 = vector.broadcast %1142 : vector<8x1xf32> to vector<8x8xf32>
    %1144 = arith.mulf %1139, %1143 : vector<8x8xf32>
    %1145 = arith.truncf %1144 : vector<8x8xf32> to vector<8x8xbf16>
    %cst_382 = arith.constant dense<0.000000e+00> : vector<8x8xf32>
    %1146 = tpu.matmul %1145, %1130, %cst_382 {dimension_numbers = #tpu.dot_dimension_numbers<[1], [0], [0], [1], [0, 0, 1, 1], [], []>} : vector<8x8xbf16>, vector<8x8xbf16>, vector<8x8xf32> -> vector<8x8xf32>
    %1147 = vector.extract_strided_slice %1122 {offsets = [0, 8], sizes = [8, 8], strides = [1, 1]} : vector<8x32xf32> to vector<8x8xf32>
    %1148 = arith.truncf %1147 : vector<8x8xf32> to vector<8x8xbf16>
    %1149 = vector.extract_strided_slice %1123 {offsets = [0, 8], sizes = [8, 8], strides = [1, 1]} : vector<8x32xf32> to vector<8x8xf32>
    %1150 = arith.truncf %1149 : vector<8x8xf32> to vector<8x8xbf16>
    %1151 = vector.extract_strided_slice %1124 {offsets = [0, 8], sizes = [8, 8], strides = [1, 1]} : vector<8x32xf32> to vector<8x8xf32>
    %1152 = arith.truncf %1151 : vector<8x8xf32> to vector<8x8xbf16>
    %cst_383 = arith.constant dense<0.000000e+00> : vector<8x8xf32>
    %1153 = tpu.matmul %1148, %1150, %cst_383 {dimension_numbers = #tpu.dot_dimension_numbers<[1], [1], [0], [0], [0, 0, 1, 0], [], []>} : vector<8x8xbf16>, vector<8x8xbf16>, vector<8x8xf32> -> vector<8x8xf32>
    %cst_384 = arith.constant 0.353553385 : f32
    %1154 = vector.broadcast %cst_384 : f32 to vector<8x8xf32>
    %1155 = arith.mulf %1153, %1154 : vector<8x8xf32>
    %1156 = arith.addf %1155, %603 : vector<8x8xf32>
    %cst_385 = arith.constant dense<0xFF800000> : vector<8xf32>
    %1157 = vector.multi_reduction <maximumf>, %1156, %cst_385 [1] : vector<8x8xf32> to vector<8xf32>
    %1158 = vector.shape_cast %1157 : vector<8xf32> to vector<8x1xf32>
    %1159 = vector.broadcast %1158 : vector<8x1xf32> to vector<8x8xf32>
    %1160 = arith.subf %1156, %1159 : vector<8x8xf32>
    %1161 = math.exp %1160 : vector<8x8xf32>
    %cst_386 = arith.constant dense<0.000000e+00> : vector<8xf32>
    %1162 = vector.multi_reduction <add>, %1161, %cst_386 [1] : vector<8x8xf32> to vector<8xf32>
    %1163 = vector.shape_cast %1162 : vector<8xf32> to vector<8x1xf32>
    %1164 = tpu.reciprocal %1163 {approx = true} : vector<8x1xf32> -> vector<8x1xf32>
    %1165 = vector.broadcast %1164 : vector<8x1xf32> to vector<8x8xf32>
    %1166 = arith.mulf %1161, %1165 : vector<8x8xf32>
    %1167 = arith.truncf %1166 : vector<8x8xf32> to vector<8x8xbf16>
    %cst_387 = arith.constant dense<0.000000e+00> : vector<8x8xf32>
    %1168 = tpu.matmul %1167, %1152, %cst_387 {dimension_numbers = #tpu.dot_dimension_numbers<[1], [0], [0], [1], [0, 0, 1, 1], [], []>} : vector<8x8xbf16>, vector<8x8xbf16>, vector<8x8xf32> -> vector<8x8xf32>
    %1169 = vector.extract_strided_slice %1122 {offsets = [0, 16], sizes = [8, 8], strides = [1, 1]} : vector<8x32xf32> to vector<8x8xf32>
    %1170 = arith.truncf %1169 : vector<8x8xf32> to vector<8x8xbf16>
    %1171 = vector.extract_strided_slice %1123 {offsets = [0, 16], sizes = [8, 8], strides = [1, 1]} : vector<8x32xf32> to vector<8x8xf32>
    %1172 = arith.truncf %1171 : vector<8x8xf32> to vector<8x8xbf16>
    %1173 = vector.extract_strided_slice %1124 {offsets = [0, 16], sizes = [8, 8], strides = [1, 1]} : vector<8x32xf32> to vector<8x8xf32>
    %1174 = arith.truncf %1173 : vector<8x8xf32> to vector<8x8xbf16>
    %cst_388 = arith.constant dense<0.000000e+00> : vector<8x8xf32>
    %1175 = tpu.matmul %1170, %1172, %cst_388 {dimension_numbers = #tpu.dot_dimension_numbers<[1], [1], [0], [0], [0, 0, 1, 0], [], []>} : vector<8x8xbf16>, vector<8x8xbf16>, vector<8x8xf32> -> vector<8x8xf32>
    %cst_389 = arith.constant 0.353553385 : f32
    %1176 = vector.broadcast %cst_389 : f32 to vector<8x8xf32>
    %1177 = arith.mulf %1175, %1176 : vector<8x8xf32>
    %1178 = arith.addf %1177, %603 : vector<8x8xf32>
    %cst_390 = arith.constant dense<0xFF800000> : vector<8xf32>
    %1179 = vector.multi_reduction <maximumf>, %1178, %cst_390 [1] : vector<8x8xf32> to vector<8xf32>
    %1180 = vector.shape_cast %1179 : vector<8xf32> to vector<8x1xf32>
    %1181 = vector.broadcast %1180 : vector<8x1xf32> to vector<8x8xf32>
    %1182 = arith.subf %1178, %1181 : vector<8x8xf32>
    %1183 = math.exp %1182 : vector<8x8xf32>
    %cst_391 = arith.constant dense<0.000000e+00> : vector<8xf32>
    %1184 = vector.multi_reduction <add>, %1183, %cst_391 [1] : vector<8x8xf32> to vector<8xf32>
    %1185 = vector.shape_cast %1184 : vector<8xf32> to vector<8x1xf32>
    %1186 = tpu.reciprocal %1185 {approx = true} : vector<8x1xf32> -> vector<8x1xf32>
    %1187 = vector.broadcast %1186 : vector<8x1xf32> to vector<8x8xf32>
    %1188 = arith.mulf %1183, %1187 : vector<8x8xf32>
    %1189 = arith.truncf %1188 : vector<8x8xf32> to vector<8x8xbf16>
    %cst_392 = arith.constant dense<0.000000e+00> : vector<8x8xf32>
    %1190 = tpu.matmul %1189, %1174, %cst_392 {dimension_numbers = #tpu.dot_dimension_numbers<[1], [0], [0], [1], [0, 0, 1, 1], [], []>} : vector<8x8xbf16>, vector<8x8xbf16>, vector<8x8xf32> -> vector<8x8xf32>
    %1191 = vector.extract_strided_slice %1122 {offsets = [0, 24], sizes = [8, 8], strides = [1, 1]} : vector<8x32xf32> to vector<8x8xf32>
    %1192 = arith.truncf %1191 : vector<8x8xf32> to vector<8x8xbf16>
    %1193 = vector.extract_strided_slice %1123 {offsets = [0, 24], sizes = [8, 8], strides = [1, 1]} : vector<8x32xf32> to vector<8x8xf32>
    %1194 = arith.truncf %1193 : vector<8x8xf32> to vector<8x8xbf16>
    %1195 = vector.extract_strided_slice %1124 {offsets = [0, 24], sizes = [8, 8], strides = [1, 1]} : vector<8x32xf32> to vector<8x8xf32>
    %1196 = arith.truncf %1195 : vector<8x8xf32> to vector<8x8xbf16>
    %cst_393 = arith.constant dense<0.000000e+00> : vector<8x8xf32>
    %1197 = tpu.matmul %1192, %1194, %cst_393 {dimension_numbers = #tpu.dot_dimension_numbers<[1], [1], [0], [0], [0, 0, 1, 0], [], []>} : vector<8x8xbf16>, vector<8x8xbf16>, vector<8x8xf32> -> vector<8x8xf32>
    %cst_394 = arith.constant 0.353553385 : f32
    %1198 = vector.broadcast %cst_394 : f32 to vector<8x8xf32>
    %1199 = arith.mulf %1197, %1198 : vector<8x8xf32>
    %1200 = arith.addf %1199, %603 : vector<8x8xf32>
    %cst_395 = arith.constant dense<0xFF800000> : vector<8xf32>
    %1201 = vector.multi_reduction <maximumf>, %1200, %cst_395 [1] : vector<8x8xf32> to vector<8xf32>
    %1202 = vector.shape_cast %1201 : vector<8xf32> to vector<8x1xf32>
    %1203 = vector.broadcast %1202 : vector<8x1xf32> to vector<8x8xf32>
    %1204 = arith.subf %1200, %1203 : vector<8x8xf32>
    %1205 = math.exp %1204 : vector<8x8xf32>
    %cst_396 = arith.constant dense<0.000000e+00> : vector<8xf32>
    %1206 = vector.multi_reduction <add>, %1205, %cst_396 [1] : vector<8x8xf32> to vector<8xf32>
    %1207 = vector.shape_cast %1206 : vector<8xf32> to vector<8x1xf32>
    %1208 = tpu.reciprocal %1207 {approx = true} : vector<8x1xf32> -> vector<8x1xf32>
    %1209 = vector.broadcast %1208 : vector<8x1xf32> to vector<8x8xf32>
    %1210 = arith.mulf %1205, %1209 : vector<8x8xf32>
    %1211 = arith.truncf %1210 : vector<8x8xf32> to vector<8x8xbf16>
    %cst_397 = arith.constant dense<0.000000e+00> : vector<8x8xf32>
    %1212 = tpu.matmul %1211, %1196, %cst_397 {dimension_numbers = #tpu.dot_dimension_numbers<[1], [0], [0], [1], [0, 0, 1, 1], [], []>} : vector<8x8xbf16>, vector<8x8xbf16>, vector<8x8xf32> -> vector<8x8xf32>
    %1213 = tpu.concatenate %1146, %1168, %1190, %1212 in 1 : vector<8x8xf32>, vector<8x8xf32>, vector<8x8xf32>, vector<8x8xf32> -> vector<8x32xf32>
    %1214 = vector.extract_strided_slice %1120 {offsets = [8, 0], sizes = [8, 96], strides = [1, 1]} : vector<16x96xf32> to vector<8x96xf32>
    %1215 = vector.extract_strided_slice %1214 {offsets = [0, 0], sizes = [8, 32], strides = [1, 1]} : vector<8x96xf32> to vector<8x32xf32>
    %1216 = vector.extract_strided_slice %1214 {offsets = [0, 32], sizes = [8, 32], strides = [1, 1]} : vector<8x96xf32> to vector<8x32xf32>
    %1217 = vector.extract_strided_slice %1214 {offsets = [0, 64], sizes = [8, 32], strides = [1, 1]} : vector<8x96xf32> to vector<8x32xf32>
    %1218 = vector.extract_strided_slice %1215 {offsets = [0, 0], sizes = [8, 8], strides = [1, 1]} : vector<8x32xf32> to vector<8x8xf32>
    %1219 = arith.truncf %1218 : vector<8x8xf32> to vector<8x8xbf16>
    %1220 = vector.extract_strided_slice %1216 {offsets = [0, 0], sizes = [8, 8], strides = [1, 1]} : vector<8x32xf32> to vector<8x8xf32>
    %1221 = arith.truncf %1220 : vector<8x8xf32> to vector<8x8xbf16>
    %1222 = vector.extract_strided_slice %1217 {offsets = [0, 0], sizes = [8, 8], strides = [1, 1]} : vector<8x32xf32> to vector<8x8xf32>
    %1223 = arith.truncf %1222 : vector<8x8xf32> to vector<8x8xbf16>
    %cst_398 = arith.constant dense<0.000000e+00> : vector<8x8xf32>
    %1224 = tpu.matmul %1219, %1221, %cst_398 {dimension_numbers = #tpu.dot_dimension_numbers<[1], [1], [0], [0], [0, 0, 1, 0], [], []>} : vector<8x8xbf16>, vector<8x8xbf16>, vector<8x8xf32> -> vector<8x8xf32>
    %cst_399 = arith.constant 0.353553385 : f32
    %1225 = vector.broadcast %cst_399 : f32 to vector<8x8xf32>
    %1226 = arith.mulf %1224, %1225 : vector<8x8xf32>
    %1227 = arith.addf %1226, %603 : vector<8x8xf32>
    %cst_400 = arith.constant dense<0xFF800000> : vector<8xf32>
    %1228 = vector.multi_reduction <maximumf>, %1227, %cst_400 [1] : vector<8x8xf32> to vector<8xf32>
    %1229 = vector.shape_cast %1228 : vector<8xf32> to vector<8x1xf32>
    %1230 = vector.broadcast %1229 : vector<8x1xf32> to vector<8x8xf32>
    %1231 = arith.subf %1227, %1230 : vector<8x8xf32>
    %1232 = math.exp %1231 : vector<8x8xf32>
    %cst_401 = arith.constant dense<0.000000e+00> : vector<8xf32>
    %1233 = vector.multi_reduction <add>, %1232, %cst_401 [1] : vector<8x8xf32> to vector<8xf32>
    %1234 = vector.shape_cast %1233 : vector<8xf32> to vector<8x1xf32>
    %1235 = tpu.reciprocal %1234 {approx = true} : vector<8x1xf32> -> vector<8x1xf32>
    %1236 = vector.broadcast %1235 : vector<8x1xf32> to vector<8x8xf32>
    %1237 = arith.mulf %1232, %1236 : vector<8x8xf32>
    %1238 = arith.truncf %1237 : vector<8x8xf32> to vector<8x8xbf16>
    %cst_402 = arith.constant dense<0.000000e+00> : vector<8x8xf32>
    %1239 = tpu.matmul %1238, %1223, %cst_402 {dimension_numbers = #tpu.dot_dimension_numbers<[1], [0], [0], [1], [0, 0, 1, 1], [], []>} : vector<8x8xbf16>, vector<8x8xbf16>, vector<8x8xf32> -> vector<8x8xf32>
    %1240 = vector.extract_strided_slice %1215 {offsets = [0, 8], sizes = [8, 8], strides = [1, 1]} : vector<8x32xf32> to vector<8x8xf32>
    %1241 = arith.truncf %1240 : vector<8x8xf32> to vector<8x8xbf16>
    %1242 = vector.extract_strided_slice %1216 {offsets = [0, 8], sizes = [8, 8], strides = [1, 1]} : vector<8x32xf32> to vector<8x8xf32>
    %1243 = arith.truncf %1242 : vector<8x8xf32> to vector<8x8xbf16>
    %1244 = vector.extract_strided_slice %1217 {offsets = [0, 8], sizes = [8, 8], strides = [1, 1]} : vector<8x32xf32> to vector<8x8xf32>
    %1245 = arith.truncf %1244 : vector<8x8xf32> to vector<8x8xbf16>
    %cst_403 = arith.constant dense<0.000000e+00> : vector<8x8xf32>
    %1246 = tpu.matmul %1241, %1243, %cst_403 {dimension_numbers = #tpu.dot_dimension_numbers<[1], [1], [0], [0], [0, 0, 1, 0], [], []>} : vector<8x8xbf16>, vector<8x8xbf16>, vector<8x8xf32> -> vector<8x8xf32>
    %cst_404 = arith.constant 0.353553385 : f32
    %1247 = vector.broadcast %cst_404 : f32 to vector<8x8xf32>
    %1248 = arith.mulf %1246, %1247 : vector<8x8xf32>
    %1249 = arith.addf %1248, %603 : vector<8x8xf32>
    %cst_405 = arith.constant dense<0xFF800000> : vector<8xf32>
    %1250 = vector.multi_reduction <maximumf>, %1249, %cst_405 [1] : vector<8x8xf32> to vector<8xf32>
    %1251 = vector.shape_cast %1250 : vector<8xf32> to vector<8x1xf32>
    %1252 = vector.broadcast %1251 : vector<8x1xf32> to vector<8x8xf32>
    %1253 = arith.subf %1249, %1252 : vector<8x8xf32>
    %1254 = math.exp %1253 : vector<8x8xf32>
    %cst_406 = arith.constant dense<0.000000e+00> : vector<8xf32>
    %1255 = vector.multi_reduction <add>, %1254, %cst_406 [1] : vector<8x8xf32> to vector<8xf32>
    %1256 = vector.shape_cast %1255 : vector<8xf32> to vector<8x1xf32>
    %1257 = tpu.reciprocal %1256 {approx = true} : vector<8x1xf32> -> vector<8x1xf32>
    %1258 = vector.broadcast %1257 : vector<8x1xf32> to vector<8x8xf32>
    %1259 = arith.mulf %1254, %1258 : vector<8x8xf32>
    %1260 = arith.truncf %1259 : vector<8x8xf32> to vector<8x8xbf16>
    %cst_407 = arith.constant dense<0.000000e+00> : vector<8x8xf32>
    %1261 = tpu.matmul %1260, %1245, %cst_407 {dimension_numbers = #tpu.dot_dimension_numbers<[1], [0], [0], [1], [0, 0, 1, 1], [], []>} : vector<8x8xbf16>, vector<8x8xbf16>, vector<8x8xf32> -> vector<8x8xf32>
    %1262 = vector.extract_strided_slice %1215 {offsets = [0, 16], sizes = [8, 8], strides = [1, 1]} : vector<8x32xf32> to vector<8x8xf32>
    %1263 = arith.truncf %1262 : vector<8x8xf32> to vector<8x8xbf16>
    %1264 = vector.extract_strided_slice %1216 {offsets = [0, 16], sizes = [8, 8], strides = [1, 1]} : vector<8x32xf32> to vector<8x8xf32>
    %1265 = arith.truncf %1264 : vector<8x8xf32> to vector<8x8xbf16>
    %1266 = vector.extract_strided_slice %1217 {offsets = [0, 16], sizes = [8, 8], strides = [1, 1]} : vector<8x32xf32> to vector<8x8xf32>
    %1267 = arith.truncf %1266 : vector<8x8xf32> to vector<8x8xbf16>
    %cst_408 = arith.constant dense<0.000000e+00> : vector<8x8xf32>
    %1268 = tpu.matmul %1263, %1265, %cst_408 {dimension_numbers = #tpu.dot_dimension_numbers<[1], [1], [0], [0], [0, 0, 1, 0], [], []>} : vector<8x8xbf16>, vector<8x8xbf16>, vector<8x8xf32> -> vector<8x8xf32>
    %cst_409 = arith.constant 0.353553385 : f32
    %1269 = vector.broadcast %cst_409 : f32 to vector<8x8xf32>
    %1270 = arith.mulf %1268, %1269 : vector<8x8xf32>
    %1271 = arith.addf %1270, %603 : vector<8x8xf32>
    %cst_410 = arith.constant dense<0xFF800000> : vector<8xf32>
    %1272 = vector.multi_reduction <maximumf>, %1271, %cst_410 [1] : vector<8x8xf32> to vector<8xf32>
    %1273 = vector.shape_cast %1272 : vector<8xf32> to vector<8x1xf32>
    %1274 = vector.broadcast %1273 : vector<8x1xf32> to vector<8x8xf32>
    %1275 = arith.subf %1271, %1274 : vector<8x8xf32>
    %1276 = math.exp %1275 : vector<8x8xf32>
    %cst_411 = arith.constant dense<0.000000e+00> : vector<8xf32>
    %1277 = vector.multi_reduction <add>, %1276, %cst_411 [1] : vector<8x8xf32> to vector<8xf32>
    %1278 = vector.shape_cast %1277 : vector<8xf32> to vector<8x1xf32>
    %1279 = tpu.reciprocal %1278 {approx = true} : vector<8x1xf32> -> vector<8x1xf32>
    %1280 = vector.broadcast %1279 : vector<8x1xf32> to vector<8x8xf32>
    %1281 = arith.mulf %1276, %1280 : vector<8x8xf32>
    %1282 = arith.truncf %1281 : vector<8x8xf32> to vector<8x8xbf16>
    %cst_412 = arith.constant dense<0.000000e+00> : vector<8x8xf32>
    %1283 = tpu.matmul %1282, %1267, %cst_412 {dimension_numbers = #tpu.dot_dimension_numbers<[1], [0], [0], [1], [0, 0, 1, 1], [], []>} : vector<8x8xbf16>, vector<8x8xbf16>, vector<8x8xf32> -> vector<8x8xf32>
    %1284 = vector.extract_strided_slice %1215 {offsets = [0, 24], sizes = [8, 8], strides = [1, 1]} : vector<8x32xf32> to vector<8x8xf32>
    %1285 = arith.truncf %1284 : vector<8x8xf32> to vector<8x8xbf16>
    %1286 = vector.extract_strided_slice %1216 {offsets = [0, 24], sizes = [8, 8], strides = [1, 1]} : vector<8x32xf32> to vector<8x8xf32>
    %1287 = arith.truncf %1286 : vector<8x8xf32> to vector<8x8xbf16>
    %1288 = vector.extract_strided_slice %1217 {offsets = [0, 24], sizes = [8, 8], strides = [1, 1]} : vector<8x32xf32> to vector<8x8xf32>
    %1289 = arith.truncf %1288 : vector<8x8xf32> to vector<8x8xbf16>
    %cst_413 = arith.constant dense<0.000000e+00> : vector<8x8xf32>
    %1290 = tpu.matmul %1285, %1287, %cst_413 {dimension_numbers = #tpu.dot_dimension_numbers<[1], [1], [0], [0], [0, 0, 1, 0], [], []>} : vector<8x8xbf16>, vector<8x8xbf16>, vector<8x8xf32> -> vector<8x8xf32>
    %cst_414 = arith.constant 0.353553385 : f32
    %1291 = vector.broadcast %cst_414 : f32 to vector<8x8xf32>
    %1292 = arith.mulf %1290, %1291 : vector<8x8xf32>
    %1293 = arith.addf %1292, %603 : vector<8x8xf32>
    %cst_415 = arith.constant dense<0xFF800000> : vector<8xf32>
    %1294 = vector.multi_reduction <maximumf>, %1293, %cst_415 [1] : vector<8x8xf32> to vector<8xf32>
    %1295 = vector.shape_cast %1294 : vector<8xf32> to vector<8x1xf32>
    %1296 = vector.broadcast %1295 : vector<8x1xf32> to vector<8x8xf32>
    %1297 = arith.subf %1293, %1296 : vector<8x8xf32>
    %1298 = math.exp %1297 : vector<8x8xf32>
    %cst_416 = arith.constant dense<0.000000e+00> : vector<8xf32>
    %1299 = vector.multi_reduction <add>, %1298, %cst_416 [1] : vector<8x8xf32> to vector<8xf32>
    %1300 = vector.shape_cast %1299 : vector<8xf32> to vector<8x1xf32>
    %1301 = tpu.reciprocal %1300 {approx = true} : vector<8x1xf32> -> vector<8x1xf32>
    %1302 = vector.broadcast %1301 : vector<8x1xf32> to vector<8x8xf32>
    %1303 = arith.mulf %1298, %1302 : vector<8x8xf32>
    %1304 = arith.truncf %1303 : vector<8x8xf32> to vector<8x8xbf16>
    %cst_417 = arith.constant dense<0.000000e+00> : vector<8x8xf32>
    %1305 = tpu.matmul %1304, %1289, %cst_417 {dimension_numbers = #tpu.dot_dimension_numbers<[1], [0], [0], [1], [0, 0, 1, 1], [], []>} : vector<8x8xbf16>, vector<8x8xbf16>, vector<8x8xf32> -> vector<8x8xf32>
    %1306 = tpu.concatenate %1239, %1261, %1283, %1305 in 1 : vector<8x8xf32>, vector<8x8xf32>, vector<8x8xf32>, vector<8x8xf32> -> vector<8x32xf32>
    %1307 = tpu.concatenate %1213, %1306 in 0 : vector<8x32xf32>, vector<8x32xf32> -> vector<16x32xf32>
    %1308 = arith.truncf %1307 : vector<16x32xf32> to vector<16x32xbf16>
    %cst_418 = arith.constant dense<0.000000e+00> : vector<16x32xf32>
    %1309 = tpu.matmul %1308, %1114, %cst_418 {dimension_numbers = #tpu.dot_dimension_numbers<[1], [0], [0], [1], [0, 0, 1, 1], [], []>} : vector<16x32xbf16>, vector<32x32xbf16>, vector<16x32xf32> -> vector<16x32xf32>
    %1310 = vector.broadcast %1116 : vector<1x32xf32> to vector<16x32xf32>
    %1311 = arith.addf %1309, %1310 : vector<16x32xf32>
    %1312 = arith.addf %1108, %1311 : vector<16x32xf32>
    %c1_419 = arith.constant 1 : index
    %c0_420 = arith.constant 0 : index
    %c0_421 = arith.constant 0 : index
    %1313 = vector.load %arg21[%c1_419, %c0_420, %c0_421] : memref<2x1x32xf32, #tpu.memory_space<vmem>>, vector<1x1x32xf32>
    %1314 = vector.shape_cast %1313 : vector<1x1x32xf32> to vector<1x32xf32>
    %c1_422 = arith.constant 1 : index
    %c0_423 = arith.constant 0 : index
    %c0_424 = arith.constant 0 : index
    %1315 = vector.load %arg22[%c1_422, %c0_423, %c0_424] : memref<2x1x32xf32, #tpu.memory_space<vmem>>, vector<1x1x32xf32>
    %1316 = vector.shape_cast %1315 : vector<1x1x32xf32> to vector<1x32xf32>
    %cst_425 = arith.constant dense<0.000000e+00> : vector<16xf32>
    %1317 = vector.multi_reduction <add>, %1312, %cst_425 [1] : vector<16x32xf32> to vector<16xf32>
    %1318 = vector.shape_cast %1317 : vector<16xf32> to vector<16x1xf32>
    %cst_426 = arith.constant 3.200000e+01 : f32
    %1319 = vector.broadcast %cst_426 : f32 to vector<16x1xf32>
    %1320 = arith.divf %1318, %1319 : vector<16x1xf32>
    %1321 = vector.broadcast %1320 : vector<16x1xf32> to vector<16x32xf32>
    %1322 = arith.subf %1312, %1321 : vector<16x32xf32>
    %1323 = arith.mulf %1322, %1322 : vector<16x32xf32>
    %cst_427 = arith.constant dense<0.000000e+00> : vector<16xf32>
    %1324 = vector.multi_reduction <add>, %1323, %cst_427 [1] : vector<16x32xf32> to vector<16xf32>
    %1325 = vector.shape_cast %1324 : vector<16xf32> to vector<16x1xf32>
    %cst_428 = arith.constant 3.200000e+01 : f32
    %1326 = vector.broadcast %cst_428 : f32 to vector<16x1xf32>
    %1327 = arith.divf %1325, %1326 : vector<16x1xf32>
    %1328 = vector.broadcast %1320 : vector<16x1xf32> to vector<16x32xf32>
    %1329 = arith.subf %1312, %1328 : vector<16x32xf32>
    %cst_429 = arith.constant 9.99999974E-6 : f32
    %1330 = vector.broadcast %cst_429 : f32 to vector<16x1xf32>
    %1331 = arith.addf %1327, %1330 : vector<16x1xf32>
    %1332 = math.rsqrt %1331 : vector<16x1xf32>
    %1333 = vector.broadcast %1332 : vector<16x1xf32> to vector<16x32xf32>
    %1334 = arith.mulf %1329, %1333 : vector<16x32xf32>
    %1335 = vector.broadcast %1314 : vector<1x32xf32> to vector<16x32xf32>
    %1336 = arith.mulf %1334, %1335 : vector<16x32xf32>
    %1337 = vector.broadcast %1316 : vector<1x32xf32> to vector<16x32xf32>
    %1338 = arith.addf %1336, %1337 : vector<16x32xf32>
    %c1_430 = arith.constant 1 : index
    %c0_431 = arith.constant 0 : index
    %c0_432 = arith.constant 0 : index
    %1339 = vector.load %arg23[%c1_430, %c0_431, %c0_432] : memref<2x32x32xbf16, #tpu.memory_space<vmem>>, vector<1x32x32xbf16>
    %1340 = vector.shape_cast %1339 : vector<1x32x32xbf16> to vector<32x32xbf16>
    %c1_433 = arith.constant 1 : index
    %c0_434 = arith.constant 0 : index
    %c0_435 = arith.constant 0 : index
    %1341 = vector.load %arg24[%c1_433, %c0_434, %c0_435] : memref<2x1x32xf32, #tpu.memory_space<vmem>>, vector<1x1x32xf32>
    %1342 = vector.shape_cast %1341 : vector<1x1x32xf32> to vector<1x32xf32>
    %c1_436 = arith.constant 1 : index
    %c0_437 = arith.constant 0 : index
    %c0_438 = arith.constant 0 : index
    %1343 = vector.load %arg25[%c1_436, %c0_437, %c0_438] : memref<2x32x64xbf16, #tpu.memory_space<vmem>>, vector<1x32x64xbf16>
    %1344 = vector.shape_cast %1343 : vector<1x32x64xbf16> to vector<32x64xbf16>
    %c1_439 = arith.constant 1 : index
    %c0_440 = arith.constant 0 : index
    %c0_441 = arith.constant 0 : index
    %1345 = vector.load %arg26[%c1_439, %c0_440, %c0_441] : memref<2x1x64xf32, #tpu.memory_space<vmem>>, vector<1x1x64xf32>
    %1346 = vector.shape_cast %1345 : vector<1x1x64xf32> to vector<1x64xf32>
    %c1_442 = arith.constant 1 : index
    %c0_443 = arith.constant 0 : index
    %c0_444 = arith.constant 0 : index
    %1347 = vector.load %arg27[%c1_442, %c0_443, %c0_444] : memref<2x32x32xbf16, #tpu.memory_space<vmem>>, vector<1x32x32xbf16>
    %1348 = vector.shape_cast %1347 : vector<1x32x32xbf16> to vector<32x32xbf16>
    %c1_445 = arith.constant 1 : index
    %c0_446 = arith.constant 0 : index
    %c0_447 = arith.constant 0 : index
    %1349 = vector.load %arg28[%c1_445, %c0_446, %c0_447] : memref<2x1x32xf32, #tpu.memory_space<vmem>>, vector<1x1x32xf32>
    %1350 = vector.shape_cast %1349 : vector<1x1x32xf32> to vector<1x32xf32>
    %1351 = arith.truncf %1338 : vector<16x32xf32> to vector<16x32xbf16>
    %cst_448 = arith.constant dense<0.000000e+00> : vector<16x32xf32>
    %1352 = tpu.matmul %1351, %1340, %cst_448 {dimension_numbers = #tpu.dot_dimension_numbers<[1], [0], [0], [1], [0, 0, 1, 1], [], []>} : vector<16x32xbf16>, vector<32x32xbf16>, vector<16x32xf32> -> vector<16x32xf32>
    %1353 = vector.broadcast %1342 : vector<1x32xf32> to vector<16x32xf32>
    %1354 = arith.addf %1352, %1353 : vector<16x32xf32>
    %1355 = arith.truncf %597 : vector<16x32xf32> to vector<16x32xbf16>
    %cst_449 = arith.constant dense<0.000000e+00> : vector<16x64xf32>
    %1356 = tpu.matmul %1355, %1344, %cst_449 {dimension_numbers = #tpu.dot_dimension_numbers<[1], [0], [0], [1], [0, 0, 1, 1], [], []>} : vector<16x32xbf16>, vector<32x64xbf16>, vector<16x64xf32> -> vector<16x64xf32>
    %1357 = vector.broadcast %1346 : vector<1x64xf32> to vector<16x64xf32>
    %1358 = arith.addf %1356, %1357 : vector<16x64xf32>
    %1359 = vector.extract_strided_slice %1354 {offsets = [0, 0], sizes = [8, 32], strides = [1, 1]} : vector<16x32xf32> to vector<8x32xf32>
    %1360 = vector.extract_strided_slice %1358 {offsets = [0, 0], sizes = [8, 64], strides = [1, 1]} : vector<16x64xf32> to vector<8x64xf32>
    %1361 = vector.extract_strided_slice %1360 {offsets = [0, 0], sizes = [8, 32], strides = [1, 1]} : vector<8x64xf32> to vector<8x32xf32>
    %1362 = vector.extract_strided_slice %1360 {offsets = [0, 32], sizes = [8, 32], strides = [1, 1]} : vector<8x64xf32> to vector<8x32xf32>
    %1363 = vector.extract_strided_slice %1359 {offsets = [0, 0], sizes = [8, 8], strides = [1, 1]} : vector<8x32xf32> to vector<8x8xf32>
    %1364 = arith.truncf %1363 : vector<8x8xf32> to vector<8x8xbf16>
    %1365 = vector.extract_strided_slice %1361 {offsets = [0, 0], sizes = [8, 8], strides = [1, 1]} : vector<8x32xf32> to vector<8x8xf32>
    %1366 = arith.truncf %1365 : vector<8x8xf32> to vector<8x8xbf16>
    %1367 = vector.extract_strided_slice %1362 {offsets = [0, 0], sizes = [8, 8], strides = [1, 1]} : vector<8x32xf32> to vector<8x8xf32>
    %1368 = arith.truncf %1367 : vector<8x8xf32> to vector<8x8xbf16>
    %cst_450 = arith.constant dense<0.000000e+00> : vector<8x8xf32>
    %1369 = tpu.matmul %1364, %1366, %cst_450 {dimension_numbers = #tpu.dot_dimension_numbers<[1], [1], [0], [0], [0, 0, 1, 0], [], []>} : vector<8x8xbf16>, vector<8x8xbf16>, vector<8x8xf32> -> vector<8x8xf32>
    %cst_451 = arith.constant 0.353553385 : f32
    %1370 = vector.broadcast %cst_451 : f32 to vector<8x8xf32>
    %1371 = arith.mulf %1369, %1370 : vector<8x8xf32>
    %cst_452 = arith.constant dense<0xFF800000> : vector<8xf32>
    %1372 = vector.multi_reduction <maximumf>, %1371, %cst_452 [1] : vector<8x8xf32> to vector<8xf32>
    %1373 = vector.shape_cast %1372 : vector<8xf32> to vector<8x1xf32>
    %1374 = vector.broadcast %1373 : vector<8x1xf32> to vector<8x8xf32>
    %1375 = arith.subf %1371, %1374 : vector<8x8xf32>
    %1376 = math.exp %1375 : vector<8x8xf32>
    %cst_453 = arith.constant dense<0.000000e+00> : vector<8xf32>
    %1377 = vector.multi_reduction <add>, %1376, %cst_453 [1] : vector<8x8xf32> to vector<8xf32>
    %1378 = vector.shape_cast %1377 : vector<8xf32> to vector<8x1xf32>
    %1379 = tpu.reciprocal %1378 {approx = true} : vector<8x1xf32> -> vector<8x1xf32>
    %1380 = vector.broadcast %1379 : vector<8x1xf32> to vector<8x8xf32>
    %1381 = arith.mulf %1376, %1380 : vector<8x8xf32>
    %1382 = arith.truncf %1381 : vector<8x8xf32> to vector<8x8xbf16>
    %cst_454 = arith.constant dense<0.000000e+00> : vector<8x8xf32>
    %1383 = tpu.matmul %1382, %1368, %cst_454 {dimension_numbers = #tpu.dot_dimension_numbers<[1], [0], [0], [1], [0, 0, 1, 1], [], []>} : vector<8x8xbf16>, vector<8x8xbf16>, vector<8x8xf32> -> vector<8x8xf32>
    %1384 = vector.extract_strided_slice %1359 {offsets = [0, 8], sizes = [8, 8], strides = [1, 1]} : vector<8x32xf32> to vector<8x8xf32>
    %1385 = arith.truncf %1384 : vector<8x8xf32> to vector<8x8xbf16>
    %1386 = vector.extract_strided_slice %1361 {offsets = [0, 8], sizes = [8, 8], strides = [1, 1]} : vector<8x32xf32> to vector<8x8xf32>
    %1387 = arith.truncf %1386 : vector<8x8xf32> to vector<8x8xbf16>
    %1388 = vector.extract_strided_slice %1362 {offsets = [0, 8], sizes = [8, 8], strides = [1, 1]} : vector<8x32xf32> to vector<8x8xf32>
    %1389 = arith.truncf %1388 : vector<8x8xf32> to vector<8x8xbf16>
    %cst_455 = arith.constant dense<0.000000e+00> : vector<8x8xf32>
    %1390 = tpu.matmul %1385, %1387, %cst_455 {dimension_numbers = #tpu.dot_dimension_numbers<[1], [1], [0], [0], [0, 0, 1, 0], [], []>} : vector<8x8xbf16>, vector<8x8xbf16>, vector<8x8xf32> -> vector<8x8xf32>
    %cst_456 = arith.constant 0.353553385 : f32
    %1391 = vector.broadcast %cst_456 : f32 to vector<8x8xf32>
    %1392 = arith.mulf %1390, %1391 : vector<8x8xf32>
    %cst_457 = arith.constant dense<0xFF800000> : vector<8xf32>
    %1393 = vector.multi_reduction <maximumf>, %1392, %cst_457 [1] : vector<8x8xf32> to vector<8xf32>
    %1394 = vector.shape_cast %1393 : vector<8xf32> to vector<8x1xf32>
    %1395 = vector.broadcast %1394 : vector<8x1xf32> to vector<8x8xf32>
    %1396 = arith.subf %1392, %1395 : vector<8x8xf32>
    %1397 = math.exp %1396 : vector<8x8xf32>
    %cst_458 = arith.constant dense<0.000000e+00> : vector<8xf32>
    %1398 = vector.multi_reduction <add>, %1397, %cst_458 [1] : vector<8x8xf32> to vector<8xf32>
    %1399 = vector.shape_cast %1398 : vector<8xf32> to vector<8x1xf32>
    %1400 = tpu.reciprocal %1399 {approx = true} : vector<8x1xf32> -> vector<8x1xf32>
    %1401 = vector.broadcast %1400 : vector<8x1xf32> to vector<8x8xf32>
    %1402 = arith.mulf %1397, %1401 : vector<8x8xf32>
    %1403 = arith.truncf %1402 : vector<8x8xf32> to vector<8x8xbf16>
    %cst_459 = arith.constant dense<0.000000e+00> : vector<8x8xf32>
    %1404 = tpu.matmul %1403, %1389, %cst_459 {dimension_numbers = #tpu.dot_dimension_numbers<[1], [0], [0], [1], [0, 0, 1, 1], [], []>} : vector<8x8xbf16>, vector<8x8xbf16>, vector<8x8xf32> -> vector<8x8xf32>
    %1405 = vector.extract_strided_slice %1359 {offsets = [0, 16], sizes = [8, 8], strides = [1, 1]} : vector<8x32xf32> to vector<8x8xf32>
    %1406 = arith.truncf %1405 : vector<8x8xf32> to vector<8x8xbf16>
    %1407 = vector.extract_strided_slice %1361 {offsets = [0, 16], sizes = [8, 8], strides = [1, 1]} : vector<8x32xf32> to vector<8x8xf32>
    %1408 = arith.truncf %1407 : vector<8x8xf32> to vector<8x8xbf16>
    %1409 = vector.extract_strided_slice %1362 {offsets = [0, 16], sizes = [8, 8], strides = [1, 1]} : vector<8x32xf32> to vector<8x8xf32>
    %1410 = arith.truncf %1409 : vector<8x8xf32> to vector<8x8xbf16>
    %cst_460 = arith.constant dense<0.000000e+00> : vector<8x8xf32>
    %1411 = tpu.matmul %1406, %1408, %cst_460 {dimension_numbers = #tpu.dot_dimension_numbers<[1], [1], [0], [0], [0, 0, 1, 0], [], []>} : vector<8x8xbf16>, vector<8x8xbf16>, vector<8x8xf32> -> vector<8x8xf32>
    %cst_461 = arith.constant 0.353553385 : f32
    %1412 = vector.broadcast %cst_461 : f32 to vector<8x8xf32>
    %1413 = arith.mulf %1411, %1412 : vector<8x8xf32>
    %cst_462 = arith.constant dense<0xFF800000> : vector<8xf32>
    %1414 = vector.multi_reduction <maximumf>, %1413, %cst_462 [1] : vector<8x8xf32> to vector<8xf32>
    %1415 = vector.shape_cast %1414 : vector<8xf32> to vector<8x1xf32>
    %1416 = vector.broadcast %1415 : vector<8x1xf32> to vector<8x8xf32>
    %1417 = arith.subf %1413, %1416 : vector<8x8xf32>
    %1418 = math.exp %1417 : vector<8x8xf32>
    %cst_463 = arith.constant dense<0.000000e+00> : vector<8xf32>
    %1419 = vector.multi_reduction <add>, %1418, %cst_463 [1] : vector<8x8xf32> to vector<8xf32>
    %1420 = vector.shape_cast %1419 : vector<8xf32> to vector<8x1xf32>
    %1421 = tpu.reciprocal %1420 {approx = true} : vector<8x1xf32> -> vector<8x1xf32>
    %1422 = vector.broadcast %1421 : vector<8x1xf32> to vector<8x8xf32>
    %1423 = arith.mulf %1418, %1422 : vector<8x8xf32>
    %1424 = arith.truncf %1423 : vector<8x8xf32> to vector<8x8xbf16>
    %cst_464 = arith.constant dense<0.000000e+00> : vector<8x8xf32>
    %1425 = tpu.matmul %1424, %1410, %cst_464 {dimension_numbers = #tpu.dot_dimension_numbers<[1], [0], [0], [1], [0, 0, 1, 1], [], []>} : vector<8x8xbf16>, vector<8x8xbf16>, vector<8x8xf32> -> vector<8x8xf32>
    %1426 = vector.extract_strided_slice %1359 {offsets = [0, 24], sizes = [8, 8], strides = [1, 1]} : vector<8x32xf32> to vector<8x8xf32>
    %1427 = arith.truncf %1426 : vector<8x8xf32> to vector<8x8xbf16>
    %1428 = vector.extract_strided_slice %1361 {offsets = [0, 24], sizes = [8, 8], strides = [1, 1]} : vector<8x32xf32> to vector<8x8xf32>
    %1429 = arith.truncf %1428 : vector<8x8xf32> to vector<8x8xbf16>
    %1430 = vector.extract_strided_slice %1362 {offsets = [0, 24], sizes = [8, 8], strides = [1, 1]} : vector<8x32xf32> to vector<8x8xf32>
    %1431 = arith.truncf %1430 : vector<8x8xf32> to vector<8x8xbf16>
    %cst_465 = arith.constant dense<0.000000e+00> : vector<8x8xf32>
    %1432 = tpu.matmul %1427, %1429, %cst_465 {dimension_numbers = #tpu.dot_dimension_numbers<[1], [1], [0], [0], [0, 0, 1, 0], [], []>} : vector<8x8xbf16>, vector<8x8xbf16>, vector<8x8xf32> -> vector<8x8xf32>
    %cst_466 = arith.constant 0.353553385 : f32
    %1433 = vector.broadcast %cst_466 : f32 to vector<8x8xf32>
    %1434 = arith.mulf %1432, %1433 : vector<8x8xf32>
    %cst_467 = arith.constant dense<0xFF800000> : vector<8xf32>
    %1435 = vector.multi_reduction <maximumf>, %1434, %cst_467 [1] : vector<8x8xf32> to vector<8xf32>
    %1436 = vector.shape_cast %1435 : vector<8xf32> to vector<8x1xf32>
    %1437 = vector.broadcast %1436 : vector<8x1xf32> to vector<8x8xf32>
    %1438 = arith.subf %1434, %1437 : vector<8x8xf32>
    %1439 = math.exp %1438 : vector<8x8xf32>
    %cst_468 = arith.constant dense<0.000000e+00> : vector<8xf32>
    %1440 = vector.multi_reduction <add>, %1439, %cst_468 [1] : vector<8x8xf32> to vector<8xf32>
    %1441 = vector.shape_cast %1440 : vector<8xf32> to vector<8x1xf32>
    %1442 = tpu.reciprocal %1441 {approx = true} : vector<8x1xf32> -> vector<8x1xf32>
    %1443 = vector.broadcast %1442 : vector<8x1xf32> to vector<8x8xf32>
    %1444 = arith.mulf %1439, %1443 : vector<8x8xf32>
    %1445 = arith.truncf %1444 : vector<8x8xf32> to vector<8x8xbf16>
    %cst_469 = arith.constant dense<0.000000e+00> : vector<8x8xf32>
    %1446 = tpu.matmul %1445, %1431, %cst_469 {dimension_numbers = #tpu.dot_dimension_numbers<[1], [0], [0], [1], [0, 0, 1, 1], [], []>} : vector<8x8xbf16>, vector<8x8xbf16>, vector<8x8xf32> -> vector<8x8xf32>
    %1447 = tpu.concatenate %1383, %1404, %1425, %1446 in 1 : vector<8x8xf32>, vector<8x8xf32>, vector<8x8xf32>, vector<8x8xf32> -> vector<8x32xf32>
    %1448 = vector.extract_strided_slice %1354 {offsets = [8, 0], sizes = [8, 32], strides = [1, 1]} : vector<16x32xf32> to vector<8x32xf32>
    %1449 = vector.extract_strided_slice %1358 {offsets = [8, 0], sizes = [8, 64], strides = [1, 1]} : vector<16x64xf32> to vector<8x64xf32>
    %1450 = vector.extract_strided_slice %1449 {offsets = [0, 0], sizes = [8, 32], strides = [1, 1]} : vector<8x64xf32> to vector<8x32xf32>
    %1451 = vector.extract_strided_slice %1449 {offsets = [0, 32], sizes = [8, 32], strides = [1, 1]} : vector<8x64xf32> to vector<8x32xf32>
    %1452 = vector.extract_strided_slice %1448 {offsets = [0, 0], sizes = [8, 8], strides = [1, 1]} : vector<8x32xf32> to vector<8x8xf32>
    %1453 = arith.truncf %1452 : vector<8x8xf32> to vector<8x8xbf16>
    %1454 = vector.extract_strided_slice %1450 {offsets = [0, 0], sizes = [8, 8], strides = [1, 1]} : vector<8x32xf32> to vector<8x8xf32>
    %1455 = arith.truncf %1454 : vector<8x8xf32> to vector<8x8xbf16>
    %1456 = vector.extract_strided_slice %1451 {offsets = [0, 0], sizes = [8, 8], strides = [1, 1]} : vector<8x32xf32> to vector<8x8xf32>
    %1457 = arith.truncf %1456 : vector<8x8xf32> to vector<8x8xbf16>
    %cst_470 = arith.constant dense<0.000000e+00> : vector<8x8xf32>
    %1458 = tpu.matmul %1453, %1455, %cst_470 {dimension_numbers = #tpu.dot_dimension_numbers<[1], [1], [0], [0], [0, 0, 1, 0], [], []>} : vector<8x8xbf16>, vector<8x8xbf16>, vector<8x8xf32> -> vector<8x8xf32>
    %cst_471 = arith.constant 0.353553385 : f32
    %1459 = vector.broadcast %cst_471 : f32 to vector<8x8xf32>
    %1460 = arith.mulf %1458, %1459 : vector<8x8xf32>
    %cst_472 = arith.constant dense<0xFF800000> : vector<8xf32>
    %1461 = vector.multi_reduction <maximumf>, %1460, %cst_472 [1] : vector<8x8xf32> to vector<8xf32>
    %1462 = vector.shape_cast %1461 : vector<8xf32> to vector<8x1xf32>
    %1463 = vector.broadcast %1462 : vector<8x1xf32> to vector<8x8xf32>
    %1464 = arith.subf %1460, %1463 : vector<8x8xf32>
    %1465 = math.exp %1464 : vector<8x8xf32>
    %cst_473 = arith.constant dense<0.000000e+00> : vector<8xf32>
    %1466 = vector.multi_reduction <add>, %1465, %cst_473 [1] : vector<8x8xf32> to vector<8xf32>
    %1467 = vector.shape_cast %1466 : vector<8xf32> to vector<8x1xf32>
    %1468 = tpu.reciprocal %1467 {approx = true} : vector<8x1xf32> -> vector<8x1xf32>
    %1469 = vector.broadcast %1468 : vector<8x1xf32> to vector<8x8xf32>
    %1470 = arith.mulf %1465, %1469 : vector<8x8xf32>
    %1471 = arith.truncf %1470 : vector<8x8xf32> to vector<8x8xbf16>
    %cst_474 = arith.constant dense<0.000000e+00> : vector<8x8xf32>
    %1472 = tpu.matmul %1471, %1457, %cst_474 {dimension_numbers = #tpu.dot_dimension_numbers<[1], [0], [0], [1], [0, 0, 1, 1], [], []>} : vector<8x8xbf16>, vector<8x8xbf16>, vector<8x8xf32> -> vector<8x8xf32>
    %1473 = vector.extract_strided_slice %1448 {offsets = [0, 8], sizes = [8, 8], strides = [1, 1]} : vector<8x32xf32> to vector<8x8xf32>
    %1474 = arith.truncf %1473 : vector<8x8xf32> to vector<8x8xbf16>
    %1475 = vector.extract_strided_slice %1450 {offsets = [0, 8], sizes = [8, 8], strides = [1, 1]} : vector<8x32xf32> to vector<8x8xf32>
    %1476 = arith.truncf %1475 : vector<8x8xf32> to vector<8x8xbf16>
    %1477 = vector.extract_strided_slice %1451 {offsets = [0, 8], sizes = [8, 8], strides = [1, 1]} : vector<8x32xf32> to vector<8x8xf32>
    %1478 = arith.truncf %1477 : vector<8x8xf32> to vector<8x8xbf16>
    %cst_475 = arith.constant dense<0.000000e+00> : vector<8x8xf32>
    %1479 = tpu.matmul %1474, %1476, %cst_475 {dimension_numbers = #tpu.dot_dimension_numbers<[1], [1], [0], [0], [0, 0, 1, 0], [], []>} : vector<8x8xbf16>, vector<8x8xbf16>, vector<8x8xf32> -> vector<8x8xf32>
    %cst_476 = arith.constant 0.353553385 : f32
    %1480 = vector.broadcast %cst_476 : f32 to vector<8x8xf32>
    %1481 = arith.mulf %1479, %1480 : vector<8x8xf32>
    %cst_477 = arith.constant dense<0xFF800000> : vector<8xf32>
    %1482 = vector.multi_reduction <maximumf>, %1481, %cst_477 [1] : vector<8x8xf32> to vector<8xf32>
    %1483 = vector.shape_cast %1482 : vector<8xf32> to vector<8x1xf32>
    %1484 = vector.broadcast %1483 : vector<8x1xf32> to vector<8x8xf32>
    %1485 = arith.subf %1481, %1484 : vector<8x8xf32>
    %1486 = math.exp %1485 : vector<8x8xf32>
    %cst_478 = arith.constant dense<0.000000e+00> : vector<8xf32>
    %1487 = vector.multi_reduction <add>, %1486, %cst_478 [1] : vector<8x8xf32> to vector<8xf32>
    %1488 = vector.shape_cast %1487 : vector<8xf32> to vector<8x1xf32>
    %1489 = tpu.reciprocal %1488 {approx = true} : vector<8x1xf32> -> vector<8x1xf32>
    %1490 = vector.broadcast %1489 : vector<8x1xf32> to vector<8x8xf32>
    %1491 = arith.mulf %1486, %1490 : vector<8x8xf32>
    %1492 = arith.truncf %1491 : vector<8x8xf32> to vector<8x8xbf16>
    %cst_479 = arith.constant dense<0.000000e+00> : vector<8x8xf32>
    %1493 = tpu.matmul %1492, %1478, %cst_479 {dimension_numbers = #tpu.dot_dimension_numbers<[1], [0], [0], [1], [0, 0, 1, 1], [], []>} : vector<8x8xbf16>, vector<8x8xbf16>, vector<8x8xf32> -> vector<8x8xf32>
    %1494 = vector.extract_strided_slice %1448 {offsets = [0, 16], sizes = [8, 8], strides = [1, 1]} : vector<8x32xf32> to vector<8x8xf32>
    %1495 = arith.truncf %1494 : vector<8x8xf32> to vector<8x8xbf16>
    %1496 = vector.extract_strided_slice %1450 {offsets = [0, 16], sizes = [8, 8], strides = [1, 1]} : vector<8x32xf32> to vector<8x8xf32>
    %1497 = arith.truncf %1496 : vector<8x8xf32> to vector<8x8xbf16>
    %1498 = vector.extract_strided_slice %1451 {offsets = [0, 16], sizes = [8, 8], strides = [1, 1]} : vector<8x32xf32> to vector<8x8xf32>
    %1499 = arith.truncf %1498 : vector<8x8xf32> to vector<8x8xbf16>
    %cst_480 = arith.constant dense<0.000000e+00> : vector<8x8xf32>
    %1500 = tpu.matmul %1495, %1497, %cst_480 {dimension_numbers = #tpu.dot_dimension_numbers<[1], [1], [0], [0], [0, 0, 1, 0], [], []>} : vector<8x8xbf16>, vector<8x8xbf16>, vector<8x8xf32> -> vector<8x8xf32>
    %cst_481 = arith.constant 0.353553385 : f32
    %1501 = vector.broadcast %cst_481 : f32 to vector<8x8xf32>
    %1502 = arith.mulf %1500, %1501 : vector<8x8xf32>
    %cst_482 = arith.constant dense<0xFF800000> : vector<8xf32>
    %1503 = vector.multi_reduction <maximumf>, %1502, %cst_482 [1] : vector<8x8xf32> to vector<8xf32>
    %1504 = vector.shape_cast %1503 : vector<8xf32> to vector<8x1xf32>
    %1505 = vector.broadcast %1504 : vector<8x1xf32> to vector<8x8xf32>
    %1506 = arith.subf %1502, %1505 : vector<8x8xf32>
    %1507 = math.exp %1506 : vector<8x8xf32>
    %cst_483 = arith.constant dense<0.000000e+00> : vector<8xf32>
    %1508 = vector.multi_reduction <add>, %1507, %cst_483 [1] : vector<8x8xf32> to vector<8xf32>
    %1509 = vector.shape_cast %1508 : vector<8xf32> to vector<8x1xf32>
    %1510 = tpu.reciprocal %1509 {approx = true} : vector<8x1xf32> -> vector<8x1xf32>
    %1511 = vector.broadcast %1510 : vector<8x1xf32> to vector<8x8xf32>
    %1512 = arith.mulf %1507, %1511 : vector<8x8xf32>
    %1513 = arith.truncf %1512 : vector<8x8xf32> to vector<8x8xbf16>
    %cst_484 = arith.constant dense<0.000000e+00> : vector<8x8xf32>
    %1514 = tpu.matmul %1513, %1499, %cst_484 {dimension_numbers = #tpu.dot_dimension_numbers<[1], [0], [0], [1], [0, 0, 1, 1], [], []>} : vector<8x8xbf16>, vector<8x8xbf16>, vector<8x8xf32> -> vector<8x8xf32>
    %1515 = vector.extract_strided_slice %1448 {offsets = [0, 24], sizes = [8, 8], strides = [1, 1]} : vector<8x32xf32> to vector<8x8xf32>
    %1516 = arith.truncf %1515 : vector<8x8xf32> to vector<8x8xbf16>
    %1517 = vector.extract_strided_slice %1450 {offsets = [0, 24], sizes = [8, 8], strides = [1, 1]} : vector<8x32xf32> to vector<8x8xf32>
    %1518 = arith.truncf %1517 : vector<8x8xf32> to vector<8x8xbf16>
    %1519 = vector.extract_strided_slice %1451 {offsets = [0, 24], sizes = [8, 8], strides = [1, 1]} : vector<8x32xf32> to vector<8x8xf32>
    %1520 = arith.truncf %1519 : vector<8x8xf32> to vector<8x8xbf16>
    %cst_485 = arith.constant dense<0.000000e+00> : vector<8x8xf32>
    %1521 = tpu.matmul %1516, %1518, %cst_485 {dimension_numbers = #tpu.dot_dimension_numbers<[1], [1], [0], [0], [0, 0, 1, 0], [], []>} : vector<8x8xbf16>, vector<8x8xbf16>, vector<8x8xf32> -> vector<8x8xf32>
    %cst_486 = arith.constant 0.353553385 : f32
    %1522 = vector.broadcast %cst_486 : f32 to vector<8x8xf32>
    %1523 = arith.mulf %1521, %1522 : vector<8x8xf32>
    %cst_487 = arith.constant dense<0xFF800000> : vector<8xf32>
    %1524 = vector.multi_reduction <maximumf>, %1523, %cst_487 [1] : vector<8x8xf32> to vector<8xf32>
    %1525 = vector.shape_cast %1524 : vector<8xf32> to vector<8x1xf32>
    %1526 = vector.broadcast %1525 : vector<8x1xf32> to vector<8x8xf32>
    %1527 = arith.subf %1523, %1526 : vector<8x8xf32>
    %1528 = math.exp %1527 : vector<8x8xf32>
    %cst_488 = arith.constant dense<0.000000e+00> : vector<8xf32>
    %1529 = vector.multi_reduction <add>, %1528, %cst_488 [1] : vector<8x8xf32> to vector<8xf32>
    %1530 = vector.shape_cast %1529 : vector<8xf32> to vector<8x1xf32>
    %1531 = tpu.reciprocal %1530 {approx = true} : vector<8x1xf32> -> vector<8x1xf32>
    %1532 = vector.broadcast %1531 : vector<8x1xf32> to vector<8x8xf32>
    %1533 = arith.mulf %1528, %1532 : vector<8x8xf32>
    %1534 = arith.truncf %1533 : vector<8x8xf32> to vector<8x8xbf16>
    %cst_489 = arith.constant dense<0.000000e+00> : vector<8x8xf32>
    %1535 = tpu.matmul %1534, %1520, %cst_489 {dimension_numbers = #tpu.dot_dimension_numbers<[1], [0], [0], [1], [0, 0, 1, 1], [], []>} : vector<8x8xbf16>, vector<8x8xbf16>, vector<8x8xf32> -> vector<8x8xf32>
    %1536 = tpu.concatenate %1472, %1493, %1514, %1535 in 1 : vector<8x8xf32>, vector<8x8xf32>, vector<8x8xf32>, vector<8x8xf32> -> vector<8x32xf32>
    %1537 = tpu.concatenate %1447, %1536 in 0 : vector<8x32xf32>, vector<8x32xf32> -> vector<16x32xf32>
    %1538 = arith.truncf %1537 : vector<16x32xf32> to vector<16x32xbf16>
    %cst_490 = arith.constant dense<0.000000e+00> : vector<16x32xf32>
    %1539 = tpu.matmul %1538, %1348, %cst_490 {dimension_numbers = #tpu.dot_dimension_numbers<[1], [0], [0], [1], [0, 0, 1, 1], [], []>} : vector<16x32xbf16>, vector<32x32xbf16>, vector<16x32xf32> -> vector<16x32xf32>
    %1540 = vector.broadcast %1350 : vector<1x32xf32> to vector<16x32xf32>
    %1541 = arith.addf %1539, %1540 : vector<16x32xf32>
    %1542 = arith.addf %1338, %1541 : vector<16x32xf32>
    %c1_491 = arith.constant 1 : index
    %c0_492 = arith.constant 0 : index
    %c0_493 = arith.constant 0 : index
    %1543 = vector.load %arg29[%c1_491, %c0_492, %c0_493] : memref<2x1x32xf32, #tpu.memory_space<vmem>>, vector<1x1x32xf32>
    %1544 = vector.shape_cast %1543 : vector<1x1x32xf32> to vector<1x32xf32>
    %c1_494 = arith.constant 1 : index
    %c0_495 = arith.constant 0 : index
    %c0_496 = arith.constant 0 : index
    %1545 = vector.load %arg30[%c1_494, %c0_495, %c0_496] : memref<2x1x32xf32, #tpu.memory_space<vmem>>, vector<1x1x32xf32>
    %1546 = vector.shape_cast %1545 : vector<1x1x32xf32> to vector<1x32xf32>
    %cst_497 = arith.constant dense<0.000000e+00> : vector<16xf32>
    %1547 = vector.multi_reduction <add>, %1542, %cst_497 [1] : vector<16x32xf32> to vector<16xf32>
    %1548 = vector.shape_cast %1547 : vector<16xf32> to vector<16x1xf32>
    %cst_498 = arith.constant 3.200000e+01 : f32
    %1549 = vector.broadcast %cst_498 : f32 to vector<16x1xf32>
    %1550 = arith.divf %1548, %1549 : vector<16x1xf32>
    %1551 = vector.broadcast %1550 : vector<16x1xf32> to vector<16x32xf32>
    %1552 = arith.subf %1542, %1551 : vector<16x32xf32>
    %1553 = arith.mulf %1552, %1552 : vector<16x32xf32>
    %cst_499 = arith.constant dense<0.000000e+00> : vector<16xf32>
    %1554 = vector.multi_reduction <add>, %1553, %cst_499 [1] : vector<16x32xf32> to vector<16xf32>
    %1555 = vector.shape_cast %1554 : vector<16xf32> to vector<16x1xf32>
    %cst_500 = arith.constant 3.200000e+01 : f32
    %1556 = vector.broadcast %cst_500 : f32 to vector<16x1xf32>
    %1557 = arith.divf %1555, %1556 : vector<16x1xf32>
    %1558 = vector.broadcast %1550 : vector<16x1xf32> to vector<16x32xf32>
    %1559 = arith.subf %1542, %1558 : vector<16x32xf32>
    %cst_501 = arith.constant 9.99999974E-6 : f32
    %1560 = vector.broadcast %cst_501 : f32 to vector<16x1xf32>
    %1561 = arith.addf %1557, %1560 : vector<16x1xf32>
    %1562 = math.rsqrt %1561 : vector<16x1xf32>
    %1563 = vector.broadcast %1562 : vector<16x1xf32> to vector<16x32xf32>
    %1564 = arith.mulf %1559, %1563 : vector<16x32xf32>
    %1565 = vector.broadcast %1544 : vector<1x32xf32> to vector<16x32xf32>
    %1566 = arith.mulf %1564, %1565 : vector<16x32xf32>
    %1567 = vector.broadcast %1546 : vector<1x32xf32> to vector<16x32xf32>
    %1568 = arith.addf %1566, %1567 : vector<16x32xf32>
    %c1_502 = arith.constant 1 : index
    %c0_503 = arith.constant 0 : index
    %c0_504 = arith.constant 0 : index
    %1569 = vector.load %arg31[%c1_502, %c0_503, %c0_504] : memref<2x32x64xbf16, #tpu.memory_space<vmem>>, vector<1x32x64xbf16>
    %1570 = vector.shape_cast %1569 : vector<1x32x64xbf16> to vector<32x64xbf16>
    %c1_505 = arith.constant 1 : index
    %c0_506 = arith.constant 0 : index
    %c0_507 = arith.constant 0 : index
    %1571 = vector.load %arg32[%c1_505, %c0_506, %c0_507] : memref<2x1x64xf32, #tpu.memory_space<vmem>>, vector<1x1x64xf32>
    %1572 = vector.shape_cast %1571 : vector<1x1x64xf32> to vector<1x64xf32>
    %c1_508 = arith.constant 1 : index
    %c0_509 = arith.constant 0 : index
    %c0_510 = arith.constant 0 : index
    %1573 = vector.load %arg33[%c1_508, %c0_509, %c0_510] : memref<2x64x32xbf16, #tpu.memory_space<vmem>>, vector<1x64x32xbf16>
    %1574 = vector.shape_cast %1573 : vector<1x64x32xbf16> to vector<64x32xbf16>
    %c1_511 = arith.constant 1 : index
    %c0_512 = arith.constant 0 : index
    %c0_513 = arith.constant 0 : index
    %1575 = vector.load %arg34[%c1_511, %c0_512, %c0_513] : memref<2x1x32xf32, #tpu.memory_space<vmem>>, vector<1x1x32xf32>
    %1576 = vector.shape_cast %1575 : vector<1x1x32xf32> to vector<1x32xf32>
    %1577 = arith.truncf %1568 : vector<16x32xf32> to vector<16x32xbf16>
    %cst_514 = arith.constant dense<0.000000e+00> : vector<16x64xf32>
    %1578 = tpu.matmul %1577, %1570, %cst_514 {dimension_numbers = #tpu.dot_dimension_numbers<[1], [0], [0], [1], [0, 0, 1, 1], [], []>} : vector<16x32xbf16>, vector<32x64xbf16>, vector<16x64xf32> -> vector<16x64xf32>
    %1579 = vector.broadcast %1572 : vector<1x64xf32> to vector<16x64xf32>
    %1580 = arith.addf %1578, %1579 : vector<16x64xf32>
    %cst_515 = arith.constant 0.000000e+00 : f32
    %1581 = vector.broadcast %cst_515 : f32 to vector<16x64xf32>
    %1582 = arith.maximumf %1580, %1581 : vector<16x64xf32>
    %1583 = arith.truncf %1582 : vector<16x64xf32> to vector<16x64xbf16>
    %cst_516 = arith.constant dense<0.000000e+00> : vector<16x32xf32>
    %1584 = tpu.matmul %1583, %1574, %cst_516 {dimension_numbers = #tpu.dot_dimension_numbers<[1], [0], [0], [1], [0, 0, 1, 1], [], []>} : vector<16x64xbf16>, vector<64x32xbf16>, vector<16x32xf32> -> vector<16x32xf32>
    %1585 = vector.broadcast %1576 : vector<1x32xf32> to vector<16x32xf32>
    %1586 = arith.addf %1584, %1585 : vector<16x32xf32>
    %1587 = arith.addf %1568, %1586 : vector<16x32xf32>
    %c1_517 = arith.constant 1 : index
    %c0_518 = arith.constant 0 : index
    %c0_519 = arith.constant 0 : index
    %1588 = vector.load %arg35[%c1_517, %c0_518, %c0_519] : memref<2x1x32xf32, #tpu.memory_space<vmem>>, vector<1x1x32xf32>
    %1589 = vector.shape_cast %1588 : vector<1x1x32xf32> to vector<1x32xf32>
    %c1_520 = arith.constant 1 : index
    %c0_521 = arith.constant 0 : index
    %c0_522 = arith.constant 0 : index
    %1590 = vector.load %arg36[%c1_520, %c0_521, %c0_522] : memref<2x1x32xf32, #tpu.memory_space<vmem>>, vector<1x1x32xf32>
    %1591 = vector.shape_cast %1590 : vector<1x1x32xf32> to vector<1x32xf32>
    %cst_523 = arith.constant dense<0.000000e+00> : vector<16xf32>
    %1592 = vector.multi_reduction <add>, %1587, %cst_523 [1] : vector<16x32xf32> to vector<16xf32>
    %1593 = vector.shape_cast %1592 : vector<16xf32> to vector<16x1xf32>
    %cst_524 = arith.constant 3.200000e+01 : f32
    %1594 = vector.broadcast %cst_524 : f32 to vector<16x1xf32>
    %1595 = arith.divf %1593, %1594 : vector<16x1xf32>
    %1596 = vector.broadcast %1595 : vector<16x1xf32> to vector<16x32xf32>
    %1597 = arith.subf %1587, %1596 : vector<16x32xf32>
    %1598 = arith.mulf %1597, %1597 : vector<16x32xf32>
    %cst_525 = arith.constant dense<0.000000e+00> : vector<16xf32>
    %1599 = vector.multi_reduction <add>, %1598, %cst_525 [1] : vector<16x32xf32> to vector<16xf32>
    %1600 = vector.shape_cast %1599 : vector<16xf32> to vector<16x1xf32>
    %cst_526 = arith.constant 3.200000e+01 : f32
    %1601 = vector.broadcast %cst_526 : f32 to vector<16x1xf32>
    %1602 = arith.divf %1600, %1601 : vector<16x1xf32>
    %1603 = vector.broadcast %1595 : vector<16x1xf32> to vector<16x32xf32>
    %1604 = arith.subf %1587, %1603 : vector<16x32xf32>
    %cst_527 = arith.constant 9.99999974E-6 : f32
    %1605 = vector.broadcast %cst_527 : f32 to vector<16x1xf32>
    %1606 = arith.addf %1602, %1605 : vector<16x1xf32>
    %1607 = math.rsqrt %1606 : vector<16x1xf32>
    %1608 = vector.broadcast %1607 : vector<16x1xf32> to vector<16x32xf32>
    %1609 = arith.mulf %1604, %1608 : vector<16x32xf32>
    %1610 = vector.broadcast %1589 : vector<1x32xf32> to vector<16x32xf32>
    %1611 = arith.mulf %1609, %1610 : vector<16x32xf32>
    %1612 = vector.broadcast %1591 : vector<1x32xf32> to vector<16x32xf32>
    %1613 = arith.addf %1611, %1612 : vector<16x32xf32>
    %c0_528 = arith.constant 0 : index
    %c0_529 = arith.constant 0 : index
    %1614 = vector.load %arg37[%c0_528, %c0_529] : memref<1x32xf32, #tpu.memory_space<vmem>>, vector<1x32xf32>
    %c0_530 = arith.constant 0 : index
    %c0_531 = arith.constant 0 : index
    %1615 = vector.load %arg38[%c0_530, %c0_531] : memref<1x32xf32, #tpu.memory_space<vmem>>, vector<1x32xf32>
    %cst_532 = arith.constant dense<0.000000e+00> : vector<16xf32>
    %1616 = vector.multi_reduction <add>, %1613, %cst_532 [1] : vector<16x32xf32> to vector<16xf32>
    %1617 = vector.shape_cast %1616 : vector<16xf32> to vector<16x1xf32>
    %cst_533 = arith.constant 3.200000e+01 : f32
    %1618 = vector.broadcast %cst_533 : f32 to vector<16x1xf32>
    %1619 = arith.divf %1617, %1618 : vector<16x1xf32>
    %1620 = vector.broadcast %1619 : vector<16x1xf32> to vector<16x32xf32>
    %1621 = arith.subf %1613, %1620 : vector<16x32xf32>
    %1622 = arith.mulf %1621, %1621 : vector<16x32xf32>
    %cst_534 = arith.constant dense<0.000000e+00> : vector<16xf32>
    %1623 = vector.multi_reduction <add>, %1622, %cst_534 [1] : vector<16x32xf32> to vector<16xf32>
    %1624 = vector.shape_cast %1623 : vector<16xf32> to vector<16x1xf32>
    %cst_535 = arith.constant 3.200000e+01 : f32
    %1625 = vector.broadcast %cst_535 : f32 to vector<16x1xf32>
    %1626 = arith.divf %1624, %1625 : vector<16x1xf32>
    %1627 = vector.broadcast %1619 : vector<16x1xf32> to vector<16x32xf32>
    %1628 = arith.subf %1613, %1627 : vector<16x32xf32>
    %cst_536 = arith.constant 9.99999974E-6 : f32
    %1629 = vector.broadcast %cst_536 : f32 to vector<16x1xf32>
    %1630 = arith.addf %1626, %1629 : vector<16x1xf32>
    %1631 = math.rsqrt %1630 : vector<16x1xf32>
    %1632 = vector.broadcast %1631 : vector<16x1xf32> to vector<16x32xf32>
    %1633 = arith.mulf %1628, %1632 : vector<16x32xf32>
    %1634 = vector.broadcast %1614 : vector<1x32xf32> to vector<16x32xf32>
    %1635 = arith.mulf %1633, %1634 : vector<16x32xf32>
    %1636 = vector.broadcast %1615 : vector<1x32xf32> to vector<16x32xf32>
    %1637 = arith.addf %1635, %1636 : vector<16x32xf32>
    %1638 = arith.truncf %1637 : vector<16x32xf32> to vector<16x32xbf16>
    %c0_537 = arith.constant 0 : index
    %c0_538 = arith.constant 0 : index
    %1639 = vector.load %arg39[%c0_537, %c0_538] : memref<32x128xbf16, #tpu.memory_space<vmem>>, vector<32x128xbf16>
    %cst_539 = arith.constant dense<0.000000e+00> : vector<16x128xf32>
    %1640 = tpu.matmul %1638, %1639, %cst_539 {dimension_numbers = #tpu.dot_dimension_numbers<[1], [0], [0], [1], [0, 0, 1, 1], [], []>} : vector<16x32xbf16>, vector<32x128xbf16>, vector<16x128xf32> -> vector<16x128xf32>
    %c0_540 = arith.constant 0 : index
    %c0_541 = arith.constant 0 : index
    %1641 = vector.load %arg40[%c0_540, %c0_541] : memref<1x128xf32, #tpu.memory_space<vmem>>, vector<1x128xf32>
    %1642 = vector.broadcast %1641 : vector<1x128xf32> to vector<16x128xf32>
    %1643 = arith.addf %1640, %1642 : vector<16x128xf32>
    %cst_542 = arith.constant dense<0xFF800000> : vector<16xf32>
    %1644 = vector.multi_reduction <maximumf>, %1643, %cst_542 [1] : vector<16x128xf32> to vector<16xf32>
    %1645 = vector.shape_cast %1644 : vector<16xf32> to vector<16x1xf32>
    %1646 = tpu.iota {dimensions = array<i32: 1>} : vector<16x128xi32>
    %1647 = vector.broadcast %1645 : vector<16x1xf32> to vector<16x128xf32>
    %1648 = arith.cmpf oeq, %1643, %1647 : vector<16x128xf32>
    %c128_i32 = arith.constant 128 : i32
    %1649 = vector.broadcast %c128_i32 : i32 to vector<16x128xi32>
    %1650 = arith.select %1648, %1646, %1649 : vector<16x128xi1>, vector<16x128xi32>
    %cst_543 = arith.constant dense<2147483647> : vector<16xi32>
    %1651 = vector.multi_reduction <minsi>, %1650, %cst_543 [1] : vector<16x128xi32> to vector<16xi32>
    %1652 = vector.shape_cast %1651 : vector<16xi32> to vector<16x1xi32>
    %1653 = vector.extract_strided_slice %1643 {offsets = [0, 0], sizes = [8, 128], strides = [1, 1]} : vector<16x128xf32> to vector<8x128xf32>
    %c0_544 = arith.constant 0 : index
    %c0_545 = arith.constant 0 : index
    %c0_546 = arith.constant 0 : index
    %1654 = vector.load %arg41[%c0_544, %c0_545, %c0_546] : memref<2x8x128xf32, #tpu.memory_space<vmem>>, vector<1x8x128xf32>
    %1655 = vector.shape_cast %1654 : vector<1x8x128xf32> to vector<8x128xf32>
    %1656 = vector.shape_cast %1653 : vector<8x128xf32> to vector<1x8x128xf32>
    tpu.vector_store %arg41[%c0_544, %c0_545, %c0_546], %1656 {strides = array<i32>} : memref<2x8x128xf32, #tpu.memory_space<vmem>>, vector<1x8x128xf32>,
    %1657 = vector.extract_strided_slice %1652 {offsets = [0, 0], sizes = [8, 1], strides = [1, 1]} : vector<16x1xi32> to vector<8x1xi32>
    %1658 = vector.shape_cast %1657 : vector<8x1xi32> to vector<8x1xi32>
    %1659 = vector.broadcast %1658 : vector<8x1xi32> to vector<8x128xi32>
    %c0_547 = arith.constant 0 : index
    %c0_548 = arith.constant 0 : index
    %c0_549 = arith.constant 0 : index
    %1660 = vector.load %arg42[%c0_547, %c0_548, %c0_549] : memref<2x8x128xi32, #tpu.memory_space<vmem>>, vector<1x8x128xi32>
    %1661 = vector.shape_cast %1660 : vector<1x8x128xi32> to vector<8x128xi32>
    %1662 = vector.shape_cast %1659 : vector<8x128xi32> to vector<1x8x128xi32>
    tpu.vector_store %arg42[%c0_547, %c0_548, %c0_549], %1662 {strides = array<i32>} : memref<2x8x128xi32, #tpu.memory_space<vmem>>, vector<1x8x128xi32>,
    %1663 = vector.extract_strided_slice %1643 {offsets = [8, 0], sizes = [8, 128], strides = [1, 1]} : vector<16x128xf32> to vector<8x128xf32>
    %c1_550 = arith.constant 1 : index
    %c0_551 = arith.constant 0 : index
    %c0_552 = arith.constant 0 : index
    %1664 = vector.load %arg41[%c1_550, %c0_551, %c0_552] : memref<2x8x128xf32, #tpu.memory_space<vmem>>, vector<1x8x128xf32>
    %1665 = vector.shape_cast %1664 : vector<1x8x128xf32> to vector<8x128xf32>
    %1666 = vector.shape_cast %1663 : vector<8x128xf32> to vector<1x8x128xf32>
    tpu.vector_store %arg41[%c1_550, %c0_551, %c0_552], %1666 {strides = array<i32>} : memref<2x8x128xf32, #tpu.memory_space<vmem>>, vector<1x8x128xf32>,
    %1667 = vector.extract_strided_slice %1652 {offsets = [8, 0], sizes = [8, 1], strides = [1, 1]} : vector<16x1xi32> to vector<8x1xi32>
    %1668 = vector.shape_cast %1667 : vector<8x1xi32> to vector<8x1xi32>
    %1669 = vector.broadcast %1668 : vector<8x1xi32> to vector<8x128xi32>
    %c1_553 = arith.constant 1 : index
    %c0_554 = arith.constant 0 : index
    %c0_555 = arith.constant 0 : index
    %1670 = vector.load %arg42[%c1_553, %c0_554, %c0_555] : memref<2x8x128xi32, #tpu.memory_space<vmem>>, vector<1x8x128xi32>
    %1671 = vector.shape_cast %1670 : vector<1x8x128xi32> to vector<8x128xi32>
    %1672 = vector.shape_cast %1669 : vector<8x128xi32> to vector<1x8x128xi32>
    tpu.vector_store %arg42[%c1_553, %c0_554, %c0_555], %1672 {strides = array<i32>} : memref<2x8x128xi32, #tpu.memory_space<vmem>>, vector<1x8x128xi32>,
    return
  }
}

</mosaic_0001>

<llo_original>
// kernel: _lambda_.1
$region0: #{_lambda_.1}
  #allocation0 [shape = 'u32[]', space=smem, size = 0x4, offset = 0x4, fixed_abs, tag = 'smem constant byte address 0x4 - core index']
  #allocation1 [shape = 'u32[144,128]{1,0:T(1,128)}', space=vmem, size = 0x12000, scoped, tag = 'internal scratch']
  %s0 = inlined_call_operand.smem [shape: u32[43], index: -1, kind: input, shape index: {}]
  %s1 = sld [smem:[%s0]]
  %s2 = scalar_lea.smem %s0, 1
  %s3 = sld [smem:[%s2]]
  %s4 = scalar_lea.smem %s0, 2
  %s5 = sld [smem:[%s4]]
  %s6 = scalar_lea.smem %s0, 3
  %s7 = sld [smem:[%s6]]
  %s8 = scalar_lea.smem %s0, 4
  %s9 = sld [smem:[%s8]]
  %s10 = scalar_lea.smem %s0, 5
  %s11 = sld [smem:[%s10]]
  %s12 = scalar_lea.smem %s0, 6
  %s13 = sld [smem:[%s12]]
  %s14 = scalar_lea.smem %s0, 7
  %s15 = sld [smem:[%s14]]
  %s16 = scalar_lea.smem %s0, 8
  %s17 = sld [smem:[%s16]]
  %s18 = scalar_lea.smem %s0, 9
  %s19 = sld [smem:[%s18]]
  %s20 = scalar_lea.smem %s0, 10
  %s21 = sld [smem:[%s20]]
  %s22 = scalar_lea.smem %s0, 11
  %s23 = sld [smem:[%s22]]
  %s24 = scalar_lea.smem %s0, 12
  %s25 = sld [smem:[%s24]]
  %s26 = scalar_lea.smem %s0, 13
  %s27 = sld [smem:[%s26]]
  %s28 = scalar_lea.smem %s0, 14
  %s29 = sld [smem:[%s28]]
  %s30 = scalar_lea.smem %s0, 15
  %s31 = sld [smem:[%s30]]
  %s32 = scalar_lea.smem %s0, 16
  %s33 = sld [smem:[%s32]]
  %s34 = scalar_lea.smem %s0, 17
  %s35 = sld [smem:[%s34]]
  %s36 = scalar_lea.smem %s0, 18
  %s37 = sld [smem:[%s36]]
  %s38 = scalar_lea.smem %s0, 19
  %s39 = sld [smem:[%s38]]
  %s40 = scalar_lea.smem %s0, 20
  %s41 = sld [smem:[%s40]]
  %s42 = scalar_lea.smem %s0, 21
  %s43 = sld [smem:[%s42]]
  %s44 = scalar_lea.smem %s0, 22
  %s45 = sld [smem:[%s44]]
  %s46 = scalar_lea.smem %s0, 23
  %s47 = sld [smem:[%s46]]
  %s48 = scalar_lea.smem %s0, 24
  %s49 = sld [smem:[%s48]]
  %s50 = scalar_lea.smem %s0, 25
  %s51 = sld [smem:[%s50]]
  %s52 = scalar_lea.smem %s0, 26
  %s53 = sld [smem:[%s52]]
  %s54 = scalar_lea.smem %s0, 27
  %s55 = sld [smem:[%s54]]
  %s56 = scalar_lea.smem %s0, 28
  %s57 = sld [smem:[%s56]]
  %s58 = scalar_lea.smem %s0, 29
  %s59 = sld [smem:[%s58]]
  %s60 = scalar_lea.smem %s0, 30
  %s61 = sld [smem:[%s60]]
  %s62 = scalar_lea.smem %s0, 31
  %s63 = sld [smem:[%s62]]
  %s64 = scalar_lea.smem %s0, 32
  %s65 = sld [smem:[%s64]]
  %s66 = scalar_lea.smem %s0, 33
  %s67 = sld [smem:[%s66]]
  %s68 = scalar_lea.smem %s0, 34
  %s69 = sld [smem:[%s68]]
  %s70 = scalar_lea.smem %s0, 35
  %s71 = sld [smem:[%s70]]
  %s72 = scalar_lea.smem %s0, 36
  %s73 = sld [smem:[%s72]]
  %s74 = scalar_lea.smem %s0, 37
  %s75 = sld [smem:[%s74]]
  %s76 = scalar_lea.smem %s0, 38
  %s77 = sld [smem:[%s76]]
  %s78 = scalar_lea.smem %s0, 39
  %s79 = sld [smem:[%s78]]
  %s80 = scalar_lea.smem %s0, 40
  %s81 = sld [smem:[%s80]]
  %s82 = scalar_lea.smem %s0, 41
  %s83 = sld [smem:[%s82]]
  %s84 = scalar_lea.smem %s0, 42
  %s85 = sld [smem:[%s84]]
  %86 = xla_tuple %s83, %s85
  %s87 = sld [smem:[#allocation0]]
  $region182: #{_lambda_.1} parent=0
    _
  %s89 = ssub.s32 1, %s87
  %s90 = scalar_select 0, %s89, %s87
  $region1: #{_lambda_.1} parent=0
    #allocation2 [shape = 'u8[8192]{0}', space=vmem, size = 0x2000, scoped, tag = 'output window, operand 0, single buffered']
    #allocation3 [shape = 's32[1]{0}', space=sflag, size = 0x4, scoped, tag = 'scoped memory for _lambda_.1']
    %91 = vsyncpa [#allocation3], 0
    // Predicated region
    $region2: #{_lambda_.1} parent=1 // pred_check
      _
    $region3: #{_lambda_.1} parent=1 // pred_check_branch
      %93 = sbr.rel (0) target = $region5
    $region4: #{_lambda_.1} parent=1 // pred_region
      _
    $region5: #{_lambda_.1} parent=1 // pred_fallthru
      _
    // Predicated region
    $region6: #{_lambda_.1} parent=1 // pred_check
      _
    $region7: #{_lambda_.1} parent=1 // pred_check_branch
      %95 = sbr.rel (0) target = $region9
    $region8: #{_lambda_.1} parent=1 // pred_region
      _
    $region9: #{_lambda_.1} parent=1 // pred_fallthru
      _
    // Predicated region
    $region10: #{_lambda_.1} parent=1 // pred_check
      _
    $region11: #{_lambda_.1} parent=1 // pred_check_branch
      %97 = sbr.rel (0) target = $region13
    $region12: #{_lambda_.1} parent=1 // pred_region
      _
    $region13: #{_lambda_.1} parent=1 // pred_fallthru
      _
    // Predicated region
    $region14: #{_lambda_.1} parent=1 // pred_check
      _
    $region15: #{_lambda_.1} parent=1 // pred_check_branch
      %99 = sbr.rel (0) target = $region17
    $region16: #{_lambda_.1} parent=1 // pred_region
      _
    $region17: #{_lambda_.1} parent=1 // pred_fallthru
      _
    // Predicated region
    $region18: #{_lambda_.1} parent=1 // pred_check
      _
    $region19: #{_lambda_.1} parent=1 // pred_check_branch
      %101 = sbr.rel (0) target = $region21
    $region20: #{_lambda_.1} parent=1 // pred_region
      _
    $region21: #{_lambda_.1} parent=1 // pred_fallthru
      _
    // Predicated region
    $region22: #{_lambda_.1} parent=1 // pred_check
      _
    $region23: #{_lambda_.1} parent=1 // pred_check_branch
      %103 = sbr.rel (0) target = $region25
    $region24: #{_lambda_.1} parent=1 // pred_region
      _
    $region25: #{_lambda_.1} parent=1 // pred_fallthru
      _
    // Predicated region
    $region26: #{_lambda_.1} parent=1 // pred_check
      _
    $region27: #{_lambda_.1} parent=1 // pred_check_branch
      %105 = sbr.rel (0) target = $region29
    $region28: #{_lambda_.1} parent=1 // pred_region
      _
    $region29: #{_lambda_.1} parent=1 // pred_fallthru
      _
    // Predicated region
    $region30: #{_lambda_.1} parent=1 // pred_check
      _
    $region31: #{_lambda_.1} parent=1 // pred_check_branch
      %107 = sbr.rel (0) target = $region33
    $region32: #{_lambda_.1} parent=1 // pred_region
      _
    $region33: #{_lambda_.1} parent=1 // pred_fallthru
      _
    // Predicated region
    $region34: #{_lambda_.1} parent=1 // pred_check
      _
    $region35: #{_lambda_.1} parent=1 // pred_check_branch
      %109 = sbr.rel (0) target = $region37
    $region36: #{_lambda_.1} parent=1 // pred_region
      _
    $region37: #{_lambda_.1} parent=1 // pred_fallthru
      _
    // Predicated region
    $region38: #{_lambda_.1} parent=1 // pred_check
      _
    $region39: #{_lambda_.1} parent=1 // pred_check_branch
      %111 = sbr.rel (0) target = $region41
    $region40: #{_lambda_.1} parent=1 // pred_region
      _
    $region41: #{_lambda_.1} parent=1 // pred_fallthru
      _
    // Predicated region
    $region42: #{_lambda_.1} parent=1 // pred_check
      _
    $region43: #{_lambda_.1} parent=1 // pred_check_branch
      %113 = sbr.rel (0) target = $region45
    $region44: #{_lambda_.1} parent=1 // pred_region
      _
    $region45: #{_lambda_.1} parent=1 // pred_fallthru
      _
    // Predicated region
    $region46: #{_lambda_.1} parent=1 // pred_check
      _
    $region47: #{_lambda_.1} parent=1 // pred_check_branch
      %115 = sbr.rel (0) target = $region49
    $region48: #{_lambda_.1} parent=1 // pred_region
      _
    $region49: #{_lambda_.1} parent=1 // pred_fallthru
      _
    // Predicated region
    $region50: #{_lambda_.1} parent=1 // pred_check
      _
    $region51: #{_lambda_.1} parent=1 // pred_check_branch
      %117 = sbr.rel (0) target = $region53
    $region52: #{_lambda_.1} parent=1 // pred_region
      _
    $region53: #{_lambda_.1} parent=1 // pred_fallthru
      _
    // Predicated region
    $region54: #{_lambda_.1} parent=1 // pred_check
      _
    $region55: #{_lambda_.1} parent=1 // pred_check_branch
      %119 = sbr.rel (0) target = $region57
    $region56: #{_lambda_.1} parent=1 // pred_region
      _
    $region57: #{_lambda_.1} parent=1 // pred_fallthru
      _
    // Predicated region
    $region58: #{_lambda_.1} parent=1 // pred_check
      _
    $region59: #{_lambda_.1} parent=1 // pred_check_branch
      %121 = sbr.rel (0) target = $region61
    $region60: #{_lambda_.1} parent=1 // pred_region
      _
    $region61: #{_lambda_.1} parent=1 // pred_fallthru
      _
    // Predicated region
    $region62: #{_lambda_.1} parent=1 // pred_check
      _
    $region63: #{_lambda_.1} parent=1 // pred_check_branch
      %123 = sbr.rel (0) target = $region65
    $region64: #{_lambda_.1} parent=1 // pred_region
      _
    $region65: #{_lambda_.1} parent=1 // pred_fallthru
      _
    // Predicated region
    $region66: #{_lambda_.1} parent=1 // pred_check
      _
    $region67: #{_lambda_.1} parent=1 // pred_check_branch
      %125 = sbr.rel (0) target = $region69
    $region68: #{_lambda_.1} parent=1 // pred_region
      _
    $region69: #{_lambda_.1} parent=1 // pred_fallthru
      _
    // Predicated region
    $region70: #{_lambda_.1} parent=1 // pred_check
      _
    $region71: #{_lambda_.1} parent=1 // pred_check_branch
      %127 = sbr.rel (0) target = $region73
    $region72: #{_lambda_.1} parent=1 // pred_region
      _
    $region73: #{_lambda_.1} parent=1 // pred_fallthru
      _
    // Predicated region
    $region74: #{_lambda_.1} parent=1 // pred_check
      _
    $region75: #{_lambda_.1} parent=1 // pred_check_branch
      %129 = sbr.rel (0) target = $region77
    $region76: #{_lambda_.1} parent=1 // pred_region
      _
    $region77: #{_lambda_.1} parent=1 // pred_fallthru
      _
    // Predicated region
    $region78: #{_lambda_.1} parent=1 // pred_check
      _
    $region79: #{_lambda_.1} parent=1 // pred_check_branch
      %131 = sbr.rel (0) target = $region81
    $region80: #{_lambda_.1} parent=1 // pred_region
      _
    $region81: #{_lambda_.1} parent=1 // pred_fallthru
      _
    // Predicated region
    $region82: #{_lambda_.1} parent=1 // pred_check
      _
    $region83: #{_lambda_.1} parent=1 // pred_check_branch
      %133 = sbr.rel (0) target = $region85
    $region84: #{_lambda_.1} parent=1 // pred_region
      _
    $region85: #{_lambda_.1} parent=1 // pred_fallthru
      _
    // Predicated region
    $region86: #{_lambda_.1} parent=1 // pred_check
      _
    $region87: #{_lambda_.1} parent=1 // pred_check_branch
      %135 = sbr.rel (0) target = $region89
    $region88: #{_lambda_.1} parent=1 // pred_region
      _
    $region89: #{_lambda_.1} parent=1 // pred_fallthru
      _
    // Predicated region
    $region90: #{_lambda_.1} parent=1 // pred_check
      _
    $region91: #{_lambda_.1} parent=1 // pred_check_branch
      %137 = sbr.rel (0) target = $region93
    $region92: #{_lambda_.1} parent=1 // pred_region
      _
    $region93: #{_lambda_.1} parent=1 // pred_fallthru
      _
    // Predicated region
    $region94: #{_lambda_.1} parent=1 // pred_check
      _
    $region95: #{_lambda_.1} parent=1 // pred_check_branch
      %139 = sbr.rel (0) target = $region97
    $region96: #{_lambda_.1} parent=1 // pred_region
      _
    $region97: #{_lambda_.1} parent=1 // pred_fallthru
      _
    // Predicated region
    $region98: #{_lambda_.1} parent=1 // pred_check
      _
    $region99: #{_lambda_.1} parent=1 // pred_check_branch
      %141 = sbr.rel (0) target = $region101
    $region100: #{_lambda_.1} parent=1 // pred_region
      _
    $region101: #{_lambda_.1} parent=1 // pred_fallthru
      _
    // Predicated region
    $region102: #{_lambda_.1} parent=1 // pred_check
      _
    $region103: #{_lambda_.1} parent=1 // pred_check_branch
      %143 = sbr.rel (0) target = $region105
    $region104: #{_lambda_.1} parent=1 // pred_region
      _
    $region105: #{_lambda_.1} parent=1 // pred_fallthru
      _
    // Predicated region
    $region106: #{_lambda_.1} parent=1 // pred_check
      _
    $region107: #{_lambda_.1} parent=1 // pred_check_branch
      %145 = sbr.rel (0) target = $region109
    $region108: #{_lambda_.1} parent=1 // pred_region
      _
    $region109: #{_lambda_.1} parent=1 // pred_fallthru
      _
    // Predicated region
    $region110: #{_lambda_.1} parent=1 // pred_check
      _
    $region111: #{_lambda_.1} parent=1 // pred_check_branch
      %147 = sbr.rel (0) target = $region113
    $region112: #{_lambda_.1} parent=1 // pred_region
      _
    $region113: #{_lambda_.1} parent=1 // pred_fallthru
      _
    // Predicated region
    $region114: #{_lambda_.1} parent=1 // pred_check
      _
    $region115: #{_lambda_.1} parent=1 // pred_check_branch
      %149 = sbr.rel (0) target = $region117
    $region116: #{_lambda_.1} parent=1 // pred_region
      _
    $region117: #{_lambda_.1} parent=1 // pred_fallthru
      _
    // Predicated region
    $region118: #{_lambda_.1} parent=1 // pred_check
      _
    $region119: #{_lambda_.1} parent=1 // pred_check_branch
      %151 = sbr.rel (0) target = $region121
    $region120: #{_lambda_.1} parent=1 // pred_region
      _
    $region121: #{_lambda_.1} parent=1 // pred_fallthru
      _
    // Predicated region
    $region122: #{_lambda_.1} parent=1 // pred_check
      _
    $region123: #{_lambda_.1} parent=1 // pred_check_branch
      %153 = sbr.rel (0) target = $region125
    $region124: #{_lambda_.1} parent=1 // pred_region
      _
    $region125: #{_lambda_.1} parent=1 // pred_fallthru
      _
    // Predicated region
    $region126: #{_lambda_.1} parent=1 // pred_check
      _
    $region127: #{_lambda_.1} parent=1 // pred_check_branch
      %155 = sbr.rel (0) target = $region129
    $region128: #{_lambda_.1} parent=1 // pred_region
      _
    $region129: #{_lambda_.1} parent=1 // pred_fallthru
      _
    // Predicated region
    $region130: #{_lambda_.1} parent=1 // pred_check
      _
    $region131: #{_lambda_.1} parent=1 // pred_check_branch
      %157 = sbr.rel (0) target = $region133
    $region132: #{_lambda_.1} parent=1 // pred_region
      _
    $region133: #{_lambda_.1} parent=1 // pred_fallthru
      _
    // Predicated region
    $region134: #{_lambda_.1} parent=1 // pred_check
      _
    $region135: #{_lambda_.1} parent=1 // pred_check_branch
      %159 = sbr.rel (0) target = $region137
    $region136: #{_lambda_.1} parent=1 // pred_region
      _
    $region137: #{_lambda_.1} parent=1 // pred_fallthru
      _
    // Predicated region
    $region138: #{_lambda_.1} parent=1 // pred_check
      _
    $region139: #{_lambda_.1} parent=1 // pred_check_branch
      %161 = sbr.rel (0) target = $region141
    $region140: #{_lambda_.1} parent=1 // pred_region
      _
    $region141: #{_lambda_.1} parent=1 // pred_fallthru
      _
    // Predicated region
    $region142: #{_lambda_.1} parent=1 // pred_check
      _
    $region143: #{_lambda_.1} parent=1 // pred_check_branch
      %163 = sbr.rel (0) target = $region145
    $region144: #{_lambda_.1} parent=1 // pred_region
      _
    $region145: #{_lambda_.1} parent=1 // pred_fallthru
      _
    // Predicated region
    $region146: #{_lambda_.1} parent=1 // pred_check
      _
    $region147: #{_lambda_.1} parent=1 // pred_check_branch
      %165 = sbr.rel (0) target = $region149
    $region148: #{_lambda_.1} parent=1 // pred_region
      _
    $region149: #{_lambda_.1} parent=1 // pred_fallthru
      _
    // Predicated region
    $region150: #{_lambda_.1} parent=1 // pred_check
      _
    $region151: #{_lambda_.1} parent=1 // pred_check_branch
      %167 = sbr.rel (0) target = $region153
    $region152: #{_lambda_.1} parent=1 // pred_region
      _
    $region153: #{_lambda_.1} parent=1 // pred_fallthru
      _
    // Predicated region
    $region154: #{_lambda_.1} parent=1 // pred_check
      _
    $region155: #{_lambda_.1} parent=1 // pred_check_branch
      %169 = sbr.rel (0) target = $region157
    $region156: #{_lambda_.1} parent=1 // pred_region
      _
    $region157: #{_lambda_.1} parent=1 // pred_fallthru
      _
    // Predicated region
    $region158: #{_lambda_.1} parent=1 // pred_check
      _
    $region159: #{_lambda_.1} parent=1 // pred_check_branch
      %171 = sbr.rel (0) target = $region161
    $region160: #{_lambda_.1} parent=1 // pred_region
      _
    $region161: #{_lambda_.1} parent=1 // pred_fallthru
      _
    // Predicated region
    $region162: #{_lambda_.1} parent=1 // pred_check
      _
    $region163: #{_lambda_.1} parent=1 // pred_check_branch
      %173 = sbr.rel (0) target = $region165
    $region164: #{_lambda_.1} parent=1 // pred_region
      _
    $region165: #{_lambda_.1} parent=1 // pred_fallthru
      _
    %v175 = vld [vmem:[%s1] sm:$0xff]
    %v176 = vld [vmem:[%s1 + $0x8] sm:$0xff]
    %v177 = vld [vmem:[%s3] sm:$0xff]
    %v178 = vld [vmem:[%s3 + $0x8] sm:$0xff]
    %v179 = vld [vmem:[%s5] sm:$0x1]
    %s180 = scalar_lea.vmem %s5, 1
    %v181 = vld [vmem:[%s180] sm:$0x1]
    %v182 = vld [vmem:[%s7] sm:$0xf]
    %v183 = vld [vmem:[%s7 + $0x4] sm:$0xf]
    %v184 = vld [vmem:[%s7 + $0x8] sm:$0xf]
    %v185 = vld [vmem:[%s7 + $0xc] sm:$0xf]
    %v186 = vld [vmem:[%s9] sm:$0x1]
    %v187 = vld [vmem:[%s11] sm:$0xf]
    %v188 = vld [vmem:[%s11 + $0x4] sm:$0xf]
    %v189 = vld [vmem:[%s11 + $0x8] sm:$0xf]
    %v190 = vld [vmem:[%s11 + $0xc] sm:$0xf]
    %v191 = vld [vmem:[%s13] sm:$0x1]
    %v192 = vpack.c.bf16 %v176, %v175
    %v194 = vlaneseq
    %v195 = vshrl.u32 %v194, 7
    %v196 = vsub.s32 0, %v195
    %v197 = vrot.slane %v186, %v196
    %v203 = vunpack.c.l.b16 %v182
    %v204 = vunpack.c.l.b16 %v183
    %v205 = vunpack.c.l.b16 %v184
    %v206 = vunpack.c.l.b16 %v185
    %v207 = vpack.c.b16 %v204, %v203
    %v208 = vpack.c.b16 %v206, %v205
    %vm211 = vcmask 261120
    %v213 = vsel %vm211, %v192, 0
    %215 = vmatprep.subr.bf16.mxu0 0
    %216 = vmatpush1.bf16.msra.mxu0 %v207
    %217 = vmatprep.subr.bf16.mxu0 0
    %218 = vmatpush1.bf16.msra.mxu0 %v208
    %219 = vmatprep.subr.bf16.mxu0 0
    %220 = vmatpush1.bf16.msra.mxu0 0
    %221 = vmatprep.subr.bf16.mxu0 0
    %222 = vmatpush1.bf16.msra.mxu0 0
    %223 = vmatprep.subr.bf16.mxu0 0
    %224 = vmatpush1.bf16.msra.mxu0 0
    %225 = vmatprep.subr.bf16.mxu0 0
    %226 = vmatpush1.bf16.msra.mxu0 0
    %227 = vmatprep.subr.bf16.mxu0 0
    %228 = vmatpush1.bf16.msra.mxu0 0
    %229 = vmatprep.subr.bf16.mxu0 0
    %230 = vmatpush1.bf16.msra.mxu0 0
    %231 = vmatprep.subr.bf16.mxu0 0
    %232 = vmatpush1.bf16.msra.mxu0 0
    %233 = vmatprep.subr.bf16.mxu0 0
    %234 = vmatpush1.bf16.msra.mxu0 0
    %235 = vmatprep.subr.bf16.mxu0 0
    %236 = vmatpush1.bf16.msra.mxu0 0
    %237 = vmatprep.subr.bf16.mxu0 0
    %238 = vmatpush1.bf16.msra.mxu0 0
    %239 = vmatprep.subr.bf16.mxu0 0
    %240 = vmatpush1.bf16.msra.mxu0 0
    %241 = vmatprep.subr.bf16.mxu0 0
    %242 = vmatpush1.bf16.msra.mxu0 0
    %243 = vmatprep.subr.bf16.mxu0 0
    %244 = vmatpush1.bf16.msra.mxu0 0
    %245 = vmatprep.subr.bf16.mxu0 0
    %246 = vmatpush1.bf16.msra.mxu0 0
    %247 = vmatprep.mubr.bf16.mxu0 0
    %248 = vmatmul.mubr.bf16.gmra.mrb[0].mxu0 %v213
    %v249 = vpop.f32.mrb[0].mxu0
    %v250 = vadd.f32 %v197, %v249
    %v251 = vpop.f32.mrb[0].mxu0
    %v252 = vpop.f32.mrb[0].mxu0
    %v253 = vadd.f32 %v197, %v252
    %v254 = vpop.f32.mrb[0].mxu0
    %255 = vdwg.mxu0
    %v256 = vpack.c.bf16 %v250, %v250
    %258 = vrot.lane.b32.xlu0 %v256, 96
    %v259 = vpop.permute.xlu0 %258
    %vm260 = vcmask 64512
    %v262 = vsel %vm260, %v256, 0
    %v265 = vsel %vm260, %v259, 0
    %267 = vmatprep.subr.bf16.mxu0 0
    %268 = vmatpush1.bf16.xpose.msra.mxu0 %v265
    %269 = vmatprep.subr.bf16.mxu0 0
    %270 = vmatpush1.bf16.xpose.msra.mxu0 0
    %271 = vmatprep.subr.bf16.mxu0 0
    %272 = vmatpush1.bf16.xpose.msra.mxu0 0
    %273 = vmatprep.subr.bf16.mxu0 0
    %274 = vmatpush1.bf16.xpose.msra.mxu0 0
    %275 = vmatprep.subr.bf16.mxu0 0
    %276 = vmatpush1.bf16.xpose.msra.mxu0 0
    %277 = vmatprep.subr.bf16.mxu0 0
    %278 = vmatpush1.bf16.xpose.msra.mxu0 0
    %279 = vmatprep.subr.bf16.mxu0 0
    %280 = vmatpush1.bf16.xpose.msra.mxu0 0
    %281 = vmatprep.subr.bf16.mxu0 0
    %282 = vmatpush1.bf16.xpose.msra.mxu0 0
    %283 = vmatprep.subr.bf16.mxu0 0
    %284 = vmatpush1.bf16.xpose.msra.mxu0 0
    %285 = vmatprep.subr.bf16.mxu0 0
    %286 = vmatpush1.bf16.xpose.msra.mxu0 0
    %287 = vmatprep.subr.bf16.mxu0 0
    %288 = vmatpush1.bf16.xpose.msra.mxu0 0
    %289 = vmatprep.subr.bf16.mxu0 0
    %290 = vmatpush1.bf16.xpose.msra.mxu0 0
    %291 = vmatprep.subr.bf16.mxu0 0
    %292 = vmatpush1.bf16.xpose.msra.mxu0 0
    %293 = vmatprep.subr.bf16.mxu0 0
    %294 = vmatpush1.bf16.xpose.msra.mxu0 0
    %295 = vmatprep.subr.bf16.mxu0 0
    %296 = vmatpush1.bf16.xpose.msra.mxu0 0
    %297 = vmatprep.subr.bf16.mxu0 0
    %298 = vmatpush1.bf16.xpose.msra.mxu0 0
    %299 = vmatprep.mubr.bf16.mxu0 0
    %300 = vmatmul.mubr.bf16.gmra.mrb[0].mxu0 %v262
    %v301 = vpop.f32.mrb[0].mxu0
    %v302 = vadd.f32 0.0, %v301
    %v303 = vpop.f32.mrb[0].mxu0
    %v304 = vpop.f32.mrb[0].mxu0
    %v305 = vpop.f32.mrb[0].mxu0
    %306 = vdwg.mxu0
    %v307 = vmul.f32 %v302, 0.35355338
    %v309 = vlaneseq
    %v310 = vshrl.u32 %v309, 7
    %v311 = vsub.s32 0, %v310
    %v312 = vrot.slane %v179, %v311
    %v314 = vadd.f32 %v307, %v312
    %v315 = vsel %vm260, %v314, -inf
    %316 = vmax.xlane.f32.xlu0 %v315
    %v317 = vpop.xlane.xlu0 %316
    %v318 = vsub.f32 %v314, %v317
    %v319 = vmul.f32 %v318, 1.442695
    %v320 = vpow.pop %v319
    %v321 = vsel %vm260, %v320, 0.0
    %322 = vadd.xlane.f32.xlu0 %v321
    %v323 = vpop.xlane.xlu0 %322
    %v324 = vrcp.pop %v323
    %v325 = vmul.f32 %v320, %v324
    %v326 = vpack.c.bf16 %v325, %v325
    %327 = vrot.lane.b32.xlu0 %v256, 64
    %v328 = vpop.permute.xlu0 %327
    %v330 = vsel %vm260, %v326, 0
    %vm332 = vcmask 1043456
    %v334 = vsel %vm332, %v328, 0
    %336 = vmatprep.subr.bf16.mxu0 0
    %337 = vmatpush1.bf16.msra.mxu0 %v334
    %338 = vmatprep.subr.bf16.mxu0 0
    %339 = vmatpush1.bf16.msra.mxu0 0
    %340 = vmatprep.subr.bf16.mxu0 0
    %341 = vmatpush1.bf16.msra.mxu0 0
    %342 = vmatprep.subr.bf16.mxu0 0
    %343 = vmatpush1.bf16.msra.mxu0 0
    %344 = vmatprep.subr.bf16.mxu0 0
    %345 = vmatpush1.bf16.msra.mxu0 0
    %346 = vmatprep.subr.bf16.mxu0 0
    %347 = vmatpush1.bf16.msra.mxu0 0
    %348 = vmatprep.subr.bf16.mxu0 0
    %349 = vmatpush1.bf16.msra.mxu0 0
    %350 = vmatprep.subr.bf16.mxu0 0
    %351 = vmatpush1.bf16.msra.mxu0 0
    %352 = vmatprep.subr.bf16.mxu0 0
    %353 = vmatpush1.bf16.msra.mxu0 0
    %354 = vmatprep.subr.bf16.mxu0 0
    %355 = vmatpush1.bf16.msra.mxu0 0
    %356 = vmatprep.subr.bf16.mxu0 0
    %357 = vmatpush1.bf16.msra.mxu0 0
    %358 = vmatprep.subr.bf16.mxu0 0
    %359 = vmatpush1.bf16.msra.mxu0 0
    %360 = vmatprep.subr.bf16.mxu0 0
    %361 = vmatpush1.bf16.msra.mxu0 0
    %362 = vmatprep.subr.bf16.mxu0 0
    %363 = vmatpush1.bf16.msra.mxu0 0
    %364 = vmatprep.subr.bf16.mxu0 0
    %365 = vmatpush1.bf16.msra.mxu0 0
    %366 = vmatprep.subr.bf16.mxu0 0
    %367 = vmatpush1.bf16.msra.mxu0 0
    %368 = vmatprep.mubr.bf16.mxu0 0
    %369 = vmatmul.mubr.bf16.gmra.mrb[0].mxu0 %v330
    %v370 = vpop.f32.mrb[0].mxu0
    %v371 = vadd.f32 0.0, %v370
    %v372 = vpop.f32.mrb[0].mxu0
    %v373 = vpop.f32.mrb[0].mxu0
    %v374 = vpop.f32.mrb[0].mxu0
    %375 = vdwg.mxu0
    %376 = vrot.lane.b32.xlu0 %v256, 120
    %v377 = vpop.permute.xlu0 %376
    %378 = vrot.lane.b32.xlu0 %v256, 88
    %v379 = vpop.permute.xlu0 %378
    %v381 = vsel %vm260, %v377, 0
    %v384 = vsel %vm260, %v379, 0
    %386 = vmatprep.subr.bf16.mxu0 0
    %387 = vmatpush1.bf16.xpose.msra.mxu0 %v384
    %388 = vmatprep.subr.bf16.mxu0 0
    %389 = vmatpush1.bf16.xpose.msra.mxu0 0
    %390 = vmatprep.subr.bf16.mxu0 0
    %391 = vmatpush1.bf16.xpose.msra.mxu0 0
    %392 = vmatprep.subr.bf16.mxu0 0
    %393 = vmatpush1.bf16.xpose.msra.mxu0 0
    %394 = vmatprep.subr.bf16.mxu0 0
    %395 = vmatpush1.bf16.xpose.msra.mxu0 0
    %396 = vmatprep.subr.bf16.mxu0 0
    %397 = vmatpush1.bf16.xpose.msra.mxu0 0
    %398 = vmatprep.subr.bf16.mxu0 0
    %399 = vmatpush1.bf16.xpose.msra.mxu0 0
    %400 = vmatprep.subr.bf16.mxu0 0
    %401 = vmatpush1.bf16.xpose.msra.mxu0 0
    %402 = vmatprep.subr.bf16.mxu0 0
    %403 = vmatpush1.bf16.xpose.msra.mxu0 0
    %404 = vmatprep.subr.bf16.mxu0 0
    %405 = vmatpush1.bf16.xpose.msra.mxu0 0
    %406 = vmatprep.subr.bf16.mxu0 0
    %407 = vmatpush1.bf16.xpose.msra.mxu0 0
    %408 = vmatprep.subr.bf16.mxu0 0
    %409 = vmatpush1.bf16.xpose.msra.mxu0 0
    %410 = vmatprep.subr.bf16.mxu0 0
    %411 = vmatpush1.bf16.xpose.msra.mxu0 0
    %412 = vmatprep.subr.bf16.mxu0 0
    %413 = vmatpush1.bf16.xpose.msra.mxu0 0
    %414 = vmatprep.subr.bf16.mxu0 0
    %415 = vmatpush1.bf16.xpose.msra.mxu0 0
    %416 = vmatprep.subr.bf16.mxu0 0
    %417 = vmatpush1.bf16.xpose.msra.mxu0 0
    %418 = vmatprep.mubr.bf16.mxu0 0
    %419 = vmatmul.mubr.bf16.gmra.mrb[0].mxu0 %v381
    %v420 = vpop.f32.mrb[0].mxu0
    %v421 = vadd.f32 0.0, %v420
    %v422 = vpop.f32.mrb[0].mxu0
    %v423 = vpop.f32.mrb[0].mxu0
    %v424 = vpop.f32.mrb[0].mxu0
    %425 = vdwg.mxu0
    %v426 = vmul.f32 %v421, 0.35355338
    %v427 = vadd.f32 %v426, %v312
    %v428 = vsel %vm260, %v427, -inf
    %429 = vmax.xlane.f32.xlu0 %v428
    %v430 = vpop.xlane.xlu0 %429
    %v431 = vsub.f32 %v427, %v430
    %v432 = vmul.f32 %v431, 1.442695
    %v433 = vpow.pop %v432
    %v434 = vsel %vm260, %v433, 0.0
    %435 = vadd.xlane.f32.xlu0 %v434
    %v436 = vpop.xlane.xlu0 %435
    %v437 = vrcp.pop %v436
    %v438 = vmul.f32 %v433, %v437
    %v439 = vpack.c.bf16 %v438, %v438
    %440 = vrot.lane.b32.xlu0 %v256, 56
    %v441 = vpop.permute.xlu0 %440
    %v443 = vsel %vm260, %v439, 0
    %v446 = vsel %vm332, %v441, 0
    %448 = vmatprep.subr.bf16.mxu0 0
    %449 = vmatpush1.bf16.msra.mxu0 %v446
    %450 = vmatprep.subr.bf16.mxu0 0
    %451 = vmatpush1.bf16.msra.mxu0 0
    %452 = vmatprep.subr.bf16.mxu0 0
    %453 = vmatpush1.bf16.msra.mxu0 0
    %454 = vmatprep.subr.bf16.mxu0 0
    %455 = vmatpush1.bf16.msra.mxu0 0
    %456 = vmatprep.subr.bf16.mxu0 0
    %457 = vmatpush1.bf16.msra.mxu0 0
    %458 = vmatprep.subr.bf16.mxu0 0
    %459 = vmatpush1.bf16.msra.mxu0 0
    %460 = vmatprep.subr.bf16.mxu0 0
    %461 = vmatpush1.bf16.msra.mxu0 0
    %462 = vmatprep.subr.bf16.mxu0 0
    %463 = vmatpush1.bf16.msra.mxu0 0
    %464 = vmatprep.subr.bf16.mxu0 0
    %465 = vmatpush1.bf16.msra.mxu0 0
    %466 = vmatprep.subr.bf16.mxu0 0
    %467 = vmatpush1.bf16.msra.mxu0 0
    %468 = vmatprep.subr.bf16.mxu0 0
    %469 = vmatpush1.bf16.msra.mxu0 0
    %470 = vmatprep.subr.bf16.mxu0 0
    %471 = vmatpush1.bf16.msra.mxu0 0
    %472 = vmatprep.subr.bf16.mxu0 0
    %473 = vmatpush1.bf16.msra.mxu0 0
    %474 = vmatprep.subr.bf16.mxu0 0
    %475 = vmatpush1.bf16.msra.mxu0 0
    %476 = vmatprep.subr.bf16.mxu0 0
    %477 = vmatpush1.bf16.msra.mxu0 0
    %478 = vmatprep.subr.bf16.mxu0 0
    %479 = vmatpush1.bf16.msra.mxu0 0
    %480 = vmatprep.mubr.bf16.mxu0 0
    %481 = vmatmul.mubr.bf16.gmra.mrb[0].mxu0 %v443
    %v482 = vpop.f32.mrb[0].mxu0
    %v483 = vadd.f32 0.0, %v482
    %v484 = vpop.f32.mrb[0].mxu0
    %v485 = vpop.f32.mrb[0].mxu0
    %v486 = vpop.f32.mrb[0].mxu0
    %487 = vdwg.mxu0
    %488 = vrot.lane.b32.xlu0 %v256, 112
    %v489 = vpop.permute.xlu0 %488
    %490 = vrot.lane.b32.xlu0 %v256, 80
    %v491 = vpop.permute.xlu0 %490
    %v493 = vsel %vm260, %v489, 0
    %v496 = vsel %vm260, %v491, 0
    %498 = vmatprep.subr.bf16.mxu0 0
    %499 = vmatpush1.bf16.xpose.msra.mxu0 %v496
    %500 = vmatprep.subr.bf16.mxu0 0
    %501 = vmatpush1.bf16.xpose.msra.mxu0 0
    %502 = vmatprep.subr.bf16.mxu0 0
    %503 = vmatpush1.bf16.xpose.msra.mxu0 0
    %504 = vmatprep.subr.bf16.mxu0 0
    %505 = vmatpush1.bf16.xpose.msra.mxu0 0
    %506 = vmatprep.subr.bf16.mxu0 0
    %507 = vmatpush1.bf16.xpose.msra.mxu0 0
    %508 = vmatprep.subr.bf16.mxu0 0
    %509 = vmatpush1.bf16.xpose.msra.mxu0 0
    %510 = vmatprep.subr.bf16.mxu0 0
    %511 = vmatpush1.bf16.xpose.msra.mxu0 0
    %512 = vmatprep.subr.bf16.mxu0 0
    %513 = vmatpush1.bf16.xpose.msra.mxu0 0
    %514 = vmatprep.subr.bf16.mxu0 0
    %515 = vmatpush1.bf16.xpose.msra.mxu0 0
    %516 = vmatprep.subr.bf16.mxu0 0
    %517 = vmatpush1.bf16.xpose.msra.mxu0 0
    %518 = vmatprep.subr.bf16.mxu0 0
    %519 = vmatpush1.bf16.xpose.msra.mxu0 0
    %520 = vmatprep.subr.bf16.mxu0 0
    %521 = vmatpush1.bf16.xpose.msra.mxu0 0
    %522 = vmatprep.subr.bf16.mxu0 0
    %523 = vmatpush1.bf16.xpose.msra.mxu0 0
    %524 = vmatprep.subr.bf16.mxu0 0
    %525 = vmatpush1.bf16.xpose.msra.mxu0 0
    %526 = vmatprep.subr.bf16.mxu0 0
    %527 = vmatpush1.bf16.xpose.msra.mxu0 0
    %528 = vmatprep.subr.bf16.mxu0 0
    %529 = vmatpush1.bf16.xpose.msra.mxu0 0
    %530 = vmatprep.mubr.bf16.mxu0 0
    %531 = vmatmul.mubr.bf16.gmra.mrb[0].mxu0 %v493
    %v532 = vpop.f32.mrb[0].mxu0
    %v533 = vadd.f32 0.0, %v532
    %v534 = vpop.f32.mrb[0].mxu0
    %v535 = vpop.f32.mrb[0].mxu0
    %v536 = vpop.f32.mrb[0].mxu0
    %537 = vdwg.mxu0
    %v538 = vmul.f32 %v533, 0.35355338
    %v539 = vadd.f32 %v538, %v312
    %v540 = vsel %vm260, %v539, -inf
    %541 = vmax.xlane.f32.xlu0 %v540
    %v542 = vpop.xlane.xlu0 %541
    %v543 = vsub.f32 %v539, %v542
    %v544 = vmul.f32 %v543, 1.442695
    %v545 = vpow.pop %v544
    %v546 = vsel %vm260, %v545, 0.0
    %547 = vadd.xlane.f32.xlu0 %v546
    %v548 = vpop.xlane.xlu0 %547
    %v549 = vrcp.pop %v548
    %v550 = vmul.f32 %v545, %v549
    %v551 = vpack.c.bf16 %v550, %v550
    %552 = vrot.lane.b32.xlu0 %v256, 48
    %v553 = vpop.permute.xlu0 %552
    %v555 = vsel %vm260, %v551, 0
    %v558 = vsel %vm332, %v553, 0
    %560 = vmatprep.subr.bf16.mxu0 0
    %561 = vmatpush1.bf16.msra.mxu0 %v558
    %562 = vmatprep.subr.bf16.mxu0 0
    %563 = vmatpush1.bf16.msra.mxu0 0
    %564 = vmatprep.subr.bf16.mxu0 0
    %565 = vmatpush1.bf16.msra.mxu0 0
    %566 = vmatprep.subr.bf16.mxu0 0
    %567 = vmatpush1.bf16.msra.mxu0 0
    %568 = vmatprep.subr.bf16.mxu0 0
    %569 = vmatpush1.bf16.msra.mxu0 0
    %570 = vmatprep.subr.bf16.mxu0 0
    %571 = vmatpush1.bf16.msra.mxu0 0
    %572 = vmatprep.subr.bf16.mxu0 0
    %573 = vmatpush1.bf16.msra.mxu0 0
    %574 = vmatprep.subr.bf16.mxu0 0
    %575 = vmatpush1.bf16.msra.mxu0 0
    %576 = vmatprep.subr.bf16.mxu0 0
    %577 = vmatpush1.bf16.msra.mxu0 0
    %578 = vmatprep.subr.bf16.mxu0 0
    %579 = vmatpush1.bf16.msra.mxu0 0
    %580 = vmatprep.subr.bf16.mxu0 0
    %581 = vmatpush1.bf16.msra.mxu0 0
    %582 = vmatprep.subr.bf16.mxu0 0
    %583 = vmatpush1.bf16.msra.mxu0 0
    %584 = vmatprep.subr.bf16.mxu0 0
    %585 = vmatpush1.bf16.msra.mxu0 0
    %586 = vmatprep.subr.bf16.mxu0 0
    %587 = vmatpush1.bf16.msra.mxu0 0
    %588 = vmatprep.subr.bf16.mxu0 0
    %589 = vmatpush1.bf16.msra.mxu0 0
    %590 = vmatprep.subr.bf16.mxu0 0
    %591 = vmatpush1.bf16.msra.mxu0 0
    %592 = vmatprep.mubr.bf16.mxu0 0
    %593 = vmatmul.mubr.bf16.gmra.mrb[0].mxu0 %v555
    %v594 = vpop.f32.mrb[0].mxu0
    %v595 = vadd.f32 0.0, %v594
    %v596 = vpop.f32.mrb[0].mxu0
    %v597 = vpop.f32.mrb[0].mxu0
    %v598 = vpop.f32.mrb[0].mxu0
    %599 = vdwg.mxu0
    %600 = vrot.lane.b32.xlu0 %v256, 104
    %v601 = vpop.permute.xlu0 %600
    %602 = vrot.lane.b32.xlu0 %v256, 72
    %v603 = vpop.permute.xlu0 %602
    %v605 = vsel %vm260, %v601, 0
    %v608 = vsel %vm260, %v603, 0
    %610 = vmatprep.subr.bf16.mxu0 0
    %611 = vmatpush1.bf16.xpose.msra.mxu0 %v608
    %612 = vmatprep.subr.bf16.mxu0 0
    %613 = vmatpush1.bf16.xpose.msra.mxu0 0
    %614 = vmatprep.subr.bf16.mxu0 0
    %615 = vmatpush1.bf16.xpose.msra.mxu0 0
    %616 = vmatprep.subr.bf16.mxu0 0
    %617 = vmatpush1.bf16.xpose.msra.mxu0 0
    %618 = vmatprep.subr.bf16.mxu0 0
    %619 = vmatpush1.bf16.xpose.msra.mxu0 0
    %620 = vmatprep.subr.bf16.mxu0 0
    %621 = vmatpush1.bf16.xpose.msra.mxu0 0
    %622 = vmatprep.subr.bf16.mxu0 0
    %623 = vmatpush1.bf16.xpose.msra.mxu0 0
    %624 = vmatprep.subr.bf16.mxu0 0
    %625 = vmatpush1.bf16.xpose.msra.mxu0 0
    %626 = vmatprep.subr.bf16.mxu0 0
    %627 = vmatpush1.bf16.xpose.msra.mxu0 0
    %628 = vmatprep.subr.bf16.mxu0 0
    %629 = vmatpush1.bf16.xpose.msra.mxu0 0
    %630 = vmatprep.subr.bf16.mxu0 0
    %631 = vmatpush1.bf16.xpose.msra.mxu0 0
    %632 = vmatprep.subr.bf16.mxu0 0
    %633 = vmatpush1.bf16.xpose.msra.mxu0 0
    %634 = vmatprep.subr.bf16.mxu0 0
    %635 = vmatpush1.bf16.xpose.msra.mxu0 0
    %636 = vmatprep.subr.bf16.mxu0 0
    %637 = vmatpush1.bf16.xpose.msra.mxu0 0
    %638 = vmatprep.subr.bf16.mxu0 0
    %639 = vmatpush1.bf16.xpose.msra.mxu0 0
    %640 = vmatprep.subr.bf16.mxu0 0
    %641 = vmatpush1.bf16.xpose.msra.mxu0 0
    %642 = vmatprep.mubr.bf16.mxu0 0
    %643 = vmatmul.mubr.bf16.gmra.mrb[0].mxu0 %v605
    %v644 = vpop.f32.mrb[0].mxu0
    %v645 = vadd.f32 0.0, %v644
    %v646 = vpop.f32.mrb[0].mxu0
    %v647 = vpop.f32.mrb[0].mxu0
    %v648 = vpop.f32.mrb[0].mxu0
    %649 = vdwg.mxu0
    %v650 = vmul.f32 %v645, 0.35355338
    %v651 = vadd.f32 %v650, %v312
    %v652 = vsel %vm260, %v651, -inf
    %653 = vmax.xlane.f32.xlu0 %v652
    %v654 = vpop.xlane.xlu0 %653
    %v655 = vsub.f32 %v651, %v654
    %v656 = vmul.f32 %v655, 1.442695
    %v657 = vpow.pop %v656
    %v658 = vsel %vm260, %v657, 0.0
    %659 = vadd.xlane.f32.xlu0 %v658
    %v660 = vpop.xlane.xlu0 %659
    %v661 = vrcp.pop %v660
    %v662 = vmul.f32 %v657, %v661
    %v663 = vpack.c.bf16 %v662, %v662
    %664 = vrot.lane.b32.xlu0 %v256, 40
    %v665 = vpop.permute.xlu0 %664
    %v667 = vsel %vm260, %v663, 0
    %v670 = vsel %vm332, %v665, 0
    %672 = vmatprep.subr.bf16.mxu0 0
    %673 = vmatpush1.bf16.msra.mxu0 %v670
    %674 = vmatprep.subr.bf16.mxu0 0
    %675 = vmatpush1.bf16.msra.mxu0 0
    %676 = vmatprep.subr.bf16.mxu0 0
    %677 = vmatpush1.bf16.msra.mxu0 0
    %678 = vmatprep.subr.bf16.mxu0 0
    %679 = vmatpush1.bf16.msra.mxu0 0
    %680 = vmatprep.subr.bf16.mxu0 0
    %681 = vmatpush1.bf16.msra.mxu0 0
    %682 = vmatprep.subr.bf16.mxu0 0
    %683 = vmatpush1.bf16.msra.mxu0 0
    %684 = vmatprep.subr.bf16.mxu0 0
    %685 = vmatpush1.bf16.msra.mxu0 0
    %686 = vmatprep.subr.bf16.mxu0 0
    %687 = vmatpush1.bf16.msra.mxu0 0
    %688 = vmatprep.subr.bf16.mxu0 0
    %689 = vmatpush1.bf16.msra.mxu0 0
    %690 = vmatprep.subr.bf16.mxu0 0
    %691 = vmatpush1.bf16.msra.mxu0 0
    %692 = vmatprep.subr.bf16.mxu0 0
    %693 = vmatpush1.bf16.msra.mxu0 0
    %694 = vmatprep.subr.bf16.mxu0 0
    %695 = vmatpush1.bf16.msra.mxu0 0
    %696 = vmatprep.subr.bf16.mxu0 0
    %697 = vmatpush1.bf16.msra.mxu0 0
    %698 = vmatprep.subr.bf16.mxu0 0
    %699 = vmatpush1.bf16.msra.mxu0 0
    %700 = vmatprep.subr.bf16.mxu0 0
    %701 = vmatpush1.bf16.msra.mxu0 0
    %702 = vmatprep.subr.bf16.mxu0 0
    %703 = vmatpush1.bf16.msra.mxu0 0
    %704 = vmatprep.mubr.bf16.mxu0 0
    %705 = vmatmul.mubr.bf16.gmra.mrb[0].mxu0 %v667
    %v706 = vpop.f32.mrb[0].mxu0
    %v707 = vadd.f32 0.0, %v706
    %v708 = vpop.f32.mrb[0].mxu0
    %v709 = vpop.f32.mrb[0].mxu0
    %v710 = vpop.f32.mrb[0].mxu0
    %711 = vdwg.mxu0
    %713 = vrot.lane.b32.xlu0 %v483, 8
    %v714 = vpop.permute.xlu0 %713
    %717 = vrot.lane.b32.xlu0 %v595, 16
    %v718 = vpop.permute.xlu0 %717
    %721 = vrot.lane.b32.xlu0 %v707, 24
    %v722 = vpop.permute.xlu0 %721
    %v724 = vsel %vm260, %v371, %v714
    %vm725 = vcmask 130048
    %v726 = vsel %vm725, %v724, %v718
    %vm727 = vcmask 195584
    %v728 = vsel %vm727, %v726, %v722
    %v729 = vpack.c.bf16 %v253, %v253
    %731 = vrot.lane.b32.xlu0 %v729, 96
    %v732 = vpop.permute.xlu0 %731
    %v734 = vsel %vm260, %v729, 0
    %v737 = vsel %vm260, %v732, 0
    %739 = vmatprep.subr.bf16.mxu0 0
    %740 = vmatpush1.bf16.xpose.msra.mxu0 %v737
    %741 = vmatprep.subr.bf16.mxu0 0
    %742 = vmatpush1.bf16.xpose.msra.mxu0 0
    %743 = vmatprep.subr.bf16.mxu0 0
    %744 = vmatpush1.bf16.xpose.msra.mxu0 0
    %745 = vmatprep.subr.bf16.mxu0 0
    %746 = vmatpush1.bf16.xpose.msra.mxu0 0
    %747 = vmatprep.subr.bf16.mxu0 0
    %748 = vmatpush1.bf16.xpose.msra.mxu0 0
    %749 = vmatprep.subr.bf16.mxu0 0
    %750 = vmatpush1.bf16.xpose.msra.mxu0 0
    %751 = vmatprep.subr.bf16.mxu0 0
    %752 = vmatpush1.bf16.xpose.msra.mxu0 0
    %753 = vmatprep.subr.bf16.mxu0 0
    %754 = vmatpush1.bf16.xpose.msra.mxu0 0
    %755 = vmatprep.subr.bf16.mxu0 0
    %756 = vmatpush1.bf16.xpose.msra.mxu0 0
    %757 = vmatprep.subr.bf16.mxu0 0
    %758 = vmatpush1.bf16.xpose.msra.mxu0 0
    %759 = vmatprep.subr.bf16.mxu0 0
    %760 = vmatpush1.bf16.xpose.msra.mxu0 0
    %761 = vmatprep.subr.bf16.mxu0 0
    %762 = vmatpush1.bf16.xpose.msra.mxu0 0
    %763 = vmatprep.subr.bf16.mxu0 0
    %764 = vmatpush1.bf16.xpose.msra.mxu0 0
    %765 = vmatprep.subr.bf16.mxu0 0
    %766 = vmatpush1.bf16.xpose.msra.mxu0 0
    %767 = vmatprep.subr.bf16.mxu0 0
    %768 = vmatpush1.bf16.xpose.msra.mxu0 0
    %769 = vmatprep.subr.bf16.mxu0 0
    %770 = vmatpush1.bf16.xpose.msra.mxu0 0
    %771 = vmatprep.mubr.bf16.mxu0 0
    %772 = vmatmul.mubr.bf16.gmra.mrb[0].mxu0 %v734
    %v773 = vpop.f32.mrb[0].mxu0
    %v774 = vadd.f32 0.0, %v773
    %v775 = vpop.f32.mrb[0].mxu0
    %v776 = vpop.f32.mrb[0].mxu0
    %v777 = vpop.f32.mrb[0].mxu0
    %778 = vdwg.mxu0
    %v779 = vmul.f32 %v774, 0.35355338
    %v781 = vlaneseq
    %v782 = vshrl.u32 %v781, 7
    %v783 = vsub.s32 0, %v782
    %v784 = vrot.slane %v181, %v783
    %v786 = vadd.f32 %v779, %v784
    %v787 = vsel %vm260, %v786, -inf
    %788 = vmax.xlane.f32.xlu0 %v787
    %v789 = vpop.xlane.xlu0 %788
    %v790 = vsub.f32 %v786, %v789
    %v791 = vmul.f32 %v790, 1.442695
    %v792 = vpow.pop %v791
    %v793 = vsel %vm260, %v792, 0.0
    %794 = vadd.xlane.f32.xlu0 %v793
    %v795 = vpop.xlane.xlu0 %794
    %v796 = vrcp.pop %v795
    %v797 = vmul.f32 %v792, %v796
    %v798 = vpack.c.bf16 %v797, %v797
    %799 = vrot.lane.b32.xlu0 %v729, 64
    %v800 = vpop.permute.xlu0 %799
    %v802 = vsel %vm260, %v798, 0
    %v805 = vsel %vm332, %v800, 0
    %807 = vmatprep.subr.bf16.mxu0 0
    %808 = vmatpush1.bf16.msra.mxu0 %v805
    %809 = vmatprep.subr.bf16.mxu0 0
    %810 = vmatpush1.bf16.msra.mxu0 0
    %811 = vmatprep.subr.bf16.mxu0 0
    %812 = vmatpush1.bf16.msra.mxu0 0
    %813 = vmatprep.subr.bf16.mxu0 0
    %814 = vmatpush1.bf16.msra.mxu0 0
    %815 = vmatprep.subr.bf16.mxu0 0
    %816 = vmatpush1.bf16.msra.mxu0 0
    %817 = vmatprep.subr.bf16.mxu0 0
    %818 = vmatpush1.bf16.msra.mxu0 0
    %819 = vmatprep.subr.bf16.mxu0 0
    %820 = vmatpush1.bf16.msra.mxu0 0
    %821 = vmatprep.subr.bf16.mxu0 0
    %822 = vmatpush1.bf16.msra.mxu0 0
    %823 = vmatprep.subr.bf16.mxu0 0
    %824 = vmatpush1.bf16.msra.mxu0 0
    %825 = vmatprep.subr.bf16.mxu0 0
    %826 = vmatpush1.bf16.msra.mxu0 0
    %827 = vmatprep.subr.bf16.mxu0 0
    %828 = vmatpush1.bf16.msra.mxu0 0
    %829 = vmatprep.subr.bf16.mxu0 0
    %830 = vmatpush1.bf16.msra.mxu0 0
    %831 = vmatprep.subr.bf16.mxu0 0
    %832 = vmatpush1.bf16.msra.mxu0 0
    %833 = vmatprep.subr.bf16.mxu0 0
    %834 = vmatpush1.bf16.msra.mxu0 0
    %835 = vmatprep.subr.bf16.mxu0 0
    %836 = vmatpush1.bf16.msra.mxu0 0
    %837 = vmatprep.subr.bf16.mxu0 0
    %838 = vmatpush1.bf16.msra.mxu0 0
    %839 = vmatprep.mubr.bf16.mxu0 0
    %840 = vmatmul.mubr.bf16.gmra.mrb[0].mxu0 %v802
    %v841 = vpop.f32.mrb[0].mxu0
    %v842 = vadd.f32 0.0, %v841
    %v843 = vpop.f32.mrb[0].mxu0
    %v844 = vpop.f32.mrb[0].mxu0
    %v845 = vpop.f32.mrb[0].mxu0
    %846 = vdwg.mxu0
    %847 = vrot.lane.b32.xlu0 %v729, 120
    %v848 = vpop.permute.xlu0 %847
    %849 = vrot.lane.b32.xlu0 %v729, 88
    %v850 = vpop.permute.xlu0 %849
    %v852 = vsel %vm260, %v848, 0
    %v855 = vsel %vm260, %v850, 0
    %857 = vmatprep.subr.bf16.mxu0 0
    %858 = vmatpush1.bf16.xpose.msra.mxu0 %v855
    %859 = vmatprep.subr.bf16.mxu0 0
    %860 = vmatpush1.bf16.xpose.msra.mxu0 0
    %861 = vmatprep.subr.bf16.mxu0 0
    %862 = vmatpush1.bf16.xpose.msra.mxu0 0
    %863 = vmatprep.subr.bf16.mxu0 0
    %864 = vmatpush1.bf16.xpose.msra.mxu0 0
    %865 = vmatprep.subr.bf16.mxu0 0
    %866 = vmatpush1.bf16.xpose.msra.mxu0 0
    %867 = vmatprep.subr.bf16.mxu0 0
    %868 = vmatpush1.bf16.xpose.msra.mxu0 0
    %869 = vmatprep.subr.bf16.mxu0 0
    %870 = vmatpush1.bf16.xpose.msra.mxu0 0
    %871 = vmatprep.subr.bf16.mxu0 0
    %872 = vmatpush1.bf16.xpose.msra.mxu0 0
    %873 = vmatprep.subr.bf16.mxu0 0
    %874 = vmatpush1.bf16.xpose.msra.mxu0 0
    %875 = vmatprep.subr.bf16.mxu0 0
    %876 = vmatpush1.bf16.xpose.msra.mxu0 0
    %877 = vmatprep.subr.bf16.mxu0 0
    %878 = vmatpush1.bf16.xpose.msra.mxu0 0
    %879 = vmatprep.subr.bf16.mxu0 0
    %880 = vmatpush1.bf16.xpose.msra.mxu0 0
    %881 = vmatprep.subr.bf16.mxu0 0
    %882 = vmatpush1.bf16.xpose.msra.mxu0 0
    %883 = vmatprep.subr.bf16.mxu0 0
    %884 = vmatpush1.bf16.xpose.msra.mxu0 0
    %885 = vmatprep.subr.bf16.mxu0 0
    %886 = vmatpush1.bf16.xpose.msra.mxu0 0
    %887 = vmatprep.subr.bf16.mxu0 0
    %888 = vmatpush1.bf16.xpose.msra.mxu0 0
    %889 = vmatprep.mubr.bf16.mxu0 0
    %890 = vmatmul.mubr.bf16.gmra.mrb[0].mxu0 %v852
    %v891 = vpop.f32.mrb[0].mxu0
    %v892 = vadd.f32 0.0, %v891
    %v893 = vpop.f32.mrb[0].mxu0
    %v894 = vpop.f32.mrb[0].mxu0
    %v895 = vpop.f32.mrb[0].mxu0
    %896 = vdwg.mxu0
    %v897 = vmul.f32 %v892, 0.35355338
    %v898 = vadd.f32 %v897, %v784
    %v899 = vsel %vm260, %v898, -inf
    %900 = vmax.xlane.f32.xlu0 %v899
    %v901 = vpop.xlane.xlu0 %900
    %v902 = vsub.f32 %v898, %v901
    %v903 = vmul.f32 %v902, 1.442695
    %v904 = vpow.pop %v903
    %v905 = vsel %vm260, %v904, 0.0
    %906 = vadd.xlane.f32.xlu0 %v905
    %v907 = vpop.xlane.xlu0 %906
    %v908 = vrcp.pop %v907
    %v909 = vmul.f32 %v904, %v908
    %v910 = vpack.c.bf16 %v909, %v909
    %911 = vrot.lane.b32.xlu0 %v729, 56
    %v912 = vpop.permute.xlu0 %911
    %v914 = vsel %vm260, %v910, 0
    %v917 = vsel %vm332, %v912, 0
    %919 = vmatprep.subr.bf16.mxu0 0
    %920 = vmatpush1.bf16.msra.mxu0 %v917
    %921 = vmatprep.subr.bf16.mxu0 0
    %922 = vmatpush1.bf16.msra.mxu0 0
    %923 = vmatprep.subr.bf16.mxu0 0
    %924 = vmatpush1.bf16.msra.mxu0 0
    %925 = vmatprep.subr.bf16.mxu0 0
    %926 = vmatpush1.bf16.msra.mxu0 0
    %927 = vmatprep.subr.bf16.mxu0 0
    %928 = vmatpush1.bf16.msra.mxu0 0
    %929 = vmatprep.subr.bf16.mxu0 0
    %930 = vmatpush1.bf16.msra.mxu0 0
    %931 = vmatprep.subr.bf16.mxu0 0
    %932 = vmatpush1.bf16.msra.mxu0 0
    %933 = vmatprep.subr.bf16.mxu0 0
    %934 = vmatpush1.bf16.msra.mxu0 0
    %935 = vmatprep.subr.bf16.mxu0 0
    %936 = vmatpush1.bf16.msra.mxu0 0
    %937 = vmatprep.subr.bf16.mxu0 0
    %938 = vmatpush1.bf16.msra.mxu0 0
    %939 = vmatprep.subr.bf16.mxu0 0
    %940 = vmatpush1.bf16.msra.mxu0 0
    %941 = vmatprep.subr.bf16.mxu0 0
    %942 = vmatpush1.bf16.msra.mxu0 0
    %943 = vmatprep.subr.bf16.mxu0 0
    %944 = vmatpush1.bf16.msra.mxu0 0
    %945 = vmatprep.subr.bf16.mxu0 0
    %946 = vmatpush1.bf16.msra.mxu0 0
    %947 = vmatprep.subr.bf16.mxu0 0
    %948 = vmatpush1.bf16.msra.mxu0 0
    %949 = vmatprep.subr.bf16.mxu0 0
    %950 = vmatpush1.bf16.msra.mxu0 0
    %951 = vmatprep.mubr.bf16.mxu0 0
    %952 = vmatmul.mubr.bf16.gmra.mrb[0].mxu0 %v914
    %v953 = vpop.f32.mrb[0].mxu0
    %v954 = vadd.f32 0.0, %v953
    %v955 = vpop.f32.mrb[0].mxu0
    %v956 = vpop.f32.mrb[0].mxu0
    %v957 = vpop.f32.mrb[0].mxu0
    %958 = vdwg.mxu0
    %959 = vrot.lane.b32.xlu0 %v729, 112
    %v960 = vpop.permute.xlu0 %959
    %961 = vrot.lane.b32.xlu0 %v729, 80
    %v962 = vpop.permute.xlu0 %961
    %v964 = vsel %vm260, %v960, 0
    %v967 = vsel %vm260, %v962, 0
    %969 = vmatprep.subr.bf16.mxu0 0
    %970 = vmatpush1.bf16.xpose.msra.mxu0 %v967
    %971 = vmatprep.subr.bf16.mxu0 0
    %972 = vmatpush1.bf16.xpose.msra.mxu0 0
    %973 = vmatprep.subr.bf16.mxu0 0
    %974 = vmatpush1.bf16.xpose.msra.mxu0 0
    %975 = vmatprep.subr.bf16.mxu0 0
    %976 = vmatpush1.bf16.xpose.msra.mxu0 0
    %977 = vmatprep.subr.bf16.mxu0 0
    %978 = vmatpush1.bf16.xpose.msra.mxu0 0
    %979 = vmatprep.subr.bf16.mxu0 0
    %980 = vmatpush1.bf16.xpose.msra.mxu0 0
    %981 = vmatprep.subr.bf16.mxu0 0
    %982 = vmatpush1.bf16.xpose.msra.mxu0 0
    %983 = vmatprep.subr.bf16.mxu0 0
    %984 = vmatpush1.bf16.xpose.msra.mxu0 0
    %985 = vmatprep.subr.bf16.mxu0 0
    %986 = vmatpush1.bf16.xpose.msra.mxu0 0
    %987 = vmatprep.subr.bf16.mxu0 0
    %988 = vmatpush1.bf16.xpose.msra.mxu0 0
    %989 = vmatprep.subr.bf16.mxu0 0
    %990 = vmatpush1.bf16.xpose.msra.mxu0 0
    %991 = vmatprep.subr.bf16.mxu0 0
    %992 = vmatpush1.bf16.xpose.msra.mxu0 0
    %993 = vmatprep.subr.bf16.mxu0 0
    %994 = vmatpush1.bf16.xpose.msra.mxu0 0
    %995 = vmatprep.subr.bf16.mxu0 0
    %996 = vmatpush1.bf16.xpose.msra.mxu0 0
    %997 = vmatprep.subr.bf16.mxu0 0
    %998 = vmatpush1.bf16.xpose.msra.mxu0 0
    %999 = vmatprep.subr.bf16.mxu0 0
    %1000 = vmatpush1.bf16.xpose.msra.mxu0 0
    %1001 = vmatprep.mubr.bf16.mxu0 0
    %1002 = vmatmul.mubr.bf16.gmra.mrb[0].mxu0 %v964
    %v1003 = vpop.f32.mrb[0].mxu0
    %v1004 = vadd.f32 0.0, %v1003
    %v1005 = vpop.f32.mrb[0].mxu0
    %v1006 = vpop.f32.mrb[0].mxu0
    %v1007 = vpop.f32.mrb[0].mxu0
    %1008 = vdwg.mxu0
    %v1009 = vmul.f32 %v1004, 0.35355338
    %v1010 = vadd.f32 %v1009, %v784
    %v1011 = vsel %vm260, %v1010, -inf
    %1012 = vmax.xlane.f32.xlu0 %v1011
    %v1013 = vpop.xlane.xlu0 %1012
    %v1014 = vsub.f32 %v1010, %v1013
    %v1015 = vmul.f32 %v1014, 1.442695
    %v1016 = vpow.pop %v1015
    %v1017 = vsel %vm260, %v1016, 0.0
    %1018 = vadd.xlane.f32.xlu0 %v1017
    %v1019 = vpop.xlane.xlu0 %1018
    %v1020 = vrcp.pop %v1019
    %v1021 = vmul.f32 %v1016, %v1020
    %v1022 = vpack.c.bf16 %v1021, %v1021
    %1023 = vrot.lane.b32.xlu0 %v729, 48
    %v1024 = vpop.permute.xlu0 %1023
    %v1026 = vsel %vm260, %v1022, 0
    %v1029 = vsel %vm332, %v1024, 0
    %1031 = vmatprep.subr.bf16.mxu0 0
    %1032 = vmatpush1.bf16.msra.mxu0 %v1029
    %1033 = vmatprep.subr.bf16.mxu0 0
    %1034 = vmatpush1.bf16.msra.mxu0 0
    %1035 = vmatprep.subr.bf16.mxu0 0
    %1036 = vmatpush1.bf16.msra.mxu0 0
    %1037 = vmatprep.subr.bf16.mxu0 0
    %1038 = vmatpush1.bf16.msra.mxu0 0
    %1039 = vmatprep.subr.bf16.mxu0 0
    %1040 = vmatpush1.bf16.msra.mxu0 0
    %1041 = vmatprep.subr.bf16.mxu0 0
    %1042 = vmatpush1.bf16.msra.mxu0 0
    %1043 = vmatprep.subr.bf16.mxu0 0
    %1044 = vmatpush1.bf16.msra.mxu0 0
    %1045 = vmatprep.subr.bf16.mxu0 0
    %1046 = vmatpush1.bf16.msra.mxu0 0
    %1047 = vmatprep.subr.bf16.mxu0 0
    %1048 = vmatpush1.bf16.msra.mxu0 0
    %1049 = vmatprep.subr.bf16.mxu0 0
    %1050 = vmatpush1.bf16.msra.mxu0 0
    %1051 = vmatprep.subr.bf16.mxu0 0
    %1052 = vmatpush1.bf16.msra.mxu0 0
    %1053 = vmatprep.subr.bf16.mxu0 0
    %1054 = vmatpush1.bf16.msra.mxu0 0
    %1055 = vmatprep.subr.bf16.mxu0 0
    %1056 = vmatpush1.bf16.msra.mxu0 0
    %1057 = vmatprep.subr.bf16.mxu0 0
    %1058 = vmatpush1.bf16.msra.mxu0 0
    %1059 = vmatprep.subr.bf16.mxu0 0
    %1060 = vmatpush1.bf16.msra.mxu0 0
    %1061 = vmatprep.subr.bf16.mxu0 0
    %1062 = vmatpush1.bf16.msra.mxu0 0
    %1063 = vmatprep.mubr.bf16.mxu0 0
    %1064 = vmatmul.mubr.bf16.gmra.mrb[0].mxu0 %v1026
    %v1065 = vpop.f32.mrb[0].mxu0
    %v1066 = vadd.f32 0.0, %v1065
    %v1067 = vpop.f32.mrb[0].mxu0
    %v1068 = vpop.f32.mrb[0].mxu0
    %v1069 = vpop.f32.mrb[0].mxu0
    %1070 = vdwg.mxu0
    %1071 = vrot.lane.b32.xlu0 %v729, 104
    %v1072 = vpop.permute.xlu0 %1071
    %1073 = vrot.lane.b32.xlu0 %v729, 72
    %v1074 = vpop.permute.xlu0 %1073
    %v1076 = vsel %vm260, %v1072, 0
    %v1079 = vsel %vm260, %v1074, 0
    %1081 = vmatprep.subr.bf16.mxu0 0
    %1082 = vmatpush1.bf16.xpose.msra.mxu0 %v1079
    %1083 = vmatprep.subr.bf16.mxu0 0
    %1084 = vmatpush1.bf16.xpose.msra.mxu0 0
    %1085 = vmatprep.subr.bf16.mxu0 0
    %1086 = vmatpush1.bf16.xpose.msra.mxu0 0
    %1087 = vmatprep.subr.bf16.mxu0 0
    %1088 = vmatpush1.bf16.xpose.msra.mxu0 0
    %1089 = vmatprep.subr.bf16.mxu0 0
    %1090 = vmatpush1.bf16.xpose.msra.mxu0 0
    %1091 = vmatprep.subr.bf16.mxu0 0
    %1092 = vmatpush1.bf16.xpose.msra.mxu0 0
    %1093 = vmatprep.subr.bf16.mxu0 0
    %1094 = vmatpush1.bf16.xpose.msra.mxu0 0
    %1095 = vmatprep.subr.bf16.mxu0 0
    %1096 = vmatpush1.bf16.xpose.msra.mxu0 0
    %1097 = vmatprep.subr.bf16.mxu0 0
    %1098 = vmatpush1.bf16.xpose.msra.mxu0 0
    %1099 = vmatprep.subr.bf16.mxu0 0
    %1100 = vmatpush1.bf16.xpose.msra.mxu0 0
    %1101 = vmatprep.subr.bf16.mxu0 0
    %1102 = vmatpush1.bf16.xpose.msra.mxu0 0
    %1103 = vmatprep.subr.bf16.mxu0 0
    %1104 = vmatpush1.bf16.xpose.msra.mxu0 0
    %1105 = vmatprep.subr.bf16.mxu0 0
    %1106 = vmatpush1.bf16.xpose.msra.mxu0 0
    %1107 = vmatprep.subr.bf16.mxu0 0
    %1108 = vmatpush1.bf16.xpose.msra.mxu0 0
    %1109 = vmatprep.subr.bf16.mxu0 0
    %1110 = vmatpush1.bf16.xpose.msra.mxu0 0
    %1111 = vmatprep.subr.bf16.mxu0 0
    %1112 = vmatpush1.bf16.xpose.msra.mxu0 0
    %1113 = vmatprep.mubr.bf16.mxu0 0
    %1114 = vmatmul.mubr.bf16.gmra.mrb[0].mxu0 %v1076
    %v1115 = vpop.f32.mrb[0].mxu0
    %v1116 = vadd.f32 0.0, %v1115
    %v1117 = vpop.f32.mrb[0].mxu0
    %v1118 = vpop.f32.mrb[0].mxu0
    %v1119 = vpop.f32.mrb[0].mxu0
    %1120 = vdwg.mxu0
    %v1121 = vmul.f32 %v1116, 0.35355338
    %v1122 = vadd.f32 %v1121, %v784
    %v1123 = vsel %vm260, %v1122, -inf
    %1124 = vmax.xlane.f32.xlu0 %v1123
    %v1125 = vpop.xlane.xlu0 %1124
    %v1126 = vsub.f32 %v1122, %v1125
    %v1127 = vmul.f32 %v1126, 1.442695
    %v1128 = vpow.pop %v1127
    %v1129 = vsel %vm260, %v1128, 0.0
    %1130 = vadd.xlane.f32.xlu0 %v1129
    %v1131 = vpop.xlane.xlu0 %1130
    %v1132 = vrcp.pop %v1131
    %v1133 = vmul.f32 %v1128, %v1132
    %v1134 = vpack.c.bf16 %v1133, %v1133
    %1135 = vrot.lane.b32.xlu0 %v729, 40
    %v1136 = vpop.permute.xlu0 %1135
    %v1138 = vsel %vm260, %v1134, 0
    %v1141 = vsel %vm332, %v1136, 0
    %1143 = vmatprep.subr.bf16.mxu0 0
    %1144 = vmatpush1.bf16.msra.mxu0 %v1141
    %1145 = vmatprep.subr.bf16.mxu0 0
    %1146 = vmatpush1.bf16.msra.mxu0 0
    %1147 = vmatprep.subr.bf16.mxu0 0
    %1148 = vmatpush1.bf16.msra.mxu0 0
    %1149 = vmatprep.subr.bf16.mxu0 0
    %1150 = vmatpush1.bf16.msra.mxu0 0
    %1151 = vmatprep.subr.bf16.mxu0 0
    %1152 = vmatpush1.bf16.msra.mxu0 0
    %1153 = vmatprep.subr.bf16.mxu0 0
    %1154 = vmatpush1.bf16.msra.mxu0 0
    %1155 = vmatprep.subr.bf16.mxu0 0
    %1156 = vmatpush1.bf16.msra.mxu0 0
    %1157 = vmatprep.subr.bf16.mxu0 0
    %1158 = vmatpush1.bf16.msra.mxu0 0
    %1159 = vmatprep.subr.bf16.mxu0 0
    %1160 = vmatpush1.bf16.msra.mxu0 0
    %1161 = vmatprep.subr.bf16.mxu0 0
    %1162 = vmatpush1.bf16.msra.mxu0 0
    %1163 = vmatprep.subr.bf16.mxu0 0
    %1164 = vmatpush1.bf16.msra.mxu0 0
    %1165 = vmatprep.subr.bf16.mxu0 0
    %1166 = vmatpush1.bf16.msra.mxu0 0
    %1167 = vmatprep.subr.bf16.mxu0 0
    %1168 = vmatpush1.bf16.msra.mxu0 0
    %1169 = vmatprep.subr.bf16.mxu0 0
    %1170 = vmatpush1.bf16.msra.mxu0 0
    %1171 = vmatprep.subr.bf16.mxu0 0
    %1172 = vmatpush1.bf16.msra.mxu0 0
    %1173 = vmatprep.subr.bf16.mxu0 0
    %1174 = vmatpush1.bf16.msra.mxu0 0
    %1175 = vmatprep.mubr.bf16.mxu0 0
    %1176 = vmatmul.mubr.bf16.gmra.mrb[0].mxu0 %v1138
    %v1177 = vpop.f32.mrb[0].mxu0
    %v1178 = vadd.f32 0.0, %v1177
    %v1179 = vpop.f32.mrb[0].mxu0
    %v1180 = vpop.f32.mrb[0].mxu0
    %v1181 = vpop.f32.mrb[0].mxu0
    %1182 = vdwg.mxu0
    %1184 = vrot.lane.b32.xlu0 %v954, 8
    %v1185 = vpop.permute.xlu0 %1184
    %1188 = vrot.lane.b32.xlu0 %v1066, 16
    %v1189 = vpop.permute.xlu0 %1188
    %1192 = vrot.lane.b32.xlu0 %v1178, 24
    %v1193 = vpop.permute.xlu0 %1192
    %v1195 = vsel %vm260, %v842, %v1185
    %v1196 = vsel %vm725, %v1195, %v1189
    %v1197 = vsel %vm727, %v1196, %v1193
    %v1198 = vpack.c.bf16 %v1197, %v728
    %v1200 = vlaneseq
    %v1201 = vshrl.u32 %v1200, 7
    %v1202 = vsub.s32 0, %v1201
    %v1203 = vrot.slane %v191, %v1202
    %v1209 = vunpack.c.l.b16 %v187
    %v1210 = vunpack.c.l.b16 %v188
    %v1211 = vunpack.c.l.b16 %v189
    %v1212 = vunpack.c.l.b16 %v190
    %v1213 = vpack.c.b16 %v1210, %v1209
    %v1214 = vpack.c.b16 %v1212, %v1211
    %v1218 = vsel %vm211, %v1198, 0
    %1220 = vmatprep.subr.bf16.mxu0 0
    %1221 = vmatpush1.bf16.msra.mxu0 %v1213
    %1222 = vmatprep.subr.bf16.mxu0 0
    %1223 = vmatpush1.bf16.msra.mxu0 %v1214
    %1224 = vmatprep.subr.bf16.mxu0 0
    %1225 = vmatpush1.bf16.msra.mxu0 0
    %1226 = vmatprep.subr.bf16.mxu0 0
    %1227 = vmatpush1.bf16.msra.mxu0 0
    %1228 = vmatprep.subr.bf16.mxu0 0
    %1229 = vmatpush1.bf16.msra.mxu0 0
    %1230 = vmatprep.subr.bf16.mxu0 0
    %1231 = vmatpush1.bf16.msra.mxu0 0
    %1232 = vmatprep.subr.bf16.mxu0 0
    %1233 = vmatpush1.bf16.msra.mxu0 0
    %1234 = vmatprep.subr.bf16.mxu0 0
    %1235 = vmatpush1.bf16.msra.mxu0 0
    %1236 = vmatprep.subr.bf16.mxu0 0
    %1237 = vmatpush1.bf16.msra.mxu0 0
    %1238 = vmatprep.subr.bf16.mxu0 0
    %1239 = vmatpush1.bf16.msra.mxu0 0
    %1240 = vmatprep.subr.bf16.mxu0 0
    %1241 = vmatpush1.bf16.msra.mxu0 0
    %1242 = vmatprep.subr.bf16.mxu0 0
    %1243 = vmatpush1.bf16.msra.mxu0 0
    %1244 = vmatprep.subr.bf16.mxu0 0
    %1245 = vmatpush1.bf16.msra.mxu0 0
    %1246 = vmatprep.subr.bf16.mxu0 0
    %1247 = vmatpush1.bf16.msra.mxu0 0
    %1248 = vmatprep.subr.bf16.mxu0 0
    %1249 = vmatpush1.bf16.msra.mxu0 0
    %1250 = vmatprep.subr.bf16.mxu0 0
    %1251 = vmatpush1.bf16.msra.mxu0 0
    %1252 = vmatprep.mubr.bf16.mxu0 0
    %1253 = vmatmul.mubr.bf16.gmra.mrb[0].mxu0 %v1218
    %v1254 = vpop.f32.mrb[0].mxu0
    %v1255 = vadd.f32 %v1203, %v1254
    %v1256 = vpop.f32.mrb[0].mxu0
    %v1257 = vpop.f32.mrb[0].mxu0
    %v1258 = vadd.f32 %v1203, %v1257
    %v1259 = vpop.f32.mrb[0].mxu0
    %1260 = vdwg.mxu0
    %v1261 = vadd.f32 %v175, %v1255
    %v1262 = vadd.f32 %v176, %v1258
    %v1263 = vld [vmem:[%s15] sm:$0x1]
    %v1264 = vld [vmem:[%s17] sm:$0x1]
    %v1265 = vsel %vm211, %v1261, 0.0
    %1266 = vadd.xlane.f32.xlu0 %v1265
    %v1267 = vpop.xlane.xlu0 %1266
    %v1268 = vsel %vm211, %v1262, 0.0
    %1269 = vadd.xlane.f32.xlu0 %v1268
    %v1270 = vpop.xlane.xlu0 %1269
    %v1271 = vrcp.pop 32.0
    %v1272 = vmul.f32 %v1267, %v1271
    %v1273 = vmul.f32 %v1270, %v1271
    %v1274 = vsub.f32 %v1261, %v1272
    %v1275 = vsub.f32 %v1262, %v1273
    %v1276 = vmul.f32 %v1274, %v1274
    %v1277 = vmul.f32 %v1275, %v1275
    %v1278 = vsel %vm211, %v1276, 0.0
    %1279 = vadd.xlane.f32.xlu0 %v1278
    %v1280 = vpop.xlane.xlu0 %1279
    %v1281 = vsel %vm211, %v1277, 0.0
    %1282 = vadd.xlane.f32.xlu0 %v1281
    %v1283 = vpop.xlane.xlu0 %1282
    %v1284 = vmul.f32 %v1280, %v1271
    %v1285 = vmul.f32 %v1283, %v1271
    %v1286 = vadd.f32 %v1284, 1e-05
    %v1287 = vadd.f32 %v1285, 1e-05
    %v1288 = vrsqrt.pop %v1286
    %v1289 = vrsqrt.pop %v1287
    %v1290 = vmul.f32 %v1274, %v1288
    %v1291 = vmul.f32 %v1275, %v1289
    %v1293 = vlaneseq
    %v1294 = vshrl.u32 %v1293, 7
    %v1295 = vsub.s32 0, %v1294
    %v1296 = vrot.slane %v1263, %v1295
    %v1298 = vmul.f32 %v1290, %v1296
    %v1299 = vmul.f32 %v1291, %v1296
    %v1301 = vlaneseq
    %v1302 = vshrl.u32 %v1301, 7
    %v1303 = vsub.s32 0, %v1302
    %v1304 = vrot.slane %v1264, %v1303
    %v1306 = vadd.f32 %v1298, %v1304
    %v1307 = vadd.f32 %v1299, %v1304
    %v1308 = vld [vmem:[%s19] sm:$0xf]
    %v1309 = vld [vmem:[%s19 + $0x4] sm:$0xf]
    %v1310 = vld [vmem:[%s19 + $0x8] sm:$0xf]
    %v1311 = vld [vmem:[%s19 + $0xc] sm:$0xf]
    %v1312 = vld [vmem:[%s21] sm:$0x1]
    %v1313 = vld [vmem:[%s23] sm:$0xf]
    %v1314 = vld [vmem:[%s23 + $0x4] sm:$0xf]
    %v1315 = vld [vmem:[%s23 + $0x8] sm:$0xf]
    %v1316 = vld [vmem:[%s23 + $0xc] sm:$0xf]
    %v1317 = vld [vmem:[%s23 + $0x10] sm:$0xf]
    %v1318 = vld [vmem:[%s23 + $0x14] sm:$0xf]
    %v1319 = vld [vmem:[%s23 + $0x18] sm:$0xf]
    %v1320 = vld [vmem:[%s23 + $0x1c] sm:$0xf]
    %v1321 = vld [vmem:[%s25] sm:$0x1]
    %v1322 = vpack.c.bf16 %v1307, %v1306
    %v1324 = vlaneseq
    %v1325 = vshrl.u32 %v1324, 7
    %v1326 = vsub.s32 0, %v1325
    %v1327 = vrot.slane %v1312, %v1326
    %v1333 = vunpack.c.l.b16 %v1308
    %v1334 = vunpack.c.l.b16 %v1309
    %v1335 = vunpack.c.l.b16 %v1310
    %v1336 = vunpack.c.l.b16 %v1311
    %v1337 = vpack.c.b16 %v1334, %v1333
    %v1338 = vpack.c.b16 %v1336, %v1335
    %v1342 = vsel %vm211, %v1322, 0
    %1344 = vmatprep.subr.bf16.mxu0 0
    %1345 = vmatpush1.bf16.msra.mxu0 %v1337
    %1346 = vmatprep.subr.bf16.mxu0 0
    %1347 = vmatpush1.bf16.msra.mxu0 %v1338
    %1348 = vmatprep.subr.bf16.mxu0 0
    %1349 = vmatpush1.bf16.msra.mxu0 0
    %1350 = vmatprep.subr.bf16.mxu0 0
    %1351 = vmatpush1.bf16.msra.mxu0 0
    %1352 = vmatprep.subr.bf16.mxu0 0
    %1353 = vmatpush1.bf16.msra.mxu0 0
    %1354 = vmatprep.subr.bf16.mxu0 0
    %1355 = vmatpush1.bf16.msra.mxu0 0
    %1356 = vmatprep.subr.bf16.mxu0 0
    %1357 = vmatpush1.bf16.msra.mxu0 0
    %1358 = vmatprep.subr.bf16.mxu0 0
    %1359 = vmatpush1.bf16.msra.mxu0 0
    %1360 = vmatprep.subr.bf16.mxu0 0
    %1361 = vmatpush1.bf16.msra.mxu0 0
    %1362 = vmatprep.subr.bf16.mxu0 0
    %1363 = vmatpush1.bf16.msra.mxu0 0
    %1364 = vmatprep.subr.bf16.mxu0 0
    %1365 = vmatpush1.bf16.msra.mxu0 0
    %1366 = vmatprep.subr.bf16.mxu0 0
    %1367 = vmatpush1.bf16.msra.mxu0 0
    %1368 = vmatprep.subr.bf16.mxu0 0
    %1369 = vmatpush1.bf16.msra.mxu0 0
    %1370 = vmatprep.subr.bf16.mxu0 0
    %1371 = vmatpush1.bf16.msra.mxu0 0
    %1372 = vmatprep.subr.bf16.mxu0 0
    %1373 = vmatpush1.bf16.msra.mxu0 0
    %1374 = vmatprep.subr.bf16.mxu0 0
    %1375 = vmatpush1.bf16.msra.mxu0 0
    %1376 = vmatprep.mubr.bf16.mxu0 0
    %1377 = vmatmul.mubr.bf16.gmra.mrb[0].mxu0 %v1342
    %v1378 = vpop.f32.mrb[0].mxu0
    %v1379 = vadd.f32 %v1327, %v1378
    %v1380 = vpop.f32.mrb[0].mxu0
    %v1381 = vpop.f32.mrb[0].mxu0
    %v1382 = vadd.f32 %v1327, %v1381
    %v1383 = vpop.f32.mrb[0].mxu0
    %1384 = vdwg.mxu0
    %v1385 = vmax.f32 %v1379, 0.0
    %v1386 = vmax.f32 %v1382, 0.0
    %v1387 = vpack.c.bf16 %v1386, %v1385
    %v1389 = vlaneseq
    %v1390 = vshrl.u32 %v1389, 7
    %v1391 = vsub.s32 0, %v1390
    %v1392 = vrot.slane %v1321, %v1391
    %v1402 = vunpack.c.l.b16 %v1313
    %v1403 = vunpack.c.l.b16 %v1314
    %v1404 = vunpack.c.l.b16 %v1315
    %v1405 = vunpack.c.l.b16 %v1316
    %v1406 = vunpack.c.l.b16 %v1317
    %v1407 = vunpack.c.l.b16 %v1318
    %v1408 = vunpack.c.l.b16 %v1319
    %v1409 = vunpack.c.l.b16 %v1320
    %v1410 = vpack.c.b16 %v1403, %v1402
    %v1411 = vpack.c.b16 %v1405, %v1404
    %v1412 = vpack.c.b16 %v1407, %v1406
    %v1413 = vpack.c.b16 %v1409, %v1408
    %vm1418 = vcmask 523264
    %v1420 = vsel %vm1418, %v1387, 0
    %1422 = vmatprep.subr.bf16.mxu0 0
    %1423 = vmatpush1.bf16.msra.mxu0 %v1410
    %1424 = vmatprep.subr.bf16.mxu0 0
    %1425 = vmatpush1.bf16.msra.mxu0 %v1411
    %1426 = vmatprep.subr.bf16.mxu0 0
    %1427 = vmatpush1.bf16.msra.mxu0 %v1412
    %1428 = vmatprep.subr.bf16.mxu0 0
    %1429 = vmatpush1.bf16.msra.mxu0 %v1413
    %1430 = vmatprep.subr.bf16.mxu0 0
    %1431 = vmatpush1.bf16.msra.mxu0 0
    %1432 = vmatprep.subr.bf16.mxu0 0
    %1433 = vmatpush1.bf16.msra.mxu0 0
    %1434 = vmatprep.subr.bf16.mxu0 0
    %1435 = vmatpush1.bf16.msra.mxu0 0
    %1436 = vmatprep.subr.bf16.mxu0 0
    %1437 = vmatpush1.bf16.msra.mxu0 0
    %1438 = vmatprep.subr.bf16.mxu0 0
    %1439 = vmatpush1.bf16.msra.mxu0 0
    %1440 = vmatprep.subr.bf16.mxu0 0
    %1441 = vmatpush1.bf16.msra.mxu0 0
    %1442 = vmatprep.subr.bf16.mxu0 0
    %1443 = vmatpush1.bf16.msra.mxu0 0
    %1444 = vmatprep.subr.bf16.mxu0 0
    %1445 = vmatpush1.bf16.msra.mxu0 0
    %1446 = vmatprep.subr.bf16.mxu0 0
    %1447 = vmatpush1.bf16.msra.mxu0 0
    %1448 = vmatprep.subr.bf16.mxu0 0
    %1449 = vmatpush1.bf16.msra.mxu0 0
    %1450 = vmatprep.subr.bf16.mxu0 0
    %1451 = vmatpush1.bf16.msra.mxu0 0
    %1452 = vmatprep.subr.bf16.mxu0 0
    %1453 = vmatpush1.bf16.msra.mxu0 0
    %1454 = vmatprep.mubr.bf16.mxu0 0
    %1455 = vmatmul.mubr.bf16.gmra.mrb[0].mxu0 %v1420
    %v1456 = vpop.f32.mrb[0].mxu0
    %v1457 = vadd.f32 %v1392, %v1456
    %v1458 = vpop.f32.mrb[0].mxu0
    %v1459 = vpop.f32.mrb[0].mxu0
    %v1460 = vadd.f32 %v1392, %v1459
    %v1461 = vpop.f32.mrb[0].mxu0
    %1462 = vdwg.mxu0
    %v1463 = vadd.f32 %v1306, %v1457
    %v1464 = vadd.f32 %v1307, %v1460
    %v1465 = vld [vmem:[%s27] sm:$0x1]
    %v1466 = vld [vmem:[%s29] sm:$0x1]
    %v1467 = vsel %vm211, %v1463, 0.0
    %1468 = vadd.xlane.f32.xlu0 %v1467
    %v1469 = vpop.xlane.xlu0 %1468
    %v1470 = vsel %vm211, %v1464, 0.0
    %1471 = vadd.xlane.f32.xlu0 %v1470
    %v1472 = vpop.xlane.xlu0 %1471
    %v1473 = vmul.f32 %v1469, %v1271
    %v1474 = vmul.f32 %v1472, %v1271
    %v1475 = vsub.f32 %v1463, %v1473
    %v1476 = vsub.f32 %v1464, %v1474
    %v1477 = vmul.f32 %v1475, %v1475
    %v1478 = vmul.f32 %v1476, %v1476
    %v1479 = vsel %vm211, %v1477, 0.0
    %1480 = vadd.xlane.f32.xlu0 %v1479
    %v1481 = vpop.xlane.xlu0 %1480
    %v1482 = vsel %vm211, %v1478, 0.0
    %1483 = vadd.xlane.f32.xlu0 %v1482
    %v1484 = vpop.xlane.xlu0 %1483
    %v1485 = vmul.f32 %v1481, %v1271
    %v1486 = vmul.f32 %v1484, %v1271
    %v1487 = vadd.f32 %v1485, 1e-05
    %v1488 = vadd.f32 %v1486, 1e-05
    %v1489 = vrsqrt.pop %v1487
    %v1490 = vrsqrt.pop %v1488
    %v1491 = vmul.f32 %v1475, %v1489
    %v1492 = vmul.f32 %v1476, %v1490
    %v1494 = vlaneseq
    %v1495 = vshrl.u32 %v1494, 7
    %v1496 = vsub.s32 0, %v1495
    %v1497 = vrot.slane %v1465, %v1496
    %v1499 = vmul.f32 %v1491, %v1497
    %v1500 = vmul.f32 %v1492, %v1497
    %v1502 = vlaneseq
    %v1503 = vshrl.u32 %v1502, 7
    %v1504 = vsub.s32 0, %v1503
    %v1505 = vrot.slane %v1466, %v1504
    %v1507 = vadd.f32 %v1499, %v1505
    %v1508 = vadd.f32 %v1500, %v1505
    %s1509 = scalar_lea.vmem %s7, 16
    %v1510 = vld [vmem:[%s1509] sm:$0xf]
    %v1511 = vld [vmem:[%s1509 + $0x4] sm:$0xf]
    %v1512 = vld [vmem:[%s1509 + $0x8] sm:$0xf]
    %v1513 = vld [vmem:[%s1509 + $0xc] sm:$0xf]
    %s1514 = scalar_lea.vmem %s9, 1
    %v1515 = vld [vmem:[%s1514] sm:$0x1]
    %s1516 = scalar_lea.vmem %s11, 16
    %v1517 = vld [vmem:[%s1516] sm:$0xf]
    %v1518 = vld [vmem:[%s1516 + $0x4] sm:$0xf]
    %v1519 = vld [vmem:[%s1516 + $0x8] sm:$0xf]
    %v1520 = vld [vmem:[%s1516 + $0xc] sm:$0xf]
    %s1521 = scalar_lea.vmem %s13, 1
    %v1522 = vld [vmem:[%s1521] sm:$0x1]
    %v1523 = vpack.c.bf16 %v1508, %v1507
    %v1525 = vlaneseq
    %v1526 = vshrl.u32 %v1525, 7
    %v1527 = vsub.s32 0, %v1526
    %v1528 = vrot.slane %v1515, %v1527
    %v1534 = vunpack.c.l.b16 %v1510
    %v1535 = vunpack.c.l.b16 %v1511
    %v1536 = vunpack.c.l.b16 %v1512
    %v1537 = vunpack.c.l.b16 %v1513
    %v1538 = vpack.c.b16 %v1535, %v1534
    %v1539 = vpack.c.b16 %v1537, %v1536
    %v1543 = vsel %vm211, %v1523, 0
    %1545 = vmatprep.subr.bf16.mxu0 0
    %1546 = vmatpush1.bf16.msra.mxu0 %v1538
    %1547 = vmatprep.subr.bf16.mxu0 0
    %1548 = vmatpush1.bf16.msra.mxu0 %v1539
    %1549 = vmatprep.subr.bf16.mxu0 0
    %1550 = vmatpush1.bf16.msra.mxu0 0
    %1551 = vmatprep.subr.bf16.mxu0 0
    %1552 = vmatpush1.bf16.msra.mxu0 0
    %1553 = vmatprep.subr.bf16.mxu0 0
    %1554 = vmatpush1.bf16.msra.mxu0 0
    %1555 = vmatprep.subr.bf16.mxu0 0
    %1556 = vmatpush1.bf16.msra.mxu0 0
    %1557 = vmatprep.subr.bf16.mxu0 0
    %1558 = vmatpush1.bf16.msra.mxu0 0
    %1559 = vmatprep.subr.bf16.mxu0 0
    %1560 = vmatpush1.bf16.msra.mxu0 0
    %1561 = vmatprep.subr.bf16.mxu0 0
    %1562 = vmatpush1.bf16.msra.mxu0 0
    %1563 = vmatprep.subr.bf16.mxu0 0
    %1564 = vmatpush1.bf16.msra.mxu0 0
    %1565 = vmatprep.subr.bf16.mxu0 0
    %1566 = vmatpush1.bf16.msra.mxu0 0
    %1567 = vmatprep.subr.bf16.mxu0 0
    %1568 = vmatpush1.bf16.msra.mxu0 0
    %1569 = vmatprep.subr.bf16.mxu0 0
    %1570 = vmatpush1.bf16.msra.mxu0 0
    %1571 = vmatprep.subr.bf16.mxu0 0
    %1572 = vmatpush1.bf16.msra.mxu0 0
    %1573 = vmatprep.subr.bf16.mxu0 0
    %1574 = vmatpush1.bf16.msra.mxu0 0
    %1575 = vmatprep.subr.bf16.mxu0 0
    %1576 = vmatpush1.bf16.msra.mxu0 0
    %1577 = vmatprep.mubr.bf16.mxu0 0
    %1578 = vmatmul.mubr.bf16.gmra.mrb[0].mxu0 %v1543
    %v1579 = vpop.f32.mrb[0].mxu0
    %v1580 = vadd.f32 %v1528, %v1579
    %v1581 = vpop.f32.mrb[0].mxu0
    %v1582 = vpop.f32.mrb[0].mxu0
    %v1583 = vadd.f32 %v1528, %v1582
    %v1584 = vpop.f32.mrb[0].mxu0
    %1585 = vdwg.mxu0
    %v1586 = vpack.c.bf16 %v1580, %v1580
    %1588 = vrot.lane.b32.xlu0 %v1586, 96
    %v1589 = vpop.permute.xlu0 %1588
    %v1591 = vsel %vm260, %v1586, 0
    %v1594 = vsel %vm260, %v1589, 0
    %1596 = vmatprep.subr.bf16.mxu0 0
    %1597 = vmatpush1.bf16.xpose.msra.mxu0 %v1594
    %1598 = vmatprep.subr.bf16.mxu0 0
    %1599 = vmatpush1.bf16.xpose.msra.mxu0 0
    %1600 = vmatprep.subr.bf16.mxu0 0
    %1601 = vmatpush1.bf16.xpose.msra.mxu0 0
    %1602 = vmatprep.subr.bf16.mxu0 0
    %1603 = vmatpush1.bf16.xpose.msra.mxu0 0
    %1604 = vmatprep.subr.bf16.mxu0 0
    %1605 = vmatpush1.bf16.xpose.msra.mxu0 0
    %1606 = vmatprep.subr.bf16.mxu0 0
    %1607 = vmatpush1.bf16.xpose.msra.mxu0 0
    %1608 = vmatprep.subr.bf16.mxu0 0
    %1609 = vmatpush1.bf16.xpose.msra.mxu0 0
    %1610 = vmatprep.subr.bf16.mxu0 0
    %1611 = vmatpush1.bf16.xpose.msra.mxu0 0
    %1612 = vmatprep.subr.bf16.mxu0 0
    %1613 = vmatpush1.bf16.xpose.msra.mxu0 0
    %1614 = vmatprep.subr.bf16.mxu0 0
    %1615 = vmatpush1.bf16.xpose.msra.mxu0 0
    %1616 = vmatprep.subr.bf16.mxu0 0
    %1617 = vmatpush1.bf16.xpose.msra.mxu0 0
    %1618 = vmatprep.subr.bf16.mxu0 0
    %1619 = vmatpush1.bf16.xpose.msra.mxu0 0
    %1620 = vmatprep.subr.bf16.mxu0 0
    %1621 = vmatpush1.bf16.xpose.msra.mxu0 0
    %1622 = vmatprep.subr.bf16.mxu0 0
    %1623 = vmatpush1.bf16.xpose.msra.mxu0 0
    %1624 = vmatprep.subr.bf16.mxu0 0
    %1625 = vmatpush1.bf16.xpose.msra.mxu0 0
    %1626 = vmatprep.subr.bf16.mxu0 0
    %1627 = vmatpush1.bf16.xpose.msra.mxu0 0
    %1628 = vmatprep.mubr.bf16.mxu0 0
    %1629 = vmatmul.mubr.bf16.gmra.mrb[0].mxu0 %v1591
    %v1630 = vpop.f32.mrb[0].mxu0
    %v1631 = vadd.f32 0.0, %v1630
    %v1632 = vpop.f32.mrb[0].mxu0
    %v1633 = vpop.f32.mrb[0].mxu0
    %v1634 = vpop.f32.mrb[0].mxu0
    %1635 = vdwg.mxu0
    %v1636 = vmul.f32 %v1631, 0.35355338
    %v1637 = vadd.f32 %v1636, %v312
    %v1638 = vsel %vm260, %v1637, -inf
    %1639 = vmax.xlane.f32.xlu0 %v1638
    %v1640 = vpop.xlane.xlu0 %1639
    %v1641 = vsub.f32 %v1637, %v1640
    %v1642 = vmul.f32 %v1641, 1.442695
    %v1643 = vpow.pop %v1642
    %v1644 = vsel %vm260, %v1643, 0.0
    %1645 = vadd.xlane.f32.xlu0 %v1644
    %v1646 = vpop.xlane.xlu0 %1645
    %v1647 = vrcp.pop %v1646
    %v1648 = vmul.f32 %v1643, %v1647
    %v1649 = vpack.c.bf16 %v1648, %v1648
    %1650 = vrot.lane.b32.xlu0 %v1586, 64
    %v1651 = vpop.permute.xlu0 %1650
    %v1653 = vsel %vm260, %v1649, 0
    %v1656 = vsel %vm332, %v1651, 0
    %1658 = vmatprep.subr.bf16.mxu0 0
    %1659 = vmatpush1.bf16.msra.mxu0 %v1656
    %1660 = vmatprep.subr.bf16.mxu0 0
    %1661 = vmatpush1.bf16.msra.mxu0 0
    %1662 = vmatprep.subr.bf16.mxu0 0
    %1663 = vmatpush1.bf16.msra.mxu0 0
    %1664 = vmatprep.subr.bf16.mxu0 0
    %1665 = vmatpush1.bf16.msra.mxu0 0
    %1666 = vmatprep.subr.bf16.mxu0 0
    %1667 = vmatpush1.bf16.msra.mxu0 0
    %1668 = vmatprep.subr.bf16.mxu0 0
    %1669 = vmatpush1.bf16.msra.mxu0 0
    %1670 = vmatprep.subr.bf16.mxu0 0
    %1671 = vmatpush1.bf16.msra.mxu0 0
    %1672 = vmatprep.subr.bf16.mxu0 0
    %1673 = vmatpush1.bf16.msra.mxu0 0
    %1674 = vmatprep.subr.bf16.mxu0 0
    %1675 = vmatpush1.bf16.msra.mxu0 0
    %1676 = vmatprep.subr.bf16.mxu0 0
    %1677 = vmatpush1.bf16.msra.mxu0 0
    %1678 = vmatprep.subr.bf16.mxu0 0
    %1679 = vmatpush1.bf16.msra.mxu0 0
    %1680 = vmatprep.subr.bf16.mxu0 0
    %1681 = vmatpush1.bf16.msra.mxu0 0
    %1682 = vmatprep.subr.bf16.mxu0 0
    %1683 = vmatpush1.bf16.msra.mxu0 0
    %1684 = vmatprep.subr.bf16.mxu0 0
    %1685 = vmatpush1.bf16.msra.mxu0 0
    %1686 = vmatprep.subr.bf16.mxu0 0
    %1687 = vmatpush1.bf16.msra.mxu0 0
    %1688 = vmatprep.subr.bf16.mxu0 0
    %1689 = vmatpush1.bf16.msra.mxu0 0
    %1690 = vmatprep.mubr.bf16.mxu0 0
    %1691 = vmatmul.mubr.bf16.gmra.mrb[0].mxu0 %v1653
    %v1692 = vpop.f32.mrb[0].mxu0
    %v1693 = vadd.f32 0.0, %v1692
    %v1694 = vpop.f32.mrb[0].mxu0
    %v1695 = vpop.f32.mrb[0].mxu0
    %v1696 = vpop.f32.mrb[0].mxu0
    %1697 = vdwg.mxu0
    %1698 = vrot.lane.b32.xlu0 %v1586, 120
    %v1699 = vpop.permute.xlu0 %1698
    %1700 = vrot.lane.b32.xlu0 %v1586, 88
    %v1701 = vpop.permute.xlu0 %1700
    %v1703 = vsel %vm260, %v1699, 0
    %v1706 = vsel %vm260, %v1701, 0
    %1708 = vmatprep.subr.bf16.mxu0 0
    %1709 = vmatpush1.bf16.xpose.msra.mxu0 %v1706
    %1710 = vmatprep.subr.bf16.mxu0 0
    %1711 = vmatpush1.bf16.xpose.msra.mxu0 0
    %1712 = vmatprep.subr.bf16.mxu0 0
    %1713 = vmatpush1.bf16.xpose.msra.mxu0 0
    %1714 = vmatprep.subr.bf16.mxu0 0
    %1715 = vmatpush1.bf16.xpose.msra.mxu0 0
    %1716 = vmatprep.subr.bf16.mxu0 0
    %1717 = vmatpush1.bf16.xpose.msra.mxu0 0
    %1718 = vmatprep.subr.bf16.mxu0 0
    %1719 = vmatpush1.bf16.xpose.msra.mxu0 0
    %1720 = vmatprep.subr.bf16.mxu0 0
    %1721 = vmatpush1.bf16.xpose.msra.mxu0 0
    %1722 = vmatprep.subr.bf16.mxu0 0
    %1723 = vmatpush1.bf16.xpose.msra.mxu0 0
    %1724 = vmatprep.subr.bf16.mxu0 0
    %1725 = vmatpush1.bf16.xpose.msra.mxu0 0
    %1726 = vmatprep.subr.bf16.mxu0 0
    %1727 = vmatpush1.bf16.xpose.msra.mxu0 0
    %1728 = vmatprep.subr.bf16.mxu0 0
    %1729 = vmatpush1.bf16.xpose.msra.mxu0 0
    %1730 = vmatprep.subr.bf16.mxu0 0
    %1731 = vmatpush1.bf16.xpose.msra.mxu0 0
    %1732 = vmatprep.subr.bf16.mxu0 0
    %1733 = vmatpush1.bf16.xpose.msra.mxu0 0
    %1734 = vmatprep.subr.bf16.mxu0 0
    %1735 = vmatpush1.bf16.xpose.msra.mxu0 0
    %1736 = vmatprep.subr.bf16.mxu0 0
    %1737 = vmatpush1.bf16.xpose.msra.mxu0 0
    %1738 = vmatprep.subr.bf16.mxu0 0
    %1739 = vmatpush1.bf16.xpose.msra.mxu0 0
    %1740 = vmatprep.mubr.bf16.mxu0 0
    %1741 = vmatmul.mubr.bf16.gmra.mrb[0].mxu0 %v1703
    %v1742 = vpop.f32.mrb[0].mxu0
    %v1743 = vadd.f32 0.0, %v1742
    %v1744 = vpop.f32.mrb[0].mxu0
    %v1745 = vpop.f32.mrb[0].mxu0
    %v1746 = vpop.f32.mrb[0].mxu0
    %1747 = vdwg.mxu0
    %v1748 = vmul.f32 %v1743, 0.35355338
    %v1749 = vadd.f32 %v1748, %v312
    %v1750 = vsel %vm260, %v1749, -inf
    %1751 = vmax.xlane.f32.xlu0 %v1750
    %v1752 = vpop.xlane.xlu0 %1751
    %v1753 = vsub.f32 %v1749, %v1752
    %v1754 = vmul.f32 %v1753, 1.442695
    %v1755 = vpow.pop %v1754
    %v1756 = vsel %vm260, %v1755, 0.0
    %1757 = vadd.xlane.f32.xlu0 %v1756
    %v1758 = vpop.xlane.xlu0 %1757
    %v1759 = vrcp.pop %v1758
    %v1760 = vmul.f32 %v1755, %v1759
    %v1761 = vpack.c.bf16 %v1760, %v1760
    %1762 = vrot.lane.b32.xlu0 %v1586, 56
    %v1763 = vpop.permute.xlu0 %1762
    %v1765 = vsel %vm260, %v1761, 0
    %v1768 = vsel %vm332, %v1763, 0
    %1770 = vmatprep.subr.bf16.mxu0 0
    %1771 = vmatpush1.bf16.msra.mxu0 %v1768
    %1772 = vmatprep.subr.bf16.mxu0 0
    %1773 = vmatpush1.bf16.msra.mxu0 0
    %1774 = vmatprep.subr.bf16.mxu0 0
    %1775 = vmatpush1.bf16.msra.mxu0 0
    %1776 = vmatprep.subr.bf16.mxu0 0
    %1777 = vmatpush1.bf16.msra.mxu0 0
    %1778 = vmatprep.subr.bf16.mxu0 0
    %1779 = vmatpush1.bf16.msra.mxu0 0
    %1780 = vmatprep.subr.bf16.mxu0 0
    %1781 = vmatpush1.bf16.msra.mxu0 0
    %1782 = vmatprep.subr.bf16.mxu0 0
    %1783 = vmatpush1.bf16.msra.mxu0 0
    %1784 = vmatprep.subr.bf16.mxu0 0
    %1785 = vmatpush1.bf16.msra.mxu0 0
    %1786 = vmatprep.subr.bf16.mxu0 0
    %1787 = vmatpush1.bf16.msra.mxu0 0
    %1788 = vmatprep.subr.bf16.mxu0 0
    %1789 = vmatpush1.bf16.msra.mxu0 0
    %1790 = vmatprep.subr.bf16.mxu0 0
    %1791 = vmatpush1.bf16.msra.mxu0 0
    %1792 = vmatprep.subr.bf16.mxu0 0
    %1793 = vmatpush1.bf16.msra.mxu0 0
    %1794 = vmatprep.subr.bf16.mxu0 0
    %1795 = vmatpush1.bf16.msra.mxu0 0
    %1796 = vmatprep.subr.bf16.mxu0 0
    %1797 = vmatpush1.bf16.msra.mxu0 0
    %1798 = vmatprep.subr.bf16.mxu0 0
    %1799 = vmatpush1.bf16.msra.mxu0 0
    %1800 = vmatprep.subr.bf16.mxu0 0
    %1801 = vmatpush1.bf16.msra.mxu0 0
    %1802 = vmatprep.mubr.bf16.mxu0 0
    %1803 = vmatmul.mubr.bf16.gmra.mrb[0].mxu0 %v1765
    %v1804 = vpop.f32.mrb[0].mxu0
    %v1805 = vadd.f32 0.0, %v1804
    %v1806 = vpop.f32.mrb[0].mxu0
    %v1807 = vpop.f32.mrb[0].mxu0
    %v1808 = vpop.f32.mrb[0].mxu0
    %1809 = vdwg.mxu0
    %1810 = vrot.lane.b32.xlu0 %v1586, 112
    %v1811 = vpop.permute.xlu0 %1810
    %1812 = vrot.lane.b32.xlu0 %v1586, 80
    %v1813 = vpop.permute.xlu0 %1812
    %v1815 = vsel %vm260, %v1811, 0
    %v1818 = vsel %vm260, %v1813, 0
    %1820 = vmatprep.subr.bf16.mxu0 0
    %1821 = vmatpush1.bf16.xpose.msra.mxu0 %v1818
    %1822 = vmatprep.subr.bf16.mxu0 0
    %1823 = vmatpush1.bf16.xpose.msra.mxu0 0
    %1824 = vmatprep.subr.bf16.mxu0 0
    %1825 = vmatpush1.bf16.xpose.msra.mxu0 0
    %1826 = vmatprep.subr.bf16.mxu0 0
    %1827 = vmatpush1.bf16.xpose.msra.mxu0 0
    %1828 = vmatprep.subr.bf16.mxu0 0
    %1829 = vmatpush1.bf16.xpose.msra.mxu0 0
    %1830 = vmatprep.subr.bf16.mxu0 0
    %1831 = vmatpush1.bf16.xpose.msra.mxu0 0
    %1832 = vmatprep.subr.bf16.mxu0 0
    %1833 = vmatpush1.bf16.xpose.msra.mxu0 0
    %1834 = vmatprep.subr.bf16.mxu0 0
    %1835 = vmatpush1.bf16.xpose.msra.mxu0 0
    %1836 = vmatprep.subr.bf16.mxu0 0
    %1837 = vmatpush1.bf16.xpose.msra.mxu0 0
    %1838 = vmatprep.subr.bf16.mxu0 0
    %1839 = vmatpush1.bf16.xpose.msra.mxu0 0
    %1840 = vmatprep.subr.bf16.mxu0 0
    %1841 = vmatpush1.bf16.xpose.msra.mxu0 0
    %1842 = vmatprep.subr.bf16.mxu0 0
    %1843 = vmatpush1.bf16.xpose.msra.mxu0 0
    %1844 = vmatprep.subr.bf16.mxu0 0
    %1845 = vmatpush1.bf16.xpose.msra.mxu0 0
    %1846 = vmatprep.subr.bf16.mxu0 0
    %1847 = vmatpush1.bf16.xpose.msra.mxu0 0
    %1848 = vmatprep.subr.bf16.mxu0 0
    %1849 = vmatpush1.bf16.xpose.msra.mxu0 0
    %1850 = vmatprep.subr.bf16.mxu0 0
    %1851 = vmatpush1.bf16.xpose.msra.mxu0 0
    %1852 = vmatprep.mubr.bf16.mxu0 0
    %1853 = vmatmul.mubr.bf16.gmra.mrb[0].mxu0 %v1815
    %v1854 = vpop.f32.mrb[0].mxu0
    %v1855 = vadd.f32 0.0, %v1854
    %v1856 = vpop.f32.mrb[0].mxu0
    %v1857 = vpop.f32.mrb[0].mxu0
    %v1858 = vpop.f32.mrb[0].mxu0
    %1859 = vdwg.mxu0
    %v1860 = vmul.f32 %v1855, 0.35355338
    %v1861 = vadd.f32 %v1860, %v312
    %v1862 = vsel %vm260, %v1861, -inf
    %1863 = vmax.xlane.f32.xlu0 %v1862
    %v1864 = vpop.xlane.xlu0 %1863
    %v1865 = vsub.f32 %v1861, %v1864
    %v1866 = vmul.f32 %v1865, 1.442695
    %v1867 = vpow.pop %v1866
    %v1868 = vsel %vm260, %v1867, 0.0
    %1869 = vadd.xlane.f32.xlu0 %v1868
    %v1870 = vpop.xlane.xlu0 %1869
    %v1871 = vrcp.pop %v1870
    %v1872 = vmul.f32 %v1867, %v1871
    %v1873 = vpack.c.bf16 %v1872, %v1872
    %1874 = vrot.lane.b32.xlu0 %v1586, 48
    %v1875 = vpop.permute.xlu0 %1874
    %v1877 = vsel %vm260, %v1873, 0
    %v1880 = vsel %vm332, %v1875, 0
    %1882 = vmatprep.subr.bf16.mxu0 0
    %1883 = vmatpush1.bf16.msra.mxu0 %v1880
    %1884 = vmatprep.subr.bf16.mxu0 0
    %1885 = vmatpush1.bf16.msra.mxu0 0
    %1886 = vmatprep.subr.bf16.mxu0 0
    %1887 = vmatpush1.bf16.msra.mxu0 0
    %1888 = vmatprep.subr.bf16.mxu0 0
    %1889 = vmatpush1.bf16.msra.mxu0 0
    %1890 = vmatprep.subr.bf16.mxu0 0
    %1891 = vmatpush1.bf16.msra.mxu0 0
    %1892 = vmatprep.subr.bf16.mxu0 0
    %1893 = vmatpush1.bf16.msra.mxu0 0
    %1894 = vmatprep.subr.bf16.mxu0 0
    %1895 = vmatpush1.bf16.msra.mxu0 0
    %1896 = vmatprep.subr.bf16.mxu0 0
    %1897 = vmatpush1.bf16.msra.mxu0 0
    %1898 = vmatprep.subr.bf16.mxu0 0
    %1899 = vmatpush1.bf16.msra.mxu0 0
    %1900 = vmatprep.subr.bf16.mxu0 0
    %1901 = vmatpush1.bf16.msra.mxu0 0
    %1902 = vmatprep.subr.bf16.mxu0 0
    %1903 = vmatpush1.bf16.msra.mxu0 0
    %1904 = vmatprep.subr.bf16.mxu0 0
    %1905 = vmatpush1.bf16.msra.mxu0 0
    %1906 = vmatprep.subr.bf16.mxu0 0
    %1907 = vmatpush1.bf16.msra.mxu0 0
    %1908 = vmatprep.subr.bf16.mxu0 0
    %1909 = vmatpush1.bf16.msra.mxu0 0
    %1910 = vmatprep.subr.bf16.mxu0 0
    %1911 = vmatpush1.bf16.msra.mxu0 0
    %1912 = vmatprep.subr.bf16.mxu0 0
    %1913 = vmatpush1.bf16.msra.mxu0 0
    %1914 = vmatprep.mubr.bf16.mxu0 0
    %1915 = vmatmul.mubr.bf16.gmra.mrb[0].mxu0 %v1877
    %v1916 = vpop.f32.mrb[0].mxu0
    %v1917 = vadd.f32 0.0, %v1916
    %v1918 = vpop.f32.mrb[0].mxu0
    %v1919 = vpop.f32.mrb[0].mxu0
    %v1920 = vpop.f32.mrb[0].mxu0
    %1921 = vdwg.mxu0
    %1922 = vrot.lane.b32.xlu0 %v1586, 104
    %v1923 = vpop.permute.xlu0 %1922
    %1924 = vrot.lane.b32.xlu0 %v1586, 72
    %v1925 = vpop.permute.xlu0 %1924
    %v1927 = vsel %vm260, %v1923, 0
    %v1930 = vsel %vm260, %v1925, 0
    %1932 = vmatprep.subr.bf16.mxu0 0
    %1933 = vmatpush1.bf16.xpose.msra.mxu0 %v1930
    %1934 = vmatprep.subr.bf16.mxu0 0
    %1935 = vmatpush1.bf16.xpose.msra.mxu0 0
    %1936 = vmatprep.subr.bf16.mxu0 0
    %1937 = vmatpush1.bf16.xpose.msra.mxu0 0
    %1938 = vmatprep.subr.bf16.mxu0 0
    %1939 = vmatpush1.bf16.xpose.msra.mxu0 0
    %1940 = vmatprep.subr.bf16.mxu0 0
    %1941 = vmatpush1.bf16.xpose.msra.mxu0 0
    %1942 = vmatprep.subr.bf16.mxu0 0
    %1943 = vmatpush1.bf16.xpose.msra.mxu0 0
    %1944 = vmatprep.subr.bf16.mxu0 0
    %1945 = vmatpush1.bf16.xpose.msra.mxu0 0
    %1946 = vmatprep.subr.bf16.mxu0 0
    %1947 = vmatpush1.bf16.xpose.msra.mxu0 0
    %1948 = vmatprep.subr.bf16.mxu0 0
    %1949 = vmatpush1.bf16.xpose.msra.mxu0 0
    %1950 = vmatprep.subr.bf16.mxu0 0
    %1951 = vmatpush1.bf16.xpose.msra.mxu0 0
    %1952 = vmatprep.subr.bf16.mxu0 0
    %1953 = vmatpush1.bf16.xpose.msra.mxu0 0
    %1954 = vmatprep.subr.bf16.mxu0 0
    %1955 = vmatpush1.bf16.xpose.msra.mxu0 0
    %1956 = vmatprep.subr.bf16.mxu0 0
    %1957 = vmatpush1.bf16.xpose.msra.mxu0 0
    %1958 = vmatprep.subr.bf16.mxu0 0
    %1959 = vmatpush1.bf16.xpose.msra.mxu0 0
    %1960 = vmatprep.subr.bf16.mxu0 0
    %1961 = vmatpush1.bf16.xpose.msra.mxu0 0
    %1962 = vmatprep.subr.bf16.mxu0 0
    %1963 = vmatpush1.bf16.xpose.msra.mxu0 0
    %1964 = vmatprep.mubr.bf16.mxu0 0
    %1965 = vmatmul.mubr.bf16.gmra.mrb[0].mxu0 %v1927
    %v1966 = vpop.f32.mrb[0].mxu0
    %v1967 = vadd.f32 0.0, %v1966
    %v1968 = vpop.f32.mrb[0].mxu0
    %v1969 = vpop.f32.mrb[0].mxu0
    %v1970 = vpop.f32.mrb[0].mxu0
    %1971 = vdwg.mxu0
    %v1972 = vmul.f32 %v1967, 0.35355338
    %v1973 = vadd.f32 %v1972, %v312
    %v1974 = vsel %vm260, %v1973, -inf
    %1975 = vmax.xlane.f32.xlu0 %v1974
    %v1976 = vpop.xlane.xlu0 %1975
    %v1977 = vsub.f32 %v1973, %v1976
    %v1978 = vmul.f32 %v1977, 1.442695
    %v1979 = vpow.pop %v1978
    %v1980 = vsel %vm260, %v1979, 0.0
    %1981 = vadd.xlane.f32.xlu0 %v1980
    %v1982 = vpop.xlane.xlu0 %1981
    %v1983 = vrcp.pop %v1982
    %v1984 = vmul.f32 %v1979, %v1983
    %v1985 = vpack.c.bf16 %v1984, %v1984
    %1986 = vrot.lane.b32.xlu0 %v1586, 40
    %v1987 = vpop.permute.xlu0 %1986
    %v1989 = vsel %vm260, %v1985, 0
    %v1992 = vsel %vm332, %v1987, 0
    %1994 = vmatprep.subr.bf16.mxu0 0
    %1995 = vmatpush1.bf16.msra.mxu0 %v1992
    %1996 = vmatprep.subr.bf16.mxu0 0
    %1997 = vmatpush1.bf16.msra.mxu0 0
    %1998 = vmatprep.subr.bf16.mxu0 0
    %1999 = vmatpush1.bf16.msra.mxu0 0
    %2000 = vmatprep.subr.bf16.mxu0 0
    %2001 = vmatpush1.bf16.msra.mxu0 0
    %2002 = vmatprep.subr.bf16.mxu0 0
    %2003 = vmatpush1.bf16.msra.mxu0 0
    %2004 = vmatprep.subr.bf16.mxu0 0
    %2005 = vmatpush1.bf16.msra.mxu0 0
    %2006 = vmatprep.subr.bf16.mxu0 0
    %2007 = vmatpush1.bf16.msra.mxu0 0
    %2008 = vmatprep.subr.bf16.mxu0 0
    %2009 = vmatpush1.bf16.msra.mxu0 0
    %2010 = vmatprep.subr.bf16.mxu0 0
    %2011 = vmatpush1.bf16.msra.mxu0 0
    %2012 = vmatprep.subr.bf16.mxu0 0
    %2013 = vmatpush1.bf16.msra.mxu0 0
    %2014 = vmatprep.subr.bf16.mxu0 0
    %2015 = vmatpush1.bf16.msra.mxu0 0
    %2016 = vmatprep.subr.bf16.mxu0 0
    %2017 = vmatpush1.bf16.msra.mxu0 0
    %2018 = vmatprep.subr.bf16.mxu0 0
    %2019 = vmatpush1.bf16.msra.mxu0 0
    %2020 = vmatprep.subr.bf16.mxu0 0
    %2021 = vmatpush1.bf16.msra.mxu0 0
    %2022 = vmatprep.subr.bf16.mxu0 0
    %2023 = vmatpush1.bf16.msra.mxu0 0
    %2024 = vmatprep.subr.bf16.mxu0 0
    %2025 = vmatpush1.bf16.msra.mxu0 0
    %2026 = vmatprep.mubr.bf16.mxu0 0
    %2027 = vmatmul.mubr.bf16.gmra.mrb[0].mxu0 %v1989
    %v2028 = vpop.f32.mrb[0].mxu0
    %v2029 = vadd.f32 0.0, %v2028
    %v2030 = vpop.f32.mrb[0].mxu0
    %v2031 = vpop.f32.mrb[0].mxu0
    %v2032 = vpop.f32.mrb[0].mxu0
    %2033 = vdwg.mxu0
    %2035 = vrot.lane.b32.xlu0 %v1805, 8
    %v2036 = vpop.permute.xlu0 %2035
    %2039 = vrot.lane.b32.xlu0 %v1917, 16
    %v2040 = vpop.permute.xlu0 %2039
    %2043 = vrot.lane.b32.xlu0 %v2029, 24
    %v2044 = vpop.permute.xlu0 %2043
    %v2046 = vsel %vm260, %v1693, %v2036
    %v2047 = vsel %vm725, %v2046, %v2040
    %v2048 = vsel %vm727, %v2047, %v2044
    %v2049 = vpack.c.bf16 %v1583, %v1583
    %2051 = vrot.lane.b32.xlu0 %v2049, 96
    %v2052 = vpop.permute.xlu0 %2051
    %v2054 = vsel %vm260, %v2049, 0
    %v2057 = vsel %vm260, %v2052, 0
    %2059 = vmatprep.subr.bf16.mxu0 0
    %2060 = vmatpush1.bf16.xpose.msra.mxu0 %v2057
    %2061 = vmatprep.subr.bf16.mxu0 0
    %2062 = vmatpush1.bf16.xpose.msra.mxu0 0
    %2063 = vmatprep.subr.bf16.mxu0 0
    %2064 = vmatpush1.bf16.xpose.msra.mxu0 0
    %2065 = vmatprep.subr.bf16.mxu0 0
    %2066 = vmatpush1.bf16.xpose.msra.mxu0 0
    %2067 = vmatprep.subr.bf16.mxu0 0
    %2068 = vmatpush1.bf16.xpose.msra.mxu0 0
    %2069 = vmatprep.subr.bf16.mxu0 0
    %2070 = vmatpush1.bf16.xpose.msra.mxu0 0
    %2071 = vmatprep.subr.bf16.mxu0 0
    %2072 = vmatpush1.bf16.xpose.msra.mxu0 0
    %2073 = vmatprep.subr.bf16.mxu0 0
    %2074 = vmatpush1.bf16.xpose.msra.mxu0 0
    %2075 = vmatprep.subr.bf16.mxu0 0
    %2076 = vmatpush1.bf16.xpose.msra.mxu0 0
    %2077 = vmatprep.subr.bf16.mxu0 0
    %2078 = vmatpush1.bf16.xpose.msra.mxu0 0
    %2079 = vmatprep.subr.bf16.mxu0 0
    %2080 = vmatpush1.bf16.xpose.msra.mxu0 0
    %2081 = vmatprep.subr.bf16.mxu0 0
    %2082 = vmatpush1.bf16.xpose.msra.mxu0 0
    %2083 = vmatprep.subr.bf16.mxu0 0
    %2084 = vmatpush1.bf16.xpose.msra.mxu0 0
    %2085 = vmatprep.subr.bf16.mxu0 0
    %2086 = vmatpush1.bf16.xpose.msra.mxu0 0
    %2087 = vmatprep.subr.bf16.mxu0 0
    %2088 = vmatpush1.bf16.xpose.msra.mxu0 0
    %2089 = vmatprep.subr.bf16.mxu0 0
    %2090 = vmatpush1.bf16.xpose.msra.mxu0 0
    %2091 = vmatprep.mubr.bf16.mxu0 0
    %2092 = vmatmul.mubr.bf16.gmra.mrb[0].mxu0 %v2054
    %v2093 = vpop.f32.mrb[0].mxu0
    %v2094 = vadd.f32 0.0, %v2093
    %v2095 = vpop.f32.mrb[0].mxu0
    %v2096 = vpop.f32.mrb[0].mxu0
    %v2097 = vpop.f32.mrb[0].mxu0
    %2098 = vdwg.mxu0
    %v2099 = vmul.f32 %v2094, 0.35355338
    %v2100 = vadd.f32 %v2099, %v784
    %v2101 = vsel %vm260, %v2100, -inf
    %2102 = vmax.xlane.f32.xlu0 %v2101
    %v2103 = vpop.xlane.xlu0 %2102
    %v2104 = vsub.f32 %v2100, %v2103
    %v2105 = vmul.f32 %v2104, 1.442695
    %v2106 = vpow.pop %v2105
    %v2107 = vsel %vm260, %v2106, 0.0
    %2108 = vadd.xlane.f32.xlu0 %v2107
    %v2109 = vpop.xlane.xlu0 %2108
    %v2110 = vrcp.pop %v2109
    %v2111 = vmul.f32 %v2106, %v2110
    %v2112 = vpack.c.bf16 %v2111, %v2111
    %2113 = vrot.lane.b32.xlu0 %v2049, 64
    %v2114 = vpop.permute.xlu0 %2113
    %v2116 = vsel %vm260, %v2112, 0
    %v2119 = vsel %vm332, %v2114, 0
    %2121 = vmatprep.subr.bf16.mxu0 0
    %2122 = vmatpush1.bf16.msra.mxu0 %v2119
    %2123 = vmatprep.subr.bf16.mxu0 0
    %2124 = vmatpush1.bf16.msra.mxu0 0
    %2125 = vmatprep.subr.bf16.mxu0 0
    %2126 = vmatpush1.bf16.msra.mxu0 0
    %2127 = vmatprep.subr.bf16.mxu0 0
    %2128 = vmatpush1.bf16.msra.mxu0 0
    %2129 = vmatprep.subr.bf16.mxu0 0
    %2130 = vmatpush1.bf16.msra.mxu0 0
    %2131 = vmatprep.subr.bf16.mxu0 0
    %2132 = vmatpush1.bf16.msra.mxu0 0
    %2133 = vmatprep.subr.bf16.mxu0 0
    %2134 = vmatpush1.bf16.msra.mxu0 0
    %2135 = vmatprep.subr.bf16.mxu0 0
    %2136 = vmatpush1.bf16.msra.mxu0 0
    %2137 = vmatprep.subr.bf16.mxu0 0
    %2138 = vmatpush1.bf16.msra.mxu0 0
    %2139 = vmatprep.subr.bf16.mxu0 0
    %2140 = vmatpush1.bf16.msra.mxu0 0
    %2141 = vmatprep.subr.bf16.mxu0 0
    %2142 = vmatpush1.bf16.msra.mxu0 0
    %2143 = vmatprep.subr.bf16.mxu0 0
    %2144 = vmatpush1.bf16.msra.mxu0 0
    %2145 = vmatprep.subr.bf16.mxu0 0
    %2146 = vmatpush1.bf16.msra.mxu0 0
    %2147 = vmatprep.subr.bf16.mxu0 0
    %2148 = vmatpush1.bf16.msra.mxu0 0
    %2149 = vmatprep.subr.bf16.mxu0 0
    %2150 = vmatpush1.bf16.msra.mxu0 0
    %2151 = vmatprep.subr.bf16.mxu0 0
    %2152 = vmatpush1.bf16.msra.mxu0 0
    %2153 = vmatprep.mubr.bf16.mxu0 0
    %2154 = vmatmul.mubr.bf16.gmra.mrb[0].mxu0 %v2116
    %v2155 = vpop.f32.mrb[0].mxu0
    %v2156 = vadd.f32 0.0, %v2155
    %v2157 = vpop.f32.mrb[0].mxu0
    %v2158 = vpop.f32.mrb[0].mxu0
    %v2159 = vpop.f32.mrb[0].mxu0
    %2160 = vdwg.mxu0
    %2161 = vrot.lane.b32.xlu0 %v2049, 120
    %v2162 = vpop.permute.xlu0 %2161
    %2163 = vrot.lane.b32.xlu0 %v2049, 88
    %v2164 = vpop.permute.xlu0 %2163
    %v2166 = vsel %vm260, %v2162, 0
    %v2169 = vsel %vm260, %v2164, 0
    %2171 = vmatprep.subr.bf16.mxu0 0
    %2172 = vmatpush1.bf16.xpose.msra.mxu0 %v2169
    %2173 = vmatprep.subr.bf16.mxu0 0
    %2174 = vmatpush1.bf16.xpose.msra.mxu0 0
    %2175 = vmatprep.subr.bf16.mxu0 0
    %2176 = vmatpush1.bf16.xpose.msra.mxu0 0
    %2177 = vmatprep.subr.bf16.mxu0 0
    %2178 = vmatpush1.bf16.xpose.msra.mxu0 0
    %2179 = vmatprep.subr.bf16.mxu0 0
    %2180 = vmatpush1.bf16.xpose.msra.mxu0 0
    %2181 = vmatprep.subr.bf16.mxu0 0
    %2182 = vmatpush1.bf16.xpose.msra.mxu0 0
    %2183 = vmatprep.subr.bf16.mxu0 0
    %2184 = vmatpush1.bf16.xpose.msra.mxu0 0
    %2185 = vmatprep.subr.bf16.mxu0 0
    %2186 = vmatpush1.bf16.xpose.msra.mxu0 0
    %2187 = vmatprep.subr.bf16.mxu0 0
    %2188 = vmatpush1.bf16.xpose.msra.mxu0 0
    %2189 = vmatprep.subr.bf16.mxu0 0
    %2190 = vmatpush1.bf16.xpose.msra.mxu0 0
    %2191 = vmatprep.subr.bf16.mxu0 0
    %2192 = vmatpush1.bf16.xpose.msra.mxu0 0
    %2193 = vmatprep.subr.bf16.mxu0 0
    %2194 = vmatpush1.bf16.xpose.msra.mxu0 0
    %2195 = vmatprep.subr.bf16.mxu0 0
    %2196 = vmatpush1.bf16.xpose.msra.mxu0 0
    %2197 = vmatprep.subr.bf16.mxu0 0
    %2198 = vmatpush1.bf16.xpose.msra.mxu0 0
    %2199 = vmatprep.subr.bf16.mxu0 0
    %2200 = vmatpush1.bf16.xpose.msra.mxu0 0
    %2201 = vmatprep.subr.bf16.mxu0 0
    %2202 = vmatpush1.bf16.xpose.msra.mxu0 0
    %2203 = vmatprep.mubr.bf16.mxu0 0
    %2204 = vmatmul.mubr.bf16.gmra.mrb[0].mxu0 %v2166
    %v2205 = vpop.f32.mrb[0].mxu0
    %v2206 = vadd.f32 0.0, %v2205
    %v2207 = vpop.f32.mrb[0].mxu0
    %v2208 = vpop.f32.mrb[0].mxu0
    %v2209 = vpop.f32.mrb[0].mxu0
    %2210 = vdwg.mxu0
    %v2211 = vmul.f32 %v2206, 0.35355338
    %v2212 = vadd.f32 %v2211, %v784
    %v2213 = vsel %vm260, %v2212, -inf
    %2214 = vmax.xlane.f32.xlu0 %v2213
    %v2215 = vpop.xlane.xlu0 %2214
    %v2216 = vsub.f32 %v2212, %v2215
    %v2217 = vmul.f32 %v2216, 1.442695
    %v2218 = vpow.pop %v2217
    %v2219 = vsel %vm260, %v2218, 0.0
    %2220 = vadd.xlane.f32.xlu0 %v2219
    %v2221 = vpop.xlane.xlu0 %2220
    %v2222 = vrcp.pop %v2221
    %v2223 = vmul.f32 %v2218, %v2222
    %v2224 = vpack.c.bf16 %v2223, %v2223
    %2225 = vrot.lane.b32.xlu0 %v2049, 56
    %v2226 = vpop.permute.xlu0 %2225
    %v2228 = vsel %vm260, %v2224, 0
    %v2231 = vsel %vm332, %v2226, 0
    %2233 = vmatprep.subr.bf16.mxu0 0
    %2234 = vmatpush1.bf16.msra.mxu0 %v2231
    %2235 = vmatprep.subr.bf16.mxu0 0
    %2236 = vmatpush1.bf16.msra.mxu0 0
    %2237 = vmatprep.subr.bf16.mxu0 0
    %2238 = vmatpush1.bf16.msra.mxu0 0
    %2239 = vmatprep.subr.bf16.mxu0 0
    %2240 = vmatpush1.bf16.msra.mxu0 0
    %2241 = vmatprep.subr.bf16.mxu0 0
    %2242 = vmatpush1.bf16.msra.mxu0 0
    %2243 = vmatprep.subr.bf16.mxu0 0
    %2244 = vmatpush1.bf16.msra.mxu0 0
    %2245 = vmatprep.subr.bf16.mxu0 0
    %2246 = vmatpush1.bf16.msra.mxu0 0
    %2247 = vmatprep.subr.bf16.mxu0 0
    %2248 = vmatpush1.bf16.msra.mxu0 0
    %2249 = vmatprep.subr.bf16.mxu0 0
    %2250 = vmatpush1.bf16.msra.mxu0 0
    %2251 = vmatprep.subr.bf16.mxu0 0
    %2252 = vmatpush1.bf16.msra.mxu0 0
    %2253 = vmatprep.subr.bf16.mxu0 0
    %2254 = vmatpush1.bf16.msra.mxu0 0
    %2255 = vmatprep.subr.bf16.mxu0 0
    %2256 = vmatpush1.bf16.msra.mxu0 0
    %2257 = vmatprep.subr.bf16.mxu0 0
    %2258 = vmatpush1.bf16.msra.mxu0 0
    %2259 = vmatprep.subr.bf16.mxu0 0
    %2260 = vmatpush1.bf16.msra.mxu0 0
    %2261 = vmatprep.subr.bf16.mxu0 0
    %2262 = vmatpush1.bf16.msra.mxu0 0
    %2263 = vmatprep.subr.bf16.mxu0 0
    %2264 = vmatpush1.bf16.msra.mxu0 0
    %2265 = vmatprep.mubr.bf16.mxu0 0
    %2266 = vmatmul.mubr.bf16.gmra.mrb[0].mxu0 %v2228
    %v2267 = vpop.f32.mrb[0].mxu0
    %v2268 = vadd.f32 0.0, %v2267
    %v2269 = vpop.f32.mrb[0].mxu0
    %v2270 = vpop.f32.mrb[0].mxu0
    %v2271 = vpop.f32.mrb[0].mxu0
    %2272 = vdwg.mxu0
    %2273 = vrot.lane.b32.xlu0 %v2049, 112
    %v2274 = vpop.permute.xlu0 %2273
    %2275 = vrot.lane.b32.xlu0 %v2049, 80
    %v2276 = vpop.permute.xlu0 %2275
    %v2278 = vsel %vm260, %v2274, 0
    %v2281 = vsel %vm260, %v2276, 0
    %2283 = vmatprep.subr.bf16.mxu0 0
    %2284 = vmatpush1.bf16.xpose.msra.mxu0 %v2281
    %2285 = vmatprep.subr.bf16.mxu0 0
    %2286 = vmatpush1.bf16.xpose.msra.mxu0 0
    %2287 = vmatprep.subr.bf16.mxu0 0
    %2288 = vmatpush1.bf16.xpose.msra.mxu0 0
    %2289 = vmatprep.subr.bf16.mxu0 0
    %2290 = vmatpush1.bf16.xpose.msra.mxu0 0
    %2291 = vmatprep.subr.bf16.mxu0 0
    %2292 = vmatpush1.bf16.xpose.msra.mxu0 0
    %2293 = vmatprep.subr.bf16.mxu0 0
    %2294 = vmatpush1.bf16.xpose.msra.mxu0 0
    %2295 = vmatprep.subr.bf16.mxu0 0
    %2296 = vmatpush1.bf16.xpose.msra.mxu0 0
    %2297 = vmatprep.subr.bf16.mxu0 0
    %2298 = vmatpush1.bf16.xpose.msra.mxu0 0
    %2299 = vmatprep.subr.bf16.mxu0 0
    %2300 = vmatpush1.bf16.xpose.msra.mxu0 0
    %2301 = vmatprep.subr.bf16.mxu0 0
    %2302 = vmatpush1.bf16.xpose.msra.mxu0 0
    %2303 = vmatprep.subr.bf16.mxu0 0
    %2304 = vmatpush1.bf16.xpose.msra.mxu0 0
    %2305 = vmatprep.subr.bf16.mxu0 0
    %2306 = vmatpush1.bf16.xpose.msra.mxu0 0
    %2307 = vmatprep.subr.bf16.mxu0 0
    %2308 = vmatpush1.bf16.xpose.msra.mxu0 0
    %2309 = vmatprep.subr.bf16.mxu0 0
    %2310 = vmatpush1.bf16.xpose.msra.mxu0 0
    %2311 = vmatprep.subr.bf16.mxu0 0
    %2312 = vmatpush1.bf16.xpose.msra.mxu0 0
    %2313 = vmatprep.subr.bf16.mxu0 0
    %2314 = vmatpush1.bf16.xpose.msra.mxu0 0
    %2315 = vmatprep.mubr.bf16.mxu0 0
    %2316 = vmatmul.mubr.bf16.gmra.mrb[0].mxu0 %v2278
    %v2317 = vpop.f32.mrb[0].mxu0
    %v2318 = vadd.f32 0.0, %v2317
    %v2319 = vpop.f32.mrb[0].mxu0
    %v2320 = vpop.f32.mrb[0].mxu0
    %v2321 = vpop.f32.mrb[0].mxu0
    %2322 = vdwg.mxu0
    %v2323 = vmul.f32 %v2318, 0.35355338
    %v2324 = vadd.f32 %v2323, %v784
    %v2325 = vsel %vm260, %v2324, -inf
    %2326 = vmax.xlane.f32.xlu0 %v2325
    %v2327 = vpop.xlane.xlu0 %2326
    %v2328 = vsub.f32 %v2324, %v2327
    %v2329 = vmul.f32 %v2328, 1.442695
    %v2330 = vpow.pop %v2329
    %v2331 = vsel %vm260, %v2330, 0.0
    %2332 = vadd.xlane.f32.xlu0 %v2331
    %v2333 = vpop.xlane.xlu0 %2332
    %v2334 = vrcp.pop %v2333
    %v2335 = vmul.f32 %v2330, %v2334
    %v2336 = vpack.c.bf16 %v2335, %v2335
    %2337 = vrot.lane.b32.xlu0 %v2049, 48
    %v2338 = vpop.permute.xlu0 %2337
    %v2340 = vsel %vm260, %v2336, 0
    %v2343 = vsel %vm332, %v2338, 0
    %2345 = vmatprep.subr.bf16.mxu0 0
    %2346 = vmatpush1.bf16.msra.mxu0 %v2343
    %2347 = vmatprep.subr.bf16.mxu0 0
    %2348 = vmatpush1.bf16.msra.mxu0 0
    %2349 = vmatprep.subr.bf16.mxu0 0
    %2350 = vmatpush1.bf16.msra.mxu0 0
    %2351 = vmatprep.subr.bf16.mxu0 0
    %2352 = vmatpush1.bf16.msra.mxu0 0
    %2353 = vmatprep.subr.bf16.mxu0 0
    %2354 = vmatpush1.bf16.msra.mxu0 0
    %2355 = vmatprep.subr.bf16.mxu0 0
    %2356 = vmatpush1.bf16.msra.mxu0 0
    %2357 = vmatprep.subr.bf16.mxu0 0
    %2358 = vmatpush1.bf16.msra.mxu0 0
    %2359 = vmatprep.subr.bf16.mxu0 0
    %2360 = vmatpush1.bf16.msra.mxu0 0
    %2361 = vmatprep.subr.bf16.mxu0 0
    %2362 = vmatpush1.bf16.msra.mxu0 0
    %2363 = vmatprep.subr.bf16.mxu0 0
    %2364 = vmatpush1.bf16.msra.mxu0 0
    %2365 = vmatprep.subr.bf16.mxu0 0
    %2366 = vmatpush1.bf16.msra.mxu0 0
    %2367 = vmatprep.subr.bf16.mxu0 0
    %2368 = vmatpush1.bf16.msra.mxu0 0
    %2369 = vmatprep.subr.bf16.mxu0 0
    %2370 = vmatpush1.bf16.msra.mxu0 0
    %2371 = vmatprep.subr.bf16.mxu0 0
    %2372 = vmatpush1.bf16.msra.mxu0 0
    %2373 = vmatprep.subr.bf16.mxu0 0
    %2374 = vmatpush1.bf16.msra.mxu0 0
    %2375 = vmatprep.subr.bf16.mxu0 0
    %2376 = vmatpush1.bf16.msra.mxu0 0
    %2377 = vmatprep.mubr.bf16.mxu0 0
    %2378 = vmatmul.mubr.bf16.gmra.mrb[0].mxu0 %v2340
    %v2379 = vpop.f32.mrb[0].mxu0
    %v2380 = vadd.f32 0.0, %v2379
    %v2381 = vpop.f32.mrb[0].mxu0
    %v2382 = vpop.f32.mrb[0].mxu0
    %v2383 = vpop.f32.mrb[0].mxu0
    %2384 = vdwg.mxu0
    %2385 = vrot.lane.b32.xlu0 %v2049, 104
    %v2386 = vpop.permute.xlu0 %2385
    %2387 = vrot.lane.b32.xlu0 %v2049, 72
    %v2388 = vpop.permute.xlu0 %2387
    %v2390 = vsel %vm260, %v2386, 0
    %v2393 = vsel %vm260, %v2388, 0
    %2395 = vmatprep.subr.bf16.mxu0 0
    %2396 = vmatpush1.bf16.xpose.msra.mxu0 %v2393
    %2397 = vmatprep.subr.bf16.mxu0 0
    %2398 = vmatpush1.bf16.xpose.msra.mxu0 0
    %2399 = vmatprep.subr.bf16.mxu0 0
    %2400 = vmatpush1.bf16.xpose.msra.mxu0 0
    %2401 = vmatprep.subr.bf16.mxu0 0
    %2402 = vmatpush1.bf16.xpose.msra.mxu0 0
    %2403 = vmatprep.subr.bf16.mxu0 0
    %2404 = vmatpush1.bf16.xpose.msra.mxu0 0
    %2405 = vmatprep.subr.bf16.mxu0 0
    %2406 = vmatpush1.bf16.xpose.msra.mxu0 0
    %2407 = vmatprep.subr.bf16.mxu0 0
    %2408 = vmatpush1.bf16.xpose.msra.mxu0 0
    %2409 = vmatprep.subr.bf16.mxu0 0
    %2410 = vmatpush1.bf16.xpose.msra.mxu0 0
    %2411 = vmatprep.subr.bf16.mxu0 0
    %2412 = vmatpush1.bf16.xpose.msra.mxu0 0
    %2413 = vmatprep.subr.bf16.mxu0 0
    %2414 = vmatpush1.bf16.xpose.msra.mxu0 0
    %2415 = vmatprep.subr.bf16.mxu0 0
    %2416 = vmatpush1.bf16.xpose.msra.mxu0 0
    %2417 = vmatprep.subr.bf16.mxu0 0
    %2418 = vmatpush1.bf16.xpose.msra.mxu0 0
    %2419 = vmatprep.subr.bf16.mxu0 0
    %2420 = vmatpush1.bf16.xpose.msra.mxu0 0
    %2421 = vmatprep.subr.bf16.mxu0 0
    %2422 = vmatpush1.bf16.xpose.msra.mxu0 0
    %2423 = vmatprep.subr.bf16.mxu0 0
    %2424 = vmatpush1.bf16.xpose.msra.mxu0 0
    %2425 = vmatprep.subr.bf16.mxu0 0
    %2426 = vmatpush1.bf16.xpose.msra.mxu0 0
    %2427 = vmatprep.mubr.bf16.mxu0 0
    %2428 = vmatmul.mubr.bf16.gmra.mrb[0].mxu0 %v2390
    %v2429 = vpop.f32.mrb[0].mxu0
    %v2430 = vadd.f32 0.0, %v2429
    %v2431 = vpop.f32.mrb[0].mxu0
    %v2432 = vpop.f32.mrb[0].mxu0
    %v2433 = vpop.f32.mrb[0].mxu0
    %2434 = vdwg.mxu0
    %v2435 = vmul.f32 %v2430, 0.35355338
    %v2436 = vadd.f32 %v2435, %v784
    %v2437 = vsel %vm260, %v2436, -inf
    %2438 = vmax.xlane.f32.xlu0 %v2437
    %v2439 = vpop.xlane.xlu0 %2438
    %v2440 = vsub.f32 %v2436, %v2439
    %v2441 = vmul.f32 %v2440, 1.442695
    %v2442 = vpow.pop %v2441
    %v2443 = vsel %vm260, %v2442, 0.0
    %2444 = vadd.xlane.f32.xlu0 %v2443
    %v2445 = vpop.xlane.xlu0 %2444
    %v2446 = vrcp.pop %v2445
    %v2447 = vmul.f32 %v2442, %v2446
    %v2448 = vpack.c.bf16 %v2447, %v2447
    %2449 = vrot.lane.b32.xlu0 %v2049, 40
    %v2450 = vpop.permute.xlu0 %2449
    %v2452 = vsel %vm260, %v2448, 0
    %v2455 = vsel %vm332, %v2450, 0
    %2457 = vmatprep.subr.bf16.mxu0 0
    %2458 = vmatpush1.bf16.msra.mxu0 %v2455
    %2459 = vmatprep.subr.bf16.mxu0 0
    %2460 = vmatpush1.bf16.msra.mxu0 0
    %2461 = vmatprep.subr.bf16.mxu0 0
    %2462 = vmatpush1.bf16.msra.mxu0 0
    %2463 = vmatprep.subr.bf16.mxu0 0
    %2464 = vmatpush1.bf16.msra.mxu0 0
    %2465 = vmatprep.subr.bf16.mxu0 0
    %2466 = vmatpush1.bf16.msra.mxu0 0
    %2467 = vmatprep.subr.bf16.mxu0 0
    %2468 = vmatpush1.bf16.msra.mxu0 0
    %2469 = vmatprep.subr.bf16.mxu0 0
    %2470 = vmatpush1.bf16.msra.mxu0 0
    %2471 = vmatprep.subr.bf16.mxu0 0
    %2472 = vmatpush1.bf16.msra.mxu0 0
    %2473 = vmatprep.subr.bf16.mxu0 0
    %2474 = vmatpush1.bf16.msra.mxu0 0
    %2475 = vmatprep.subr.bf16.mxu0 0
    %2476 = vmatpush1.bf16.msra.mxu0 0
    %2477 = vmatprep.subr.bf16.mxu0 0
    %2478 = vmatpush1.bf16.msra.mxu0 0
    %2479 = vmatprep.subr.bf16.mxu0 0
    %2480 = vmatpush1.bf16.msra.mxu0 0
    %2481 = vmatprep.subr.bf16.mxu0 0
    %2482 = vmatpush1.bf16.msra.mxu0 0
    %2483 = vmatprep.subr.bf16.mxu0 0
    %2484 = vmatpush1.bf16.msra.mxu0 0
    %2485 = vmatprep.subr.bf16.mxu0 0
    %2486 = vmatpush1.bf16.msra.mxu0 0
    %2487 = vmatprep.subr.bf16.mxu0 0
    %2488 = vmatpush1.bf16.msra.mxu0 0
    %2489 = vmatprep.mubr.bf16.mxu0 0
    %2490 = vmatmul.mubr.bf16.gmra.mrb[0].mxu0 %v2452
    %v2491 = vpop.f32.mrb[0].mxu0
    %v2492 = vadd.f32 0.0, %v2491
    %v2493 = vpop.f32.mrb[0].mxu0
    %v2494 = vpop.f32.mrb[0].mxu0
    %v2495 = vpop.f32.mrb[0].mxu0
    %2496 = vdwg.mxu0
    %2498 = vrot.lane.b32.xlu0 %v2268, 8
    %v2499 = vpop.permute.xlu0 %2498
    %2502 = vrot.lane.b32.xlu0 %v2380, 16
    %v2503 = vpop.permute.xlu0 %2502
    %2506 = vrot.lane.b32.xlu0 %v2492, 24
    %v2507 = vpop.permute.xlu0 %2506
    %v2509 = vsel %vm260, %v2156, %v2499
    %v2510 = vsel %vm725, %v2509, %v2503
    %v2511 = vsel %vm727, %v2510, %v2507
    %v2512 = vpack.c.bf16 %v2511, %v2048
    %v2514 = vlaneseq
    %v2515 = vshrl.u32 %v2514, 7
    %v2516 = vsub.s32 0, %v2515
    %v2517 = vrot.slane %v1522, %v2516
    %v2523 = vunpack.c.l.b16 %v1517
    %v2524 = vunpack.c.l.b16 %v1518
    %v2525 = vunpack.c.l.b16 %v1519
    %v2526 = vunpack.c.l.b16 %v1520
    %v2527 = vpack.c.b16 %v2524, %v2523
    %v2528 = vpack.c.b16 %v2526, %v2525
    %v2532 = vsel %vm211, %v2512, 0
    %2534 = vmatprep.subr.bf16.mxu0 0
    %2535 = vmatpush1.bf16.msra.mxu0 %v2527
    %2536 = vmatprep.subr.bf16.mxu0 0
    %2537 = vmatpush1.bf16.msra.mxu0 %v2528
    %2538 = vmatprep.subr.bf16.mxu0 0
    %2539 = vmatpush1.bf16.msra.mxu0 0
    %2540 = vmatprep.subr.bf16.mxu0 0
    %2541 = vmatpush1.bf16.msra.mxu0 0
    %2542 = vmatprep.subr.bf16.mxu0 0
    %2543 = vmatpush1.bf16.msra.mxu0 0
    %2544 = vmatprep.subr.bf16.mxu0 0
    %2545 = vmatpush1.bf16.msra.mxu0 0
    %2546 = vmatprep.subr.bf16.mxu0 0
    %2547 = vmatpush1.bf16.msra.mxu0 0
    %2548 = vmatprep.subr.bf16.mxu0 0
    %2549 = vmatpush1.bf16.msra.mxu0 0
    %2550 = vmatprep.subr.bf16.mxu0 0
    %2551 = vmatpush1.bf16.msra.mxu0 0
    %2552 = vmatprep.subr.bf16.mxu0 0
    %2553 = vmatpush1.bf16.msra.mxu0 0
    %2554 = vmatprep.subr.bf16.mxu0 0
    %2555 = vmatpush1.bf16.msra.mxu0 0
    %2556 = vmatprep.subr.bf16.mxu0 0
    %2557 = vmatpush1.bf16.msra.mxu0 0
    %2558 = vmatprep.subr.bf16.mxu0 0
    %2559 = vmatpush1.bf16.msra.mxu0 0
    %2560 = vmatprep.subr.bf16.mxu0 0
    %2561 = vmatpush1.bf16.msra.mxu0 0
    %2562 = vmatprep.subr.bf16.mxu0 0
    %2563 = vmatpush1.bf16.msra.mxu0 0
    %2564 = vmatprep.subr.bf16.mxu0 0
    %2565 = vmatpush1.bf16.msra.mxu0 0
    %2566 = vmatprep.mubr.bf16.mxu0 0
    %2567 = vmatmul.mubr.bf16.gmra.mrb[0].mxu0 %v2532
    %v2568 = vpop.f32.mrb[0].mxu0
    %v2569 = vadd.f32 %v2517, %v2568
    %v2570 = vpop.f32.mrb[0].mxu0
    %v2571 = vpop.f32.mrb[0].mxu0
    %v2572 = vadd.f32 %v2517, %v2571
    %v2573 = vpop.f32.mrb[0].mxu0
    %2574 = vdwg.mxu0
    %v2575 = vadd.f32 %v1507, %v2569
    %v2576 = vadd.f32 %v1508, %v2572
    %s2577 = scalar_lea.vmem %s15, 1
    %v2578 = vld [vmem:[%s2577] sm:$0x1]
    %s2579 = scalar_lea.vmem %s17, 1
    %v2580 = vld [vmem:[%s2579] sm:$0x1]
    %v2581 = vsel %vm211, %v2575, 0.0
    %2582 = vadd.xlane.f32.xlu0 %v2581
    %v2583 = vpop.xlane.xlu0 %2582
    %v2584 = vsel %vm211, %v2576, 0.0
    %2585 = vadd.xlane.f32.xlu0 %v2584
    %v2586 = vpop.xlane.xlu0 %2585
    %v2587 = vmul.f32 %v2583, %v1271
    %v2588 = vmul.f32 %v2586, %v1271
    %v2589 = vsub.f32 %v2575, %v2587
    %v2590 = vsub.f32 %v2576, %v2588
    %v2591 = vmul.f32 %v2589, %v2589
    %v2592 = vmul.f32 %v2590, %v2590
    %v2593 = vsel %vm211, %v2591, 0.0
    %2594 = vadd.xlane.f32.xlu0 %v2593
    %v2595 = vpop.xlane.xlu0 %2594
    %v2596 = vsel %vm211, %v2592, 0.0
    %2597 = vadd.xlane.f32.xlu0 %v2596
    %v2598 = vpop.xlane.xlu0 %2597
    %v2599 = vmul.f32 %v2595, %v1271
    %v2600 = vmul.f32 %v2598, %v1271
    %v2601 = vadd.f32 %v2599, 1e-05
    %v2602 = vadd.f32 %v2600, 1e-05
    %v2603 = vrsqrt.pop %v2601
    %v2604 = vrsqrt.pop %v2602
    %v2605 = vmul.f32 %v2589, %v2603
    %v2606 = vmul.f32 %v2590, %v2604
    %v2608 = vlaneseq
    %v2609 = vshrl.u32 %v2608, 7
    %v2610 = vsub.s32 0, %v2609
    %v2611 = vrot.slane %v2578, %v2610
    %v2613 = vmul.f32 %v2605, %v2611
    %v2614 = vmul.f32 %v2606, %v2611
    %v2616 = vlaneseq
    %v2617 = vshrl.u32 %v2616, 7
    %v2618 = vsub.s32 0, %v2617
    %v2619 = vrot.slane %v2580, %v2618
    %v2621 = vadd.f32 %v2613, %v2619
    %v2622 = vadd.f32 %v2614, %v2619
    %s2623 = scalar_lea.vmem %s19, 16
    %v2624 = vld [vmem:[%s2623] sm:$0xf]
    %v2625 = vld [vmem:[%s2623 + $0x4] sm:$0xf]
    %v2626 = vld [vmem:[%s2623 + $0x8] sm:$0xf]
    %v2627 = vld [vmem:[%s2623 + $0xc] sm:$0xf]
    %s2628 = scalar_lea.vmem %s21, 1
    %v2629 = vld [vmem:[%s2628] sm:$0x1]
    %s2630 = scalar_lea.vmem %s23, 32
    %v2631 = vld [vmem:[%s2630] sm:$0xf]
    %v2632 = vld [vmem:[%s2630 + $0x4] sm:$0xf]
    %v2633 = vld [vmem:[%s2630 + $0x8] sm:$0xf]
    %v2634 = vld [vmem:[%s2630 + $0xc] sm:$0xf]
    %v2635 = vld [vmem:[%s2630 + $0x10] sm:$0xf]
    %v2636 = vld [vmem:[%s2630 + $0x14] sm:$0xf]
    %v2637 = vld [vmem:[%s2630 + $0x18] sm:$0xf]
    %v2638 = vld [vmem:[%s2630 + $0x1c] sm:$0xf]
    %s2639 = scalar_lea.vmem %s25, 1
    %v2640 = vld [vmem:[%s2639] sm:$0x1]
    %v2641 = vpack.c.bf16 %v2622, %v2621
    %v2643 = vlaneseq
    %v2644 = vshrl.u32 %v2643, 7
    %v2645 = vsub.s32 0, %v2644
    %v2646 = vrot.slane %v2629, %v2645
    %v2652 = vunpack.c.l.b16 %v2624
    %v2653 = vunpack.c.l.b16 %v2625
    %v2654 = vunpack.c.l.b16 %v2626
    %v2655 = vunpack.c.l.b16 %v2627
    %v2656 = vpack.c.b16 %v2653, %v2652
    %v2657 = vpack.c.b16 %v2655, %v2654
    %v2661 = vsel %vm211, %v2641, 0
    %2663 = vmatprep.subr.bf16.mxu0 0
    %2664 = vmatpush1.bf16.msra.mxu0 %v2656
    %2665 = vmatprep.subr.bf16.mxu0 0
    %2666 = vmatpush1.bf16.msra.mxu0 %v2657
    %2667 = vmatprep.subr.bf16.mxu0 0
    %2668 = vmatpush1.bf16.msra.mxu0 0
    %2669 = vmatprep.subr.bf16.mxu0 0
    %2670 = vmatpush1.bf16.msra.mxu0 0
    %2671 = vmatprep.subr.bf16.mxu0 0
    %2672 = vmatpush1.bf16.msra.mxu0 0
    %2673 = vmatprep.subr.bf16.mxu0 0
    %2674 = vmatpush1.bf16.msra.mxu0 0
    %2675 = vmatprep.subr.bf16.mxu0 0
    %2676 = vmatpush1.bf16.msra.mxu0 0
    %2677 = vmatprep.subr.bf16.mxu0 0
    %2678 = vmatpush1.bf16.msra.mxu0 0
    %2679 = vmatprep.subr.bf16.mxu0 0
    %2680 = vmatpush1.bf16.msra.mxu0 0
    %2681 = vmatprep.subr.bf16.mxu0 0
    %2682 = vmatpush1.bf16.msra.mxu0 0
    %2683 = vmatprep.subr.bf16.mxu0 0
    %2684 = vmatpush1.bf16.msra.mxu0 0
    %2685 = vmatprep.subr.bf16.mxu0 0
    %2686 = vmatpush1.bf16.msra.mxu0 0
    %2687 = vmatprep.subr.bf16.mxu0 0
    %2688 = vmatpush1.bf16.msra.mxu0 0
    %2689 = vmatprep.subr.bf16.mxu0 0
    %2690 = vmatpush1.bf16.msra.mxu0 0
    %2691 = vmatprep.subr.bf16.mxu0 0
    %2692 = vmatpush1.bf16.msra.mxu0 0
    %2693 = vmatprep.subr.bf16.mxu0 0
    %2694 = vmatpush1.bf16.msra.mxu0 0
    %2695 = vmatprep.mubr.bf16.mxu0 0
    %2696 = vmatmul.mubr.bf16.gmra.mrb[0].mxu0 %v2661
    %v2697 = vpop.f32.mrb[0].mxu0
    %v2698 = vadd.f32 %v2646, %v2697
    %v2699 = vpop.f32.mrb[0].mxu0
    %v2700 = vpop.f32.mrb[0].mxu0
    %v2701 = vadd.f32 %v2646, %v2700
    %v2702 = vpop.f32.mrb[0].mxu0
    %2703 = vdwg.mxu0
    %v2704 = vmax.f32 %v2698, 0.0
    %v2705 = vmax.f32 %v2701, 0.0
    %v2706 = vpack.c.bf16 %v2705, %v2704
    %v2708 = vlaneseq
    %v2709 = vshrl.u32 %v2708, 7
    %v2710 = vsub.s32 0, %v2709
    %v2711 = vrot.slane %v2640, %v2710
    %v2721 = vunpack.c.l.b16 %v2631
    %v2722 = vunpack.c.l.b16 %v2632
    %v2723 = vunpack.c.l.b16 %v2633
    %v2724 = vunpack.c.l.b16 %v2634
    %v2725 = vunpack.c.l.b16 %v2635
    %v2726 = vunpack.c.l.b16 %v2636
    %v2727 = vunpack.c.l.b16 %v2637
    %v2728 = vunpack.c.l.b16 %v2638
    %v2729 = vpack.c.b16 %v2722, %v2721
    %v2730 = vpack.c.b16 %v2724, %v2723
    %v2731 = vpack.c.b16 %v2726, %v2725
    %v2732 = vpack.c.b16 %v2728, %v2727
    %v2738 = vsel %vm1418, %v2706, 0
    %2740 = vmatprep.subr.bf16.mxu0 0
    %2741 = vmatpush1.bf16.msra.mxu0 %v2729
    %2742 = vmatprep.subr.bf16.mxu0 0
    %2743 = vmatpush1.bf16.msra.mxu0 %v2730
    %2744 = vmatprep.subr.bf16.mxu0 0
    %2745 = vmatpush1.bf16.msra.mxu0 %v2731
    %2746 = vmatprep.subr.bf16.mxu0 0
    %2747 = vmatpush1.bf16.msra.mxu0 %v2732
    %2748 = vmatprep.subr.bf16.mxu0 0
    %2749 = vmatpush1.bf16.msra.mxu0 0
    %2750 = vmatprep.subr.bf16.mxu0 0
    %2751 = vmatpush1.bf16.msra.mxu0 0
    %2752 = vmatprep.subr.bf16.mxu0 0
    %2753 = vmatpush1.bf16.msra.mxu0 0
    %2754 = vmatprep.subr.bf16.mxu0 0
    %2755 = vmatpush1.bf16.msra.mxu0 0
    %2756 = vmatprep.subr.bf16.mxu0 0
    %2757 = vmatpush1.bf16.msra.mxu0 0
    %2758 = vmatprep.subr.bf16.mxu0 0
    %2759 = vmatpush1.bf16.msra.mxu0 0
    %2760 = vmatprep.subr.bf16.mxu0 0
    %2761 = vmatpush1.bf16.msra.mxu0 0
    %2762 = vmatprep.subr.bf16.mxu0 0
    %2763 = vmatpush1.bf16.msra.mxu0 0
    %2764 = vmatprep.subr.bf16.mxu0 0
    %2765 = vmatpush1.bf16.msra.mxu0 0
    %2766 = vmatprep.subr.bf16.mxu0 0
    %2767 = vmatpush1.bf16.msra.mxu0 0
    %2768 = vmatprep.subr.bf16.mxu0 0
    %2769 = vmatpush1.bf16.msra.mxu0 0
    %2770 = vmatprep.subr.bf16.mxu0 0
    %2771 = vmatpush1.bf16.msra.mxu0 0
    %2772 = vmatprep.mubr.bf16.mxu0 0
    %2773 = vmatmul.mubr.bf16.gmra.mrb[0].mxu0 %v2738
    %v2774 = vpop.f32.mrb[0].mxu0
    %v2775 = vadd.f32 %v2711, %v2774
    %v2776 = vpop.f32.mrb[0].mxu0
    %v2777 = vpop.f32.mrb[0].mxu0
    %v2778 = vadd.f32 %v2711, %v2777
    %v2779 = vpop.f32.mrb[0].mxu0
    %2780 = vdwg.mxu0
    %v2781 = vadd.f32 %v2621, %v2775
    %v2782 = vadd.f32 %v2622, %v2778
    %s2783 = scalar_lea.vmem %s27, 1
    %v2784 = vld [vmem:[%s2783] sm:$0x1]
    %s2785 = scalar_lea.vmem %s29, 1
    %v2786 = vld [vmem:[%s2785] sm:$0x1]
    %v2787 = vsel %vm211, %v2781, 0.0
    %2788 = vadd.xlane.f32.xlu0 %v2787
    %v2789 = vpop.xlane.xlu0 %2788
    %v2790 = vsel %vm211, %v2782, 0.0
    %2791 = vadd.xlane.f32.xlu0 %v2790
    %v2792 = vpop.xlane.xlu0 %2791
    %v2793 = vmul.f32 %v2789, %v1271
    %v2794 = vmul.f32 %v2792, %v1271
    %v2795 = vsub.f32 %v2781, %v2793
    %v2796 = vsub.f32 %v2782, %v2794
    %v2797 = vmul.f32 %v2795, %v2795
    %v2798 = vmul.f32 %v2796, %v2796
    %v2799 = vsel %vm211, %v2797, 0.0
    %2800 = vadd.xlane.f32.xlu0 %v2799
    %v2801 = vpop.xlane.xlu0 %2800
    %v2802 = vsel %vm211, %v2798, 0.0
    %2803 = vadd.xlane.f32.xlu0 %v2802
    %v2804 = vpop.xlane.xlu0 %2803
    %v2805 = vmul.f32 %v2801, %v1271
    %v2806 = vmul.f32 %v2804, %v1271
    %v2807 = vadd.f32 %v2805, 1e-05
    %v2808 = vadd.f32 %v2806, 1e-05
    %v2809 = vrsqrt.pop %v2807
    %v2810 = vrsqrt.pop %v2808
    %v2811 = vmul.f32 %v2795, %v2809
    %v2812 = vmul.f32 %v2796, %v2810
    %v2814 = vlaneseq
    %v2815 = vshrl.u32 %v2814, 7
    %v2816 = vsub.s32 0, %v2815
    %v2817 = vrot.slane %v2784, %v2816
    %v2819 = vmul.f32 %v2811, %v2817
    %v2820 = vmul.f32 %v2812, %v2817
    %v2822 = vlaneseq
    %v2823 = vshrl.u32 %v2822, 7
    %v2824 = vsub.s32 0, %v2823
    %v2825 = vrot.slane %v2786, %v2824
    %v2827 = vadd.f32 %v2819, %v2825
    %v2828 = vadd.f32 %v2820, %v2825
    %v2829 = vld [vmem:[%s31] sm:$0x1]
    %v2830 = vld [vmem:[%s33] sm:$0x1]
    %v2831 = vsel %vm211, %v2827, 0.0
    %2832 = vadd.xlane.f32.xlu0 %v2831
    %v2833 = vpop.xlane.xlu0 %2832
    %v2834 = vsel %vm211, %v2828, 0.0
    %2835 = vadd.xlane.f32.xlu0 %v2834
    %v2836 = vpop.xlane.xlu0 %2835
    %v2837 = vmul.f32 %v2833, %v1271
    %v2838 = vmul.f32 %v2836, %v1271
    %v2839 = vsub.f32 %v2827, %v2837
    %v2840 = vsub.f32 %v2828, %v2838
    %v2841 = vmul.f32 %v2839, %v2839
    %v2842 = vmul.f32 %v2840, %v2840
    %v2843 = vsel %vm211, %v2841, 0.0
    %2844 = vadd.xlane.f32.xlu0 %v2843
    %v2845 = vpop.xlane.xlu0 %2844
    %v2846 = vsel %vm211, %v2842, 0.0
    %2847 = vadd.xlane.f32.xlu0 %v2846
    %v2848 = vpop.xlane.xlu0 %2847
    %v2849 = vmul.f32 %v2845, %v1271
    %v2850 = vmul.f32 %v2848, %v1271
    %v2851 = vadd.f32 %v2849, 1e-05
    %v2852 = vadd.f32 %v2850, 1e-05
    %v2853 = vrsqrt.pop %v2851
    %v2854 = vrsqrt.pop %v2852
    %v2855 = vmul.f32 %v2839, %v2853
    %v2856 = vmul.f32 %v2840, %v2854
    %v2858 = vlaneseq
    %v2859 = vshrl.u32 %v2858, 7
    %v2860 = vsub.s32 0, %v2859
    %v2861 = vrot.slane %v2829, %v2860
    %v2863 = vmul.f32 %v2855, %v2861
    %v2864 = vmul.f32 %v2856, %v2861
    %v2866 = vlaneseq
    %v2867 = vshrl.u32 %v2866, 7
    %v2868 = vsub.s32 0, %v2867
    %v2869 = vrot.slane %v2830, %v2868
    %v2871 = vadd.f32 %v2863, %v2869
    %v2872 = vadd.f32 %v2864, %v2869
    %v2873 = vlaneseq
    %v2874 = vshrl.u32 %v2873, 7
    %v2875 = vlaneseq
    %v2876 = vand.u32 %v2875, 127
    %vm2877 = vcmp.gt.s32.totalorder %v2876, %v2874
    %v2878 = vsel %vm2877, -1e+30, 0.0
    %v2879 = vld [vmem:[%s35] sm:$0xf]
    %v2880 = vld [vmem:[%s35 + $0x4] sm:$0xf]
    %v2881 = vld [vmem:[%s35 + $0x8] sm:$0xf]
    %v2882 = vld [vmem:[%s35 + $0xc] sm:$0xf]
    %v2883 = vld [vmem:[%s37] sm:$0x1]
    %v2884 = vld [vmem:[%s39] sm:$0xf]
    %v2885 = vld [vmem:[%s39 + $0x4] sm:$0xf]
    %v2886 = vld [vmem:[%s39 + $0x8] sm:$0xf]
    %v2887 = vld [vmem:[%s39 + $0xc] sm:$0xf]
    %v2888 = vld [vmem:[%s41] sm:$0x1]
    %v2889 = vpack.c.bf16 %v178, %v177
    %v2891 = vlaneseq
    %v2892 = vshrl.u32 %v2891, 7
    %v2893 = vsub.s32 0, %v2892
    %v2894 = vrot.slane %v2883, %v2893
    %v2900 = vunpack.c.l.b16 %v2879
    %v2901 = vunpack.c.l.b16 %v2880
    %v2902 = vunpack.c.l.b16 %v2881
    %v2903 = vunpack.c.l.b16 %v2882
    %v2904 = vpack.c.b16 %v2901, %v2900
    %v2905 = vpack.c.b16 %v2903, %v2902
    %v2909 = vsel %vm211, %v2889, 0
    %2911 = vmatprep.subr.bf16.mxu0 0
    %2912 = vmatpush1.bf16.msra.mxu0 %v2904
    %2913 = vmatprep.subr.bf16.mxu0 0
    %2914 = vmatpush1.bf16.msra.mxu0 %v2905
    %2915 = vmatprep.subr.bf16.mxu0 0
    %2916 = vmatpush1.bf16.msra.mxu0 0
    %2917 = vmatprep.subr.bf16.mxu0 0
    %2918 = vmatpush1.bf16.msra.mxu0 0
    %2919 = vmatprep.subr.bf16.mxu0 0
    %2920 = vmatpush1.bf16.msra.mxu0 0
    %2921 = vmatprep.subr.bf16.mxu0 0
    %2922 = vmatpush1.bf16.msra.mxu0 0
    %2923 = vmatprep.subr.bf16.mxu0 0
    %2924 = vmatpush1.bf16.msra.mxu0 0
    %2925 = vmatprep.subr.bf16.mxu0 0
    %2926 = vmatpush1.bf16.msra.mxu0 0
    %2927 = vmatprep.subr.bf16.mxu0 0
    %2928 = vmatpush1.bf16.msra.mxu0 0
    %2929 = vmatprep.subr.bf16.mxu0 0
    %2930 = vmatpush1.bf16.msra.mxu0 0
    %2931 = vmatprep.subr.bf16.mxu0 0
    %2932 = vmatpush1.bf16.msra.mxu0 0
    %2933 = vmatprep.subr.bf16.mxu0 0
    %2934 = vmatpush1.bf16.msra.mxu0 0
    %2935 = vmatprep.subr.bf16.mxu0 0
    %2936 = vmatpush1.bf16.msra.mxu0 0
    %2937 = vmatprep.subr.bf16.mxu0 0
    %2938 = vmatpush1.bf16.msra.mxu0 0
    %2939 = vmatprep.subr.bf16.mxu0 0
    %2940 = vmatpush1.bf16.msra.mxu0 0
    %2941 = vmatprep.subr.bf16.mxu0 0
    %2942 = vmatpush1.bf16.msra.mxu0 0
    %2943 = vmatprep.mubr.bf16.mxu0 0
    %2944 = vmatmul.mubr.bf16.gmra.mrb[0].mxu0 %v2909
    %v2945 = vpop.f32.mrb[0].mxu0
    %v2946 = vadd.f32 %v2894, %v2945
    %v2947 = vpop.f32.mrb[0].mxu0
    %v2948 = vpop.f32.mrb[0].mxu0
    %v2949 = vadd.f32 %v2894, %v2948
    %v2950 = vpop.f32.mrb[0].mxu0
    %2951 = vdwg.mxu0
    %v2952 = vpack.c.bf16 %v2946, %v2946
    %2954 = vrot.lane.b32.xlu0 %v2952, 96
    %v2955 = vpop.permute.xlu0 %2954
    %v2957 = vsel %vm260, %v2952, 0
    %v2960 = vsel %vm260, %v2955, 0
    %2962 = vmatprep.subr.bf16.mxu0 0
    %2963 = vmatpush1.bf16.xpose.msra.mxu0 %v2960
    %2964 = vmatprep.subr.bf16.mxu0 0
    %2965 = vmatpush1.bf16.xpose.msra.mxu0 0
    %2966 = vmatprep.subr.bf16.mxu0 0
    %2967 = vmatpush1.bf16.xpose.msra.mxu0 0
    %2968 = vmatprep.subr.bf16.mxu0 0
    %2969 = vmatpush1.bf16.xpose.msra.mxu0 0
    %2970 = vmatprep.subr.bf16.mxu0 0
    %2971 = vmatpush1.bf16.xpose.msra.mxu0 0
    %2972 = vmatprep.subr.bf16.mxu0 0
    %2973 = vmatpush1.bf16.xpose.msra.mxu0 0
    %2974 = vmatprep.subr.bf16.mxu0 0
    %2975 = vmatpush1.bf16.xpose.msra.mxu0 0
    %2976 = vmatprep.subr.bf16.mxu0 0
    %2977 = vmatpush1.bf16.xpose.msra.mxu0 0
    %2978 = vmatprep.subr.bf16.mxu0 0
    %2979 = vmatpush1.bf16.xpose.msra.mxu0 0
    %2980 = vmatprep.subr.bf16.mxu0 0
    %2981 = vmatpush1.bf16.xpose.msra.mxu0 0
    %2982 = vmatprep.subr.bf16.mxu0 0
    %2983 = vmatpush1.bf16.xpose.msra.mxu0 0
    %2984 = vmatprep.subr.bf16.mxu0 0
    %2985 = vmatpush1.bf16.xpose.msra.mxu0 0
    %2986 = vmatprep.subr.bf16.mxu0 0
    %2987 = vmatpush1.bf16.xpose.msra.mxu0 0
    %2988 = vmatprep.subr.bf16.mxu0 0
    %2989 = vmatpush1.bf16.xpose.msra.mxu0 0
    %2990 = vmatprep.subr.bf16.mxu0 0
    %2991 = vmatpush1.bf16.xpose.msra.mxu0 0
    %2992 = vmatprep.subr.bf16.mxu0 0
    %2993 = vmatpush1.bf16.xpose.msra.mxu0 0
    %2994 = vmatprep.mubr.bf16.mxu0 0
    %2995 = vmatmul.mubr.bf16.gmra.mrb[0].mxu0 %v2957
    %v2996 = vpop.f32.mrb[0].mxu0
    %v2997 = vadd.f32 0.0, %v2996
    %v2998 = vpop.f32.mrb[0].mxu0
    %v2999 = vpop.f32.mrb[0].mxu0
    %v3000 = vpop.f32.mrb[0].mxu0
    %3001 = vdwg.mxu0
    %v3002 = vmul.f32 %v2997, 0.35355338
    %v3003 = vadd.f32 %v3002, %v2878
    %v3004 = vsel %vm260, %v3003, -inf
    %3005 = vmax.xlane.f32.xlu0 %v3004
    %v3006 = vpop.xlane.xlu0 %3005
    %v3007 = vsub.f32 %v3003, %v3006
    %v3008 = vmul.f32 %v3007, 1.442695
    %v3009 = vpow.pop %v3008
    %v3010 = vsel %vm260, %v3009, 0.0
    %3011 = vadd.xlane.f32.xlu0 %v3010
    %v3012 = vpop.xlane.xlu0 %3011
    %v3013 = vrcp.pop %v3012
    %v3014 = vmul.f32 %v3009, %v3013
    %v3015 = vpack.c.bf16 %v3014, %v3014
    %3016 = vrot.lane.b32.xlu0 %v2952, 64
    %v3017 = vpop.permute.xlu0 %3016
    %v3019 = vsel %vm260, %v3015, 0
    %v3022 = vsel %vm332, %v3017, 0
    %3024 = vmatprep.subr.bf16.mxu0 0
    %3025 = vmatpush1.bf16.msra.mxu0 %v3022
    %3026 = vmatprep.subr.bf16.mxu0 0
    %3027 = vmatpush1.bf16.msra.mxu0 0
    %3028 = vmatprep.subr.bf16.mxu0 0
    %3029 = vmatpush1.bf16.msra.mxu0 0
    %3030 = vmatprep.subr.bf16.mxu0 0
    %3031 = vmatpush1.bf16.msra.mxu0 0
    %3032 = vmatprep.subr.bf16.mxu0 0
    %3033 = vmatpush1.bf16.msra.mxu0 0
    %3034 = vmatprep.subr.bf16.mxu0 0
    %3035 = vmatpush1.bf16.msra.mxu0 0
    %3036 = vmatprep.subr.bf16.mxu0 0
    %3037 = vmatpush1.bf16.msra.mxu0 0
    %3038 = vmatprep.subr.bf16.mxu0 0
    %3039 = vmatpush1.bf16.msra.mxu0 0
    %3040 = vmatprep.subr.bf16.mxu0 0
    %3041 = vmatpush1.bf16.msra.mxu0 0
    %3042 = vmatprep.subr.bf16.mxu0 0
    %3043 = vmatpush1.bf16.msra.mxu0 0
    %3044 = vmatprep.subr.bf16.mxu0 0
    %3045 = vmatpush1.bf16.msra.mxu0 0
    %3046 = vmatprep.subr.bf16.mxu0 0
    %3047 = vmatpush1.bf16.msra.mxu0 0
    %3048 = vmatprep.subr.bf16.mxu0 0
    %3049 = vmatpush1.bf16.msra.mxu0 0
    %3050 = vmatprep.subr.bf16.mxu0 0
    %3051 = vmatpush1.bf16.msra.mxu0 0
    %3052 = vmatprep.subr.bf16.mxu0 0
    %3053 = vmatpush1.bf16.msra.mxu0 0
    %3054 = vmatprep.subr.bf16.mxu0 0
    %3055 = vmatpush1.bf16.msra.mxu0 0
    %3056 = vmatprep.mubr.bf16.mxu0 0
    %3057 = vmatmul.mubr.bf16.gmra.mrb[0].mxu0 %v3019
    %v3058 = vpop.f32.mrb[0].mxu0
    %v3059 = vadd.f32 0.0, %v3058
    %v3060 = vpop.f32.mrb[0].mxu0
    %v3061 = vpop.f32.mrb[0].mxu0
    %v3062 = vpop.f32.mrb[0].mxu0
    %3063 = vdwg.mxu0
    %3064 = vrot.lane.b32.xlu0 %v2952, 120
    %v3065 = vpop.permute.xlu0 %3064
    %3066 = vrot.lane.b32.xlu0 %v2952, 88
    %v3067 = vpop.permute.xlu0 %3066
    %v3069 = vsel %vm260, %v3065, 0
    %v3072 = vsel %vm260, %v3067, 0
    %3074 = vmatprep.subr.bf16.mxu0 0
    %3075 = vmatpush1.bf16.xpose.msra.mxu0 %v3072
    %3076 = vmatprep.subr.bf16.mxu0 0
    %3077 = vmatpush1.bf16.xpose.msra.mxu0 0
    %3078 = vmatprep.subr.bf16.mxu0 0
    %3079 = vmatpush1.bf16.xpose.msra.mxu0 0
    %3080 = vmatprep.subr.bf16.mxu0 0
    %3081 = vmatpush1.bf16.xpose.msra.mxu0 0
    %3082 = vmatprep.subr.bf16.mxu0 0
    %3083 = vmatpush1.bf16.xpose.msra.mxu0 0
    %3084 = vmatprep.subr.bf16.mxu0 0
    %3085 = vmatpush1.bf16.xpose.msra.mxu0 0
    %3086 = vmatprep.subr.bf16.mxu0 0
    %3087 = vmatpush1.bf16.xpose.msra.mxu0 0
    %3088 = vmatprep.subr.bf16.mxu0 0
    %3089 = vmatpush1.bf16.xpose.msra.mxu0 0
    %3090 = vmatprep.subr.bf16.mxu0 0
    %3091 = vmatpush1.bf16.xpose.msra.mxu0 0
    %3092 = vmatprep.subr.bf16.mxu0 0
    %3093 = vmatpush1.bf16.xpose.msra.mxu0 0
    %3094 = vmatprep.subr.bf16.mxu0 0
    %3095 = vmatpush1.bf16.xpose.msra.mxu0 0
    %3096 = vmatprep.subr.bf16.mxu0 0
    %3097 = vmatpush1.bf16.xpose.msra.mxu0 0
    %3098 = vmatprep.subr.bf16.mxu0 0
    %3099 = vmatpush1.bf16.xpose.msra.mxu0 0
    %3100 = vmatprep.subr.bf16.mxu0 0
    %3101 = vmatpush1.bf16.xpose.msra.mxu0 0
    %3102 = vmatprep.subr.bf16.mxu0 0
    %3103 = vmatpush1.bf16.xpose.msra.mxu0 0
    %3104 = vmatprep.subr.bf16.mxu0 0
    %3105 = vmatpush1.bf16.xpose.msra.mxu0 0
    %3106 = vmatprep.mubr.bf16.mxu0 0
    %3107 = vmatmul.mubr.bf16.gmra.mrb[0].mxu0 %v3069
    %v3108 = vpop.f32.mrb[0].mxu0
    %v3109 = vadd.f32 0.0, %v3108
    %v3110 = vpop.f32.mrb[0].mxu0
    %v3111 = vpop.f32.mrb[0].mxu0
    %v3112 = vpop.f32.mrb[0].mxu0
    %3113 = vdwg.mxu0
    %v3114 = vmul.f32 %v3109, 0.35355338
    %v3115 = vadd.f32 %v3114, %v2878
    %v3116 = vsel %vm260, %v3115, -inf
    %3117 = vmax.xlane.f32.xlu0 %v3116
    %v3118 = vpop.xlane.xlu0 %3117
    %v3119 = vsub.f32 %v3115, %v3118
    %v3120 = vmul.f32 %v3119, 1.442695
    %v3121 = vpow.pop %v3120
    %v3122 = vsel %vm260, %v3121, 0.0
    %3123 = vadd.xlane.f32.xlu0 %v3122
    %v3124 = vpop.xlane.xlu0 %3123
    %v3125 = vrcp.pop %v3124
    %v3126 = vmul.f32 %v3121, %v3125
    %v3127 = vpack.c.bf16 %v3126, %v3126
    %3128 = vrot.lane.b32.xlu0 %v2952, 56
    %v3129 = vpop.permute.xlu0 %3128
    %v3131 = vsel %vm260, %v3127, 0
    %v3134 = vsel %vm332, %v3129, 0
    %3136 = vmatprep.subr.bf16.mxu0 0
    %3137 = vmatpush1.bf16.msra.mxu0 %v3134
    %3138 = vmatprep.subr.bf16.mxu0 0
    %3139 = vmatpush1.bf16.msra.mxu0 0
    %3140 = vmatprep.subr.bf16.mxu0 0
    %3141 = vmatpush1.bf16.msra.mxu0 0
    %3142 = vmatprep.subr.bf16.mxu0 0
    %3143 = vmatpush1.bf16.msra.mxu0 0
    %3144 = vmatprep.subr.bf16.mxu0 0
    %3145 = vmatpush1.bf16.msra.mxu0 0
    %3146 = vmatprep.subr.bf16.mxu0 0
    %3147 = vmatpush1.bf16.msra.mxu0 0
    %3148 = vmatprep.subr.bf16.mxu0 0
    %3149 = vmatpush1.bf16.msra.mxu0 0
    %3150 = vmatprep.subr.bf16.mxu0 0
    %3151 = vmatpush1.bf16.msra.mxu0 0
    %3152 = vmatprep.subr.bf16.mxu0 0
    %3153 = vmatpush1.bf16.msra.mxu0 0
    %3154 = vmatprep.subr.bf16.mxu0 0
    %3155 = vmatpush1.bf16.msra.mxu0 0
    %3156 = vmatprep.subr.bf16.mxu0 0
    %3157 = vmatpush1.bf16.msra.mxu0 0
    %3158 = vmatprep.subr.bf16.mxu0 0
    %3159 = vmatpush1.bf16.msra.mxu0 0
    %3160 = vmatprep.subr.bf16.mxu0 0
    %3161 = vmatpush1.bf16.msra.mxu0 0
    %3162 = vmatprep.subr.bf16.mxu0 0
    %3163 = vmatpush1.bf16.msra.mxu0 0
    %3164 = vmatprep.subr.bf16.mxu0 0
    %3165 = vmatpush1.bf16.msra.mxu0 0
    %3166 = vmatprep.subr.bf16.mxu0 0
    %3167 = vmatpush1.bf16.msra.mxu0 0
    %3168 = vmatprep.mubr.bf16.mxu0 0
    %3169 = vmatmul.mubr.bf16.gmra.mrb[0].mxu0 %v3131
    %v3170 = vpop.f32.mrb[0].mxu0
    %v3171 = vadd.f32 0.0, %v3170
    %v3172 = vpop.f32.mrb[0].mxu0
    %v3173 = vpop.f32.mrb[0].mxu0
    %v3174 = vpop.f32.mrb[0].mxu0
    %3175 = vdwg.mxu0
    %3176 = vrot.lane.b32.xlu0 %v2952, 112
    %v3177 = vpop.permute.xlu0 %3176
    %3178 = vrot.lane.b32.xlu0 %v2952, 80
    %v3179 = vpop.permute.xlu0 %3178
    %v3181 = vsel %vm260, %v3177, 0
    %v3184 = vsel %vm260, %v3179, 0
    %3186 = vmatprep.subr.bf16.mxu0 0
    %3187 = vmatpush1.bf16.xpose.msra.mxu0 %v3184
    %3188 = vmatprep.subr.bf16.mxu0 0
    %3189 = vmatpush1.bf16.xpose.msra.mxu0 0
    %3190 = vmatprep.subr.bf16.mxu0 0
    %3191 = vmatpush1.bf16.xpose.msra.mxu0 0
    %3192 = vmatprep.subr.bf16.mxu0 0
    %3193 = vmatpush1.bf16.xpose.msra.mxu0 0
    %3194 = vmatprep.subr.bf16.mxu0 0
    %3195 = vmatpush1.bf16.xpose.msra.mxu0 0
    %3196 = vmatprep.subr.bf16.mxu0 0
    %3197 = vmatpush1.bf16.xpose.msra.mxu0 0
    %3198 = vmatprep.subr.bf16.mxu0 0
    %3199 = vmatpush1.bf16.xpose.msra.mxu0 0
    %3200 = vmatprep.subr.bf16.mxu0 0
    %3201 = vmatpush1.bf16.xpose.msra.mxu0 0
    %3202 = vmatprep.subr.bf16.mxu0 0
    %3203 = vmatpush1.bf16.xpose.msra.mxu0 0
    %3204 = vmatprep.subr.bf16.mxu0 0
    %3205 = vmatpush1.bf16.xpose.msra.mxu0 0
    %3206 = vmatprep.subr.bf16.mxu0 0
    %3207 = vmatpush1.bf16.xpose.msra.mxu0 0
    %3208 = vmatprep.subr.bf16.mxu0 0
    %3209 = vmatpush1.bf16.xpose.msra.mxu0 0
    %3210 = vmatprep.subr.bf16.mxu0 0
    %3211 = vmatpush1.bf16.xpose.msra.mxu0 0
    %3212 = vmatprep.subr.bf16.mxu0 0
    %3213 = vmatpush1.bf16.xpose.msra.mxu0 0
    %3214 = vmatprep.subr.bf16.mxu0 0
    %3215 = vmatpush1.bf16.xpose.msra.mxu0 0
    %3216 = vmatprep.subr.bf16.mxu0 0
    %3217 = vmatpush1.bf16.xpose.msra.mxu0 0
    %3218 = vmatprep.mubr.bf16.mxu0 0
    %3219 = vmatmul.mubr.bf16.gmra.mrb[0].mxu0 %v3181
    %v3220 = vpop.f32.mrb[0].mxu0
    %v3221 = vadd.f32 0.0, %v3220
    %v3222 = vpop.f32.mrb[0].mxu0
    %v3223 = vpop.f32.mrb[0].mxu0
    %v3224 = vpop.f32.mrb[0].mxu0
    %3225 = vdwg.mxu0
    %v3226 = vmul.f32 %v3221, 0.35355338
    %v3227 = vadd.f32 %v3226, %v2878
    %v3228 = vsel %vm260, %v3227, -inf
    %3229 = vmax.xlane.f32.xlu0 %v3228
    %v3230 = vpop.xlane.xlu0 %3229
    %v3231 = vsub.f32 %v3227, %v3230
    %v3232 = vmul.f32 %v3231, 1.442695
    %v3233 = vpow.pop %v3232
    %v3234 = vsel %vm260, %v3233, 0.0
    %3235 = vadd.xlane.f32.xlu0 %v3234
    %v3236 = vpop.xlane.xlu0 %3235
    %v3237 = vrcp.pop %v3236
    %v3238 = vmul.f32 %v3233, %v3237
    %v3239 = vpack.c.bf16 %v3238, %v3238
    %3240 = vrot.lane.b32.xlu0 %v2952, 48
    %v3241 = vpop.permute.xlu0 %3240
    %v3243 = vsel %vm260, %v3239, 0
    %v3246 = vsel %vm332, %v3241, 0
    %3248 = vmatprep.subr.bf16.mxu0 0
    %3249 = vmatpush1.bf16.msra.mxu0 %v3246
    %3250 = vmatprep.subr.bf16.mxu0 0
    %3251 = vmatpush1.bf16.msra.mxu0 0
    %3252 = vmatprep.subr.bf16.mxu0 0
    %3253 = vmatpush1.bf16.msra.mxu0 0
    %3254 = vmatprep.subr.bf16.mxu0 0
    %3255 = vmatpush1.bf16.msra.mxu0 0
    %3256 = vmatprep.subr.bf16.mxu0 0
    %3257 = vmatpush1.bf16.msra.mxu0 0
    %3258 = vmatprep.subr.bf16.mxu0 0
    %3259 = vmatpush1.bf16.msra.mxu0 0
    %3260 = vmatprep.subr.bf16.mxu0 0
    %3261 = vmatpush1.bf16.msra.mxu0 0
    %3262 = vmatprep.subr.bf16.mxu0 0
    %3263 = vmatpush1.bf16.msra.mxu0 0
    %3264 = vmatprep.subr.bf16.mxu0 0
    %3265 = vmatpush1.bf16.msra.mxu0 0
    %3266 = vmatprep.subr.bf16.mxu0 0
    %3267 = vmatpush1.bf16.msra.mxu0 0
    %3268 = vmatprep.subr.bf16.mxu0 0
    %3269 = vmatpush1.bf16.msra.mxu0 0
    %3270 = vmatprep.subr.bf16.mxu0 0
    %3271 = vmatpush1.bf16.msra.mxu0 0
    %3272 = vmatprep.subr.bf16.mxu0 0
    %3273 = vmatpush1.bf16.msra.mxu0 0
    %3274 = vmatprep.subr.bf16.mxu0 0
    %3275 = vmatpush1.bf16.msra.mxu0 0
    %3276 = vmatprep.subr.bf16.mxu0 0
    %3277 = vmatpush1.bf16.msra.mxu0 0
    %3278 = vmatprep.subr.bf16.mxu0 0
    %3279 = vmatpush1.bf16.msra.mxu0 0
    %3280 = vmatprep.mubr.bf16.mxu0 0
    %3281 = vmatmul.mubr.bf16.gmra.mrb[0].mxu0 %v3243
    %v3282 = vpop.f32.mrb[0].mxu0
    %v3283 = vadd.f32 0.0, %v3282
    %v3284 = vpop.f32.mrb[0].mxu0
    %v3285 = vpop.f32.mrb[0].mxu0
    %v3286 = vpop.f32.mrb[0].mxu0
    %3287 = vdwg.mxu0
    %3288 = vrot.lane.b32.xlu0 %v2952, 104
    %v3289 = vpop.permute.xlu0 %3288
    %3290 = vrot.lane.b32.xlu0 %v2952, 72
    %v3291 = vpop.permute.xlu0 %3290
    %v3293 = vsel %vm260, %v3289, 0
    %v3296 = vsel %vm260, %v3291, 0
    %3298 = vmatprep.subr.bf16.mxu0 0
    %3299 = vmatpush1.bf16.xpose.msra.mxu0 %v3296
    %3300 = vmatprep.subr.bf16.mxu0 0
    %3301 = vmatpush1.bf16.xpose.msra.mxu0 0
    %3302 = vmatprep.subr.bf16.mxu0 0
    %3303 = vmatpush1.bf16.xpose.msra.mxu0 0
    %3304 = vmatprep.subr.bf16.mxu0 0
    %3305 = vmatpush1.bf16.xpose.msra.mxu0 0
    %3306 = vmatprep.subr.bf16.mxu0 0
    %3307 = vmatpush1.bf16.xpose.msra.mxu0 0
    %3308 = vmatprep.subr.bf16.mxu0 0
    %3309 = vmatpush1.bf16.xpose.msra.mxu0 0
    %3310 = vmatprep.subr.bf16.mxu0 0
    %3311 = vmatpush1.bf16.xpose.msra.mxu0 0
    %3312 = vmatprep.subr.bf16.mxu0 0
    %3313 = vmatpush1.bf16.xpose.msra.mxu0 0
    %3314 = vmatprep.subr.bf16.mxu0 0
    %3315 = vmatpush1.bf16.xpose.msra.mxu0 0
    %3316 = vmatprep.subr.bf16.mxu0 0
    %3317 = vmatpush1.bf16.xpose.msra.mxu0 0
    %3318 = vmatprep.subr.bf16.mxu0 0
    %3319 = vmatpush1.bf16.xpose.msra.mxu0 0
    %3320 = vmatprep.subr.bf16.mxu0 0
    %3321 = vmatpush1.bf16.xpose.msra.mxu0 0
    %3322 = vmatprep.subr.bf16.mxu0 0
    %3323 = vmatpush1.bf16.xpose.msra.mxu0 0
    %3324 = vmatprep.subr.bf16.mxu0 0
    %3325 = vmatpush1.bf16.xpose.msra.mxu0 0
    %3326 = vmatprep.subr.bf16.mxu0 0
    %3327 = vmatpush1.bf16.xpose.msra.mxu0 0
    %3328 = vmatprep.subr.bf16.mxu0 0
    %3329 = vmatpush1.bf16.xpose.msra.mxu0 0
    %3330 = vmatprep.mubr.bf16.mxu0 0
    %3331 = vmatmul.mubr.bf16.gmra.mrb[0].mxu0 %v3293
    %v3332 = vpop.f32.mrb[0].mxu0
    %v3333 = vadd.f32 0.0, %v3332
    %v3334 = vpop.f32.mrb[0].mxu0
    %v3335 = vpop.f32.mrb[0].mxu0
    %v3336 = vpop.f32.mrb[0].mxu0
    %3337 = vdwg.mxu0
    %v3338 = vmul.f32 %v3333, 0.35355338
    %v3339 = vadd.f32 %v3338, %v2878
    %v3340 = vsel %vm260, %v3339, -inf
    %3341 = vmax.xlane.f32.xlu0 %v3340
    %v3342 = vpop.xlane.xlu0 %3341
    %v3343 = vsub.f32 %v3339, %v3342
    %v3344 = vmul.f32 %v3343, 1.442695
    %v3345 = vpow.pop %v3344
    %v3346 = vsel %vm260, %v3345, 0.0
    %3347 = vadd.xlane.f32.xlu0 %v3346
    %v3348 = vpop.xlane.xlu0 %3347
    %v3349 = vrcp.pop %v3348
    %v3350 = vmul.f32 %v3345, %v3349
    %v3351 = vpack.c.bf16 %v3350, %v3350
    %3352 = vrot.lane.b32.xlu0 %v2952, 40
    %v3353 = vpop.permute.xlu0 %3352
    %v3355 = vsel %vm260, %v3351, 0
    %v3358 = vsel %vm332, %v3353, 0
    %3360 = vmatprep.subr.bf16.mxu0 0
    %3361 = vmatpush1.bf16.msra.mxu0 %v3358
    %3362 = vmatprep.subr.bf16.mxu0 0
    %3363 = vmatpush1.bf16.msra.mxu0 0
    %3364 = vmatprep.subr.bf16.mxu0 0
    %3365 = vmatpush1.bf16.msra.mxu0 0
    %3366 = vmatprep.subr.bf16.mxu0 0
    %3367 = vmatpush1.bf16.msra.mxu0 0
    %3368 = vmatprep.subr.bf16.mxu0 0
    %3369 = vmatpush1.bf16.msra.mxu0 0
    %3370 = vmatprep.subr.bf16.mxu0 0
    %3371 = vmatpush1.bf16.msra.mxu0 0
    %3372 = vmatprep.subr.bf16.mxu0 0
    %3373 = vmatpush1.bf16.msra.mxu0 0
    %3374 = vmatprep.subr.bf16.mxu0 0
    %3375 = vmatpush1.bf16.msra.mxu0 0
    %3376 = vmatprep.subr.bf16.mxu0 0
    %3377 = vmatpush1.bf16.msra.mxu0 0
    %3378 = vmatprep.subr.bf16.mxu0 0
    %3379 = vmatpush1.bf16.msra.mxu0 0
    %3380 = vmatprep.subr.bf16.mxu0 0
    %3381 = vmatpush1.bf16.msra.mxu0 0
    %3382 = vmatprep.subr.bf16.mxu0 0
    %3383 = vmatpush1.bf16.msra.mxu0 0
    %3384 = vmatprep.subr.bf16.mxu0 0
    %3385 = vmatpush1.bf16.msra.mxu0 0
    %3386 = vmatprep.subr.bf16.mxu0 0
    %3387 = vmatpush1.bf16.msra.mxu0 0
    %3388 = vmatprep.subr.bf16.mxu0 0
    %3389 = vmatpush1.bf16.msra.mxu0 0
    %3390 = vmatprep.subr.bf16.mxu0 0
    %3391 = vmatpush1.bf16.msra.mxu0 0
    %3392 = vmatprep.mubr.bf16.mxu0 0
    %3393 = vmatmul.mubr.bf16.gmra.mrb[0].mxu0 %v3355
    %v3394 = vpop.f32.mrb[0].mxu0
    %v3395 = vadd.f32 0.0, %v3394
    %v3396 = vpop.f32.mrb[0].mxu0
    %v3397 = vpop.f32.mrb[0].mxu0
    %v3398 = vpop.f32.mrb[0].mxu0
    %3399 = vdwg.mxu0
    %3401 = vrot.lane.b32.xlu0 %v3171, 8
    %v3402 = vpop.permute.xlu0 %3401
    %3405 = vrot.lane.b32.xlu0 %v3283, 16
    %v3406 = vpop.permute.xlu0 %3405
    %3409 = vrot.lane.b32.xlu0 %v3395, 24
    %v3410 = vpop.permute.xlu0 %3409
    %v3412 = vsel %vm260, %v3059, %v3402
    %v3413 = vsel %vm725, %v3412, %v3406
    %v3414 = vsel %vm727, %v3413, %v3410
    %v3415 = vpack.c.bf16 %v2949, %v2949
    %3417 = vrot.lane.b32.xlu0 %v3415, 96
    %v3418 = vpop.permute.xlu0 %3417
    %v3420 = vsel %vm260, %v3415, 0
    %v3423 = vsel %vm260, %v3418, 0
    %3425 = vmatprep.subr.bf16.mxu0 0
    %3426 = vmatpush1.bf16.xpose.msra.mxu0 %v3423
    %3427 = vmatprep.subr.bf16.mxu0 0
    %3428 = vmatpush1.bf16.xpose.msra.mxu0 0
    %3429 = vmatprep.subr.bf16.mxu0 0
    %3430 = vmatpush1.bf16.xpose.msra.mxu0 0
    %3431 = vmatprep.subr.bf16.mxu0 0
    %3432 = vmatpush1.bf16.xpose.msra.mxu0 0
    %3433 = vmatprep.subr.bf16.mxu0 0
    %3434 = vmatpush1.bf16.xpose.msra.mxu0 0
    %3435 = vmatprep.subr.bf16.mxu0 0
    %3436 = vmatpush1.bf16.xpose.msra.mxu0 0
    %3437 = vmatprep.subr.bf16.mxu0 0
    %3438 = vmatpush1.bf16.xpose.msra.mxu0 0
    %3439 = vmatprep.subr.bf16.mxu0 0
    %3440 = vmatpush1.bf16.xpose.msra.mxu0 0
    %3441 = vmatprep.subr.bf16.mxu0 0
    %3442 = vmatpush1.bf16.xpose.msra.mxu0 0
    %3443 = vmatprep.subr.bf16.mxu0 0
    %3444 = vmatpush1.bf16.xpose.msra.mxu0 0
    %3445 = vmatprep.subr.bf16.mxu0 0
    %3446 = vmatpush1.bf16.xpose.msra.mxu0 0
    %3447 = vmatprep.subr.bf16.mxu0 0
    %3448 = vmatpush1.bf16.xpose.msra.mxu0 0
    %3449 = vmatprep.subr.bf16.mxu0 0
    %3450 = vmatpush1.bf16.xpose.msra.mxu0 0
    %3451 = vmatprep.subr.bf16.mxu0 0
    %3452 = vmatpush1.bf16.xpose.msra.mxu0 0
    %3453 = vmatprep.subr.bf16.mxu0 0
    %3454 = vmatpush1.bf16.xpose.msra.mxu0 0
    %3455 = vmatprep.subr.bf16.mxu0 0
    %3456 = vmatpush1.bf16.xpose.msra.mxu0 0
    %3457 = vmatprep.mubr.bf16.mxu0 0
    %3458 = vmatmul.mubr.bf16.gmra.mrb[0].mxu0 %v3420
    %v3459 = vpop.f32.mrb[0].mxu0
    %v3460 = vadd.f32 0.0, %v3459
    %v3461 = vpop.f32.mrb[0].mxu0
    %v3462 = vpop.f32.mrb[0].mxu0
    %v3463 = vpop.f32.mrb[0].mxu0
    %3464 = vdwg.mxu0
    %v3465 = vmul.f32 %v3460, 0.35355338
    %v3466 = vadd.f32 %v3465, %v2878
    %v3467 = vsel %vm260, %v3466, -inf
    %3468 = vmax.xlane.f32.xlu0 %v3467
    %v3469 = vpop.xlane.xlu0 %3468
    %v3470 = vsub.f32 %v3466, %v3469
    %v3471 = vmul.f32 %v3470, 1.442695
    %v3472 = vpow.pop %v3471
    %v3473 = vsel %vm260, %v3472, 0.0
    %3474 = vadd.xlane.f32.xlu0 %v3473
    %v3475 = vpop.xlane.xlu0 %3474
    %v3476 = vrcp.pop %v3475
    %v3477 = vmul.f32 %v3472, %v3476
    %v3478 = vpack.c.bf16 %v3477, %v3477
    %3479 = vrot.lane.b32.xlu0 %v3415, 64
    %v3480 = vpop.permute.xlu0 %3479
    %v3482 = vsel %vm260, %v3478, 0
    %v3485 = vsel %vm332, %v3480, 0
    %3487 = vmatprep.subr.bf16.mxu0 0
    %3488 = vmatpush1.bf16.msra.mxu0 %v3485
    %3489 = vmatprep.subr.bf16.mxu0 0
    %3490 = vmatpush1.bf16.msra.mxu0 0
    %3491 = vmatprep.subr.bf16.mxu0 0
    %3492 = vmatpush1.bf16.msra.mxu0 0
    %3493 = vmatprep.subr.bf16.mxu0 0
    %3494 = vmatpush1.bf16.msra.mxu0 0
    %3495 = vmatprep.subr.bf16.mxu0 0
    %3496 = vmatpush1.bf16.msra.mxu0 0
    %3497 = vmatprep.subr.bf16.mxu0 0
    %3498 = vmatpush1.bf16.msra.mxu0 0
    %3499 = vmatprep.subr.bf16.mxu0 0
    %3500 = vmatpush1.bf16.msra.mxu0 0
    %3501 = vmatprep.subr.bf16.mxu0 0
    %3502 = vmatpush1.bf16.msra.mxu0 0
    %3503 = vmatprep.subr.bf16.mxu0 0
    %3504 = vmatpush1.bf16.msra.mxu0 0
    %3505 = vmatprep.subr.bf16.mxu0 0
    %3506 = vmatpush1.bf16.msra.mxu0 0
    %3507 = vmatprep.subr.bf16.mxu0 0
    %3508 = vmatpush1.bf16.msra.mxu0 0
    %3509 = vmatprep.subr.bf16.mxu0 0
    %3510 = vmatpush1.bf16.msra.mxu0 0
    %3511 = vmatprep.subr.bf16.mxu0 0
    %3512 = vmatpush1.bf16.msra.mxu0 0
    %3513 = vmatprep.subr.bf16.mxu0 0
    %3514 = vmatpush1.bf16.msra.mxu0 0
    %3515 = vmatprep.subr.bf16.mxu0 0
    %3516 = vmatpush1.bf16.msra.mxu0 0
    %3517 = vmatprep.subr.bf16.mxu0 0
    %3518 = vmatpush1.bf16.msra.mxu0 0
    %3519 = vmatprep.mubr.bf16.mxu0 0
    %3520 = vmatmul.mubr.bf16.gmra.mrb[0].mxu0 %v3482
    %v3521 = vpop.f32.mrb[0].mxu0
    %v3522 = vadd.f32 0.0, %v3521
    %v3523 = vpop.f32.mrb[0].mxu0
    %v3524 = vpop.f32.mrb[0].mxu0
    %v3525 = vpop.f32.mrb[0].mxu0
    %3526 = vdwg.mxu0
    %3527 = vrot.lane.b32.xlu0 %v3415, 120
    %v3528 = vpop.permute.xlu0 %3527
    %3529 = vrot.lane.b32.xlu0 %v3415, 88
    %v3530 = vpop.permute.xlu0 %3529
    %v3532 = vsel %vm260, %v3528, 0
    %v3535 = vsel %vm260, %v3530, 0
    %3537 = vmatprep.subr.bf16.mxu0 0
    %3538 = vmatpush1.bf16.xpose.msra.mxu0 %v3535
    %3539 = vmatprep.subr.bf16.mxu0 0
    %3540 = vmatpush1.bf16.xpose.msra.mxu0 0
    %3541 = vmatprep.subr.bf16.mxu0 0
    %3542 = vmatpush1.bf16.xpose.msra.mxu0 0
    %3543 = vmatprep.subr.bf16.mxu0 0
    %3544 = vmatpush1.bf16.xpose.msra.mxu0 0
    %3545 = vmatprep.subr.bf16.mxu0 0
    %3546 = vmatpush1.bf16.xpose.msra.mxu0 0
    %3547 = vmatprep.subr.bf16.mxu0 0
    %3548 = vmatpush1.bf16.xpose.msra.mxu0 0
    %3549 = vmatprep.subr.bf16.mxu0 0
    %3550 = vmatpush1.bf16.xpose.msra.mxu0 0
    %3551 = vmatprep.subr.bf16.mxu0 0
    %3552 = vmatpush1.bf16.xpose.msra.mxu0 0
    %3553 = vmatprep.subr.bf16.mxu0 0
    %3554 = vmatpush1.bf16.xpose.msra.mxu0 0
    %3555 = vmatprep.subr.bf16.mxu0 0
    %3556 = vmatpush1.bf16.xpose.msra.mxu0 0
    %3557 = vmatprep.subr.bf16.mxu0 0
    %3558 = vmatpush1.bf16.xpose.msra.mxu0 0
    %3559 = vmatprep.subr.bf16.mxu0 0
    %3560 = vmatpush1.bf16.xpose.msra.mxu0 0
    %3561 = vmatprep.subr.bf16.mxu0 0
    %3562 = vmatpush1.bf16.xpose.msra.mxu0 0
    %3563 = vmatprep.subr.bf16.mxu0 0
    %3564 = vmatpush1.bf16.xpose.msra.mxu0 0
    %3565 = vmatprep.subr.bf16.mxu0 0
    %3566 = vmatpush1.bf16.xpose.msra.mxu0 0
    %3567 = vmatprep.subr.bf16.mxu0 0
    %3568 = vmatpush1.bf16.xpose.msra.mxu0 0
    %3569 = vmatprep.mubr.bf16.mxu0 0
    %3570 = vmatmul.mubr.bf16.gmra.mrb[0].mxu0 %v3532
    %v3571 = vpop.f32.mrb[0].mxu0
    %v3572 = vadd.f32 0.0, %v3571
    %v3573 = vpop.f32.mrb[0].mxu0
    %v3574 = vpop.f32.mrb[0].mxu0
    %v3575 = vpop.f32.mrb[0].mxu0
    %3576 = vdwg.mxu0
    %v3577 = vmul.f32 %v3572, 0.35355338
    %v3578 = vadd.f32 %v3577, %v2878
    %v3579 = vsel %vm260, %v3578, -inf
    %3580 = vmax.xlane.f32.xlu0 %v3579
    %v3581 = vpop.xlane.xlu0 %3580
    %v3582 = vsub.f32 %v3578, %v3581
    %v3583 = vmul.f32 %v3582, 1.442695
    %v3584 = vpow.pop %v3583
    %v3585 = vsel %vm260, %v3584, 0.0
    %3586 = vadd.xlane.f32.xlu0 %v3585
    %v3587 = vpop.xlane.xlu0 %3586
    %v3588 = vrcp.pop %v3587
    %v3589 = vmul.f32 %v3584, %v3588
    %v3590 = vpack.c.bf16 %v3589, %v3589
    %3591 = vrot.lane.b32.xlu0 %v3415, 56
    %v3592 = vpop.permute.xlu0 %3591
    %v3594 = vsel %vm260, %v3590, 0
    %v3597 = vsel %vm332, %v3592, 0
    %3599 = vmatprep.subr.bf16.mxu0 0
    %3600 = vmatpush1.bf16.msra.mxu0 %v3597
    %3601 = vmatprep.subr.bf16.mxu0 0
    %3602 = vmatpush1.bf16.msra.mxu0 0
    %3603 = vmatprep.subr.bf16.mxu0 0
    %3604 = vmatpush1.bf16.msra.mxu0 0
    %3605 = vmatprep.subr.bf16.mxu0 0
    %3606 = vmatpush1.bf16.msra.mxu0 0
    %3607 = vmatprep.subr.bf16.mxu0 0
    %3608 = vmatpush1.bf16.msra.mxu0 0
    %3609 = vmatprep.subr.bf16.mxu0 0
    %3610 = vmatpush1.bf16.msra.mxu0 0
    %3611 = vmatprep.subr.bf16.mxu0 0
    %3612 = vmatpush1.bf16.msra.mxu0 0
    %3613 = vmatprep.subr.bf16.mxu0 0
    %3614 = vmatpush1.bf16.msra.mxu0 0
    %3615 = vmatprep.subr.bf16.mxu0 0
    %3616 = vmatpush1.bf16.msra.mxu0 0
    %3617 = vmatprep.subr.bf16.mxu0 0
    %3618 = vmatpush1.bf16.msra.mxu0 0
    %3619 = vmatprep.subr.bf16.mxu0 0
    %3620 = vmatpush1.bf16.msra.mxu0 0
    %3621 = vmatprep.subr.bf16.mxu0 0
    %3622 = vmatpush1.bf16.msra.mxu0 0
    %3623 = vmatprep.subr.bf16.mxu0 0
    %3624 = vmatpush1.bf16.msra.mxu0 0
    %3625 = vmatprep.subr.bf16.mxu0 0
    %3626 = vmatpush1.bf16.msra.mxu0 0
    %3627 = vmatprep.subr.bf16.mxu0 0
    %3628 = vmatpush1.bf16.msra.mxu0 0
    %3629 = vmatprep.subr.bf16.mxu0 0
    %3630 = vmatpush1.bf16.msra.mxu0 0
    %3631 = vmatprep.mubr.bf16.mxu0 0
    %3632 = vmatmul.mubr.bf16.gmra.mrb[0].mxu0 %v3594
    %v3633 = vpop.f32.mrb[0].mxu0
    %v3634 = vadd.f32 0.0, %v3633
    %v3635 = vpop.f32.mrb[0].mxu0
    %v3636 = vpop.f32.mrb[0].mxu0
    %v3637 = vpop.f32.mrb[0].mxu0
    %3638 = vdwg.mxu0
    %3639 = vrot.lane.b32.xlu0 %v3415, 112
    %v3640 = vpop.permute.xlu0 %3639
    %3641 = vrot.lane.b32.xlu0 %v3415, 80
    %v3642 = vpop.permute.xlu0 %3641
    %v3644 = vsel %vm260, %v3640, 0
    %v3647 = vsel %vm260, %v3642, 0
    %3649 = vmatprep.subr.bf16.mxu0 0
    %3650 = vmatpush1.bf16.xpose.msra.mxu0 %v3647
    %3651 = vmatprep.subr.bf16.mxu0 0
    %3652 = vmatpush1.bf16.xpose.msra.mxu0 0
    %3653 = vmatprep.subr.bf16.mxu0 0
    %3654 = vmatpush1.bf16.xpose.msra.mxu0 0
    %3655 = vmatprep.subr.bf16.mxu0 0
    %3656 = vmatpush1.bf16.xpose.msra.mxu0 0
    %3657 = vmatprep.subr.bf16.mxu0 0
    %3658 = vmatpush1.bf16.xpose.msra.mxu0 0
    %3659 = vmatprep.subr.bf16.mxu0 0
    %3660 = vmatpush1.bf16.xpose.msra.mxu0 0
    %3661 = vmatprep.subr.bf16.mxu0 0
    %3662 = vmatpush1.bf16.xpose.msra.mxu0 0
    %3663 = vmatprep.subr.bf16.mxu0 0
    %3664 = vmatpush1.bf16.xpose.msra.mxu0 0
    %3665 = vmatprep.subr.bf16.mxu0 0
    %3666 = vmatpush1.bf16.xpose.msra.mxu0 0
    %3667 = vmatprep.subr.bf16.mxu0 0
    %3668 = vmatpush1.bf16.xpose.msra.mxu0 0
    %3669 = vmatprep.subr.bf16.mxu0 0
    %3670 = vmatpush1.bf16.xpose.msra.mxu0 0
    %3671 = vmatprep.subr.bf16.mxu0 0
    %3672 = vmatpush1.bf16.xpose.msra.mxu0 0
    %3673 = vmatprep.subr.bf16.mxu0 0
    %3674 = vmatpush1.bf16.xpose.msra.mxu0 0
    %3675 = vmatprep.subr.bf16.mxu0 0
    %3676 = vmatpush1.bf16.xpose.msra.mxu0 0
    %3677 = vmatprep.subr.bf16.mxu0 0
    %3678 = vmatpush1.bf16.xpose.msra.mxu0 0
    %3679 = vmatprep.subr.bf16.mxu0 0
    %3680 = vmatpush1.bf16.xpose.msra.mxu0 0
    %3681 = vmatprep.mubr.bf16.mxu0 0
    %3682 = vmatmul.mubr.bf16.gmra.mrb[0].mxu0 %v3644
    %v3683 = vpop.f32.mrb[0].mxu0
    %v3684 = vadd.f32 0.0, %v3683
    %v3685 = vpop.f32.mrb[0].mxu0
    %v3686 = vpop.f32.mrb[0].mxu0
    %v3687 = vpop.f32.mrb[0].mxu0
    %3688 = vdwg.mxu0
    %v3689 = vmul.f32 %v3684, 0.35355338
    %v3690 = vadd.f32 %v3689, %v2878
    %v3691 = vsel %vm260, %v3690, -inf
    %3692 = vmax.xlane.f32.xlu0 %v3691
    %v3693 = vpop.xlane.xlu0 %3692
    %v3694 = vsub.f32 %v3690, %v3693
    %v3695 = vmul.f32 %v3694, 1.442695
    %v3696 = vpow.pop %v3695
    %v3697 = vsel %vm260, %v3696, 0.0
    %3698 = vadd.xlane.f32.xlu0 %v3697
    %v3699 = vpop.xlane.xlu0 %3698
    %v3700 = vrcp.pop %v3699
    %v3701 = vmul.f32 %v3696, %v3700
    %v3702 = vpack.c.bf16 %v3701, %v3701
    %3703 = vrot.lane.b32.xlu0 %v3415, 48
    %v3704 = vpop.permute.xlu0 %3703
    %v3706 = vsel %vm260, %v3702, 0
    %v3709 = vsel %vm332, %v3704, 0
    %3711 = vmatprep.subr.bf16.mxu0 0
    %3712 = vmatpush1.bf16.msra.mxu0 %v3709
    %3713 = vmatprep.subr.bf16.mxu0 0
    %3714 = vmatpush1.bf16.msra.mxu0 0
    %3715 = vmatprep.subr.bf16.mxu0 0
    %3716 = vmatpush1.bf16.msra.mxu0 0
    %3717 = vmatprep.subr.bf16.mxu0 0
    %3718 = vmatpush1.bf16.msra.mxu0 0
    %3719 = vmatprep.subr.bf16.mxu0 0
    %3720 = vmatpush1.bf16.msra.mxu0 0
    %3721 = vmatprep.subr.bf16.mxu0 0
    %3722 = vmatpush1.bf16.msra.mxu0 0
    %3723 = vmatprep.subr.bf16.mxu0 0
    %3724 = vmatpush1.bf16.msra.mxu0 0
    %3725 = vmatprep.subr.bf16.mxu0 0
    %3726 = vmatpush1.bf16.msra.mxu0 0
    %3727 = vmatprep.subr.bf16.mxu0 0
    %3728 = vmatpush1.bf16.msra.mxu0 0
    %3729 = vmatprep.subr.bf16.mxu0 0
    %3730 = vmatpush1.bf16.msra.mxu0 0
    %3731 = vmatprep.subr.bf16.mxu0 0
    %3732 = vmatpush1.bf16.msra.mxu0 0
    %3733 = vmatprep.subr.bf16.mxu0 0
    %3734 = vmatpush1.bf16.msra.mxu0 0
    %3735 = vmatprep.subr.bf16.mxu0 0
    %3736 = vmatpush1.bf16.msra.mxu0 0
    %3737 = vmatprep.subr.bf16.mxu0 0
    %3738 = vmatpush1.bf16.msra.mxu0 0
    %3739 = vmatprep.subr.bf16.mxu0 0
    %3740 = vmatpush1.bf16.msra.mxu0 0
    %3741 = vmatprep.subr.bf16.mxu0 0
    %3742 = vmatpush1.bf16.msra.mxu0 0
    %3743 = vmatprep.mubr.bf16.mxu0 0
    %3744 = vmatmul.mubr.bf16.gmra.mrb[0].mxu0 %v3706
    %v3745 = vpop.f32.mrb[0].mxu0
    %v3746 = vadd.f32 0.0, %v3745
    %v3747 = vpop.f32.mrb[0].mxu0
    %v3748 = vpop.f32.mrb[0].mxu0
    %v3749 = vpop.f32.mrb[0].mxu0
    %3750 = vdwg.mxu0
    %3751 = vrot.lane.b32.xlu0 %v3415, 104
    %v3752 = vpop.permute.xlu0 %3751
    %3753 = vrot.lane.b32.xlu0 %v3415, 72
    %v3754 = vpop.permute.xlu0 %3753
    %v3756 = vsel %vm260, %v3752, 0
    %v3759 = vsel %vm260, %v3754, 0
    %3761 = vmatprep.subr.bf16.mxu0 0
    %3762 = vmatpush1.bf16.xpose.msra.mxu0 %v3759
    %3763 = vmatprep.subr.bf16.mxu0 0
    %3764 = vmatpush1.bf16.xpose.msra.mxu0 0
    %3765 = vmatprep.subr.bf16.mxu0 0
    %3766 = vmatpush1.bf16.xpose.msra.mxu0 0
    %3767 = vmatprep.subr.bf16.mxu0 0
    %3768 = vmatpush1.bf16.xpose.msra.mxu0 0
    %3769 = vmatprep.subr.bf16.mxu0 0
    %3770 = vmatpush1.bf16.xpose.msra.mxu0 0
    %3771 = vmatprep.subr.bf16.mxu0 0
    %3772 = vmatpush1.bf16.xpose.msra.mxu0 0
    %3773 = vmatprep.subr.bf16.mxu0 0
    %3774 = vmatpush1.bf16.xpose.msra.mxu0 0
    %3775 = vmatprep.subr.bf16.mxu0 0
    %3776 = vmatpush1.bf16.xpose.msra.mxu0 0
    %3777 = vmatprep.subr.bf16.mxu0 0
    %3778 = vmatpush1.bf16.xpose.msra.mxu0 0
    %3779 = vmatprep.subr.bf16.mxu0 0
    %3780 = vmatpush1.bf16.xpose.msra.mxu0 0
    %3781 = vmatprep.subr.bf16.mxu0 0
    %3782 = vmatpush1.bf16.xpose.msra.mxu0 0
    %3783 = vmatprep.subr.bf16.mxu0 0
    %3784 = vmatpush1.bf16.xpose.msra.mxu0 0
    %3785 = vmatprep.subr.bf16.mxu0 0
    %3786 = vmatpush1.bf16.xpose.msra.mxu0 0
    %3787 = vmatprep.subr.bf16.mxu0 0
    %3788 = vmatpush1.bf16.xpose.msra.mxu0 0
    %3789 = vmatprep.subr.bf16.mxu0 0
    %3790 = vmatpush1.bf16.xpose.msra.mxu0 0
    %3791 = vmatprep.subr.bf16.mxu0 0
    %3792 = vmatpush1.bf16.xpose.msra.mxu0 0
    %3793 = vmatprep.mubr.bf16.mxu0 0
    %3794 = vmatmul.mubr.bf16.gmra.mrb[0].mxu0 %v3756
    %v3795 = vpop.f32.mrb[0].mxu0
    %v3796 = vadd.f32 0.0, %v3795
    %v3797 = vpop.f32.mrb[0].mxu0
    %v3798 = vpop.f32.mrb[0].mxu0
    %v3799 = vpop.f32.mrb[0].mxu0
    %3800 = vdwg.mxu0
    %v3801 = vmul.f32 %v3796, 0.35355338
    %v3802 = vadd.f32 %v3801, %v2878
    %v3803 = vsel %vm260, %v3802, -inf
    %3804 = vmax.xlane.f32.xlu0 %v3803
    %v3805 = vpop.xlane.xlu0 %3804
    %v3806 = vsub.f32 %v3802, %v3805
    %v3807 = vmul.f32 %v3806, 1.442695
    %v3808 = vpow.pop %v3807
    %v3809 = vsel %vm260, %v3808, 0.0
    %3810 = vadd.xlane.f32.xlu0 %v3809
    %v3811 = vpop.xlane.xlu0 %3810
    %v3812 = vrcp.pop %v3811
    %v3813 = vmul.f32 %v3808, %v3812
    %v3814 = vpack.c.bf16 %v3813, %v3813
    %3815 = vrot.lane.b32.xlu0 %v3415, 40
    %v3816 = vpop.permute.xlu0 %3815
    %v3818 = vsel %vm260, %v3814, 0
    %v3821 = vsel %vm332, %v3816, 0
    %3823 = vmatprep.subr.bf16.mxu0 0
    %3824 = vmatpush1.bf16.msra.mxu0 %v3821
    %3825 = vmatprep.subr.bf16.mxu0 0
    %3826 = vmatpush1.bf16.msra.mxu0 0
    %3827 = vmatprep.subr.bf16.mxu0 0
    %3828 = vmatpush1.bf16.msra.mxu0 0
    %3829 = vmatprep.subr.bf16.mxu0 0
    %3830 = vmatpush1.bf16.msra.mxu0 0
    %3831 = vmatprep.subr.bf16.mxu0 0
    %3832 = vmatpush1.bf16.msra.mxu0 0
    %3833 = vmatprep.subr.bf16.mxu0 0
    %3834 = vmatpush1.bf16.msra.mxu0 0
    %3835 = vmatprep.subr.bf16.mxu0 0
    %3836 = vmatpush1.bf16.msra.mxu0 0
    %3837 = vmatprep.subr.bf16.mxu0 0
    %3838 = vmatpush1.bf16.msra.mxu0 0
    %3839 = vmatprep.subr.bf16.mxu0 0
    %3840 = vmatpush1.bf16.msra.mxu0 0
    %3841 = vmatprep.subr.bf16.mxu0 0
    %3842 = vmatpush1.bf16.msra.mxu0 0
    %3843 = vmatprep.subr.bf16.mxu0 0
    %3844 = vmatpush1.bf16.msra.mxu0 0
    %3845 = vmatprep.subr.bf16.mxu0 0
    %3846 = vmatpush1.bf16.msra.mxu0 0
    %3847 = vmatprep.subr.bf16.mxu0 0
    %3848 = vmatpush1.bf16.msra.mxu0 0
    %3849 = vmatprep.subr.bf16.mxu0 0
    %3850 = vmatpush1.bf16.msra.mxu0 0
    %3851 = vmatprep.subr.bf16.mxu0 0
    %3852 = vmatpush1.bf16.msra.mxu0 0
    %3853 = vmatprep.subr.bf16.mxu0 0
    %3854 = vmatpush1.bf16.msra.mxu0 0
    %3855 = vmatprep.mubr.bf16.mxu0 0
    %3856 = vmatmul.mubr.bf16.gmra.mrb[0].mxu0 %v3818
    %v3857 = vpop.f32.mrb[0].mxu0
    %v3858 = vadd.f32 0.0, %v3857
    %v3859 = vpop.f32.mrb[0].mxu0
    %v3860 = vpop.f32.mrb[0].mxu0
    %v3861 = vpop.f32.mrb[0].mxu0
    %3862 = vdwg.mxu0
    %3864 = vrot.lane.b32.xlu0 %v3634, 8
    %v3865 = vpop.permute.xlu0 %3864
    %3868 = vrot.lane.b32.xlu0 %v3746, 16
    %v3869 = vpop.permute.xlu0 %3868
    %3872 = vrot.lane.b32.xlu0 %v3858, 24
    %v3873 = vpop.permute.xlu0 %3872
    %v3875 = vsel %vm260, %v3522, %v3865
    %v3876 = vsel %vm725, %v3875, %v3869
    %v3877 = vsel %vm727, %v3876, %v3873
    %v3878 = vpack.c.bf16 %v3877, %v3414
    %v3880 = vlaneseq
    %v3881 = vshrl.u32 %v3880, 7
    %v3882 = vsub.s32 0, %v3881
    %v3883 = vrot.slane %v2888, %v3882
    %v3889 = vunpack.c.l.b16 %v2884
    %v3890 = vunpack.c.l.b16 %v2885
    %v3891 = vunpack.c.l.b16 %v2886
    %v3892 = vunpack.c.l.b16 %v2887
    %v3893 = vpack.c.b16 %v3890, %v3889
    %v3894 = vpack.c.b16 %v3892, %v3891
    %v3898 = vsel %vm211, %v3878, 0
    %3900 = vmatprep.subr.bf16.mxu0 0
    %3901 = vmatpush1.bf16.msra.mxu0 %v3893
    %3902 = vmatprep.subr.bf16.mxu0 0
    %3903 = vmatpush1.bf16.msra.mxu0 %v3894
    %3904 = vmatprep.subr.bf16.mxu0 0
    %3905 = vmatpush1.bf16.msra.mxu0 0
    %3906 = vmatprep.subr.bf16.mxu0 0
    %3907 = vmatpush1.bf16.msra.mxu0 0
    %3908 = vmatprep.subr.bf16.mxu0 0
    %3909 = vmatpush1.bf16.msra.mxu0 0
    %3910 = vmatprep.subr.bf16.mxu0 0
    %3911 = vmatpush1.bf16.msra.mxu0 0
    %3912 = vmatprep.subr.bf16.mxu0 0
    %3913 = vmatpush1.bf16.msra.mxu0 0
    %3914 = vmatprep.subr.bf16.mxu0 0
    %3915 = vmatpush1.bf16.msra.mxu0 0
    %3916 = vmatprep.subr.bf16.mxu0 0
    %3917 = vmatpush1.bf16.msra.mxu0 0
    %3918 = vmatprep.subr.bf16.mxu0 0
    %3919 = vmatpush1.bf16.msra.mxu0 0
    %3920 = vmatprep.subr.bf16.mxu0 0
    %3921 = vmatpush1.bf16.msra.mxu0 0
    %3922 = vmatprep.subr.bf16.mxu0 0
    %3923 = vmatpush1.bf16.msra.mxu0 0
    %3924 = vmatprep.subr.bf16.mxu0 0
    %3925 = vmatpush1.bf16.msra.mxu0 0
    %3926 = vmatprep.subr.bf16.mxu0 0
    %3927 = vmatpush1.bf16.msra.mxu0 0
    %3928 = vmatprep.subr.bf16.mxu0 0
    %3929 = vmatpush1.bf16.msra.mxu0 0
    %3930 = vmatprep.subr.bf16.mxu0 0
    %3931 = vmatpush1.bf16.msra.mxu0 0
    %3932 = vmatprep.mubr.bf16.mxu0 0
    %3933 = vmatmul.mubr.bf16.gmra.mrb[0].mxu0 %v3898
    %v3934 = vpop.f32.mrb[0].mxu0
    %v3935 = vadd.f32 %v3883, %v3934
    %v3936 = vpop.f32.mrb[0].mxu0
    %v3937 = vpop.f32.mrb[0].mxu0
    %v3938 = vadd.f32 %v3883, %v3937
    %v3939 = vpop.f32.mrb[0].mxu0
    %3940 = vdwg.mxu0
    %v3941 = vadd.f32 %v177, %v3935
    %v3942 = vadd.f32 %v178, %v3938
    %v3943 = vld [vmem:[%s43] sm:$0x1]
    %v3944 = vld [vmem:[%s45] sm:$0x1]
    %v3945 = vsel %vm211, %v3941, 0.0
    %3946 = vadd.xlane.f32.xlu0 %v3945
    %v3947 = vpop.xlane.xlu0 %3946
    %v3948 = vsel %vm211, %v3942, 0.0
    %3949 = vadd.xlane.f32.xlu0 %v3948
    %v3950 = vpop.xlane.xlu0 %3949
    %v3951 = vmul.f32 %v3947, %v1271
    %v3952 = vmul.f32 %v3950, %v1271
    %v3953 = vsub.f32 %v3941, %v3951
    %v3954 = vsub.f32 %v3942, %v3952
    %v3955 = vmul.f32 %v3953, %v3953
    %v3956 = vmul.f32 %v3954, %v3954
    %v3957 = vsel %vm211, %v3955, 0.0
    %3958 = vadd.xlane.f32.xlu0 %v3957
    %v3959 = vpop.xlane.xlu0 %3958
    %v3960 = vsel %vm211, %v3956, 0.0
    %3961 = vadd.xlane.f32.xlu0 %v3960
    %v3962 = vpop.xlane.xlu0 %3961
    %v3963 = vmul.f32 %v3959, %v1271
    %v3964 = vmul.f32 %v3962, %v1271
    %v3965 = vadd.f32 %v3963, 1e-05
    %v3966 = vadd.f32 %v3964, 1e-05
    %v3967 = vrsqrt.pop %v3965
    %v3968 = vrsqrt.pop %v3966
    %v3969 = vmul.f32 %v3953, %v3967
    %v3970 = vmul.f32 %v3954, %v3968
    %v3972 = vlaneseq
    %v3973 = vshrl.u32 %v3972, 7
    %v3974 = vsub.s32 0, %v3973
    %v3975 = vrot.slane %v3943, %v3974
    %v3977 = vmul.f32 %v3969, %v3975
    %v3978 = vmul.f32 %v3970, %v3975
    %v3980 = vlaneseq
    %v3981 = vshrl.u32 %v3980, 7
    %v3982 = vsub.s32 0, %v3981
    %v3983 = vrot.slane %v3944, %v3982
    %v3985 = vadd.f32 %v3977, %v3983
    %v3986 = vadd.f32 %v3978, %v3983
    %v3987 = vld [vmem:[%s47] sm:$0xf]
    %v3988 = vld [vmem:[%s47 + $0x4] sm:$0xf]
    %v3989 = vld [vmem:[%s47 + $0x8] sm:$0xf]
    %v3990 = vld [vmem:[%s47 + $0xc] sm:$0xf]
    %v3991 = vld [vmem:[%s49] sm:$0x1]
    %v3992 = vld [vmem:[%s51] sm:$0xf]
    %v3993 = vld [vmem:[%s51 + $0x4] sm:$0xf]
    %v3994 = vld [vmem:[%s51 + $0x8] sm:$0xf]
    %v3995 = vld [vmem:[%s51 + $0xc] sm:$0xf]
    %v3996 = vld [vmem:[%s53] sm:$0x1]
    %v3997 = vld [vmem:[%s55] sm:$0xf]
    %v3998 = vld [vmem:[%s55 + $0x4] sm:$0xf]
    %v3999 = vld [vmem:[%s55 + $0x8] sm:$0xf]
    %v4000 = vld [vmem:[%s55 + $0xc] sm:$0xf]
    %v4001 = vld [vmem:[%s57] sm:$0x1]
    %v4002 = vpack.c.bf16 %v3986, %v3985
    %v4004 = vlaneseq
    %v4005 = vshrl.u32 %v4004, 7
    %v4006 = vsub.s32 0, %v4005
    %v4007 = vrot.slane %v3991, %v4006
    %v4013 = vunpack.c.l.b16 %v3987
    %v4014 = vunpack.c.l.b16 %v3988
    %v4015 = vunpack.c.l.b16 %v3989
    %v4016 = vunpack.c.l.b16 %v3990
    %v4017 = vpack.c.b16 %v4014, %v4013
    %v4018 = vpack.c.b16 %v4016, %v4015
    %v4022 = vsel %vm211, %v4002, 0
    %4024 = vmatprep.subr.bf16.mxu0 0
    %4025 = vmatpush1.bf16.msra.mxu0 %v4017
    %4026 = vmatprep.subr.bf16.mxu0 0
    %4027 = vmatpush1.bf16.msra.mxu0 %v4018
    %4028 = vmatprep.subr.bf16.mxu0 0
    %4029 = vmatpush1.bf16.msra.mxu0 0
    %4030 = vmatprep.subr.bf16.mxu0 0
    %4031 = vmatpush1.bf16.msra.mxu0 0
    %4032 = vmatprep.subr.bf16.mxu0 0
    %4033 = vmatpush1.bf16.msra.mxu0 0
    %4034 = vmatprep.subr.bf16.mxu0 0
    %4035 = vmatpush1.bf16.msra.mxu0 0
    %4036 = vmatprep.subr.bf16.mxu0 0
    %4037 = vmatpush1.bf16.msra.mxu0 0
    %4038 = vmatprep.subr.bf16.mxu0 0
    %4039 = vmatpush1.bf16.msra.mxu0 0
    %4040 = vmatprep.subr.bf16.mxu0 0
    %4041 = vmatpush1.bf16.msra.mxu0 0
    %4042 = vmatprep.subr.bf16.mxu0 0
    %4043 = vmatpush1.bf16.msra.mxu0 0
    %4044 = vmatprep.subr.bf16.mxu0 0
    %4045 = vmatpush1.bf16.msra.mxu0 0
    %4046 = vmatprep.subr.bf16.mxu0 0
    %4047 = vmatpush1.bf16.msra.mxu0 0
    %4048 = vmatprep.subr.bf16.mxu0 0
    %4049 = vmatpush1.bf16.msra.mxu0 0
    %4050 = vmatprep.subr.bf16.mxu0 0
    %4051 = vmatpush1.bf16.msra.mxu0 0
    %4052 = vmatprep.subr.bf16.mxu0 0
    %4053 = vmatpush1.bf16.msra.mxu0 0
    %4054 = vmatprep.subr.bf16.mxu0 0
    %4055 = vmatpush1.bf16.msra.mxu0 0
    %4056 = vmatprep.mubr.bf16.mxu0 0
    %4057 = vmatmul.mubr.bf16.gmra.mrb[0].mxu0 %v4022
    %v4058 = vpop.f32.mrb[0].mxu0
    %v4059 = vadd.f32 %v4007, %v4058
    %v4060 = vpop.f32.mrb[0].mxu0
    %v4061 = vpop.f32.mrb[0].mxu0
    %v4062 = vadd.f32 %v4007, %v4061
    %v4063 = vpop.f32.mrb[0].mxu0
    %4064 = vdwg.mxu0
    %v4065 = vpack.c.bf16 %v2872, %v2871
    %v4067 = vlaneseq
    %v4068 = vshrl.u32 %v4067, 7
    %v4069 = vsub.s32 0, %v4068
    %v4070 = vrot.slane %v3996, %v4069
    %v4076 = vunpack.c.l.b16 %v3992
    %v4077 = vunpack.c.l.b16 %v3993
    %v4078 = vunpack.c.l.b16 %v3994
    %v4079 = vunpack.c.l.b16 %v3995
    %v4080 = vpack.c.b16 %v4077, %v4076
    %v4081 = vpack.c.b16 %v4079, %v4078
    %v4085 = vsel %vm211, %v4065, 0
    %4087 = vmatprep.subr.bf16.mxu0 0
    %4088 = vmatpush1.bf16.msra.mxu0 %v4080
    %4089 = vmatprep.subr.bf16.mxu0 0
    %4090 = vmatpush1.bf16.msra.mxu0 %v4081
    %4091 = vmatprep.subr.bf16.mxu0 0
    %4092 = vmatpush1.bf16.msra.mxu0 0
    %4093 = vmatprep.subr.bf16.mxu0 0
    %4094 = vmatpush1.bf16.msra.mxu0 0
    %4095 = vmatprep.subr.bf16.mxu0 0
    %4096 = vmatpush1.bf16.msra.mxu0 0
    %4097 = vmatprep.subr.bf16.mxu0 0
    %4098 = vmatpush1.bf16.msra.mxu0 0
    %4099 = vmatprep.subr.bf16.mxu0 0
    %4100 = vmatpush1.bf16.msra.mxu0 0
    %4101 = vmatprep.subr.bf16.mxu0 0
    %4102 = vmatpush1.bf16.msra.mxu0 0
    %4103 = vmatprep.subr.bf16.mxu0 0
    %4104 = vmatpush1.bf16.msra.mxu0 0
    %4105 = vmatprep.subr.bf16.mxu0 0
    %4106 = vmatpush1.bf16.msra.mxu0 0
    %4107 = vmatprep.subr.bf16.mxu0 0
    %4108 = vmatpush1.bf16.msra.mxu0 0
    %4109 = vmatprep.subr.bf16.mxu0 0
    %4110 = vmatpush1.bf16.msra.mxu0 0
    %4111 = vmatprep.subr.bf16.mxu0 0
    %4112 = vmatpush1.bf16.msra.mxu0 0
    %4113 = vmatprep.subr.bf16.mxu0 0
    %4114 = vmatpush1.bf16.msra.mxu0 0
    %4115 = vmatprep.subr.bf16.mxu0 0
    %4116 = vmatpush1.bf16.msra.mxu0 0
    %4117 = vmatprep.subr.bf16.mxu0 0
    %4118 = vmatpush1.bf16.msra.mxu0 0
    %4119 = vmatprep.mubr.bf16.mxu0 0
    %4120 = vmatmul.mubr.bf16.gmra.mrb[0].mxu0 %v4085
    %v4121 = vpop.f32.mrb[0].mxu0
    %v4122 = vadd.f32 %v4070, %v4121
    %v4123 = vpop.f32.mrb[0].mxu0
    %v4124 = vpop.f32.mrb[0].mxu0
    %v4125 = vadd.f32 %v4070, %v4124
    %v4126 = vpop.f32.mrb[0].mxu0
    %4127 = vdwg.mxu0
    %v4128 = vpack.c.bf16 %v4059, %v4059
    %v4129 = vpack.c.bf16 %v4122, %v4122
    %v4131 = vsel %vm260, %v4128, 0
    %v4134 = vsel %vm260, %v4129, 0
    %4136 = vmatprep.subr.bf16.mxu0 0
    %4137 = vmatpush1.bf16.xpose.msra.mxu0 %v4134
    %4138 = vmatprep.subr.bf16.mxu0 0
    %4139 = vmatpush1.bf16.xpose.msra.mxu0 0
    %4140 = vmatprep.subr.bf16.mxu0 0
    %4141 = vmatpush1.bf16.xpose.msra.mxu0 0
    %4142 = vmatprep.subr.bf16.mxu0 0
    %4143 = vmatpush1.bf16.xpose.msra.mxu0 0
    %4144 = vmatprep.subr.bf16.mxu0 0
    %4145 = vmatpush1.bf16.xpose.msra.mxu0 0
    %4146 = vmatprep.subr.bf16.mxu0 0
    %4147 = vmatpush1.bf16.xpose.msra.mxu0 0
    %4148 = vmatprep.subr.bf16.mxu0 0
    %4149 = vmatpush1.bf16.xpose.msra.mxu0 0
    %4150 = vmatprep.subr.bf16.mxu0 0
    %4151 = vmatpush1.bf16.xpose.msra.mxu0 0
    %4152 = vmatprep.subr.bf16.mxu0 0
    %4153 = vmatpush1.bf16.xpose.msra.mxu0 0
    %4154 = vmatprep.subr.bf16.mxu0 0
    %4155 = vmatpush1.bf16.xpose.msra.mxu0 0
    %4156 = vmatprep.subr.bf16.mxu0 0
    %4157 = vmatpush1.bf16.xpose.msra.mxu0 0
    %4158 = vmatprep.subr.bf16.mxu0 0
    %4159 = vmatpush1.bf16.xpose.msra.mxu0 0
    %4160 = vmatprep.subr.bf16.mxu0 0
    %4161 = vmatpush1.bf16.xpose.msra.mxu0 0
    %4162 = vmatprep.subr.bf16.mxu0 0
    %4163 = vmatpush1.bf16.xpose.msra.mxu0 0
    %4164 = vmatprep.subr.bf16.mxu0 0
    %4165 = vmatpush1.bf16.xpose.msra.mxu0 0
    %4166 = vmatprep.subr.bf16.mxu0 0
    %4167 = vmatpush1.bf16.xpose.msra.mxu0 0
    %4168 = vmatprep.mubr.bf16.mxu0 0
    %4169 = vmatmul.mubr.bf16.gmra.mrb[0].mxu0 %v4131
    %v4170 = vpop.f32.mrb[0].mxu0
    %v4171 = vadd.f32 0.0, %v4170
    %v4172 = vpop.f32.mrb[0].mxu0
    %v4173 = vpop.f32.mrb[0].mxu0
    %v4174 = vpop.f32.mrb[0].mxu0
    %4175 = vdwg.mxu0
    %v4176 = vmul.f32 %v4171, 0.35355338
    %v4177 = vsel %vm260, %v4176, -inf
    %4178 = vmax.xlane.f32.xlu0 %v4177
    %v4179 = vpop.xlane.xlu0 %4178
    %v4180 = vsub.f32 %v4176, %v4179
    %v4181 = vmul.f32 %v4180, 1.442695
    %v4182 = vpow.pop %v4181
    %v4183 = vsel %vm260, %v4182, 0.0
    %4184 = vadd.xlane.f32.xlu0 %v4183
    %v4185 = vpop.xlane.xlu0 %4184
    %v4186 = vrcp.pop %v4185
    %v4187 = vmul.f32 %v4182, %v4186
    %v4188 = vpack.c.bf16 %v4187, %v4187
    %4190 = vrot.lane.b32.xlu0 %v4129, 96
    %v4191 = vpop.permute.xlu0 %4190
    %v4193 = vsel %vm260, %v4188, 0
    %v4196 = vsel %vm332, %v4191, 0
    %4198 = vmatprep.subr.bf16.mxu0 0
    %4199 = vmatpush1.bf16.msra.mxu0 %v4196
    %4200 = vmatprep.subr.bf16.mxu0 0
    %4201 = vmatpush1.bf16.msra.mxu0 0
    %4202 = vmatprep.subr.bf16.mxu0 0
    %4203 = vmatpush1.bf16.msra.mxu0 0
    %4204 = vmatprep.subr.bf16.mxu0 0
    %4205 = vmatpush1.bf16.msra.mxu0 0
    %4206 = vmatprep.subr.bf16.mxu0 0
    %4207 = vmatpush1.bf16.msra.mxu0 0
    %4208 = vmatprep.subr.bf16.mxu0 0
    %4209 = vmatpush1.bf16.msra.mxu0 0
    %4210 = vmatprep.subr.bf16.mxu0 0
    %4211 = vmatpush1.bf16.msra.mxu0 0
    %4212 = vmatprep.subr.bf16.mxu0 0
    %4213 = vmatpush1.bf16.msra.mxu0 0
    %4214 = vmatprep.subr.bf16.mxu0 0
    %4215 = vmatpush1.bf16.msra.mxu0 0
    %4216 = vmatprep.subr.bf16.mxu0 0
    %4217 = vmatpush1.bf16.msra.mxu0 0
    %4218 = vmatprep.subr.bf16.mxu0 0
    %4219 = vmatpush1.bf16.msra.mxu0 0
    %4220 = vmatprep.subr.bf16.mxu0 0
    %4221 = vmatpush1.bf16.msra.mxu0 0
    %4222 = vmatprep.subr.bf16.mxu0 0
    %4223 = vmatpush1.bf16.msra.mxu0 0
    %4224 = vmatprep.subr.bf16.mxu0 0
    %4225 = vmatpush1.bf16.msra.mxu0 0
    %4226 = vmatprep.subr.bf16.mxu0 0
    %4227 = vmatpush1.bf16.msra.mxu0 0
    %4228 = vmatprep.subr.bf16.mxu0 0
    %4229 = vmatpush1.bf16.msra.mxu0 0
    %4230 = vmatprep.mubr.bf16.mxu0 0
    %4231 = vmatmul.mubr.bf16.gmra.mrb[0].mxu0 %v4193
    %v4232 = vpop.f32.mrb[0].mxu0
    %v4233 = vadd.f32 0.0, %v4232
    %v4234 = vpop.f32.mrb[0].mxu0
    %v4235 = vpop.f32.mrb[0].mxu0
    %v4236 = vpop.f32.mrb[0].mxu0
    %4237 = vdwg.mxu0
    %4239 = vrot.lane.b32.xlu0 %v4128, 120
    %v4240 = vpop.permute.xlu0 %4239
    %4241 = vrot.lane.b32.xlu0 %v4129, 120
    %v4242 = vpop.permute.xlu0 %4241
    %v4244 = vsel %vm260, %v4240, 0
    %v4247 = vsel %vm260, %v4242, 0
    %4249 = vmatprep.subr.bf16.mxu0 0
    %4250 = vmatpush1.bf16.xpose.msra.mxu0 %v4247
    %4251 = vmatprep.subr.bf16.mxu0 0
    %4252 = vmatpush1.bf16.xpose.msra.mxu0 0
    %4253 = vmatprep.subr.bf16.mxu0 0
    %4254 = vmatpush1.bf16.xpose.msra.mxu0 0
    %4255 = vmatprep.subr.bf16.mxu0 0
    %4256 = vmatpush1.bf16.xpose.msra.mxu0 0
    %4257 = vmatprep.subr.bf16.mxu0 0
    %4258 = vmatpush1.bf16.xpose.msra.mxu0 0
    %4259 = vmatprep.subr.bf16.mxu0 0
    %4260 = vmatpush1.bf16.xpose.msra.mxu0 0
    %4261 = vmatprep.subr.bf16.mxu0 0
    %4262 = vmatpush1.bf16.xpose.msra.mxu0 0
    %4263 = vmatprep.subr.bf16.mxu0 0
    %4264 = vmatpush1.bf16.xpose.msra.mxu0 0
    %4265 = vmatprep.subr.bf16.mxu0 0
    %4266 = vmatpush1.bf16.xpose.msra.mxu0 0
    %4267 = vmatprep.subr.bf16.mxu0 0
    %4268 = vmatpush1.bf16.xpose.msra.mxu0 0
    %4269 = vmatprep.subr.bf16.mxu0 0
    %4270 = vmatpush1.bf16.xpose.msra.mxu0 0
    %4271 = vmatprep.subr.bf16.mxu0 0
    %4272 = vmatpush1.bf16.xpose.msra.mxu0 0
    %4273 = vmatprep.subr.bf16.mxu0 0
    %4274 = vmatpush1.bf16.xpose.msra.mxu0 0
    %4275 = vmatprep.subr.bf16.mxu0 0
    %4276 = vmatpush1.bf16.xpose.msra.mxu0 0
    %4277 = vmatprep.subr.bf16.mxu0 0
    %4278 = vmatpush1.bf16.xpose.msra.mxu0 0
    %4279 = vmatprep.subr.bf16.mxu0 0
    %4280 = vmatpush1.bf16.xpose.msra.mxu0 0
    %4281 = vmatprep.mubr.bf16.mxu0 0
    %4282 = vmatmul.mubr.bf16.gmra.mrb[0].mxu0 %v4244
    %v4283 = vpop.f32.mrb[0].mxu0
    %v4284 = vadd.f32 0.0, %v4283
    %v4285 = vpop.f32.mrb[0].mxu0
    %v4286 = vpop.f32.mrb[0].mxu0
    %v4287 = vpop.f32.mrb[0].mxu0
    %4288 = vdwg.mxu0
    %v4289 = vmul.f32 %v4284, 0.35355338
    %v4290 = vsel %vm260, %v4289, -inf
    %4291 = vmax.xlane.f32.xlu0 %v4290
    %v4292 = vpop.xlane.xlu0 %4291
    %v4293 = vsub.f32 %v4289, %v4292
    %v4294 = vmul.f32 %v4293, 1.442695
    %v4295 = vpow.pop %v4294
    %v4296 = vsel %vm260, %v4295, 0.0
    %4297 = vadd.xlane.f32.xlu0 %v4296
    %v4298 = vpop.xlane.xlu0 %4297
    %v4299 = vrcp.pop %v4298
    %v4300 = vmul.f32 %v4295, %v4299
    %v4301 = vpack.c.bf16 %v4300, %v4300
    %4302 = vrot.lane.b32.xlu0 %v4129, 88
    %v4303 = vpop.permute.xlu0 %4302
    %v4305 = vsel %vm260, %v4301, 0
    %v4308 = vsel %vm332, %v4303, 0
    %4310 = vmatprep.subr.bf16.mxu0 0
    %4311 = vmatpush1.bf16.msra.mxu0 %v4308
    %4312 = vmatprep.subr.bf16.mxu0 0
    %4313 = vmatpush1.bf16.msra.mxu0 0
    %4314 = vmatprep.subr.bf16.mxu0 0
    %4315 = vmatpush1.bf16.msra.mxu0 0
    %4316 = vmatprep.subr.bf16.mxu0 0
    %4317 = vmatpush1.bf16.msra.mxu0 0
    %4318 = vmatprep.subr.bf16.mxu0 0
    %4319 = vmatpush1.bf16.msra.mxu0 0
    %4320 = vmatprep.subr.bf16.mxu0 0
    %4321 = vmatpush1.bf16.msra.mxu0 0
    %4322 = vmatprep.subr.bf16.mxu0 0
    %4323 = vmatpush1.bf16.msra.mxu0 0
    %4324 = vmatprep.subr.bf16.mxu0 0
    %4325 = vmatpush1.bf16.msra.mxu0 0
    %4326 = vmatprep.subr.bf16.mxu0 0
    %4327 = vmatpush1.bf16.msra.mxu0 0
    %4328 = vmatprep.subr.bf16.mxu0 0
    %4329 = vmatpush1.bf16.msra.mxu0 0
    %4330 = vmatprep.subr.bf16.mxu0 0
    %4331 = vmatpush1.bf16.msra.mxu0 0
    %4332 = vmatprep.subr.bf16.mxu0 0
    %4333 = vmatpush1.bf16.msra.mxu0 0
    %4334 = vmatprep.subr.bf16.mxu0 0
    %4335 = vmatpush1.bf16.msra.mxu0 0
    %4336 = vmatprep.subr.bf16.mxu0 0
    %4337 = vmatpush1.bf16.msra.mxu0 0
    %4338 = vmatprep.subr.bf16.mxu0 0
    %4339 = vmatpush1.bf16.msra.mxu0 0
    %4340 = vmatprep.subr.bf16.mxu0 0
    %4341 = vmatpush1.bf16.msra.mxu0 0
    %4342 = vmatprep.mubr.bf16.mxu0 0
    %4343 = vmatmul.mubr.bf16.gmra.mrb[0].mxu0 %v4305
    %v4344 = vpop.f32.mrb[0].mxu0
    %v4345 = vadd.f32 0.0, %v4344
    %v4346 = vpop.f32.mrb[0].mxu0
    %v4347 = vpop.f32.mrb[0].mxu0
    %v4348 = vpop.f32.mrb[0].mxu0
    %4349 = vdwg.mxu0
    %4350 = vrot.lane.b32.xlu0 %v4128, 112
    %v4351 = vpop.permute.xlu0 %4350
    %4352 = vrot.lane.b32.xlu0 %v4129, 112
    %v4353 = vpop.permute.xlu0 %4352
    %v4355 = vsel %vm260, %v4351, 0
    %v4358 = vsel %vm260, %v4353, 0
    %4360 = vmatprep.subr.bf16.mxu0 0
    %4361 = vmatpush1.bf16.xpose.msra.mxu0 %v4358
    %4362 = vmatprep.subr.bf16.mxu0 0
    %4363 = vmatpush1.bf16.xpose.msra.mxu0 0
    %4364 = vmatprep.subr.bf16.mxu0 0
    %4365 = vmatpush1.bf16.xpose.msra.mxu0 0
    %4366 = vmatprep.subr.bf16.mxu0 0
    %4367 = vmatpush1.bf16.xpose.msra.mxu0 0
    %4368 = vmatprep.subr.bf16.mxu0 0
    %4369 = vmatpush1.bf16.xpose.msra.mxu0 0
    %4370 = vmatprep.subr.bf16.mxu0 0
    %4371 = vmatpush1.bf16.xpose.msra.mxu0 0
    %4372 = vmatprep.subr.bf16.mxu0 0
    %4373 = vmatpush1.bf16.xpose.msra.mxu0 0
    %4374 = vmatprep.subr.bf16.mxu0 0
    %4375 = vmatpush1.bf16.xpose.msra.mxu0 0
    %4376 = vmatprep.subr.bf16.mxu0 0
    %4377 = vmatpush1.bf16.xpose.msra.mxu0 0
    %4378 = vmatprep.subr.bf16.mxu0 0
    %4379 = vmatpush1.bf16.xpose.msra.mxu0 0
    %4380 = vmatprep.subr.bf16.mxu0 0
    %4381 = vmatpush1.bf16.xpose.msra.mxu0 0
    %4382 = vmatprep.subr.bf16.mxu0 0
    %4383 = vmatpush1.bf16.xpose.msra.mxu0 0
    %4384 = vmatprep.subr.bf16.mxu0 0
    %4385 = vmatpush1.bf16.xpose.msra.mxu0 0
    %4386 = vmatprep.subr.bf16.mxu0 0
    %4387 = vmatpush1.bf16.xpose.msra.mxu0 0
    %4388 = vmatprep.subr.bf16.mxu0 0
    %4389 = vmatpush1.bf16.xpose.msra.mxu0 0
    %4390 = vmatprep.subr.bf16.mxu0 0
    %4391 = vmatpush1.bf16.xpose.msra.mxu0 0
    %4392 = vmatprep.mubr.bf16.mxu0 0
    %4393 = vmatmul.mubr.bf16.gmra.mrb[0].mxu0 %v4355
    %v4394 = vpop.f32.mrb[0].mxu0
    %v4395 = vadd.f32 0.0, %v4394
    %v4396 = vpop.f32.mrb[0].mxu0
    %v4397 = vpop.f32.mrb[0].mxu0
    %v4398 = vpop.f32.mrb[0].mxu0
    %4399 = vdwg.mxu0
    %v4400 = vmul.f32 %v4395, 0.35355338
    %v4401 = vsel %vm260, %v4400, -inf
    %4402 = vmax.xlane.f32.xlu0 %v4401
    %v4403 = vpop.xlane.xlu0 %4402
    %v4404 = vsub.f32 %v4400, %v4403
    %v4405 = vmul.f32 %v4404, 1.442695
    %v4406 = vpow.pop %v4405
    %v4407 = vsel %vm260, %v4406, 0.0
    %4408 = vadd.xlane.f32.xlu0 %v4407
    %v4409 = vpop.xlane.xlu0 %4408
    %v4410 = vrcp.pop %v4409
    %v4411 = vmul.f32 %v4406, %v4410
    %v4412 = vpack.c.bf16 %v4411, %v4411
    %4413 = vrot.lane.b32.xlu0 %v4129, 80
    %v4414 = vpop.permute.xlu0 %4413
    %v4416 = vsel %vm260, %v4412, 0
    %v4419 = vsel %vm332, %v4414, 0
    %4421 = vmatprep.subr.bf16.mxu0 0
    %4422 = vmatpush1.bf16.msra.mxu0 %v4419
    %4423 = vmatprep.subr.bf16.mxu0 0
    %4424 = vmatpush1.bf16.msra.mxu0 0
    %4425 = vmatprep.subr.bf16.mxu0 0
    %4426 = vmatpush1.bf16.msra.mxu0 0
    %4427 = vmatprep.subr.bf16.mxu0 0
    %4428 = vmatpush1.bf16.msra.mxu0 0
    %4429 = vmatprep.subr.bf16.mxu0 0
    %4430 = vmatpush1.bf16.msra.mxu0 0
    %4431 = vmatprep.subr.bf16.mxu0 0
    %4432 = vmatpush1.bf16.msra.mxu0 0
    %4433 = vmatprep.subr.bf16.mxu0 0
    %4434 = vmatpush1.bf16.msra.mxu0 0
    %4435 = vmatprep.subr.bf16.mxu0 0
    %4436 = vmatpush1.bf16.msra.mxu0 0
    %4437 = vmatprep.subr.bf16.mxu0 0
    %4438 = vmatpush1.bf16.msra.mxu0 0
    %4439 = vmatprep.subr.bf16.mxu0 0
    %4440 = vmatpush1.bf16.msra.mxu0 0
    %4441 = vmatprep.subr.bf16.mxu0 0
    %4442 = vmatpush1.bf16.msra.mxu0 0
    %4443 = vmatprep.subr.bf16.mxu0 0
    %4444 = vmatpush1.bf16.msra.mxu0 0
    %4445 = vmatprep.subr.bf16.mxu0 0
    %4446 = vmatpush1.bf16.msra.mxu0 0
    %4447 = vmatprep.subr.bf16.mxu0 0
    %4448 = vmatpush1.bf16.msra.mxu0 0
    %4449 = vmatprep.subr.bf16.mxu0 0
    %4450 = vmatpush1.bf16.msra.mxu0 0
    %4451 = vmatprep.subr.bf16.mxu0 0
    %4452 = vmatpush1.bf16.msra.mxu0 0
    %4453 = vmatprep.mubr.bf16.mxu0 0
    %4454 = vmatmul.mubr.bf16.gmra.mrb[0].mxu0 %v4416
    %v4455 = vpop.f32.mrb[0].mxu0
    %v4456 = vadd.f32 0.0, %v4455
    %v4457 = vpop.f32.mrb[0].mxu0
    %v4458 = vpop.f32.mrb[0].mxu0
    %v4459 = vpop.f32.mrb[0].mxu0
    %4460 = vdwg.mxu0
    %4461 = vrot.lane.b32.xlu0 %v4128, 104
    %v4462 = vpop.permute.xlu0 %4461
    %4463 = vrot.lane.b32.xlu0 %v4129, 104
    %v4464 = vpop.permute.xlu0 %4463
    %v4466 = vsel %vm260, %v4462, 0
    %v4469 = vsel %vm260, %v4464, 0
    %4471 = vmatprep.subr.bf16.mxu0 0
    %4472 = vmatpush1.bf16.xpose.msra.mxu0 %v4469
    %4473 = vmatprep.subr.bf16.mxu0 0
    %4474 = vmatpush1.bf16.xpose.msra.mxu0 0
    %4475 = vmatprep.subr.bf16.mxu0 0
    %4476 = vmatpush1.bf16.xpose.msra.mxu0 0
    %4477 = vmatprep.subr.bf16.mxu0 0
    %4478 = vmatpush1.bf16.xpose.msra.mxu0 0
    %4479 = vmatprep.subr.bf16.mxu0 0
    %4480 = vmatpush1.bf16.xpose.msra.mxu0 0
    %4481 = vmatprep.subr.bf16.mxu0 0
    %4482 = vmatpush1.bf16.xpose.msra.mxu0 0
    %4483 = vmatprep.subr.bf16.mxu0 0
    %4484 = vmatpush1.bf16.xpose.msra.mxu0 0
    %4485 = vmatprep.subr.bf16.mxu0 0
    %4486 = vmatpush1.bf16.xpose.msra.mxu0 0
    %4487 = vmatprep.subr.bf16.mxu0 0
    %4488 = vmatpush1.bf16.xpose.msra.mxu0 0
    %4489 = vmatprep.subr.bf16.mxu0 0
    %4490 = vmatpush1.bf16.xpose.msra.mxu0 0
    %4491 = vmatprep.subr.bf16.mxu0 0
    %4492 = vmatpush1.bf16.xpose.msra.mxu0 0
    %4493 = vmatprep.subr.bf16.mxu0 0
    %4494 = vmatpush1.bf16.xpose.msra.mxu0 0
    %4495 = vmatprep.subr.bf16.mxu0 0
    %4496 = vmatpush1.bf16.xpose.msra.mxu0 0
    %4497 = vmatprep.subr.bf16.mxu0 0
    %4498 = vmatpush1.bf16.xpose.msra.mxu0 0
    %4499 = vmatprep.subr.bf16.mxu0 0
    %4500 = vmatpush1.bf16.xpose.msra.mxu0 0
    %4501 = vmatprep.subr.bf16.mxu0 0
    %4502 = vmatpush1.bf16.xpose.msra.mxu0 0
    %4503 = vmatprep.mubr.bf16.mxu0 0
    %4504 = vmatmul.mubr.bf16.gmra.mrb[0].mxu0 %v4466
    %v4505 = vpop.f32.mrb[0].mxu0
    %v4506 = vadd.f32 0.0, %v4505
    %v4507 = vpop.f32.mrb[0].mxu0
    %v4508 = vpop.f32.mrb[0].mxu0
    %v4509 = vpop.f32.mrb[0].mxu0
    %4510 = vdwg.mxu0
    %v4511 = vmul.f32 %v4506, 0.35355338
    %v4512 = vsel %vm260, %v4511, -inf
    %4513 = vmax.xlane.f32.xlu0 %v4512
    %v4514 = vpop.xlane.xlu0 %4513
    %v4515 = vsub.f32 %v4511, %v4514
    %v4516 = vmul.f32 %v4515, 1.442695
    %v4517 = vpow.pop %v4516
    %v4518 = vsel %vm260, %v4517, 0.0
    %4519 = vadd.xlane.f32.xlu0 %v4518
    %v4520 = vpop.xlane.xlu0 %4519
    %v4521 = vrcp.pop %v4520
    %v4522 = vmul.f32 %v4517, %v4521
    %v4523 = vpack.c.bf16 %v4522, %v4522
    %4524 = vrot.lane.b32.xlu0 %v4129, 72
    %v4525 = vpop.permute.xlu0 %4524
    %v4527 = vsel %vm260, %v4523, 0
    %v4530 = vsel %vm332, %v4525, 0
    %4532 = vmatprep.subr.bf16.mxu0 0
    %4533 = vmatpush1.bf16.msra.mxu0 %v4530
    %4534 = vmatprep.subr.bf16.mxu0 0
    %4535 = vmatpush1.bf16.msra.mxu0 0
    %4536 = vmatprep.subr.bf16.mxu0 0
    %4537 = vmatpush1.bf16.msra.mxu0 0
    %4538 = vmatprep.subr.bf16.mxu0 0
    %4539 = vmatpush1.bf16.msra.mxu0 0
    %4540 = vmatprep.subr.bf16.mxu0 0
    %4541 = vmatpush1.bf16.msra.mxu0 0
    %4542 = vmatprep.subr.bf16.mxu0 0
    %4543 = vmatpush1.bf16.msra.mxu0 0
    %4544 = vmatprep.subr.bf16.mxu0 0
    %4545 = vmatpush1.bf16.msra.mxu0 0
    %4546 = vmatprep.subr.bf16.mxu0 0
    %4547 = vmatpush1.bf16.msra.mxu0 0
    %4548 = vmatprep.subr.bf16.mxu0 0
    %4549 = vmatpush1.bf16.msra.mxu0 0
    %4550 = vmatprep.subr.bf16.mxu0 0
    %4551 = vmatpush1.bf16.msra.mxu0 0
    %4552 = vmatprep.subr.bf16.mxu0 0
    %4553 = vmatpush1.bf16.msra.mxu0 0
    %4554 = vmatprep.subr.bf16.mxu0 0
    %4555 = vmatpush1.bf16.msra.mxu0 0
    %4556 = vmatprep.subr.bf16.mxu0 0
    %4557 = vmatpush1.bf16.msra.mxu0 0
    %4558 = vmatprep.subr.bf16.mxu0 0
    %4559 = vmatpush1.bf16.msra.mxu0 0
    %4560 = vmatprep.subr.bf16.mxu0 0
    %4561 = vmatpush1.bf16.msra.mxu0 0
    %4562 = vmatprep.subr.bf16.mxu0 0
    %4563 = vmatpush1.bf16.msra.mxu0 0
    %4564 = vmatprep.mubr.bf16.mxu0 0
    %4565 = vmatmul.mubr.bf16.gmra.mrb[0].mxu0 %v4527
    %v4566 = vpop.f32.mrb[0].mxu0
    %v4567 = vadd.f32 0.0, %v4566
    %v4568 = vpop.f32.mrb[0].mxu0
    %v4569 = vpop.f32.mrb[0].mxu0
    %v4570 = vpop.f32.mrb[0].mxu0
    %4571 = vdwg.mxu0
    %4573 = vrot.lane.b32.xlu0 %v4345, 8
    %v4574 = vpop.permute.xlu0 %4573
    %4577 = vrot.lane.b32.xlu0 %v4456, 16
    %v4578 = vpop.permute.xlu0 %4577
    %4581 = vrot.lane.b32.xlu0 %v4567, 24
    %v4582 = vpop.permute.xlu0 %4581
    %v4584 = vsel %vm260, %v4233, %v4574
    %v4585 = vsel %vm725, %v4584, %v4578
    %v4586 = vsel %vm727, %v4585, %v4582
    %v4587 = vpack.c.bf16 %v4062, %v4062
    %v4588 = vpack.c.bf16 %v4125, %v4125
    %v4590 = vsel %vm260, %v4587, 0
    %v4593 = vsel %vm260, %v4588, 0
    %4595 = vmatprep.subr.bf16.mxu0 0
    %4596 = vmatpush1.bf16.xpose.msra.mxu0 %v4593
    %4597 = vmatprep.subr.bf16.mxu0 0
    %4598 = vmatpush1.bf16.xpose.msra.mxu0 0
    %4599 = vmatprep.subr.bf16.mxu0 0
    %4600 = vmatpush1.bf16.xpose.msra.mxu0 0
    %4601 = vmatprep.subr.bf16.mxu0 0
    %4602 = vmatpush1.bf16.xpose.msra.mxu0 0
    %4603 = vmatprep.subr.bf16.mxu0 0
    %4604 = vmatpush1.bf16.xpose.msra.mxu0 0
    %4605 = vmatprep.subr.bf16.mxu0 0
    %4606 = vmatpush1.bf16.xpose.msra.mxu0 0
    %4607 = vmatprep.subr.bf16.mxu0 0
    %4608 = vmatpush1.bf16.xpose.msra.mxu0 0
    %4609 = vmatprep.subr.bf16.mxu0 0
    %4610 = vmatpush1.bf16.xpose.msra.mxu0 0
    %4611 = vmatprep.subr.bf16.mxu0 0
    %4612 = vmatpush1.bf16.xpose.msra.mxu0 0
    %4613 = vmatprep.subr.bf16.mxu0 0
    %4614 = vmatpush1.bf16.xpose.msra.mxu0 0
    %4615 = vmatprep.subr.bf16.mxu0 0
    %4616 = vmatpush1.bf16.xpose.msra.mxu0 0
    %4617 = vmatprep.subr.bf16.mxu0 0
    %4618 = vmatpush1.bf16.xpose.msra.mxu0 0
    %4619 = vmatprep.subr.bf16.mxu0 0
    %4620 = vmatpush1.bf16.xpose.msra.mxu0 0
    %4621 = vmatprep.subr.bf16.mxu0 0
    %4622 = vmatpush1.bf16.xpose.msra.mxu0 0
    %4623 = vmatprep.subr.bf16.mxu0 0
    %4624 = vmatpush1.bf16.xpose.msra.mxu0 0
    %4625 = vmatprep.subr.bf16.mxu0 0
    %4626 = vmatpush1.bf16.xpose.msra.mxu0 0
    %4627 = vmatprep.mubr.bf16.mxu0 0
    %4628 = vmatmul.mubr.bf16.gmra.mrb[0].mxu0 %v4590
    %v4629 = vpop.f32.mrb[0].mxu0
    %v4630 = vadd.f32 0.0, %v4629
    %v4631 = vpop.f32.mrb[0].mxu0
    %v4632 = vpop.f32.mrb[0].mxu0
    %v4633 = vpop.f32.mrb[0].mxu0
    %4634 = vdwg.mxu0
    %v4635 = vmul.f32 %v4630, 0.35355338
    %v4636 = vsel %vm260, %v4635, -inf
    %4637 = vmax.xlane.f32.xlu0 %v4636
    %v4638 = vpop.xlane.xlu0 %4637
    %v4639 = vsub.f32 %v4635, %v4638
    %v4640 = vmul.f32 %v4639, 1.442695
    %v4641 = vpow.pop %v4640
    %v4642 = vsel %vm260, %v4641, 0.0
    %4643 = vadd.xlane.f32.xlu0 %v4642
    %v4644 = vpop.xlane.xlu0 %4643
    %v4645 = vrcp.pop %v4644
    %v4646 = vmul.f32 %v4641, %v4645
    %v4647 = vpack.c.bf16 %v4646, %v4646
    %4649 = vrot.lane.b32.xlu0 %v4588, 96
    %v4650 = vpop.permute.xlu0 %4649
    %v4652 = vsel %vm260, %v4647, 0
    %v4655 = vsel %vm332, %v4650, 0
    %4657 = vmatprep.subr.bf16.mxu0 0
    %4658 = vmatpush1.bf16.msra.mxu0 %v4655
    %4659 = vmatprep.subr.bf16.mxu0 0
    %4660 = vmatpush1.bf16.msra.mxu0 0
    %4661 = vmatprep.subr.bf16.mxu0 0
    %4662 = vmatpush1.bf16.msra.mxu0 0
    %4663 = vmatprep.subr.bf16.mxu0 0
    %4664 = vmatpush1.bf16.msra.mxu0 0
    %4665 = vmatprep.subr.bf16.mxu0 0
    %4666 = vmatpush1.bf16.msra.mxu0 0
    %4667 = vmatprep.subr.bf16.mxu0 0
    %4668 = vmatpush1.bf16.msra.mxu0 0
    %4669 = vmatprep.subr.bf16.mxu0 0
    %4670 = vmatpush1.bf16.msra.mxu0 0
    %4671 = vmatprep.subr.bf16.mxu0 0
    %4672 = vmatpush1.bf16.msra.mxu0 0
    %4673 = vmatprep.subr.bf16.mxu0 0
    %4674 = vmatpush1.bf16.msra.mxu0 0
    %4675 = vmatprep.subr.bf16.mxu0 0
    %4676 = vmatpush1.bf16.msra.mxu0 0
    %4677 = vmatprep.subr.bf16.mxu0 0
    %4678 = vmatpush1.bf16.msra.mxu0 0
    %4679 = vmatprep.subr.bf16.mxu0 0
    %4680 = vmatpush1.bf16.msra.mxu0 0
    %4681 = vmatprep.subr.bf16.mxu0 0
    %4682 = vmatpush1.bf16.msra.mxu0 0
    %4683 = vmatprep.subr.bf16.mxu0 0
    %4684 = vmatpush1.bf16.msra.mxu0 0
    %4685 = vmatprep.subr.bf16.mxu0 0
    %4686 = vmatpush1.bf16.msra.mxu0 0
    %4687 = vmatprep.subr.bf16.mxu0 0
    %4688 = vmatpush1.bf16.msra.mxu0 0
    %4689 = vmatprep.mubr.bf16.mxu0 0
    %4690 = vmatmul.mubr.bf16.gmra.mrb[0].mxu0 %v4652
    %v4691 = vpop.f32.mrb[0].mxu0
    %v4692 = vadd.f32 0.0, %v4691
    %v4693 = vpop.f32.mrb[0].mxu0
    %v4694 = vpop.f32.mrb[0].mxu0
    %v4695 = vpop.f32.mrb[0].mxu0
    %4696 = vdwg.mxu0
    %4698 = vrot.lane.b32.xlu0 %v4587, 120
    %v4699 = vpop.permute.xlu0 %4698
    %4700 = vrot.lane.b32.xlu0 %v4588, 120
    %v4701 = vpop.permute.xlu0 %4700
    %v4703 = vsel %vm260, %v4699, 0
    %v4706 = vsel %vm260, %v4701, 0
    %4708 = vmatprep.subr.bf16.mxu0 0
    %4709 = vmatpush1.bf16.xpose.msra.mxu0 %v4706
    %4710 = vmatprep.subr.bf16.mxu0 0
    %4711 = vmatpush1.bf16.xpose.msra.mxu0 0
    %4712 = vmatprep.subr.bf16.mxu0 0
    %4713 = vmatpush1.bf16.xpose.msra.mxu0 0
    %4714 = vmatprep.subr.bf16.mxu0 0
    %4715 = vmatpush1.bf16.xpose.msra.mxu0 0
    %4716 = vmatprep.subr.bf16.mxu0 0
    %4717 = vmatpush1.bf16.xpose.msra.mxu0 0
    %4718 = vmatprep.subr.bf16.mxu0 0
    %4719 = vmatpush1.bf16.xpose.msra.mxu0 0
    %4720 = vmatprep.subr.bf16.mxu0 0
    %4721 = vmatpush1.bf16.xpose.msra.mxu0 0
    %4722 = vmatprep.subr.bf16.mxu0 0
    %4723 = vmatpush1.bf16.xpose.msra.mxu0 0
    %4724 = vmatprep.subr.bf16.mxu0 0
    %4725 = vmatpush1.bf16.xpose.msra.mxu0 0
    %4726 = vmatprep.subr.bf16.mxu0 0
    %4727 = vmatpush1.bf16.xpose.msra.mxu0 0
    %4728 = vmatprep.subr.bf16.mxu0 0
    %4729 = vmatpush1.bf16.xpose.msra.mxu0 0
    %4730 = vmatprep.subr.bf16.mxu0 0
    %4731 = vmatpush1.bf16.xpose.msra.mxu0 0
    %4732 = vmatprep.subr.bf16.mxu0 0
    %4733 = vmatpush1.bf16.xpose.msra.mxu0 0
    %4734 = vmatprep.subr.bf16.mxu0 0
    %4735 = vmatpush1.bf16.xpose.msra.mxu0 0
    %4736 = vmatprep.subr.bf16.mxu0 0
    %4737 = vmatpush1.bf16.xpose.msra.mxu0 0
    %4738 = vmatprep.subr.bf16.mxu0 0
    %4739 = vmatpush1.bf16.xpose.msra.mxu0 0
    %4740 = vmatprep.mubr.bf16.mxu0 0
    %4741 = vmatmul.mubr.bf16.gmra.mrb[0].mxu0 %v4703
    %v4742 = vpop.f32.mrb[0].mxu0
    %v4743 = vadd.f32 0.0, %v4742
    %v4744 = vpop.f32.mrb[0].mxu0
    %v4745 = vpop.f32.mrb[0].mxu0
    %v4746 = vpop.f32.mrb[0].mxu0
    %4747 = vdwg.mxu0
    %v4748 = vmul.f32 %v4743, 0.35355338
    %v4749 = vsel %vm260, %v4748, -inf
    %4750 = vmax.xlane.f32.xlu0 %v4749
    %v4751 = vpop.xlane.xlu0 %4750
    %v4752 = vsub.f32 %v4748, %v4751
    %v4753 = vmul.f32 %v4752, 1.442695
    %v4754 = vpow.pop %v4753
    %v4755 = vsel %vm260, %v4754, 0.0
    %4756 = vadd.xlane.f32.xlu0 %v4755
    %v4757 = vpop.xlane.xlu0 %4756
    %v4758 = vrcp.pop %v4757
    %v4759 = vmul.f32 %v4754, %v4758
    %v4760 = vpack.c.bf16 %v4759, %v4759
    %4761 = vrot.lane.b32.xlu0 %v4588, 88
    %v4762 = vpop.permute.xlu0 %4761
    %v4764 = vsel %vm260, %v4760, 0
    %v4767 = vsel %vm332, %v4762, 0
    %4769 = vmatprep.subr.bf16.mxu0 0
    %4770 = vmatpush1.bf16.msra.mxu0 %v4767
    %4771 = vmatprep.subr.bf16.mxu0 0
    %4772 = vmatpush1.bf16.msra.mxu0 0
    %4773 = vmatprep.subr.bf16.mxu0 0
    %4774 = vmatpush1.bf16.msra.mxu0 0
    %4775 = vmatprep.subr.bf16.mxu0 0
    %4776 = vmatpush1.bf16.msra.mxu0 0
    %4777 = vmatprep.subr.bf16.mxu0 0
    %4778 = vmatpush1.bf16.msra.mxu0 0
    %4779 = vmatprep.subr.bf16.mxu0 0
    %4780 = vmatpush1.bf16.msra.mxu0 0
    %4781 = vmatprep.subr.bf16.mxu0 0
    %4782 = vmatpush1.bf16.msra.mxu0 0
    %4783 = vmatprep.subr.bf16.mxu0 0
    %4784 = vmatpush1.bf16.msra.mxu0 0
    %4785 = vmatprep.subr.bf16.mxu0 0
    %4786 = vmatpush1.bf16.msra.mxu0 0
    %4787 = vmatprep.subr.bf16.mxu0 0
    %4788 = vmatpush1.bf16.msra.mxu0 0
    %4789 = vmatprep.subr.bf16.mxu0 0
    %4790 = vmatpush1.bf16.msra.mxu0 0
    %4791 = vmatprep.subr.bf16.mxu0 0
    %4792 = vmatpush1.bf16.msra.mxu0 0
    %4793 = vmatprep.subr.bf16.mxu0 0
    %4794 = vmatpush1.bf16.msra.mxu0 0
    %4795 = vmatprep.subr.bf16.mxu0 0
    %4796 = vmatpush1.bf16.msra.mxu0 0
    %4797 = vmatprep.subr.bf16.mxu0 0
    %4798 = vmatpush1.bf16.msra.mxu0 0
    %4799 = vmatprep.subr.bf16.mxu0 0
    %4800 = vmatpush1.bf16.msra.mxu0 0
    %4801 = vmatprep.mubr.bf16.mxu0 0
    %4802 = vmatmul.mubr.bf16.gmra.mrb[0].mxu0 %v4764
    %v4803 = vpop.f32.mrb[0].mxu0
    %v4804 = vadd.f32 0.0, %v4803
    %v4805 = vpop.f32.mrb[0].mxu0
    %v4806 = vpop.f32.mrb[0].mxu0
    %v4807 = vpop.f32.mrb[0].mxu0
    %4808 = vdwg.mxu0
    %4809 = vrot.lane.b32.xlu0 %v4587, 112
    %v4810 = vpop.permute.xlu0 %4809
    %4811 = vrot.lane.b32.xlu0 %v4588, 112
    %v4812 = vpop.permute.xlu0 %4811
    %v4814 = vsel %vm260, %v4810, 0
    %v4817 = vsel %vm260, %v4812, 0
    %4819 = vmatprep.subr.bf16.mxu0 0
    %4820 = vmatpush1.bf16.xpose.msra.mxu0 %v4817
    %4821 = vmatprep.subr.bf16.mxu0 0
    %4822 = vmatpush1.bf16.xpose.msra.mxu0 0
    %4823 = vmatprep.subr.bf16.mxu0 0
    %4824 = vmatpush1.bf16.xpose.msra.mxu0 0
    %4825 = vmatprep.subr.bf16.mxu0 0
    %4826 = vmatpush1.bf16.xpose.msra.mxu0 0
    %4827 = vmatprep.subr.bf16.mxu0 0
    %4828 = vmatpush1.bf16.xpose.msra.mxu0 0
    %4829 = vmatprep.subr.bf16.mxu0 0
    %4830 = vmatpush1.bf16.xpose.msra.mxu0 0
    %4831 = vmatprep.subr.bf16.mxu0 0
    %4832 = vmatpush1.bf16.xpose.msra.mxu0 0
    %4833 = vmatprep.subr.bf16.mxu0 0
    %4834 = vmatpush1.bf16.xpose.msra.mxu0 0
    %4835 = vmatprep.subr.bf16.mxu0 0
    %4836 = vmatpush1.bf16.xpose.msra.mxu0 0
    %4837 = vmatprep.subr.bf16.mxu0 0
    %4838 = vmatpush1.bf16.xpose.msra.mxu0 0
    %4839 = vmatprep.subr.bf16.mxu0 0
    %4840 = vmatpush1.bf16.xpose.msra.mxu0 0
    %4841 = vmatprep.subr.bf16.mxu0 0
    %4842 = vmatpush1.bf16.xpose.msra.mxu0 0
    %4843 = vmatprep.subr.bf16.mxu0 0
    %4844 = vmatpush1.bf16.xpose.msra.mxu0 0
    %4845 = vmatprep.subr.bf16.mxu0 0
    %4846 = vmatpush1.bf16.xpose.msra.mxu0 0
    %4847 = vmatprep.subr.bf16.mxu0 0
    %4848 = vmatpush1.bf16.xpose.msra.mxu0 0
    %4849 = vmatprep.subr.bf16.mxu0 0
    %4850 = vmatpush1.bf16.xpose.msra.mxu0 0
    %4851 = vmatprep.mubr.bf16.mxu0 0
    %4852 = vmatmul.mubr.bf16.gmra.mrb[0].mxu0 %v4814
    %v4853 = vpop.f32.mrb[0].mxu0
    %v4854 = vadd.f32 0.0, %v4853
    %v4855 = vpop.f32.mrb[0].mxu0
    %v4856 = vpop.f32.mrb[0].mxu0
    %v4857 = vpop.f32.mrb[0].mxu0
    %4858 = vdwg.mxu0
    %v4859 = vmul.f32 %v4854, 0.35355338
    %v4860 = vsel %vm260, %v4859, -inf
    %4861 = vmax.xlane.f32.xlu0 %v4860
    %v4862 = vpop.xlane.xlu0 %4861
    %v4863 = vsub.f32 %v4859, %v4862
    %v4864 = vmul.f32 %v4863, 1.442695
    %v4865 = vpow.pop %v4864
    %v4866 = vsel %vm260, %v4865, 0.0
    %4867 = vadd.xlane.f32.xlu0 %v4866
    %v4868 = vpop.xlane.xlu0 %4867
    %v4869 = vrcp.pop %v4868
    %v4870 = vmul.f32 %v4865, %v4869
    %v4871 = vpack.c.bf16 %v4870, %v4870
    %4872 = vrot.lane.b32.xlu0 %v4588, 80
    %v4873 = vpop.permute.xlu0 %4872
    %v4875 = vsel %vm260, %v4871, 0
    %v4878 = vsel %vm332, %v4873, 0
    %4880 = vmatprep.subr.bf16.mxu0 0
    %4881 = vmatpush1.bf16.msra.mxu0 %v4878
    %4882 = vmatprep.subr.bf16.mxu0 0
    %4883 = vmatpush1.bf16.msra.mxu0 0
    %4884 = vmatprep.subr.bf16.mxu0 0
    %4885 = vmatpush1.bf16.msra.mxu0 0
    %4886 = vmatprep.subr.bf16.mxu0 0
    %4887 = vmatpush1.bf16.msra.mxu0 0
    %4888 = vmatprep.subr.bf16.mxu0 0
    %4889 = vmatpush1.bf16.msra.mxu0 0
    %4890 = vmatprep.subr.bf16.mxu0 0
    %4891 = vmatpush1.bf16.msra.mxu0 0
    %4892 = vmatprep.subr.bf16.mxu0 0
    %4893 = vmatpush1.bf16.msra.mxu0 0
    %4894 = vmatprep.subr.bf16.mxu0 0
    %4895 = vmatpush1.bf16.msra.mxu0 0
    %4896 = vmatprep.subr.bf16.mxu0 0
    %4897 = vmatpush1.bf16.msra.mxu0 0
    %4898 = vmatprep.subr.bf16.mxu0 0
    %4899 = vmatpush1.bf16.msra.mxu0 0
    %4900 = vmatprep.subr.bf16.mxu0 0
    %4901 = vmatpush1.bf16.msra.mxu0 0
    %4902 = vmatprep.subr.bf16.mxu0 0
    %4903 = vmatpush1.bf16.msra.mxu0 0
    %4904 = vmatprep.subr.bf16.mxu0 0
    %4905 = vmatpush1.bf16.msra.mxu0 0
    %4906 = vmatprep.subr.bf16.mxu0 0
    %4907 = vmatpush1.bf16.msra.mxu0 0
    %4908 = vmatprep.subr.bf16.mxu0 0
    %4909 = vmatpush1.bf16.msra.mxu0 0
    %4910 = vmatprep.subr.bf16.mxu0 0
    %4911 = vmatpush1.bf16.msra.mxu0 0
    %4912 = vmatprep.mubr.bf16.mxu0 0
    %4913 = vmatmul.mubr.bf16.gmra.mrb[0].mxu0 %v4875
    %v4914 = vpop.f32.mrb[0].mxu0
    %v4915 = vadd.f32 0.0, %v4914
    %v4916 = vpop.f32.mrb[0].mxu0
    %v4917 = vpop.f32.mrb[0].mxu0
    %v4918 = vpop.f32.mrb[0].mxu0
    %4919 = vdwg.mxu0
    %4920 = vrot.lane.b32.xlu0 %v4587, 104
    %v4921 = vpop.permute.xlu0 %4920
    %4922 = vrot.lane.b32.xlu0 %v4588, 104
    %v4923 = vpop.permute.xlu0 %4922
    %v4925 = vsel %vm260, %v4921, 0
    %v4928 = vsel %vm260, %v4923, 0
    %4930 = vmatprep.subr.bf16.mxu0 0
    %4931 = vmatpush1.bf16.xpose.msra.mxu0 %v4928
    %4932 = vmatprep.subr.bf16.mxu0 0
    %4933 = vmatpush1.bf16.xpose.msra.mxu0 0
    %4934 = vmatprep.subr.bf16.mxu0 0
    %4935 = vmatpush1.bf16.xpose.msra.mxu0 0
    %4936 = vmatprep.subr.bf16.mxu0 0
    %4937 = vmatpush1.bf16.xpose.msra.mxu0 0
    %4938 = vmatprep.subr.bf16.mxu0 0
    %4939 = vmatpush1.bf16.xpose.msra.mxu0 0
    %4940 = vmatprep.subr.bf16.mxu0 0
    %4941 = vmatpush1.bf16.xpose.msra.mxu0 0
    %4942 = vmatprep.subr.bf16.mxu0 0
    %4943 = vmatpush1.bf16.xpose.msra.mxu0 0
    %4944 = vmatprep.subr.bf16.mxu0 0
    %4945 = vmatpush1.bf16.xpose.msra.mxu0 0
    %4946 = vmatprep.subr.bf16.mxu0 0
    %4947 = vmatpush1.bf16.xpose.msra.mxu0 0
    %4948 = vmatprep.subr.bf16.mxu0 0
    %4949 = vmatpush1.bf16.xpose.msra.mxu0 0
    %4950 = vmatprep.subr.bf16.mxu0 0
    %4951 = vmatpush1.bf16.xpose.msra.mxu0 0
    %4952 = vmatprep.subr.bf16.mxu0 0
    %4953 = vmatpush1.bf16.xpose.msra.mxu0 0
    %4954 = vmatprep.subr.bf16.mxu0 0
    %4955 = vmatpush1.bf16.xpose.msra.mxu0 0
    %4956 = vmatprep.subr.bf16.mxu0 0
    %4957 = vmatpush1.bf16.xpose.msra.mxu0 0
    %4958 = vmatprep.subr.bf16.mxu0 0
    %4959 = vmatpush1.bf16.xpose.msra.mxu0 0
    %4960 = vmatprep.subr.bf16.mxu0 0
    %4961 = vmatpush1.bf16.xpose.msra.mxu0 0
    %4962 = vmatprep.mubr.bf16.mxu0 0
    %4963 = vmatmul.mubr.bf16.gmra.mrb[0].mxu0 %v4925
    %v4964 = vpop.f32.mrb[0].mxu0
    %v4965 = vadd.f32 0.0, %v4964
    %v4966 = vpop.f32.mrb[0].mxu0
    %v4967 = vpop.f32.mrb[0].mxu0
    %v4968 = vpop.f32.mrb[0].mxu0
    %4969 = vdwg.mxu0
    %v4970 = vmul.f32 %v4965, 0.35355338
    %v4971 = vsel %vm260, %v4970, -inf
    %4972 = vmax.xlane.f32.xlu0 %v4971
    %v4973 = vpop.xlane.xlu0 %4972
    %v4974 = vsub.f32 %v4970, %v4973
    %v4975 = vmul.f32 %v4974, 1.442695
    %v4976 = vpow.pop %v4975
    %v4977 = vsel %vm260, %v4976, 0.0
    %4978 = vadd.xlane.f32.xlu0 %v4977
    %v4979 = vpop.xlane.xlu0 %4978
    %v4980 = vrcp.pop %v4979
    %v4981 = vmul.f32 %v4976, %v4980
    %v4982 = vpack.c.bf16 %v4981, %v4981
    %4983 = vrot.lane.b32.xlu0 %v4588, 72
    %v4984 = vpop.permute.xlu0 %4983
    %v4986 = vsel %vm260, %v4982, 0
    %v4989 = vsel %vm332, %v4984, 0
    %4991 = vmatprep.subr.bf16.mxu0 0
    %4992 = vmatpush1.bf16.msra.mxu0 %v4989
    %4993 = vmatprep.subr.bf16.mxu0 0
    %4994 = vmatpush1.bf16.msra.mxu0 0
    %4995 = vmatprep.subr.bf16.mxu0 0
    %4996 = vmatpush1.bf16.msra.mxu0 0
    %4997 = vmatprep.subr.bf16.mxu0 0
    %4998 = vmatpush1.bf16.msra.mxu0 0
    %4999 = vmatprep.subr.bf16.mxu0 0
    %5000 = vmatpush1.bf16.msra.mxu0 0
    %5001 = vmatprep.subr.bf16.mxu0 0
    %5002 = vmatpush1.bf16.msra.mxu0 0
    %5003 = vmatprep.subr.bf16.mxu0 0
    %5004 = vmatpush1.bf16.msra.mxu0 0
    %5005 = vmatprep.subr.bf16.mxu0 0
    %5006 = vmatpush1.bf16.msra.mxu0 0
    %5007 = vmatprep.subr.bf16.mxu0 0
    %5008 = vmatpush1.bf16.msra.mxu0 0
    %5009 = vmatprep.subr.bf16.mxu0 0
    %5010 = vmatpush1.bf16.msra.mxu0 0
    %5011 = vmatprep.subr.bf16.mxu0 0
    %5012 = vmatpush1.bf16.msra.mxu0 0
    %5013 = vmatprep.subr.bf16.mxu0 0
    %5014 = vmatpush1.bf16.msra.mxu0 0
    %5015 = vmatprep.subr.bf16.mxu0 0
    %5016 = vmatpush1.bf16.msra.mxu0 0
    %5017 = vmatprep.subr.bf16.mxu0 0
    %5018 = vmatpush1.bf16.msra.mxu0 0
    %5019 = vmatprep.subr.bf16.mxu0 0
    %5020 = vmatpush1.bf16.msra.mxu0 0
    %5021 = vmatprep.subr.bf16.mxu0 0
    %5022 = vmatpush1.bf16.msra.mxu0 0
    %5023 = vmatprep.mubr.bf16.mxu0 0
    %5024 = vmatmul.mubr.bf16.gmra.mrb[0].mxu0 %v4986
    %v5025 = vpop.f32.mrb[0].mxu0
    %v5026 = vadd.f32 0.0, %v5025
    %v5027 = vpop.f32.mrb[0].mxu0
    %v5028 = vpop.f32.mrb[0].mxu0
    %v5029 = vpop.f32.mrb[0].mxu0
    %5030 = vdwg.mxu0
    %5032 = vrot.lane.b32.xlu0 %v4804, 8
    %v5033 = vpop.permute.xlu0 %5032
    %5036 = vrot.lane.b32.xlu0 %v4915, 16
    %v5037 = vpop.permute.xlu0 %5036
    %5040 = vrot.lane.b32.xlu0 %v5026, 24
    %v5041 = vpop.permute.xlu0 %5040
    %v5043 = vsel %vm260, %v4692, %v5033
    %v5044 = vsel %vm725, %v5043, %v5037
    %v5045 = vsel %vm727, %v5044, %v5041
    %v5046 = vpack.c.bf16 %v5045, %v4586
    %v5048 = vlaneseq
    %v5049 = vshrl.u32 %v5048, 7
    %v5050 = vsub.s32 0, %v5049
    %v5051 = vrot.slane %v4001, %v5050
    %v5057 = vunpack.c.l.b16 %v3997
    %v5058 = vunpack.c.l.b16 %v3998
    %v5059 = vunpack.c.l.b16 %v3999
    %v5060 = vunpack.c.l.b16 %v4000
    %v5061 = vpack.c.b16 %v5058, %v5057
    %v5062 = vpack.c.b16 %v5060, %v5059
    %v5066 = vsel %vm211, %v5046, 0
    %5068 = vmatprep.subr.bf16.mxu0 0
    %5069 = vmatpush1.bf16.msra.mxu0 %v5061
    %5070 = vmatprep.subr.bf16.mxu0 0
    %5071 = vmatpush1.bf16.msra.mxu0 %v5062
    %5072 = vmatprep.subr.bf16.mxu0 0
    %5073 = vmatpush1.bf16.msra.mxu0 0
    %5074 = vmatprep.subr.bf16.mxu0 0
    %5075 = vmatpush1.bf16.msra.mxu0 0
    %5076 = vmatprep.subr.bf16.mxu0 0
    %5077 = vmatpush1.bf16.msra.mxu0 0
    %5078 = vmatprep.subr.bf16.mxu0 0
    %5079 = vmatpush1.bf16.msra.mxu0 0
    %5080 = vmatprep.subr.bf16.mxu0 0
    %5081 = vmatpush1.bf16.msra.mxu0 0
    %5082 = vmatprep.subr.bf16.mxu0 0
    %5083 = vmatpush1.bf16.msra.mxu0 0
    %5084 = vmatprep.subr.bf16.mxu0 0
    %5085 = vmatpush1.bf16.msra.mxu0 0
    %5086 = vmatprep.subr.bf16.mxu0 0
    %5087 = vmatpush1.bf16.msra.mxu0 0
    %5088 = vmatprep.subr.bf16.mxu0 0
    %5089 = vmatpush1.bf16.msra.mxu0 0
    %5090 = vmatprep.subr.bf16.mxu0 0
    %5091 = vmatpush1.bf16.msra.mxu0 0
    %5092 = vmatprep.subr.bf16.mxu0 0
    %5093 = vmatpush1.bf16.msra.mxu0 0
    %5094 = vmatprep.subr.bf16.mxu0 0
    %5095 = vmatpush1.bf16.msra.mxu0 0
    %5096 = vmatprep.subr.bf16.mxu0 0
    %5097 = vmatpush1.bf16.msra.mxu0 0
    %5098 = vmatprep.subr.bf16.mxu0 0
    %5099 = vmatpush1.bf16.msra.mxu0 0
    %5100 = vmatprep.mubr.bf16.mxu0 0
    %5101 = vmatmul.mubr.bf16.gmra.mrb[0].mxu0 %v5066
    %v5102 = vpop.f32.mrb[0].mxu0
    %v5103 = vadd.f32 %v5051, %v5102
    %v5104 = vpop.f32.mrb[0].mxu0
    %v5105 = vpop.f32.mrb[0].mxu0
    %v5106 = vadd.f32 %v5051, %v5105
    %v5107 = vpop.f32.mrb[0].mxu0
    %5108 = vdwg.mxu0
    %v5109 = vadd.f32 %v3985, %v5103
    %v5110 = vadd.f32 %v3986, %v5106
    %v5111 = vld [vmem:[%s59] sm:$0x1]
    %v5112 = vld [vmem:[%s61] sm:$0x1]
    %v5113 = vsel %vm211, %v5109, 0.0
    %5114 = vadd.xlane.f32.xlu0 %v5113
    %v5115 = vpop.xlane.xlu0 %5114
    %v5116 = vsel %vm211, %v5110, 0.0
    %5117 = vadd.xlane.f32.xlu0 %v5116
    %v5118 = vpop.xlane.xlu0 %5117
    %v5119 = vmul.f32 %v5115, %v1271
    %v5120 = vmul.f32 %v5118, %v1271
    %v5121 = vsub.f32 %v5109, %v5119
    %v5122 = vsub.f32 %v5110, %v5120
    %v5123 = vmul.f32 %v5121, %v5121
    %v5124 = vmul.f32 %v5122, %v5122
    %v5125 = vsel %vm211, %v5123, 0.0
    %5126 = vadd.xlane.f32.xlu0 %v5125
    %v5127 = vpop.xlane.xlu0 %5126
    %v5128 = vsel %vm211, %v5124, 0.0
    %5129 = vadd.xlane.f32.xlu0 %v5128
    %v5130 = vpop.xlane.xlu0 %5129
    %v5131 = vmul.f32 %v5127, %v1271
    %v5132 = vmul.f32 %v5130, %v1271
    %v5133 = vadd.f32 %v5131, 1e-05
    %v5134 = vadd.f32 %v5132, 1e-05
    %v5135 = vrsqrt.pop %v5133
    %v5136 = vrsqrt.pop %v5134
    %v5137 = vmul.f32 %v5121, %v5135
    %v5138 = vmul.f32 %v5122, %v5136
    %v5140 = vlaneseq
    %v5141 = vshrl.u32 %v5140, 7
    %v5142 = vsub.s32 0, %v5141
    %v5143 = vrot.slane %v5111, %v5142
    %v5145 = vmul.f32 %v5137, %v5143
    %v5146 = vmul.f32 %v5138, %v5143
    %v5148 = vlaneseq
    %v5149 = vshrl.u32 %v5148, 7
    %v5150 = vsub.s32 0, %v5149
    %v5151 = vrot.slane %v5112, %v5150
    %v5153 = vadd.f32 %v5145, %v5151
    %v5154 = vadd.f32 %v5146, %v5151
    %v5155 = vld [vmem:[%s63] sm:$0xf]
    %v5156 = vld [vmem:[%s63 + $0x4] sm:$0xf]
    %v5157 = vld [vmem:[%s63 + $0x8] sm:$0xf]
    %v5158 = vld [vmem:[%s63 + $0xc] sm:$0xf]
    %v5159 = vld [vmem:[%s65] sm:$0x1]
    %v5160 = vld [vmem:[%s67] sm:$0xf]
    %v5161 = vld [vmem:[%s67 + $0x4] sm:$0xf]
    %v5162 = vld [vmem:[%s67 + $0x8] sm:$0xf]
    %v5163 = vld [vmem:[%s67 + $0xc] sm:$0xf]
    %v5164 = vld [vmem:[%s67 + $0x10] sm:$0xf]
    %v5165 = vld [vmem:[%s67 + $0x14] sm:$0xf]
    %v5166 = vld [vmem:[%s67 + $0x18] sm:$0xf]
    %v5167 = vld [vmem:[%s67 + $0x1c] sm:$0xf]
    %v5168 = vld [vmem:[%s69] sm:$0x1]
    %v5169 = vpack.c.bf16 %v5154, %v5153
    %v5171 = vlaneseq
    %v5172 = vshrl.u32 %v5171, 7
    %v5173 = vsub.s32 0, %v5172
    %v5174 = vrot.slane %v5159, %v5173
    %v5180 = vunpack.c.l.b16 %v5155
    %v5181 = vunpack.c.l.b16 %v5156
    %v5182 = vunpack.c.l.b16 %v5157
    %v5183 = vunpack.c.l.b16 %v5158
    %v5184 = vpack.c.b16 %v5181, %v5180
    %v5185 = vpack.c.b16 %v5183, %v5182
    %v5189 = vsel %vm211, %v5169, 0
    %5191 = vmatprep.subr.bf16.mxu0 0
    %5192 = vmatpush1.bf16.msra.mxu0 %v5184
    %5193 = vmatprep.subr.bf16.mxu0 0
    %5194 = vmatpush1.bf16.msra.mxu0 %v5185
    %5195 = vmatprep.subr.bf16.mxu0 0
    %5196 = vmatpush1.bf16.msra.mxu0 0
    %5197 = vmatprep.subr.bf16.mxu0 0
    %5198 = vmatpush1.bf16.msra.mxu0 0
    %5199 = vmatprep.subr.bf16.mxu0 0
    %5200 = vmatpush1.bf16.msra.mxu0 0
    %5201 = vmatprep.subr.bf16.mxu0 0
    %5202 = vmatpush1.bf16.msra.mxu0 0
    %5203 = vmatprep.subr.bf16.mxu0 0
    %5204 = vmatpush1.bf16.msra.mxu0 0
    %5205 = vmatprep.subr.bf16.mxu0 0
    %5206 = vmatpush1.bf16.msra.mxu0 0
    %5207 = vmatprep.subr.bf16.mxu0 0
    %5208 = vmatpush1.bf16.msra.mxu0 0
    %5209 = vmatprep.subr.bf16.mxu0 0
    %5210 = vmatpush1.bf16.msra.mxu0 0
    %5211 = vmatprep.subr.bf16.mxu0 0
    %5212 = vmatpush1.bf16.msra.mxu0 0
    %5213 = vmatprep.subr.bf16.mxu0 0
    %5214 = vmatpush1.bf16.msra.mxu0 0
    %5215 = vmatprep.subr.bf16.mxu0 0
    %5216 = vmatpush1.bf16.msra.mxu0 0
    %5217 = vmatprep.subr.bf16.mxu0 0
    %5218 = vmatpush1.bf16.msra.mxu0 0
    %5219 = vmatprep.subr.bf16.mxu0 0
    %5220 = vmatpush1.bf16.msra.mxu0 0
    %5221 = vmatprep.subr.bf16.mxu0 0
    %5222 = vmatpush1.bf16.msra.mxu0 0
    %5223 = vmatprep.mubr.bf16.mxu0 0
    %5224 = vmatmul.mubr.bf16.gmra.mrb[0].mxu0 %v5189
    %v5225 = vpop.f32.mrb[0].mxu0
    %v5226 = vadd.f32 %v5174, %v5225
    %v5227 = vpop.f32.mrb[0].mxu0
    %v5228 = vpop.f32.mrb[0].mxu0
    %v5229 = vadd.f32 %v5174, %v5228
    %v5230 = vpop.f32.mrb[0].mxu0
    %5231 = vdwg.mxu0
    %v5232 = vmax.f32 %v5226, 0.0
    %v5233 = vmax.f32 %v5229, 0.0
    %v5234 = vpack.c.bf16 %v5233, %v5232
    %v5236 = vlaneseq
    %v5237 = vshrl.u32 %v5236, 7
    %v5238 = vsub.s32 0, %v5237
    %v5239 = vrot.slane %v5168, %v5238
    %v5249 = vunpack.c.l.b16 %v5160
    %v5250 = vunpack.c.l.b16 %v5161
    %v5251 = vunpack.c.l.b16 %v5162
    %v5252 = vunpack.c.l.b16 %v5163
    %v5253 = vunpack.c.l.b16 %v5164
    %v5254 = vunpack.c.l.b16 %v5165
    %v5255 = vunpack.c.l.b16 %v5166
    %v5256 = vunpack.c.l.b16 %v5167
    %v5257 = vpack.c.b16 %v5250, %v5249
    %v5258 = vpack.c.b16 %v5252, %v5251
    %v5259 = vpack.c.b16 %v5254, %v5253
    %v5260 = vpack.c.b16 %v5256, %v5255
    %v5266 = vsel %vm1418, %v5234, 0
    %5268 = vmatprep.subr.bf16.mxu0 0
    %5269 = vmatpush1.bf16.msra.mxu0 %v5257
    %5270 = vmatprep.subr.bf16.mxu0 0
    %5271 = vmatpush1.bf16.msra.mxu0 %v5258
    %5272 = vmatprep.subr.bf16.mxu0 0
    %5273 = vmatpush1.bf16.msra.mxu0 %v5259
    %5274 = vmatprep.subr.bf16.mxu0 0
    %5275 = vmatpush1.bf16.msra.mxu0 %v5260
    %5276 = vmatprep.subr.bf16.mxu0 0
    %5277 = vmatpush1.bf16.msra.mxu0 0
    %5278 = vmatprep.subr.bf16.mxu0 0
    %5279 = vmatpush1.bf16.msra.mxu0 0
    %5280 = vmatprep.subr.bf16.mxu0 0
    %5281 = vmatpush1.bf16.msra.mxu0 0
    %5282 = vmatprep.subr.bf16.mxu0 0
    %5283 = vmatpush1.bf16.msra.mxu0 0
    %5284 = vmatprep.subr.bf16.mxu0 0
    %5285 = vmatpush1.bf16.msra.mxu0 0
    %5286 = vmatprep.subr.bf16.mxu0 0
    %5287 = vmatpush1.bf16.msra.mxu0 0
    %5288 = vmatprep.subr.bf16.mxu0 0
    %5289 = vmatpush1.bf16.msra.mxu0 0
    %5290 = vmatprep.subr.bf16.mxu0 0
    %5291 = vmatpush1.bf16.msra.mxu0 0
    %5292 = vmatprep.subr.bf16.mxu0 0
    %5293 = vmatpush1.bf16.msra.mxu0 0
    %5294 = vmatprep.subr.bf16.mxu0 0
    %5295 = vmatpush1.bf16.msra.mxu0 0
    %5296 = vmatprep.subr.bf16.mxu0 0
    %5297 = vmatpush1.bf16.msra.mxu0 0
    %5298 = vmatprep.subr.bf16.mxu0 0
    %5299 = vmatpush1.bf16.msra.mxu0 0
    %5300 = vmatprep.mubr.bf16.mxu0 0
    %5301 = vmatmul.mubr.bf16.gmra.mrb[0].mxu0 %v5266
    %v5302 = vpop.f32.mrb[0].mxu0
    %v5303 = vadd.f32 %v5239, %v5302
    %v5304 = vpop.f32.mrb[0].mxu0
    %v5305 = vpop.f32.mrb[0].mxu0
    %v5306 = vadd.f32 %v5239, %v5305
    %v5307 = vpop.f32.mrb[0].mxu0
    %5308 = vdwg.mxu0
    %v5309 = vadd.f32 %v5153, %v5303
    %v5310 = vadd.f32 %v5154, %v5306
    %v5311 = vld [vmem:[%s71] sm:$0x1]
    %v5312 = vld [vmem:[%s73] sm:$0x1]
    %v5313 = vsel %vm211, %v5309, 0.0
    %5314 = vadd.xlane.f32.xlu0 %v5313
    %v5315 = vpop.xlane.xlu0 %5314
    %v5316 = vsel %vm211, %v5310, 0.0
    %5317 = vadd.xlane.f32.xlu0 %v5316
    %v5318 = vpop.xlane.xlu0 %5317
    %v5319 = vmul.f32 %v5315, %v1271
    %v5320 = vmul.f32 %v5318, %v1271
    %v5321 = vsub.f32 %v5309, %v5319
    %v5322 = vsub.f32 %v5310, %v5320
    %v5323 = vmul.f32 %v5321, %v5321
    %v5324 = vmul.f32 %v5322, %v5322
    %v5325 = vsel %vm211, %v5323, 0.0
    %5326 = vadd.xlane.f32.xlu0 %v5325
    %v5327 = vpop.xlane.xlu0 %5326
    %v5328 = vsel %vm211, %v5324, 0.0
    %5329 = vadd.xlane.f32.xlu0 %v5328
    %v5330 = vpop.xlane.xlu0 %5329
    %v5331 = vmul.f32 %v5327, %v1271
    %v5332 = vmul.f32 %v5330, %v1271
    %v5333 = vadd.f32 %v5331, 1e-05
    %v5334 = vadd.f32 %v5332, 1e-05
    %v5335 = vrsqrt.pop %v5333
    %v5336 = vrsqrt.pop %v5334
    %v5337 = vmul.f32 %v5321, %v5335
    %v5338 = vmul.f32 %v5322, %v5336
    %v5340 = vlaneseq
    %v5341 = vshrl.u32 %v5340, 7
    %v5342 = vsub.s32 0, %v5341
    %v5343 = vrot.slane %v5311, %v5342
    %v5345 = vmul.f32 %v5337, %v5343
    %v5346 = vmul.f32 %v5338, %v5343
    %v5348 = vlaneseq
    %v5349 = vshrl.u32 %v5348, 7
    %v5350 = vsub.s32 0, %v5349
    %v5351 = vrot.slane %v5312, %v5350
    %v5353 = vadd.f32 %v5345, %v5351
    %v5354 = vadd.f32 %v5346, %v5351
    %s5355 = scalar_lea.vmem %s35, 16
    %v5356 = vld [vmem:[%s5355] sm:$0xf]
    %v5357 = vld [vmem:[%s5355 + $0x4] sm:$0xf]
    %v5358 = vld [vmem:[%s5355 + $0x8] sm:$0xf]
    %v5359 = vld [vmem:[%s5355 + $0xc] sm:$0xf]
    %s5360 = scalar_lea.vmem %s37, 1
    %v5361 = vld [vmem:[%s5360] sm:$0x1]
    %s5362 = scalar_lea.vmem %s39, 16
    %v5363 = vld [vmem:[%s5362] sm:$0xf]
    %v5364 = vld [vmem:[%s5362 + $0x4] sm:$0xf]
    %v5365 = vld [vmem:[%s5362 + $0x8] sm:$0xf]
    %v5366 = vld [vmem:[%s5362 + $0xc] sm:$0xf]
    %s5367 = scalar_lea.vmem %s41, 1
    %v5368 = vld [vmem:[%s5367] sm:$0x1]
    %v5369 = vpack.c.bf16 %v5354, %v5353
    %v5371 = vlaneseq
    %v5372 = vshrl.u32 %v5371, 7
    %v5373 = vsub.s32 0, %v5372
    %v5374 = vrot.slane %v5361, %v5373
    %v5380 = vunpack.c.l.b16 %v5356
    %v5381 = vunpack.c.l.b16 %v5357
    %v5382 = vunpack.c.l.b16 %v5358
    %v5383 = vunpack.c.l.b16 %v5359
    %v5384 = vpack.c.b16 %v5381, %v5380
    %v5385 = vpack.c.b16 %v5383, %v5382
    %v5389 = vsel %vm211, %v5369, 0
    %5391 = vmatprep.subr.bf16.mxu0 0
    %5392 = vmatpush1.bf16.msra.mxu0 %v5384
    %5393 = vmatprep.subr.bf16.mxu0 0
    %5394 = vmatpush1.bf16.msra.mxu0 %v5385
    %5395 = vmatprep.subr.bf16.mxu0 0
    %5396 = vmatpush1.bf16.msra.mxu0 0
    %5397 = vmatprep.subr.bf16.mxu0 0
    %5398 = vmatpush1.bf16.msra.mxu0 0
    %5399 = vmatprep.subr.bf16.mxu0 0
    %5400 = vmatpush1.bf16.msra.mxu0 0
    %5401 = vmatprep.subr.bf16.mxu0 0
    %5402 = vmatpush1.bf16.msra.mxu0 0
    %5403 = vmatprep.subr.bf16.mxu0 0
    %5404 = vmatpush1.bf16.msra.mxu0 0
    %5405 = vmatprep.subr.bf16.mxu0 0
    %5406 = vmatpush1.bf16.msra.mxu0 0
    %5407 = vmatprep.subr.bf16.mxu0 0
    %5408 = vmatpush1.bf16.msra.mxu0 0
    %5409 = vmatprep.subr.bf16.mxu0 0
    %5410 = vmatpush1.bf16.msra.mxu0 0
    %5411 = vmatprep.subr.bf16.mxu0 0
    %5412 = vmatpush1.bf16.msra.mxu0 0
    %5413 = vmatprep.subr.bf16.mxu0 0
    %5414 = vmatpush1.bf16.msra.mxu0 0
    %5415 = vmatprep.subr.bf16.mxu0 0
    %5416 = vmatpush1.bf16.msra.mxu0 0
    %5417 = vmatprep.subr.bf16.mxu0 0
    %5418 = vmatpush1.bf16.msra.mxu0 0
    %5419 = vmatprep.subr.bf16.mxu0 0
    %5420 = vmatpush1.bf16.msra.mxu0 0
    %5421 = vmatprep.subr.bf16.mxu0 0
    %5422 = vmatpush1.bf16.msra.mxu0 0
    %5423 = vmatprep.mubr.bf16.mxu0 0
    %5424 = vmatmul.mubr.bf16.gmra.mrb[0].mxu0 %v5389
    %v5425 = vpop.f32.mrb[0].mxu0
    %v5426 = vadd.f32 %v5374, %v5425
    %v5427 = vpop.f32.mrb[0].mxu0
    %v5428 = vpop.f32.mrb[0].mxu0
    %v5429 = vadd.f32 %v5374, %v5428
    %v5430 = vpop.f32.mrb[0].mxu0
    %5431 = vdwg.mxu0
    %v5432 = vpack.c.bf16 %v5426, %v5426
    %5434 = vrot.lane.b32.xlu0 %v5432, 96
    %v5435 = vpop.permute.xlu0 %5434
    %v5437 = vsel %vm260, %v5432, 0
    %v5440 = vsel %vm260, %v5435, 0
    %5442 = vmatprep.subr.bf16.mxu0 0
    %5443 = vmatpush1.bf16.xpose.msra.mxu0 %v5440
    %5444 = vmatprep.subr.bf16.mxu0 0
    %5445 = vmatpush1.bf16.xpose.msra.mxu0 0
    %5446 = vmatprep.subr.bf16.mxu0 0
    %5447 = vmatpush1.bf16.xpose.msra.mxu0 0
    %5448 = vmatprep.subr.bf16.mxu0 0
    %5449 = vmatpush1.bf16.xpose.msra.mxu0 0
    %5450 = vmatprep.subr.bf16.mxu0 0
    %5451 = vmatpush1.bf16.xpose.msra.mxu0 0
    %5452 = vmatprep.subr.bf16.mxu0 0
    %5453 = vmatpush1.bf16.xpose.msra.mxu0 0
    %5454 = vmatprep.subr.bf16.mxu0 0
    %5455 = vmatpush1.bf16.xpose.msra.mxu0 0
    %5456 = vmatprep.subr.bf16.mxu0 0
    %5457 = vmatpush1.bf16.xpose.msra.mxu0 0
    %5458 = vmatprep.subr.bf16.mxu0 0
    %5459 = vmatpush1.bf16.xpose.msra.mxu0 0
    %5460 = vmatprep.subr.bf16.mxu0 0
    %5461 = vmatpush1.bf16.xpose.msra.mxu0 0
    %5462 = vmatprep.subr.bf16.mxu0 0
    %5463 = vmatpush1.bf16.xpose.msra.mxu0 0
    %5464 = vmatprep.subr.bf16.mxu0 0
    %5465 = vmatpush1.bf16.xpose.msra.mxu0 0
    %5466 = vmatprep.subr.bf16.mxu0 0
    %5467 = vmatpush1.bf16.xpose.msra.mxu0 0
    %5468 = vmatprep.subr.bf16.mxu0 0
    %5469 = vmatpush1.bf16.xpose.msra.mxu0 0
    %5470 = vmatprep.subr.bf16.mxu0 0
    %5471 = vmatpush1.bf16.xpose.msra.mxu0 0
    %5472 = vmatprep.subr.bf16.mxu0 0
    %5473 = vmatpush1.bf16.xpose.msra.mxu0 0
    %5474 = vmatprep.mubr.bf16.mxu0 0
    %5475 = vmatmul.mubr.bf16.gmra.mrb[0].mxu0 %v5437
    %v5476 = vpop.f32.mrb[0].mxu0
    %v5477 = vadd.f32 0.0, %v5476
    %v5478 = vpop.f32.mrb[0].mxu0
    %v5479 = vpop.f32.mrb[0].mxu0
    %v5480 = vpop.f32.mrb[0].mxu0
    %5481 = vdwg.mxu0
    %v5482 = vmul.f32 %v5477, 0.35355338
    %v5483 = vadd.f32 %v5482, %v2878
    %v5484 = vsel %vm260, %v5483, -inf
    %5485 = vmax.xlane.f32.xlu0 %v5484
    %v5486 = vpop.xlane.xlu0 %5485
    %v5487 = vsub.f32 %v5483, %v5486
    %v5488 = vmul.f32 %v5487, 1.442695
    %v5489 = vpow.pop %v5488
    %v5490 = vsel %vm260, %v5489, 0.0
    %5491 = vadd.xlane.f32.xlu0 %v5490
    %v5492 = vpop.xlane.xlu0 %5491
    %v5493 = vrcp.pop %v5492
    %v5494 = vmul.f32 %v5489, %v5493
    %v5495 = vpack.c.bf16 %v5494, %v5494
    %5496 = vrot.lane.b32.xlu0 %v5432, 64
    %v5497 = vpop.permute.xlu0 %5496
    %v5499 = vsel %vm260, %v5495, 0
    %v5502 = vsel %vm332, %v5497, 0
    %5504 = vmatprep.subr.bf16.mxu0 0
    %5505 = vmatpush1.bf16.msra.mxu0 %v5502
    %5506 = vmatprep.subr.bf16.mxu0 0
    %5507 = vmatpush1.bf16.msra.mxu0 0
    %5508 = vmatprep.subr.bf16.mxu0 0
    %5509 = vmatpush1.bf16.msra.mxu0 0
    %5510 = vmatprep.subr.bf16.mxu0 0
    %5511 = vmatpush1.bf16.msra.mxu0 0
    %5512 = vmatprep.subr.bf16.mxu0 0
    %5513 = vmatpush1.bf16.msra.mxu0 0
    %5514 = vmatprep.subr.bf16.mxu0 0
    %5515 = vmatpush1.bf16.msra.mxu0 0
    %5516 = vmatprep.subr.bf16.mxu0 0
    %5517 = vmatpush1.bf16.msra.mxu0 0
    %5518 = vmatprep.subr.bf16.mxu0 0
    %5519 = vmatpush1.bf16.msra.mxu0 0
    %5520 = vmatprep.subr.bf16.mxu0 0
    %5521 = vmatpush1.bf16.msra.mxu0 0
    %5522 = vmatprep.subr.bf16.mxu0 0
    %5523 = vmatpush1.bf16.msra.mxu0 0
    %5524 = vmatprep.subr.bf16.mxu0 0
    %5525 = vmatpush1.bf16.msra.mxu0 0
    %5526 = vmatprep.subr.bf16.mxu0 0
    %5527 = vmatpush1.bf16.msra.mxu0 0
    %5528 = vmatprep.subr.bf16.mxu0 0
    %5529 = vmatpush1.bf16.msra.mxu0 0
    %5530 = vmatprep.subr.bf16.mxu0 0
    %5531 = vmatpush1.bf16.msra.mxu0 0
    %5532 = vmatprep.subr.bf16.mxu0 0
    %5533 = vmatpush1.bf16.msra.mxu0 0
    %5534 = vmatprep.subr.bf16.mxu0 0
    %5535 = vmatpush1.bf16.msra.mxu0 0
    %5536 = vmatprep.mubr.bf16.mxu0 0
    %5537 = vmatmul.mubr.bf16.gmra.mrb[0].mxu0 %v5499
    %v5538 = vpop.f32.mrb[0].mxu0
    %v5539 = vadd.f32 0.0, %v5538
    %v5540 = vpop.f32.mrb[0].mxu0
    %v5541 = vpop.f32.mrb[0].mxu0
    %v5542 = vpop.f32.mrb[0].mxu0
    %5543 = vdwg.mxu0
    %5544 = vrot.lane.b32.xlu0 %v5432, 120
    %v5545 = vpop.permute.xlu0 %5544
    %5546 = vrot.lane.b32.xlu0 %v5432, 88
    %v5547 = vpop.permute.xlu0 %5546
    %v5549 = vsel %vm260, %v5545, 0
    %v5552 = vsel %vm260, %v5547, 0
    %5554 = vmatprep.subr.bf16.mxu0 0
    %5555 = vmatpush1.bf16.xpose.msra.mxu0 %v5552
    %5556 = vmatprep.subr.bf16.mxu0 0
    %5557 = vmatpush1.bf16.xpose.msra.mxu0 0
    %5558 = vmatprep.subr.bf16.mxu0 0
    %5559 = vmatpush1.bf16.xpose.msra.mxu0 0
    %5560 = vmatprep.subr.bf16.mxu0 0
    %5561 = vmatpush1.bf16.xpose.msra.mxu0 0
    %5562 = vmatprep.subr.bf16.mxu0 0
    %5563 = vmatpush1.bf16.xpose.msra.mxu0 0
    %5564 = vmatprep.subr.bf16.mxu0 0
    %5565 = vmatpush1.bf16.xpose.msra.mxu0 0
    %5566 = vmatprep.subr.bf16.mxu0 0
    %5567 = vmatpush1.bf16.xpose.msra.mxu0 0
    %5568 = vmatprep.subr.bf16.mxu0 0
    %5569 = vmatpush1.bf16.xpose.msra.mxu0 0
    %5570 = vmatprep.subr.bf16.mxu0 0
    %5571 = vmatpush1.bf16.xpose.msra.mxu0 0
    %5572 = vmatprep.subr.bf16.mxu0 0
    %5573 = vmatpush1.bf16.xpose.msra.mxu0 0
    %5574 = vmatprep.subr.bf16.mxu0 0
    %5575 = vmatpush1.bf16.xpose.msra.mxu0 0
    %5576 = vmatprep.subr.bf16.mxu0 0
    %5577 = vmatpush1.bf16.xpose.msra.mxu0 0
    %5578 = vmatprep.subr.bf16.mxu0 0
    %5579 = vmatpush1.bf16.xpose.msra.mxu0 0
    %5580 = vmatprep.subr.bf16.mxu0 0
    %5581 = vmatpush1.bf16.xpose.msra.mxu0 0
    %5582 = vmatprep.subr.bf16.mxu0 0
    %5583 = vmatpush1.bf16.xpose.msra.mxu0 0
    %5584 = vmatprep.subr.bf16.mxu0 0
    %5585 = vmatpush1.bf16.xpose.msra.mxu0 0
    %5586 = vmatprep.mubr.bf16.mxu0 0
    %5587 = vmatmul.mubr.bf16.gmra.mrb[0].mxu0 %v5549
    %v5588 = vpop.f32.mrb[0].mxu0
    %v5589 = vadd.f32 0.0, %v5588
    %v5590 = vpop.f32.mrb[0].mxu0
    %v5591 = vpop.f32.mrb[0].mxu0
    %v5592 = vpop.f32.mrb[0].mxu0
    %5593 = vdwg.mxu0
    %v5594 = vmul.f32 %v5589, 0.35355338
    %v5595 = vadd.f32 %v5594, %v2878
    %v5596 = vsel %vm260, %v5595, -inf
    %5597 = vmax.xlane.f32.xlu0 %v5596
    %v5598 = vpop.xlane.xlu0 %5597
    %v5599 = vsub.f32 %v5595, %v5598
    %v5600 = vmul.f32 %v5599, 1.442695
    %v5601 = vpow.pop %v5600
    %v5602 = vsel %vm260, %v5601, 0.0
    %5603 = vadd.xlane.f32.xlu0 %v5602
    %v5604 = vpop.xlane.xlu0 %5603
    %v5605 = vrcp.pop %v5604
    %v5606 = vmul.f32 %v5601, %v5605
    %v5607 = vpack.c.bf16 %v5606, %v5606
    %5608 = vrot.lane.b32.xlu0 %v5432, 56
    %v5609 = vpop.permute.xlu0 %5608
    %v5611 = vsel %vm260, %v5607, 0
    %v5614 = vsel %vm332, %v5609, 0
    %5616 = vmatprep.subr.bf16.mxu0 0
    %5617 = vmatpush1.bf16.msra.mxu0 %v5614
    %5618 = vmatprep.subr.bf16.mxu0 0
    %5619 = vmatpush1.bf16.msra.mxu0 0
    %5620 = vmatprep.subr.bf16.mxu0 0
    %5621 = vmatpush1.bf16.msra.mxu0 0
    %5622 = vmatprep.subr.bf16.mxu0 0
    %5623 = vmatpush1.bf16.msra.mxu0 0
    %5624 = vmatprep.subr.bf16.mxu0 0
    %5625 = vmatpush1.bf16.msra.mxu0 0
    %5626 = vmatprep.subr.bf16.mxu0 0
    %5627 = vmatpush1.bf16.msra.mxu0 0
    %5628 = vmatprep.subr.bf16.mxu0 0
    %5629 = vmatpush1.bf16.msra.mxu0 0
    %5630 = vmatprep.subr.bf16.mxu0 0
    %5631 = vmatpush1.bf16.msra.mxu0 0
    %5632 = vmatprep.subr.bf16.mxu0 0
    %5633 = vmatpush1.bf16.msra.mxu0 0
    %5634 = vmatprep.subr.bf16.mxu0 0
    %5635 = vmatpush1.bf16.msra.mxu0 0
    %5636 = vmatprep.subr.bf16.mxu0 0
    %5637 = vmatpush1.bf16.msra.mxu0 0
    %5638 = vmatprep.subr.bf16.mxu0 0
    %5639 = vmatpush1.bf16.msra.mxu0 0
    %5640 = vmatprep.subr.bf16.mxu0 0
    %5641 = vmatpush1.bf16.msra.mxu0 0
    %5642 = vmatprep.subr.bf16.mxu0 0
    %5643 = vmatpush1.bf16.msra.mxu0 0
    %5644 = vmatprep.subr.bf16.mxu0 0
    %5645 = vmatpush1.bf16.msra.mxu0 0
    %5646 = vmatprep.subr.bf16.mxu0 0
    %5647 = vmatpush1.bf16.msra.mxu0 0
    %5648 = vmatprep.mubr.bf16.mxu0 0
    %5649 = vmatmul.mubr.bf16.gmra.mrb[0].mxu0 %v5611
    %v5650 = vpop.f32.mrb[0].mxu0
    %v5651 = vadd.f32 0.0, %v5650
    %v5652 = vpop.f32.mrb[0].mxu0
    %v5653 = vpop.f32.mrb[0].mxu0
    %v5654 = vpop.f32.mrb[0].mxu0
    %5655 = vdwg.mxu0
    %5656 = vrot.lane.b32.xlu0 %v5432, 112
    %v5657 = vpop.permute.xlu0 %5656
    %5658 = vrot.lane.b32.xlu0 %v5432, 80
    %v5659 = vpop.permute.xlu0 %5658
    %v5661 = vsel %vm260, %v5657, 0
    %v5664 = vsel %vm260, %v5659, 0
    %5666 = vmatprep.subr.bf16.mxu0 0
    %5667 = vmatpush1.bf16.xpose.msra.mxu0 %v5664
    %5668 = vmatprep.subr.bf16.mxu0 0
    %5669 = vmatpush1.bf16.xpose.msra.mxu0 0
    %5670 = vmatprep.subr.bf16.mxu0 0
    %5671 = vmatpush1.bf16.xpose.msra.mxu0 0
    %5672 = vmatprep.subr.bf16.mxu0 0
    %5673 = vmatpush1.bf16.xpose.msra.mxu0 0
    %5674 = vmatprep.subr.bf16.mxu0 0
    %5675 = vmatpush1.bf16.xpose.msra.mxu0 0
    %5676 = vmatprep.subr.bf16.mxu0 0
    %5677 = vmatpush1.bf16.xpose.msra.mxu0 0
    %5678 = vmatprep.subr.bf16.mxu0 0
    %5679 = vmatpush1.bf16.xpose.msra.mxu0 0
    %5680 = vmatprep.subr.bf16.mxu0 0
    %5681 = vmatpush1.bf16.xpose.msra.mxu0 0
    %5682 = vmatprep.subr.bf16.mxu0 0
    %5683 = vmatpush1.bf16.xpose.msra.mxu0 0
    %5684 = vmatprep.subr.bf16.mxu0 0
    %5685 = vmatpush1.bf16.xpose.msra.mxu0 0
    %5686 = vmatprep.subr.bf16.mxu0 0
    %5687 = vmatpush1.bf16.xpose.msra.mxu0 0
    %5688 = vmatprep.subr.bf16.mxu0 0
    %5689 = vmatpush1.bf16.xpose.msra.mxu0 0
    %5690 = vmatprep.subr.bf16.mxu0 0
    %5691 = vmatpush1.bf16.xpose.msra.mxu0 0
    %5692 = vmatprep.subr.bf16.mxu0 0
    %5693 = vmatpush1.bf16.xpose.msra.mxu0 0
    %5694 = vmatprep.subr.bf16.mxu0 0
    %5695 = vmatpush1.bf16.xpose.msra.mxu0 0
    %5696 = vmatprep.subr.bf16.mxu0 0
    %5697 = vmatpush1.bf16.xpose.msra.mxu0 0
    %5698 = vmatprep.mubr.bf16.mxu0 0
    %5699 = vmatmul.mubr.bf16.gmra.mrb[0].mxu0 %v5661
    %v5700 = vpop.f32.mrb[0].mxu0
    %v5701 = vadd.f32 0.0, %v5700
    %v5702 = vpop.f32.mrb[0].mxu0
    %v5703 = vpop.f32.mrb[0].mxu0
    %v5704 = vpop.f32.mrb[0].mxu0
    %5705 = vdwg.mxu0
    %v5706 = vmul.f32 %v5701, 0.35355338
    %v5707 = vadd.f32 %v5706, %v2878
    %v5708 = vsel %vm260, %v5707, -inf
    %5709 = vmax.xlane.f32.xlu0 %v5708
    %v5710 = vpop.xlane.xlu0 %5709
    %v5711 = vsub.f32 %v5707, %v5710
    %v5712 = vmul.f32 %v5711, 1.442695
    %v5713 = vpow.pop %v5712
    %v5714 = vsel %vm260, %v5713, 0.0
    %5715 = vadd.xlane.f32.xlu0 %v5714
    %v5716 = vpop.xlane.xlu0 %5715
    %v5717 = vrcp.pop %v5716
    %v5718 = vmul.f32 %v5713, %v5717
    %v5719 = vpack.c.bf16 %v5718, %v5718
    %5720 = vrot.lane.b32.xlu0 %v5432, 48
    %v5721 = vpop.permute.xlu0 %5720
    %v5723 = vsel %vm260, %v5719, 0
    %v5726 = vsel %vm332, %v5721, 0
    %5728 = vmatprep.subr.bf16.mxu0 0
    %5729 = vmatpush1.bf16.msra.mxu0 %v5726
    %5730 = vmatprep.subr.bf16.mxu0 0
    %5731 = vmatpush1.bf16.msra.mxu0 0
    %5732 = vmatprep.subr.bf16.mxu0 0
    %5733 = vmatpush1.bf16.msra.mxu0 0
    %5734 = vmatprep.subr.bf16.mxu0 0
    %5735 = vmatpush1.bf16.msra.mxu0 0
    %5736 = vmatprep.subr.bf16.mxu0 0
    %5737 = vmatpush1.bf16.msra.mxu0 0
    %5738 = vmatprep.subr.bf16.mxu0 0
    %5739 = vmatpush1.bf16.msra.mxu0 0
    %5740 = vmatprep.subr.bf16.mxu0 0
    %5741 = vmatpush1.bf16.msra.mxu0 0
    %5742 = vmatprep.subr.bf16.mxu0 0
    %5743 = vmatpush1.bf16.msra.mxu0 0
    %5744 = vmatprep.subr.bf16.mxu0 0
    %5745 = vmatpush1.bf16.msra.mxu0 0
    %5746 = vmatprep.subr.bf16.mxu0 0
    %5747 = vmatpush1.bf16.msra.mxu0 0
    %5748 = vmatprep.subr.bf16.mxu0 0
    %5749 = vmatpush1.bf16.msra.mxu0 0
    %5750 = vmatprep.subr.bf16.mxu0 0
    %5751 = vmatpush1.bf16.msra.mxu0 0
    %5752 = vmatprep.subr.bf16.mxu0 0
    %5753 = vmatpush1.bf16.msra.mxu0 0
    %5754 = vmatprep.subr.bf16.mxu0 0
    %5755 = vmatpush1.bf16.msra.mxu0 0
    %5756 = vmatprep.subr.bf16.mxu0 0
    %5757 = vmatpush1.bf16.msra.mxu0 0
    %5758 = vmatprep.subr.bf16.mxu0 0
    %5759 = vmatpush1.bf16.msra.mxu0 0
    %5760 = vmatprep.mubr.bf16.mxu0 0
    %5761 = vmatmul.mubr.bf16.gmra.mrb[0].mxu0 %v5723
    %v5762 = vpop.f32.mrb[0].mxu0
    %v5763 = vadd.f32 0.0, %v5762
    %v5764 = vpop.f32.mrb[0].mxu0
    %v5765 = vpop.f32.mrb[0].mxu0
    %v5766 = vpop.f32.mrb[0].mxu0
    %5767 = vdwg.mxu0
    %5768 = vrot.lane.b32.xlu0 %v5432, 104
    %v5769 = vpop.permute.xlu0 %5768
    %5770 = vrot.lane.b32.xlu0 %v5432, 72
    %v5771 = vpop.permute.xlu0 %5770
    %v5773 = vsel %vm260, %v5769, 0
    %v5776 = vsel %vm260, %v5771, 0
    %5778 = vmatprep.subr.bf16.mxu0 0
    %5779 = vmatpush1.bf16.xpose.msra.mxu0 %v5776
    %5780 = vmatprep.subr.bf16.mxu0 0
    %5781 = vmatpush1.bf16.xpose.msra.mxu0 0
    %5782 = vmatprep.subr.bf16.mxu0 0
    %5783 = vmatpush1.bf16.xpose.msra.mxu0 0
    %5784 = vmatprep.subr.bf16.mxu0 0
    %5785 = vmatpush1.bf16.xpose.msra.mxu0 0
    %5786 = vmatprep.subr.bf16.mxu0 0
    %5787 = vmatpush1.bf16.xpose.msra.mxu0 0
    %5788 = vmatprep.subr.bf16.mxu0 0
    %5789 = vmatpush1.bf16.xpose.msra.mxu0 0
    %5790 = vmatprep.subr.bf16.mxu0 0
    %5791 = vmatpush1.bf16.xpose.msra.mxu0 0
    %5792 = vmatprep.subr.bf16.mxu0 0
    %5793 = vmatpush1.bf16.xpose.msra.mxu0 0
    %5794 = vmatprep.subr.bf16.mxu0 0
    %5795 = vmatpush1.bf16.xpose.msra.mxu0 0
    %5796 = vmatprep.subr.bf16.mxu0 0
    %5797 = vmatpush1.bf16.xpose.msra.mxu0 0
    %5798 = vmatprep.subr.bf16.mxu0 0
    %5799 = vmatpush1.bf16.xpose.msra.mxu0 0
    %5800 = vmatprep.subr.bf16.mxu0 0
    %5801 = vmatpush1.bf16.xpose.msra.mxu0 0
    %5802 = vmatprep.subr.bf16.mxu0 0
    %5803 = vmatpush1.bf16.xpose.msra.mxu0 0
    %5804 = vmatprep.subr.bf16.mxu0 0
    %5805 = vmatpush1.bf16.xpose.msra.mxu0 0
    %5806 = vmatprep.subr.bf16.mxu0 0
    %5807 = vmatpush1.bf16.xpose.msra.mxu0 0
    %5808 = vmatprep.subr.bf16.mxu0 0
    %5809 = vmatpush1.bf16.xpose.msra.mxu0 0
    %5810 = vmatprep.mubr.bf16.mxu0 0
    %5811 = vmatmul.mubr.bf16.gmra.mrb[0].mxu0 %v5773
    %v5812 = vpop.f32.mrb[0].mxu0
    %v5813 = vadd.f32 0.0, %v5812
    %v5814 = vpop.f32.mrb[0].mxu0
    %v5815 = vpop.f32.mrb[0].mxu0
    %v5816 = vpop.f32.mrb[0].mxu0
    %5817 = vdwg.mxu0
    %v5818 = vmul.f32 %v5813, 0.35355338
    %v5819 = vadd.f32 %v5818, %v2878
    %v5820 = vsel %vm260, %v5819, -inf
    %5821 = vmax.xlane.f32.xlu0 %v5820
    %v5822 = vpop.xlane.xlu0 %5821
    %v5823 = vsub.f32 %v5819, %v5822
    %v5824 = vmul.f32 %v5823, 1.442695
    %v5825 = vpow.pop %v5824
    %v5826 = vsel %vm260, %v5825, 0.0
    %5827 = vadd.xlane.f32.xlu0 %v5826
    %v5828 = vpop.xlane.xlu0 %5827
    %v5829 = vrcp.pop %v5828
    %v5830 = vmul.f32 %v5825, %v5829
    %v5831 = vpack.c.bf16 %v5830, %v5830
    %5832 = vrot.lane.b32.xlu0 %v5432, 40
    %v5833 = vpop.permute.xlu0 %5832
    %v5835 = vsel %vm260, %v5831, 0
    %v5838 = vsel %vm332, %v5833, 0
    %5840 = vmatprep.subr.bf16.mxu0 0
    %5841 = vmatpush1.bf16.msra.mxu0 %v5838
    %5842 = vmatprep.subr.bf16.mxu0 0
    %5843 = vmatpush1.bf16.msra.mxu0 0
    %5844 = vmatprep.subr.bf16.mxu0 0
    %5845 = vmatpush1.bf16.msra.mxu0 0
    %5846 = vmatprep.subr.bf16.mxu0 0
    %5847 = vmatpush1.bf16.msra.mxu0 0
    %5848 = vmatprep.subr.bf16.mxu0 0
    %5849 = vmatpush1.bf16.msra.mxu0 0
    %5850 = vmatprep.subr.bf16.mxu0 0
    %5851 = vmatpush1.bf16.msra.mxu0 0
    %5852 = vmatprep.subr.bf16.mxu0 0
    %5853 = vmatpush1.bf16.msra.mxu0 0
    %5854 = vmatprep.subr.bf16.mxu0 0
    %5855 = vmatpush1.bf16.msra.mxu0 0
    %5856 = vmatprep.subr.bf16.mxu0 0
    %5857 = vmatpush1.bf16.msra.mxu0 0
    %5858 = vmatprep.subr.bf16.mxu0 0
    %5859 = vmatpush1.bf16.msra.mxu0 0
    %5860 = vmatprep.subr.bf16.mxu0 0
    %5861 = vmatpush1.bf16.msra.mxu0 0
    %5862 = vmatprep.subr.bf16.mxu0 0
    %5863 = vmatpush1.bf16.msra.mxu0 0
    %5864 = vmatprep.subr.bf16.mxu0 0
    %5865 = vmatpush1.bf16.msra.mxu0 0
    %5866 = vmatprep.subr.bf16.mxu0 0
    %5867 = vmatpush1.bf16.msra.mxu0 0
    %5868 = vmatprep.subr.bf16.mxu0 0
    %5869 = vmatpush1.bf16.msra.mxu0 0
    %5870 = vmatprep.subr.bf16.mxu0 0
    %5871 = vmatpush1.bf16.msra.mxu0 0
    %5872 = vmatprep.mubr.bf16.mxu0 0
    %5873 = vmatmul.mubr.bf16.gmra.mrb[0].mxu0 %v5835
    %v5874 = vpop.f32.mrb[0].mxu0
    %v5875 = vadd.f32 0.0, %v5874
    %v5876 = vpop.f32.mrb[0].mxu0
    %v5877 = vpop.f32.mrb[0].mxu0
    %v5878 = vpop.f32.mrb[0].mxu0
    %5879 = vdwg.mxu0
    %5881 = vrot.lane.b32.xlu0 %v5651, 8
    %v5882 = vpop.permute.xlu0 %5881
    %5885 = vrot.lane.b32.xlu0 %v5763, 16
    %v5886 = vpop.permute.xlu0 %5885
    %5889 = vrot.lane.b32.xlu0 %v5875, 24
    %v5890 = vpop.permute.xlu0 %5889
    %v5892 = vsel %vm260, %v5539, %v5882
    %v5893 = vsel %vm725, %v5892, %v5886
    %v5894 = vsel %vm727, %v5893, %v5890
    %v5895 = vpack.c.bf16 %v5429, %v5429
    %5897 = vrot.lane.b32.xlu0 %v5895, 96
    %v5898 = vpop.permute.xlu0 %5897
    %v5900 = vsel %vm260, %v5895, 0
    %v5903 = vsel %vm260, %v5898, 0
    %5905 = vmatprep.subr.bf16.mxu0 0
    %5906 = vmatpush1.bf16.xpose.msra.mxu0 %v5903
    %5907 = vmatprep.subr.bf16.mxu0 0
    %5908 = vmatpush1.bf16.xpose.msra.mxu0 0
    %5909 = vmatprep.subr.bf16.mxu0 0
    %5910 = vmatpush1.bf16.xpose.msra.mxu0 0
    %5911 = vmatprep.subr.bf16.mxu0 0
    %5912 = vmatpush1.bf16.xpose.msra.mxu0 0
    %5913 = vmatprep.subr.bf16.mxu0 0
    %5914 = vmatpush1.bf16.xpose.msra.mxu0 0
    %5915 = vmatprep.subr.bf16.mxu0 0
    %5916 = vmatpush1.bf16.xpose.msra.mxu0 0
    %5917 = vmatprep.subr.bf16.mxu0 0
    %5918 = vmatpush1.bf16.xpose.msra.mxu0 0
    %5919 = vmatprep.subr.bf16.mxu0 0
    %5920 = vmatpush1.bf16.xpose.msra.mxu0 0
    %5921 = vmatprep.subr.bf16.mxu0 0
    %5922 = vmatpush1.bf16.xpose.msra.mxu0 0
    %5923 = vmatprep.subr.bf16.mxu0 0
    %5924 = vmatpush1.bf16.xpose.msra.mxu0 0
    %5925 = vmatprep.subr.bf16.mxu0 0
    %5926 = vmatpush1.bf16.xpose.msra.mxu0 0
    %5927 = vmatprep.subr.bf16.mxu0 0
    %5928 = vmatpush1.bf16.xpose.msra.mxu0 0
    %5929 = vmatprep.subr.bf16.mxu0 0
    %5930 = vmatpush1.bf16.xpose.msra.mxu0 0
    %5931 = vmatprep.subr.bf16.mxu0 0
    %5932 = vmatpush1.bf16.xpose.msra.mxu0 0
    %5933 = vmatprep.subr.bf16.mxu0 0
    %5934 = vmatpush1.bf16.xpose.msra.mxu0 0
    %5935 = vmatprep.subr.bf16.mxu0 0
    %5936 = vmatpush1.bf16.xpose.msra.mxu0 0
    %5937 = vmatprep.mubr.bf16.mxu0 0
    %5938 = vmatmul.mubr.bf16.gmra.mrb[0].mxu0 %v5900
    %v5939 = vpop.f32.mrb[0].mxu0
    %v5940 = vadd.f32 0.0, %v5939
    %v5941 = vpop.f32.mrb[0].mxu0
    %v5942 = vpop.f32.mrb[0].mxu0
    %v5943 = vpop.f32.mrb[0].mxu0
    %5944 = vdwg.mxu0
    %v5945 = vmul.f32 %v5940, 0.35355338
    %v5946 = vadd.f32 %v5945, %v2878
    %v5947 = vsel %vm260, %v5946, -inf
    %5948 = vmax.xlane.f32.xlu0 %v5947
    %v5949 = vpop.xlane.xlu0 %5948
    %v5950 = vsub.f32 %v5946, %v5949
    %v5951 = vmul.f32 %v5950, 1.442695
    %v5952 = vpow.pop %v5951
    %v5953 = vsel %vm260, %v5952, 0.0
    %5954 = vadd.xlane.f32.xlu0 %v5953
    %v5955 = vpop.xlane.xlu0 %5954
    %v5956 = vrcp.pop %v5955
    %v5957 = vmul.f32 %v5952, %v5956
    %v5958 = vpack.c.bf16 %v5957, %v5957
    %5959 = vrot.lane.b32.xlu0 %v5895, 64
    %v5960 = vpop.permute.xlu0 %5959
    %v5962 = vsel %vm260, %v5958, 0
    %v5965 = vsel %vm332, %v5960, 0
    %5967 = vmatprep.subr.bf16.mxu0 0
    %5968 = vmatpush1.bf16.msra.mxu0 %v5965
    %5969 = vmatprep.subr.bf16.mxu0 0
    %5970 = vmatpush1.bf16.msra.mxu0 0
    %5971 = vmatprep.subr.bf16.mxu0 0
    %5972 = vmatpush1.bf16.msra.mxu0 0
    %5973 = vmatprep.subr.bf16.mxu0 0
    %5974 = vmatpush1.bf16.msra.mxu0 0
    %5975 = vmatprep.subr.bf16.mxu0 0
    %5976 = vmatpush1.bf16.msra.mxu0 0
    %5977 = vmatprep.subr.bf16.mxu0 0
    %5978 = vmatpush1.bf16.msra.mxu0 0
    %5979 = vmatprep.subr.bf16.mxu0 0
    %5980 = vmatpush1.bf16.msra.mxu0 0
    %5981 = vmatprep.subr.bf16.mxu0 0
    %5982 = vmatpush1.bf16.msra.mxu0 0
    %5983 = vmatprep.subr.bf16.mxu0 0
    %5984 = vmatpush1.bf16.msra.mxu0 0
    %5985 = vmatprep.subr.bf16.mxu0 0
    %5986 = vmatpush1.bf16.msra.mxu0 0
    %5987 = vmatprep.subr.bf16.mxu0 0
    %5988 = vmatpush1.bf16.msra.mxu0 0
    %5989 = vmatprep.subr.bf16.mxu0 0
    %5990 = vmatpush1.bf16.msra.mxu0 0
    %5991 = vmatprep.subr.bf16.mxu0 0
    %5992 = vmatpush1.bf16.msra.mxu0 0
    %5993 = vmatprep.subr.bf16.mxu0 0
    %5994 = vmatpush1.bf16.msra.mxu0 0
    %5995 = vmatprep.subr.bf16.mxu0 0
    %5996 = vmatpush1.bf16.msra.mxu0 0
    %5997 = vmatprep.subr.bf16.mxu0 0
    %5998 = vmatpush1.bf16.msra.mxu0 0
    %5999 = vmatprep.mubr.bf16.mxu0 0
    %6000 = vmatmul.mubr.bf16.gmra.mrb[0].mxu0 %v5962
    %v6001 = vpop.f32.mrb[0].mxu0
    %v6002 = vadd.f32 0.0, %v6001
    %v6003 = vpop.f32.mrb[0].mxu0
    %v6004 = vpop.f32.mrb[0].mxu0
    %v6005 = vpop.f32.mrb[0].mxu0
    %6006 = vdwg.mxu0
    %6007 = vrot.lane.b32.xlu0 %v5895, 120
    %v6008 = vpop.permute.xlu0 %6007
    %6009 = vrot.lane.b32.xlu0 %v5895, 88
    %v6010 = vpop.permute.xlu0 %6009
    %v6012 = vsel %vm260, %v6008, 0
    %v6015 = vsel %vm260, %v6010, 0
    %6017 = vmatprep.subr.bf16.mxu0 0
    %6018 = vmatpush1.bf16.xpose.msra.mxu0 %v6015
    %6019 = vmatprep.subr.bf16.mxu0 0
    %6020 = vmatpush1.bf16.xpose.msra.mxu0 0
    %6021 = vmatprep.subr.bf16.mxu0 0
    %6022 = vmatpush1.bf16.xpose.msra.mxu0 0
    %6023 = vmatprep.subr.bf16.mxu0 0
    %6024 = vmatpush1.bf16.xpose.msra.mxu0 0
    %6025 = vmatprep.subr.bf16.mxu0 0
    %6026 = vmatpush1.bf16.xpose.msra.mxu0 0
    %6027 = vmatprep.subr.bf16.mxu0 0
    %6028 = vmatpush1.bf16.xpose.msra.mxu0 0
    %6029 = vmatprep.subr.bf16.mxu0 0
    %6030 = vmatpush1.bf16.xpose.msra.mxu0 0
    %6031 = vmatprep.subr.bf16.mxu0 0
    %6032 = vmatpush1.bf16.xpose.msra.mxu0 0
    %6033 = vmatprep.subr.bf16.mxu0 0
    %6034 = vmatpush1.bf16.xpose.msra.mxu0 0
    %6035 = vmatprep.subr.bf16.mxu0 0
    %6036 = vmatpush1.bf16.xpose.msra.mxu0 0
    %6037 = vmatprep.subr.bf16.mxu0 0
    %6038 = vmatpush1.bf16.xpose.msra.mxu0 0
    %6039 = vmatprep.subr.bf16.mxu0 0
    %6040 = vmatpush1.bf16.xpose.msra.mxu0 0
    %6041 = vmatprep.subr.bf16.mxu0 0
    %6042 = vmatpush1.bf16.xpose.msra.mxu0 0
    %6043 = vmatprep.subr.bf16.mxu0 0
    %6044 = vmatpush1.bf16.xpose.msra.mxu0 0
    %6045 = vmatprep.subr.bf16.mxu0 0
    %6046 = vmatpush1.bf16.xpose.msra.mxu0 0
    %6047 = vmatprep.subr.bf16.mxu0 0
    %6048 = vmatpush1.bf16.xpose.msra.mxu0 0
    %6049 = vmatprep.mubr.bf16.mxu0 0
    %6050 = vmatmul.mubr.bf16.gmra.mrb[0].mxu0 %v6012
    %v6051 = vpop.f32.mrb[0].mxu0
    %v6052 = vadd.f32 0.0, %v6051
    %v6053 = vpop.f32.mrb[0].mxu0
    %v6054 = vpop.f32.mrb[0].mxu0
    %v6055 = vpop.f32.mrb[0].mxu0
    %6056 = vdwg.mxu0
    %v6057 = vmul.f32 %v6052, 0.35355338
    %v6058 = vadd.f32 %v6057, %v2878
    %v6059 = vsel %vm260, %v6058, -inf
    %6060 = vmax.xlane.f32.xlu0 %v6059
    %v6061 = vpop.xlane.xlu0 %6060
    %v6062 = vsub.f32 %v6058, %v6061
    %v6063 = vmul.f32 %v6062, 1.442695
    %v6064 = vpow.pop %v6063
    %v6065 = vsel %vm260, %v6064, 0.0
    %6066 = vadd.xlane.f32.xlu0 %v6065
    %v6067 = vpop.xlane.xlu0 %6066
    %v6068 = vrcp.pop %v6067
    %v6069 = vmul.f32 %v6064, %v6068
    %v6070 = vpack.c.bf16 %v6069, %v6069
    %6071 = vrot.lane.b32.xlu0 %v5895, 56
    %v6072 = vpop.permute.xlu0 %6071
    %v6074 = vsel %vm260, %v6070, 0
    %v6077 = vsel %vm332, %v6072, 0
    %6079 = vmatprep.subr.bf16.mxu0 0
    %6080 = vmatpush1.bf16.msra.mxu0 %v6077
    %6081 = vmatprep.subr.bf16.mxu0 0
    %6082 = vmatpush1.bf16.msra.mxu0 0
    %6083 = vmatprep.subr.bf16.mxu0 0
    %6084 = vmatpush1.bf16.msra.mxu0 0
    %6085 = vmatprep.subr.bf16.mxu0 0
    %6086 = vmatpush1.bf16.msra.mxu0 0
    %6087 = vmatprep.subr.bf16.mxu0 0
    %6088 = vmatpush1.bf16.msra.mxu0 0
    %6089 = vmatprep.subr.bf16.mxu0 0
    %6090 = vmatpush1.bf16.msra.mxu0 0
    %6091 = vmatprep.subr.bf16.mxu0 0
    %6092 = vmatpush1.bf16.msra.mxu0 0
    %6093 = vmatprep.subr.bf16.mxu0 0
    %6094 = vmatpush1.bf16.msra.mxu0 0
    %6095 = vmatprep.subr.bf16.mxu0 0
    %6096 = vmatpush1.bf16.msra.mxu0 0
    %6097 = vmatprep.subr.bf16.mxu0 0
    %6098 = vmatpush1.bf16.msra.mxu0 0
    %6099 = vmatprep.subr.bf16.mxu0 0
    %6100 = vmatpush1.bf16.msra.mxu0 0
    %6101 = vmatprep.subr.bf16.mxu0 0
    %6102 = vmatpush1.bf16.msra.mxu0 0
    %6103 = vmatprep.subr.bf16.mxu0 0
    %6104 = vmatpush1.bf16.msra.mxu0 0
    %6105 = vmatprep.subr.bf16.mxu0 0
    %6106 = vmatpush1.bf16.msra.mxu0 0
    %6107 = vmatprep.subr.bf16.mxu0 0
    %6108 = vmatpush1.bf16.msra.mxu0 0
    %6109 = vmatprep.subr.bf16.mxu0 0
    %6110 = vmatpush1.bf16.msra.mxu0 0
    %6111 = vmatprep.mubr.bf16.mxu0 0
    %6112 = vmatmul.mubr.bf16.gmra.mrb[0].mxu0 %v6074
    %v6113 = vpop.f32.mrb[0].mxu0
    %v6114 = vadd.f32 0.0, %v6113
    %v6115 = vpop.f32.mrb[0].mxu0
    %v6116 = vpop.f32.mrb[0].mxu0
    %v6117 = vpop.f32.mrb[0].mxu0
    %6118 = vdwg.mxu0
    %6119 = vrot.lane.b32.xlu0 %v5895, 112
    %v6120 = vpop.permute.xlu0 %6119
    %6121 = vrot.lane.b32.xlu0 %v5895, 80
    %v6122 = vpop.permute.xlu0 %6121
    %v6124 = vsel %vm260, %v6120, 0
    %v6127 = vsel %vm260, %v6122, 0
    %6129 = vmatprep.subr.bf16.mxu0 0
    %6130 = vmatpush1.bf16.xpose.msra.mxu0 %v6127
    %6131 = vmatprep.subr.bf16.mxu0 0
    %6132 = vmatpush1.bf16.xpose.msra.mxu0 0
    %6133 = vmatprep.subr.bf16.mxu0 0
    %6134 = vmatpush1.bf16.xpose.msra.mxu0 0
    %6135 = vmatprep.subr.bf16.mxu0 0
    %6136 = vmatpush1.bf16.xpose.msra.mxu0 0
    %6137 = vmatprep.subr.bf16.mxu0 0
    %6138 = vmatpush1.bf16.xpose.msra.mxu0 0
    %6139 = vmatprep.subr.bf16.mxu0 0
    %6140 = vmatpush1.bf16.xpose.msra.mxu0 0
    %6141 = vmatprep.subr.bf16.mxu0 0
    %6142 = vmatpush1.bf16.xpose.msra.mxu0 0
    %6143 = vmatprep.subr.bf16.mxu0 0
    %6144 = vmatpush1.bf16.xpose.msra.mxu0 0
    %6145 = vmatprep.subr.bf16.mxu0 0
    %6146 = vmatpush1.bf16.xpose.msra.mxu0 0
    %6147 = vmatprep.subr.bf16.mxu0 0
    %6148 = vmatpush1.bf16.xpose.msra.mxu0 0
    %6149 = vmatprep.subr.bf16.mxu0 0
    %6150 = vmatpush1.bf16.xpose.msra.mxu0 0
    %6151 = vmatprep.subr.bf16.mxu0 0
    %6152 = vmatpush1.bf16.xpose.msra.mxu0 0
    %6153 = vmatprep.subr.bf16.mxu0 0
    %6154 = vmatpush1.bf16.xpose.msra.mxu0 0
    %6155 = vmatprep.subr.bf16.mxu0 0
    %6156 = vmatpush1.bf16.xpose.msra.mxu0 0
    %6157 = vmatprep.subr.bf16.mxu0 0
    %6158 = vmatpush1.bf16.xpose.msra.mxu0 0
    %6159 = vmatprep.subr.bf16.mxu0 0
    %6160 = vmatpush1.bf16.xpose.msra.mxu0 0
    %6161 = vmatprep.mubr.bf16.mxu0 0
    %6162 = vmatmul.mubr.bf16.gmra.mrb[0].mxu0 %v6124
    %v6163 = vpop.f32.mrb[0].mxu0
    %v6164 = vadd.f32 0.0, %v6163
    %v6165 = vpop.f32.mrb[0].mxu0
    %v6166 = vpop.f32.mrb[0].mxu0
    %v6167 = vpop.f32.mrb[0].mxu0
    %6168 = vdwg.mxu0
    %v6169 = vmul.f32 %v6164, 0.35355338
    %v6170 = vadd.f32 %v6169, %v2878
    %v6171 = vsel %vm260, %v6170, -inf
    %6172 = vmax.xlane.f32.xlu0 %v6171
    %v6173 = vpop.xlane.xlu0 %6172
    %v6174 = vsub.f32 %v6170, %v6173
    %v6175 = vmul.f32 %v6174, 1.442695
    %v6176 = vpow.pop %v6175
    %v6177 = vsel %vm260, %v6176, 0.0
    %6178 = vadd.xlane.f32.xlu0 %v6177
    %v6179 = vpop.xlane.xlu0 %6178
    %v6180 = vrcp.pop %v6179
    %v6181 = vmul.f32 %v6176, %v6180
    %v6182 = vpack.c.bf16 %v6181, %v6181
    %6183 = vrot.lane.b32.xlu0 %v5895, 48
    %v6184 = vpop.permute.xlu0 %6183
    %v6186 = vsel %vm260, %v6182, 0
    %v6189 = vsel %vm332, %v6184, 0
    %6191 = vmatprep.subr.bf16.mxu0 0
    %6192 = vmatpush1.bf16.msra.mxu0 %v6189
    %6193 = vmatprep.subr.bf16.mxu0 0
    %6194 = vmatpush1.bf16.msra.mxu0 0
    %6195 = vmatprep.subr.bf16.mxu0 0
    %6196 = vmatpush1.bf16.msra.mxu0 0
    %6197 = vmatprep.subr.bf16.mxu0 0
    %6198 = vmatpush1.bf16.msra.mxu0 0
    %6199 = vmatprep.subr.bf16.mxu0 0
    %6200 = vmatpush1.bf16.msra.mxu0 0
    %6201 = vmatprep.subr.bf16.mxu0 0
    %6202 = vmatpush1.bf16.msra.mxu0 0
    %6203 = vmatprep.subr.bf16.mxu0 0
    %6204 = vmatpush1.bf16.msra.mxu0 0
    %6205 = vmatprep.subr.bf16.mxu0 0
    %6206 = vmatpush1.bf16.msra.mxu0 0
    %6207 = vmatprep.subr.bf16.mxu0 0
    %6208 = vmatpush1.bf16.msra.mxu0 0
    %6209 = vmatprep.subr.bf16.mxu0 0
    %6210 = vmatpush1.bf16.msra.mxu0 0
    %6211 = vmatprep.subr.bf16.mxu0 0
    %6212 = vmatpush1.bf16.msra.mxu0 0
    %6213 = vmatprep.subr.bf16.mxu0 0
    %6214 = vmatpush1.bf16.msra.mxu0 0
    %6215 = vmatprep.subr.bf16.mxu0 0
    %6216 = vmatpush1.bf16.msra.mxu0 0
    %6217 = vmatprep.subr.bf16.mxu0 0
    %6218 = vmatpush1.bf16.msra.mxu0 0
    %6219 = vmatprep.subr.bf16.mxu0 0
    %6220 = vmatpush1.bf16.msra.mxu0 0
    %6221 = vmatprep.subr.bf16.mxu0 0
    %6222 = vmatpush1.bf16.msra.mxu0 0
    %6223 = vmatprep.mubr.bf16.mxu0 0
    %6224 = vmatmul.mubr.bf16.gmra.mrb[0].mxu0 %v6186
    %v6225 = vpop.f32.mrb[0].mxu0
    %v6226 = vadd.f32 0.0, %v6225
    %v6227 = vpop.f32.mrb[0].mxu0
    %v6228 = vpop.f32.mrb[0].mxu0
    %v6229 = vpop.f32.mrb[0].mxu0
    %6230 = vdwg.mxu0
    %6231 = vrot.lane.b32.xlu0 %v5895, 104
    %v6232 = vpop.permute.xlu0 %6231
    %6233 = vrot.lane.b32.xlu0 %v5895, 72
    %v6234 = vpop.permute.xlu0 %6233
    %v6236 = vsel %vm260, %v6232, 0
    %v6239 = vsel %vm260, %v6234, 0
    %6241 = vmatprep.subr.bf16.mxu0 0
    %6242 = vmatpush1.bf16.xpose.msra.mxu0 %v6239
    %6243 = vmatprep.subr.bf16.mxu0 0
    %6244 = vmatpush1.bf16.xpose.msra.mxu0 0
    %6245 = vmatprep.subr.bf16.mxu0 0
    %6246 = vmatpush1.bf16.xpose.msra.mxu0 0
    %6247 = vmatprep.subr.bf16.mxu0 0
    %6248 = vmatpush1.bf16.xpose.msra.mxu0 0
    %6249 = vmatprep.subr.bf16.mxu0 0
    %6250 = vmatpush1.bf16.xpose.msra.mxu0 0
    %6251 = vmatprep.subr.bf16.mxu0 0
    %6252 = vmatpush1.bf16.xpose.msra.mxu0 0
    %6253 = vmatprep.subr.bf16.mxu0 0
    %6254 = vmatpush1.bf16.xpose.msra.mxu0 0
    %6255 = vmatprep.subr.bf16.mxu0 0
    %6256 = vmatpush1.bf16.xpose.msra.mxu0 0
    %6257 = vmatprep.subr.bf16.mxu0 0
    %6258 = vmatpush1.bf16.xpose.msra.mxu0 0
    %6259 = vmatprep.subr.bf16.mxu0 0
    %6260 = vmatpush1.bf16.xpose.msra.mxu0 0
    %6261 = vmatprep.subr.bf16.mxu0 0
    %6262 = vmatpush1.bf16.xpose.msra.mxu0 0
    %6263 = vmatprep.subr.bf16.mxu0 0
    %6264 = vmatpush1.bf16.xpose.msra.mxu0 0
    %6265 = vmatprep.subr.bf16.mxu0 0
    %6266 = vmatpush1.bf16.xpose.msra.mxu0 0
    %6267 = vmatprep.subr.bf16.mxu0 0
    %6268 = vmatpush1.bf16.xpose.msra.mxu0 0
    %6269 = vmatprep.subr.bf16.mxu0 0
    %6270 = vmatpush1.bf16.xpose.msra.mxu0 0
    %6271 = vmatprep.subr.bf16.mxu0 0
    %6272 = vmatpush1.bf16.xpose.msra.mxu0 0
    %6273 = vmatprep.mubr.bf16.mxu0 0
    %6274 = vmatmul.mubr.bf16.gmra.mrb[0].mxu0 %v6236
    %v6275 = vpop.f32.mrb[0].mxu0
    %v6276 = vadd.f32 0.0, %v6275
    %v6277 = vpop.f32.mrb[0].mxu0
    %v6278 = vpop.f32.mrb[0].mxu0
    %v6279 = vpop.f32.mrb[0].mxu0
    %6280 = vdwg.mxu0
    %v6281 = vmul.f32 %v6276, 0.35355338
    %v6282 = vadd.f32 %v6281, %v2878
    %v6283 = vsel %vm260, %v6282, -inf
    %6284 = vmax.xlane.f32.xlu0 %v6283
    %v6285 = vpop.xlane.xlu0 %6284
    %v6286 = vsub.f32 %v6282, %v6285
    %v6287 = vmul.f32 %v6286, 1.442695
    %v6288 = vpow.pop %v6287
    %v6289 = vsel %vm260, %v6288, 0.0
    %6290 = vadd.xlane.f32.xlu0 %v6289
    %v6291 = vpop.xlane.xlu0 %6290
    %v6292 = vrcp.pop %v6291
    %v6293 = vmul.f32 %v6288, %v6292
    %v6294 = vpack.c.bf16 %v6293, %v6293
    %6295 = vrot.lane.b32.xlu0 %v5895, 40
    %v6296 = vpop.permute.xlu0 %6295
    %v6298 = vsel %vm260, %v6294, 0
    %v6301 = vsel %vm332, %v6296, 0
    %6303 = vmatprep.subr.bf16.mxu0 0
    %6304 = vmatpush1.bf16.msra.mxu0 %v6301
    %6305 = vmatprep.subr.bf16.mxu0 0
    %6306 = vmatpush1.bf16.msra.mxu0 0
    %6307 = vmatprep.subr.bf16.mxu0 0
    %6308 = vmatpush1.bf16.msra.mxu0 0
    %6309 = vmatprep.subr.bf16.mxu0 0
    %6310 = vmatpush1.bf16.msra.mxu0 0
    %6311 = vmatprep.subr.bf16.mxu0 0
    %6312 = vmatpush1.bf16.msra.mxu0 0
    %6313 = vmatprep.subr.bf16.mxu0 0
    %6314 = vmatpush1.bf16.msra.mxu0 0
    %6315 = vmatprep.subr.bf16.mxu0 0
    %6316 = vmatpush1.bf16.msra.mxu0 0
    %6317 = vmatprep.subr.bf16.mxu0 0
    %6318 = vmatpush1.bf16.msra.mxu0 0
    %6319 = vmatprep.subr.bf16.mxu0 0
    %6320 = vmatpush1.bf16.msra.mxu0 0
    %6321 = vmatprep.subr.bf16.mxu0 0
    %6322 = vmatpush1.bf16.msra.mxu0 0
    %6323 = vmatprep.subr.bf16.mxu0 0
    %6324 = vmatpush1.bf16.msra.mxu0 0
    %6325 = vmatprep.subr.bf16.mxu0 0
    %6326 = vmatpush1.bf16.msra.mxu0 0
    %6327 = vmatprep.subr.bf16.mxu0 0
    %6328 = vmatpush1.bf16.msra.mxu0 0
    %6329 = vmatprep.subr.bf16.mxu0 0
    %6330 = vmatpush1.bf16.msra.mxu0 0
    %6331 = vmatprep.subr.bf16.mxu0 0
    %6332 = vmatpush1.bf16.msra.mxu0 0
    %6333 = vmatprep.subr.bf16.mxu0 0
    %6334 = vmatpush1.bf16.msra.mxu0 0
    %6335 = vmatprep.mubr.bf16.mxu0 0
    %6336 = vmatmul.mubr.bf16.gmra.mrb[0].mxu0 %v6298
    %v6337 = vpop.f32.mrb[0].mxu0
    %v6338 = vadd.f32 0.0, %v6337
    %v6339 = vpop.f32.mrb[0].mxu0
    %v6340 = vpop.f32.mrb[0].mxu0
    %v6341 = vpop.f32.mrb[0].mxu0
    %6342 = vdwg.mxu0
    %6344 = vrot.lane.b32.xlu0 %v6114, 8
    %v6345 = vpop.permute.xlu0 %6344
    %6348 = vrot.lane.b32.xlu0 %v6226, 16
    %v6349 = vpop.permute.xlu0 %6348
    %6352 = vrot.lane.b32.xlu0 %v6338, 24
    %v6353 = vpop.permute.xlu0 %6352
    %v6355 = vsel %vm260, %v6002, %v6345
    %v6356 = vsel %vm725, %v6355, %v6349
    %v6357 = vsel %vm727, %v6356, %v6353
    %v6358 = vpack.c.bf16 %v6357, %v5894
    %v6360 = vlaneseq
    %v6361 = vshrl.u32 %v6360, 7
    %v6362 = vsub.s32 0, %v6361
    %v6363 = vrot.slane %v5368, %v6362
    %v6369 = vunpack.c.l.b16 %v5363
    %v6370 = vunpack.c.l.b16 %v5364
    %v6371 = vunpack.c.l.b16 %v5365
    %v6372 = vunpack.c.l.b16 %v5366
    %v6373 = vpack.c.b16 %v6370, %v6369
    %v6374 = vpack.c.b16 %v6372, %v6371
    %v6378 = vsel %vm211, %v6358, 0
    %6380 = vmatprep.subr.bf16.mxu0 0
    %6381 = vmatpush1.bf16.msra.mxu0 %v6373
    %6382 = vmatprep.subr.bf16.mxu0 0
    %6383 = vmatpush1.bf16.msra.mxu0 %v6374
    %6384 = vmatprep.subr.bf16.mxu0 0
    %6385 = vmatpush1.bf16.msra.mxu0 0
    %6386 = vmatprep.subr.bf16.mxu0 0
    %6387 = vmatpush1.bf16.msra.mxu0 0
    %6388 = vmatprep.subr.bf16.mxu0 0
    %6389 = vmatpush1.bf16.msra.mxu0 0
    %6390 = vmatprep.subr.bf16.mxu0 0
    %6391 = vmatpush1.bf16.msra.mxu0 0
    %6392 = vmatprep.subr.bf16.mxu0 0
    %6393 = vmatpush1.bf16.msra.mxu0 0
    %6394 = vmatprep.subr.bf16.mxu0 0
    %6395 = vmatpush1.bf16.msra.mxu0 0
    %6396 = vmatprep.subr.bf16.mxu0 0
    %6397 = vmatpush1.bf16.msra.mxu0 0
    %6398 = vmatprep.subr.bf16.mxu0 0
    %6399 = vmatpush1.bf16.msra.mxu0 0
    %6400 = vmatprep.subr.bf16.mxu0 0
    %6401 = vmatpush1.bf16.msra.mxu0 0
    %6402 = vmatprep.subr.bf16.mxu0 0
    %6403 = vmatpush1.bf16.msra.mxu0 0
    %6404 = vmatprep.subr.bf16.mxu0 0
    %6405 = vmatpush1.bf16.msra.mxu0 0
    %6406 = vmatprep.subr.bf16.mxu0 0
    %6407 = vmatpush1.bf16.msra.mxu0 0
    %6408 = vmatprep.subr.bf16.mxu0 0
    %6409 = vmatpush1.bf16.msra.mxu0 0
    %6410 = vmatprep.subr.bf16.mxu0 0
    %6411 = vmatpush1.bf16.msra.mxu0 0
    %6412 = vmatprep.mubr.bf16.mxu0 0
    %6413 = vmatmul.mubr.bf16.gmra.mrb[0].mxu0 %v6378
    %v6414 = vpop.f32.mrb[0].mxu0
    %v6415 = vadd.f32 %v6363, %v6414
    %v6416 = vpop.f32.mrb[0].mxu0
    %v6417 = vpop.f32.mrb[0].mxu0
    %v6418 = vadd.f32 %v6363, %v6417
    %v6419 = vpop.f32.mrb[0].mxu0
    %6420 = vdwg.mxu0
    %v6421 = vadd.f32 %v5353, %v6415
    %v6422 = vadd.f32 %v5354, %v6418
    %s6423 = scalar_lea.vmem %s43, 1
    %v6424 = vld [vmem:[%s6423] sm:$0x1]
    %s6425 = scalar_lea.vmem %s45, 1
    %v6426 = vld [vmem:[%s6425] sm:$0x1]
    %v6427 = vsel %vm211, %v6421, 0.0
    %6428 = vadd.xlane.f32.xlu0 %v6427
    %v6429 = vpop.xlane.xlu0 %6428
    %v6430 = vsel %vm211, %v6422, 0.0
    %6431 = vadd.xlane.f32.xlu0 %v6430
    %v6432 = vpop.xlane.xlu0 %6431
    %v6433 = vmul.f32 %v6429, %v1271
    %v6434 = vmul.f32 %v6432, %v1271
    %v6435 = vsub.f32 %v6421, %v6433
    %v6436 = vsub.f32 %v6422, %v6434
    %v6437 = vmul.f32 %v6435, %v6435
    %v6438 = vmul.f32 %v6436, %v6436
    %v6439 = vsel %vm211, %v6437, 0.0
    %6440 = vadd.xlane.f32.xlu0 %v6439
    %v6441 = vpop.xlane.xlu0 %6440
    %v6442 = vsel %vm211, %v6438, 0.0
    %6443 = vadd.xlane.f32.xlu0 %v6442
    %v6444 = vpop.xlane.xlu0 %6443
    %v6445 = vmul.f32 %v6441, %v1271
    %v6446 = vmul.f32 %v6444, %v1271
    %v6447 = vadd.f32 %v6445, 1e-05
    %v6448 = vadd.f32 %v6446, 1e-05
    %v6449 = vrsqrt.pop %v6447
    %v6450 = vrsqrt.pop %v6448
    %v6451 = vmul.f32 %v6435, %v6449
    %v6452 = vmul.f32 %v6436, %v6450
    %v6454 = vlaneseq
    %v6455 = vshrl.u32 %v6454, 7
    %v6456 = vsub.s32 0, %v6455
    %v6457 = vrot.slane %v6424, %v6456
    %v6459 = vmul.f32 %v6451, %v6457
    %v6460 = vmul.f32 %v6452, %v6457
    %v6462 = vlaneseq
    %v6463 = vshrl.u32 %v6462, 7
    %v6464 = vsub.s32 0, %v6463
    %v6465 = vrot.slane %v6426, %v6464
    %v6467 = vadd.f32 %v6459, %v6465
    %v6468 = vadd.f32 %v6460, %v6465
    %s6469 = scalar_lea.vmem %s47, 16
    %v6470 = vld [vmem:[%s6469] sm:$0xf]
    %v6471 = vld [vmem:[%s6469 + $0x4] sm:$0xf]
    %v6472 = vld [vmem:[%s6469 + $0x8] sm:$0xf]
    %v6473 = vld [vmem:[%s6469 + $0xc] sm:$0xf]
    %s6474 = scalar_lea.vmem %s49, 1
    %v6475 = vld [vmem:[%s6474] sm:$0x1]
    %s6476 = scalar_lea.vmem %s51, 16
    %v6477 = vld [vmem:[%s6476] sm:$0xf]
    %v6478 = vld [vmem:[%s6476 + $0x4] sm:$0xf]
    %v6479 = vld [vmem:[%s6476 + $0x8] sm:$0xf]
    %v6480 = vld [vmem:[%s6476 + $0xc] sm:$0xf]
    %s6481 = scalar_lea.vmem %s53, 1
    %v6482 = vld [vmem:[%s6481] sm:$0x1]
    %s6483 = scalar_lea.vmem %s55, 16
    %v6484 = vld [vmem:[%s6483] sm:$0xf]
    %v6485 = vld [vmem:[%s6483 + $0x4] sm:$0xf]
    %v6486 = vld [vmem:[%s6483 + $0x8] sm:$0xf]
    %v6487 = vld [vmem:[%s6483 + $0xc] sm:$0xf]
    %s6488 = scalar_lea.vmem %s57, 1
    %v6489 = vld [vmem:[%s6488] sm:$0x1]
    %v6490 = vpack.c.bf16 %v6468, %v6467
    %v6492 = vlaneseq
    %v6493 = vshrl.u32 %v6492, 7
    %v6494 = vsub.s32 0, %v6493
    %v6495 = vrot.slane %v6475, %v6494
    %v6501 = vunpack.c.l.b16 %v6470
    %v6502 = vunpack.c.l.b16 %v6471
    %v6503 = vunpack.c.l.b16 %v6472
    %v6504 = vunpack.c.l.b16 %v6473
    %v6505 = vpack.c.b16 %v6502, %v6501
    %v6506 = vpack.c.b16 %v6504, %v6503
    %v6510 = vsel %vm211, %v6490, 0
    %6512 = vmatprep.subr.bf16.mxu0 0
    %6513 = vmatpush1.bf16.msra.mxu0 %v6505
    %6514 = vmatprep.subr.bf16.mxu0 0
    %6515 = vmatpush1.bf16.msra.mxu0 %v6506
    %6516 = vmatprep.subr.bf16.mxu0 0
    %6517 = vmatpush1.bf16.msra.mxu0 0
    %6518 = vmatprep.subr.bf16.mxu0 0
    %6519 = vmatpush1.bf16.msra.mxu0 0
    %6520 = vmatprep.subr.bf16.mxu0 0
    %6521 = vmatpush1.bf16.msra.mxu0 0
    %6522 = vmatprep.subr.bf16.mxu0 0
    %6523 = vmatpush1.bf16.msra.mxu0 0
    %6524 = vmatprep.subr.bf16.mxu0 0
    %6525 = vmatpush1.bf16.msra.mxu0 0
    %6526 = vmatprep.subr.bf16.mxu0 0
    %6527 = vmatpush1.bf16.msra.mxu0 0
    %6528 = vmatprep.subr.bf16.mxu0 0
    %6529 = vmatpush1.bf16.msra.mxu0 0
    %6530 = vmatprep.subr.bf16.mxu0 0
    %6531 = vmatpush1.bf16.msra.mxu0 0
    %6532 = vmatprep.subr.bf16.mxu0 0
    %6533 = vmatpush1.bf16.msra.mxu0 0
    %6534 = vmatprep.subr.bf16.mxu0 0
    %6535 = vmatpush1.bf16.msra.mxu0 0
    %6536 = vmatprep.subr.bf16.mxu0 0
    %6537 = vmatpush1.bf16.msra.mxu0 0
    %6538 = vmatprep.subr.bf16.mxu0 0
    %6539 = vmatpush1.bf16.msra.mxu0 0
    %6540 = vmatprep.subr.bf16.mxu0 0
    %6541 = vmatpush1.bf16.msra.mxu0 0
    %6542 = vmatprep.subr.bf16.mxu0 0
    %6543 = vmatpush1.bf16.msra.mxu0 0
    %6544 = vmatprep.mubr.bf16.mxu0 0
    %6545 = vmatmul.mubr.bf16.gmra.mrb[0].mxu0 %v6510
    %v6546 = vpop.f32.mrb[0].mxu0
    %v6547 = vadd.f32 %v6495, %v6546
    %v6548 = vpop.f32.mrb[0].mxu0
    %v6549 = vpop.f32.mrb[0].mxu0
    %v6550 = vadd.f32 %v6495, %v6549
    %v6551 = vpop.f32.mrb[0].mxu0
    %6552 = vdwg.mxu0
    %v6554 = vlaneseq
    %v6555 = vshrl.u32 %v6554, 7
    %v6556 = vsub.s32 0, %v6555
    %v6557 = vrot.slane %v6482, %v6556
    %v6563 = vunpack.c.l.b16 %v6477
    %v6564 = vunpack.c.l.b16 %v6478
    %v6565 = vunpack.c.l.b16 %v6479
    %v6566 = vunpack.c.l.b16 %v6480
    %v6567 = vpack.c.b16 %v6564, %v6563
    %v6568 = vpack.c.b16 %v6566, %v6565
    %6571 = vmatprep.subr.bf16.mxu0 0
    %6572 = vmatpush1.bf16.msra.mxu0 %v6567
    %6573 = vmatprep.subr.bf16.mxu0 0
    %6574 = vmatpush1.bf16.msra.mxu0 %v6568
    %6575 = vmatprep.subr.bf16.mxu0 0
    %6576 = vmatpush1.bf16.msra.mxu0 0
    %6577 = vmatprep.subr.bf16.mxu0 0
    %6578 = vmatpush1.bf16.msra.mxu0 0
    %6579 = vmatprep.subr.bf16.mxu0 0
    %6580 = vmatpush1.bf16.msra.mxu0 0
    %6581 = vmatprep.subr.bf16.mxu0 0
    %6582 = vmatpush1.bf16.msra.mxu0 0
    %6583 = vmatprep.subr.bf16.mxu0 0
    %6584 = vmatpush1.bf16.msra.mxu0 0
    %6585 = vmatprep.subr.bf16.mxu0 0
    %6586 = vmatpush1.bf16.msra.mxu0 0
    %6587 = vmatprep.subr.bf16.mxu0 0
    %6588 = vmatpush1.bf16.msra.mxu0 0
    %6589 = vmatprep.subr.bf16.mxu0 0
    %6590 = vmatpush1.bf16.msra.mxu0 0
    %6591 = vmatprep.subr.bf16.mxu0 0
    %6592 = vmatpush1.bf16.msra.mxu0 0
    %6593 = vmatprep.subr.bf16.mxu0 0
    %6594 = vmatpush1.bf16.msra.mxu0 0
    %6595 = vmatprep.subr.bf16.mxu0 0
    %6596 = vmatpush1.bf16.msra.mxu0 0
    %6597 = vmatprep.subr.bf16.mxu0 0
    %6598 = vmatpush1.bf16.msra.mxu0 0
    %6599 = vmatprep.subr.bf16.mxu0 0
    %6600 = vmatpush1.bf16.msra.mxu0 0
    %6601 = vmatprep.subr.bf16.mxu0 0
    %6602 = vmatpush1.bf16.msra.mxu0 0
    %6603 = vmatprep.mubr.bf16.mxu0 0
    %6604 = vmatmul.mubr.bf16.gmra.mrb[0].mxu0 %v4085
    %v6605 = vpop.f32.mrb[0].mxu0
    %v6606 = vadd.f32 %v6557, %v6605
    %v6607 = vpop.f32.mrb[0].mxu0
    %v6608 = vpop.f32.mrb[0].mxu0
    %v6609 = vadd.f32 %v6557, %v6608
    %v6610 = vpop.f32.mrb[0].mxu0
    %6611 = vdwg.mxu0
    %v6612 = vpack.c.bf16 %v6547, %v6547
    %v6613 = vpack.c.bf16 %v6606, %v6606
    %v6615 = vsel %vm260, %v6612, 0
    %v6618 = vsel %vm260, %v6613, 0
    %6620 = vmatprep.subr.bf16.mxu0 0
    %6621 = vmatpush1.bf16.xpose.msra.mxu0 %v6618
    %6622 = vmatprep.subr.bf16.mxu0 0
    %6623 = vmatpush1.bf16.xpose.msra.mxu0 0
    %6624 = vmatprep.subr.bf16.mxu0 0
    %6625 = vmatpush1.bf16.xpose.msra.mxu0 0
    %6626 = vmatprep.subr.bf16.mxu0 0
    %6627 = vmatpush1.bf16.xpose.msra.mxu0 0
    %6628 = vmatprep.subr.bf16.mxu0 0
    %6629 = vmatpush1.bf16.xpose.msra.mxu0 0
    %6630 = vmatprep.subr.bf16.mxu0 0
    %6631 = vmatpush1.bf16.xpose.msra.mxu0 0
    %6632 = vmatprep.subr.bf16.mxu0 0
    %6633 = vmatpush1.bf16.xpose.msra.mxu0 0
    %6634 = vmatprep.subr.bf16.mxu0 0
    %6635 = vmatpush1.bf16.xpose.msra.mxu0 0
    %6636 = vmatprep.subr.bf16.mxu0 0
    %6637 = vmatpush1.bf16.xpose.msra.mxu0 0
    %6638 = vmatprep.subr.bf16.mxu0 0
    %6639 = vmatpush1.bf16.xpose.msra.mxu0 0
    %6640 = vmatprep.subr.bf16.mxu0 0
    %6641 = vmatpush1.bf16.xpose.msra.mxu0 0
    %6642 = vmatprep.subr.bf16.mxu0 0
    %6643 = vmatpush1.bf16.xpose.msra.mxu0 0
    %6644 = vmatprep.subr.bf16.mxu0 0
    %6645 = vmatpush1.bf16.xpose.msra.mxu0 0
    %6646 = vmatprep.subr.bf16.mxu0 0
    %6647 = vmatpush1.bf16.xpose.msra.mxu0 0
    %6648 = vmatprep.subr.bf16.mxu0 0
    %6649 = vmatpush1.bf16.xpose.msra.mxu0 0
    %6650 = vmatprep.subr.bf16.mxu0 0
    %6651 = vmatpush1.bf16.xpose.msra.mxu0 0
    %6652 = vmatprep.mubr.bf16.mxu0 0
    %6653 = vmatmul.mubr.bf16.gmra.mrb[0].mxu0 %v6615
    %v6654 = vpop.f32.mrb[0].mxu0
    %v6655 = vadd.f32 0.0, %v6654
    %v6656 = vpop.f32.mrb[0].mxu0
    %v6657 = vpop.f32.mrb[0].mxu0
    %v6658 = vpop.f32.mrb[0].mxu0
    %6659 = vdwg.mxu0
    %v6660 = vmul.f32 %v6655, 0.35355338
    %v6661 = vsel %vm260, %v6660, -inf
    %6662 = vmax.xlane.f32.xlu0 %v6661
    %v6663 = vpop.xlane.xlu0 %6662
    %v6664 = vsub.f32 %v6660, %v6663
    %v6665 = vmul.f32 %v6664, 1.442695
    %v6666 = vpow.pop %v6665
    %v6667 = vsel %vm260, %v6666, 0.0
    %6668 = vadd.xlane.f32.xlu0 %v6667
    %v6669 = vpop.xlane.xlu0 %6668
    %v6670 = vrcp.pop %v6669
    %v6671 = vmul.f32 %v6666, %v6670
    %v6672 = vpack.c.bf16 %v6671, %v6671
    %6674 = vrot.lane.b32.xlu0 %v6613, 96
    %v6675 = vpop.permute.xlu0 %6674
    %v6677 = vsel %vm260, %v6672, 0
    %v6680 = vsel %vm332, %v6675, 0
    %6682 = vmatprep.subr.bf16.mxu0 0
    %6683 = vmatpush1.bf16.msra.mxu0 %v6680
    %6684 = vmatprep.subr.bf16.mxu0 0
    %6685 = vmatpush1.bf16.msra.mxu0 0
    %6686 = vmatprep.subr.bf16.mxu0 0
    %6687 = vmatpush1.bf16.msra.mxu0 0
    %6688 = vmatprep.subr.bf16.mxu0 0
    %6689 = vmatpush1.bf16.msra.mxu0 0
    %6690 = vmatprep.subr.bf16.mxu0 0
    %6691 = vmatpush1.bf16.msra.mxu0 0
    %6692 = vmatprep.subr.bf16.mxu0 0
    %6693 = vmatpush1.bf16.msra.mxu0 0
    %6694 = vmatprep.subr.bf16.mxu0 0
    %6695 = vmatpush1.bf16.msra.mxu0 0
    %6696 = vmatprep.subr.bf16.mxu0 0
    %6697 = vmatpush1.bf16.msra.mxu0 0
    %6698 = vmatprep.subr.bf16.mxu0 0
    %6699 = vmatpush1.bf16.msra.mxu0 0
    %6700 = vmatprep.subr.bf16.mxu0 0
    %6701 = vmatpush1.bf16.msra.mxu0 0
    %6702 = vmatprep.subr.bf16.mxu0 0
    %6703 = vmatpush1.bf16.msra.mxu0 0
    %6704 = vmatprep.subr.bf16.mxu0 0
    %6705 = vmatpush1.bf16.msra.mxu0 0
    %6706 = vmatprep.subr.bf16.mxu0 0
    %6707 = vmatpush1.bf16.msra.mxu0 0
    %6708 = vmatprep.subr.bf16.mxu0 0
    %6709 = vmatpush1.bf16.msra.mxu0 0
    %6710 = vmatprep.subr.bf16.mxu0 0
    %6711 = vmatpush1.bf16.msra.mxu0 0
    %6712 = vmatprep.subr.bf16.mxu0 0
    %6713 = vmatpush1.bf16.msra.mxu0 0
    %6714 = vmatprep.mubr.bf16.mxu0 0
    %6715 = vmatmul.mubr.bf16.gmra.mrb[0].mxu0 %v6677
    %v6716 = vpop.f32.mrb[0].mxu0
    %v6717 = vadd.f32 0.0, %v6716
    %v6718 = vpop.f32.mrb[0].mxu0
    %v6719 = vpop.f32.mrb[0].mxu0
    %v6720 = vpop.f32.mrb[0].mxu0
    %6721 = vdwg.mxu0
    %6723 = vrot.lane.b32.xlu0 %v6612, 120
    %v6724 = vpop.permute.xlu0 %6723
    %6725 = vrot.lane.b32.xlu0 %v6613, 120
    %v6726 = vpop.permute.xlu0 %6725
    %v6728 = vsel %vm260, %v6724, 0
    %v6731 = vsel %vm260, %v6726, 0
    %6733 = vmatprep.subr.bf16.mxu0 0
    %6734 = vmatpush1.bf16.xpose.msra.mxu0 %v6731
    %6735 = vmatprep.subr.bf16.mxu0 0
    %6736 = vmatpush1.bf16.xpose.msra.mxu0 0
    %6737 = vmatprep.subr.bf16.mxu0 0
    %6738 = vmatpush1.bf16.xpose.msra.mxu0 0
    %6739 = vmatprep.subr.bf16.mxu0 0
    %6740 = vmatpush1.bf16.xpose.msra.mxu0 0
    %6741 = vmatprep.subr.bf16.mxu0 0
    %6742 = vmatpush1.bf16.xpose.msra.mxu0 0
    %6743 = vmatprep.subr.bf16.mxu0 0
    %6744 = vmatpush1.bf16.xpose.msra.mxu0 0
    %6745 = vmatprep.subr.bf16.mxu0 0
    %6746 = vmatpush1.bf16.xpose.msra.mxu0 0
    %6747 = vmatprep.subr.bf16.mxu0 0
    %6748 = vmatpush1.bf16.xpose.msra.mxu0 0
    %6749 = vmatprep.subr.bf16.mxu0 0
    %6750 = vmatpush1.bf16.xpose.msra.mxu0 0
    %6751 = vmatprep.subr.bf16.mxu0 0
    %6752 = vmatpush1.bf16.xpose.msra.mxu0 0
    %6753 = vmatprep.subr.bf16.mxu0 0
    %6754 = vmatpush1.bf16.xpose.msra.mxu0 0
    %6755 = vmatprep.subr.bf16.mxu0 0
    %6756 = vmatpush1.bf16.xpose.msra.mxu0 0
    %6757 = vmatprep.subr.bf16.mxu0 0
    %6758 = vmatpush1.bf16.xpose.msra.mxu0 0
    %6759 = vmatprep.subr.bf16.mxu0 0
    %6760 = vmatpush1.bf16.xpose.msra.mxu0 0
    %6761 = vmatprep.subr.bf16.mxu0 0
    %6762 = vmatpush1.bf16.xpose.msra.mxu0 0
    %6763 = vmatprep.subr.bf16.mxu0 0
    %6764 = vmatpush1.bf16.xpose.msra.mxu0 0
    %6765 = vmatprep.mubr.bf16.mxu0 0
    %6766 = vmatmul.mubr.bf16.gmra.mrb[0].mxu0 %v6728
    %v6767 = vpop.f32.mrb[0].mxu0
    %v6768 = vadd.f32 0.0, %v6767
    %v6769 = vpop.f32.mrb[0].mxu0
    %v6770 = vpop.f32.mrb[0].mxu0
    %v6771 = vpop.f32.mrb[0].mxu0
    %6772 = vdwg.mxu0
    %v6773 = vmul.f32 %v6768, 0.35355338
    %v6774 = vsel %vm260, %v6773, -inf
    %6775 = vmax.xlane.f32.xlu0 %v6774
    %v6776 = vpop.xlane.xlu0 %6775
    %v6777 = vsub.f32 %v6773, %v6776
    %v6778 = vmul.f32 %v6777, 1.442695
    %v6779 = vpow.pop %v6778
    %v6780 = vsel %vm260, %v6779, 0.0
    %6781 = vadd.xlane.f32.xlu0 %v6780
    %v6782 = vpop.xlane.xlu0 %6781
    %v6783 = vrcp.pop %v6782
    %v6784 = vmul.f32 %v6779, %v6783
    %v6785 = vpack.c.bf16 %v6784, %v6784
    %6786 = vrot.lane.b32.xlu0 %v6613, 88
    %v6787 = vpop.permute.xlu0 %6786
    %v6789 = vsel %vm260, %v6785, 0
    %v6792 = vsel %vm332, %v6787, 0
    %6794 = vmatprep.subr.bf16.mxu0 0
    %6795 = vmatpush1.bf16.msra.mxu0 %v6792
    %6796 = vmatprep.subr.bf16.mxu0 0
    %6797 = vmatpush1.bf16.msra.mxu0 0
    %6798 = vmatprep.subr.bf16.mxu0 0
    %6799 = vmatpush1.bf16.msra.mxu0 0
    %6800 = vmatprep.subr.bf16.mxu0 0
    %6801 = vmatpush1.bf16.msra.mxu0 0
    %6802 = vmatprep.subr.bf16.mxu0 0
    %6803 = vmatpush1.bf16.msra.mxu0 0
    %6804 = vmatprep.subr.bf16.mxu0 0
    %6805 = vmatpush1.bf16.msra.mxu0 0
    %6806 = vmatprep.subr.bf16.mxu0 0
    %6807 = vmatpush1.bf16.msra.mxu0 0
    %6808 = vmatprep.subr.bf16.mxu0 0
    %6809 = vmatpush1.bf16.msra.mxu0 0
    %6810 = vmatprep.subr.bf16.mxu0 0
    %6811 = vmatpush1.bf16.msra.mxu0 0
    %6812 = vmatprep.subr.bf16.mxu0 0
    %6813 = vmatpush1.bf16.msra.mxu0 0
    %6814 = vmatprep.subr.bf16.mxu0 0
    %6815 = vmatpush1.bf16.msra.mxu0 0
    %6816 = vmatprep.subr.bf16.mxu0 0
    %6817 = vmatpush1.bf16.msra.mxu0 0
    %6818 = vmatprep.subr.bf16.mxu0 0
    %6819 = vmatpush1.bf16.msra.mxu0 0
    %6820 = vmatprep.subr.bf16.mxu0 0
    %6821 = vmatpush1.bf16.msra.mxu0 0
    %6822 = vmatprep.subr.bf16.mxu0 0
    %6823 = vmatpush1.bf16.msra.mxu0 0
    %6824 = vmatprep.subr.bf16.mxu0 0
    %6825 = vmatpush1.bf16.msra.mxu0 0
    %6826 = vmatprep.mubr.bf16.mxu0 0
    %6827 = vmatmul.mubr.bf16.gmra.mrb[0].mxu0 %v6789
    %v6828 = vpop.f32.mrb[0].mxu0
    %v6829 = vadd.f32 0.0, %v6828
    %v6830 = vpop.f32.mrb[0].mxu0
    %v6831 = vpop.f32.mrb[0].mxu0
    %v6832 = vpop.f32.mrb[0].mxu0
    %6833 = vdwg.mxu0
    %6834 = vrot.lane.b32.xlu0 %v6612, 112
    %v6835 = vpop.permute.xlu0 %6834
    %6836 = vrot.lane.b32.xlu0 %v6613, 112
    %v6837 = vpop.permute.xlu0 %6836
    %v6839 = vsel %vm260, %v6835, 0
    %v6842 = vsel %vm260, %v6837, 0
    %6844 = vmatprep.subr.bf16.mxu0 0
    %6845 = vmatpush1.bf16.xpose.msra.mxu0 %v6842
    %6846 = vmatprep.subr.bf16.mxu0 0
    %6847 = vmatpush1.bf16.xpose.msra.mxu0 0
    %6848 = vmatprep.subr.bf16.mxu0 0
    %6849 = vmatpush1.bf16.xpose.msra.mxu0 0
    %6850 = vmatprep.subr.bf16.mxu0 0
    %6851 = vmatpush1.bf16.xpose.msra.mxu0 0
    %6852 = vmatprep.subr.bf16.mxu0 0
    %6853 = vmatpush1.bf16.xpose.msra.mxu0 0
    %6854 = vmatprep.subr.bf16.mxu0 0
    %6855 = vmatpush1.bf16.xpose.msra.mxu0 0
    %6856 = vmatprep.subr.bf16.mxu0 0
    %6857 = vmatpush1.bf16.xpose.msra.mxu0 0
    %6858 = vmatprep.subr.bf16.mxu0 0
    %6859 = vmatpush1.bf16.xpose.msra.mxu0 0
    %6860 = vmatprep.subr.bf16.mxu0 0
    %6861 = vmatpush1.bf16.xpose.msra.mxu0 0
    %6862 = vmatprep.subr.bf16.mxu0 0
    %6863 = vmatpush1.bf16.xpose.msra.mxu0 0
    %6864 = vmatprep.subr.bf16.mxu0 0
    %6865 = vmatpush1.bf16.xpose.msra.mxu0 0
    %6866 = vmatprep.subr.bf16.mxu0 0
    %6867 = vmatpush1.bf16.xpose.msra.mxu0 0
    %6868 = vmatprep.subr.bf16.mxu0 0
    %6869 = vmatpush1.bf16.xpose.msra.mxu0 0
    %6870 = vmatprep.subr.bf16.mxu0 0
    %6871 = vmatpush1.bf16.xpose.msra.mxu0 0
    %6872 = vmatprep.subr.bf16.mxu0 0
    %6873 = vmatpush1.bf16.xpose.msra.mxu0 0
    %6874 = vmatprep.subr.bf16.mxu0 0
    %6875 = vmatpush1.bf16.xpose.msra.mxu0 0
    %6876 = vmatprep.mubr.bf16.mxu0 0
    %6877 = vmatmul.mubr.bf16.gmra.mrb[0].mxu0 %v6839
    %v6878 = vpop.f32.mrb[0].mxu0
    %v6879 = vadd.f32 0.0, %v6878
    %v6880 = vpop.f32.mrb[0].mxu0
    %v6881 = vpop.f32.mrb[0].mxu0
    %v6882 = vpop.f32.mrb[0].mxu0
    %6883 = vdwg.mxu0
    %v6884 = vmul.f32 %v6879, 0.35355338
    %v6885 = vsel %vm260, %v6884, -inf
    %6886 = vmax.xlane.f32.xlu0 %v6885
    %v6887 = vpop.xlane.xlu0 %6886
    %v6888 = vsub.f32 %v6884, %v6887
    %v6889 = vmul.f32 %v6888, 1.442695
    %v6890 = vpow.pop %v6889
    %v6891 = vsel %vm260, %v6890, 0.0
    %6892 = vadd.xlane.f32.xlu0 %v6891
    %v6893 = vpop.xlane.xlu0 %6892
    %v6894 = vrcp.pop %v6893
    %v6895 = vmul.f32 %v6890, %v6894
    %v6896 = vpack.c.bf16 %v6895, %v6895
    %6897 = vrot.lane.b32.xlu0 %v6613, 80
    %v6898 = vpop.permute.xlu0 %6897
    %v6900 = vsel %vm260, %v6896, 0
    %v6903 = vsel %vm332, %v6898, 0
    %6905 = vmatprep.subr.bf16.mxu0 0
    %6906 = vmatpush1.bf16.msra.mxu0 %v6903
    %6907 = vmatprep.subr.bf16.mxu0 0
    %6908 = vmatpush1.bf16.msra.mxu0 0
    %6909 = vmatprep.subr.bf16.mxu0 0
    %6910 = vmatpush1.bf16.msra.mxu0 0
    %6911 = vmatprep.subr.bf16.mxu0 0
    %6912 = vmatpush1.bf16.msra.mxu0 0
    %6913 = vmatprep.subr.bf16.mxu0 0
    %6914 = vmatpush1.bf16.msra.mxu0 0
    %6915 = vmatprep.subr.bf16.mxu0 0
    %6916 = vmatpush1.bf16.msra.mxu0 0
    %6917 = vmatprep.subr.bf16.mxu0 0
    %6918 = vmatpush1.bf16.msra.mxu0 0
    %6919 = vmatprep.subr.bf16.mxu0 0
    %6920 = vmatpush1.bf16.msra.mxu0 0
    %6921 = vmatprep.subr.bf16.mxu0 0
    %6922 = vmatpush1.bf16.msra.mxu0 0
    %6923 = vmatprep.subr.bf16.mxu0 0
    %6924 = vmatpush1.bf16.msra.mxu0 0
    %6925 = vmatprep.subr.bf16.mxu0 0
    %6926 = vmatpush1.bf16.msra.mxu0 0
    %6927 = vmatprep.subr.bf16.mxu0 0
    %6928 = vmatpush1.bf16.msra.mxu0 0
    %6929 = vmatprep.subr.bf16.mxu0 0
    %6930 = vmatpush1.bf16.msra.mxu0 0
    %6931 = vmatprep.subr.bf16.mxu0 0
    %6932 = vmatpush1.bf16.msra.mxu0 0
    %6933 = vmatprep.subr.bf16.mxu0 0
    %6934 = vmatpush1.bf16.msra.mxu0 0
    %6935 = vmatprep.subr.bf16.mxu0 0
    %6936 = vmatpush1.bf16.msra.mxu0 0
    %6937 = vmatprep.mubr.bf16.mxu0 0
    %6938 = vmatmul.mubr.bf16.gmra.mrb[0].mxu0 %v6900
    %v6939 = vpop.f32.mrb[0].mxu0
    %v6940 = vadd.f32 0.0, %v6939
    %v6941 = vpop.f32.mrb[0].mxu0
    %v6942 = vpop.f32.mrb[0].mxu0
    %v6943 = vpop.f32.mrb[0].mxu0
    %6944 = vdwg.mxu0
    %6945 = vrot.lane.b32.xlu0 %v6612, 104
    %v6946 = vpop.permute.xlu0 %6945
    %6947 = vrot.lane.b32.xlu0 %v6613, 104
    %v6948 = vpop.permute.xlu0 %6947
    %v6950 = vsel %vm260, %v6946, 0
    %v6953 = vsel %vm260, %v6948, 0
    %6955 = vmatprep.subr.bf16.mxu0 0
    %6956 = vmatpush1.bf16.xpose.msra.mxu0 %v6953
    %6957 = vmatprep.subr.bf16.mxu0 0
    %6958 = vmatpush1.bf16.xpose.msra.mxu0 0
    %6959 = vmatprep.subr.bf16.mxu0 0
    %6960 = vmatpush1.bf16.xpose.msra.mxu0 0
    %6961 = vmatprep.subr.bf16.mxu0 0
    %6962 = vmatpush1.bf16.xpose.msra.mxu0 0
    %6963 = vmatprep.subr.bf16.mxu0 0
    %6964 = vmatpush1.bf16.xpose.msra.mxu0 0
    %6965 = vmatprep.subr.bf16.mxu0 0
    %6966 = vmatpush1.bf16.xpose.msra.mxu0 0
    %6967 = vmatprep.subr.bf16.mxu0 0
    %6968 = vmatpush1.bf16.xpose.msra.mxu0 0
    %6969 = vmatprep.subr.bf16.mxu0 0
    %6970 = vmatpush1.bf16.xpose.msra.mxu0 0
    %6971 = vmatprep.subr.bf16.mxu0 0
    %6972 = vmatpush1.bf16.xpose.msra.mxu0 0
    %6973 = vmatprep.subr.bf16.mxu0 0
    %6974 = vmatpush1.bf16.xpose.msra.mxu0 0
    %6975 = vmatprep.subr.bf16.mxu0 0
    %6976 = vmatpush1.bf16.xpose.msra.mxu0 0
    %6977 = vmatprep.subr.bf16.mxu0 0
    %6978 = vmatpush1.bf16.xpose.msra.mxu0 0
    %6979 = vmatprep.subr.bf16.mxu0 0
    %6980 = vmatpush1.bf16.xpose.msra.mxu0 0
    %6981 = vmatprep.subr.bf16.mxu0 0
    %6982 = vmatpush1.bf16.xpose.msra.mxu0 0
    %6983 = vmatprep.subr.bf16.mxu0 0
    %6984 = vmatpush1.bf16.xpose.msra.mxu0 0
    %6985 = vmatprep.subr.bf16.mxu0 0
    %6986 = vmatpush1.bf16.xpose.msra.mxu0 0
    %6987 = vmatprep.mubr.bf16.mxu0 0
    %6988 = vmatmul.mubr.bf16.gmra.mrb[0].mxu0 %v6950
    %v6989 = vpop.f32.mrb[0].mxu0
    %v6990 = vadd.f32 0.0, %v6989
    %v6991 = vpop.f32.mrb[0].mxu0
    %v6992 = vpop.f32.mrb[0].mxu0
    %v6993 = vpop.f32.mrb[0].mxu0
    %6994 = vdwg.mxu0
    %v6995 = vmul.f32 %v6990, 0.35355338
    %v6996 = vsel %vm260, %v6995, -inf
    %6997 = vmax.xlane.f32.xlu0 %v6996
    %v6998 = vpop.xlane.xlu0 %6997
    %v6999 = vsub.f32 %v6995, %v6998
    %v7000 = vmul.f32 %v6999, 1.442695
    %v7001 = vpow.pop %v7000
    %v7002 = vsel %vm260, %v7001, 0.0
    %7003 = vadd.xlane.f32.xlu0 %v7002
    %v7004 = vpop.xlane.xlu0 %7003
    %v7005 = vrcp.pop %v7004
    %v7006 = vmul.f32 %v7001, %v7005
    %v7007 = vpack.c.bf16 %v7006, %v7006
    %7008 = vrot.lane.b32.xlu0 %v6613, 72
    %v7009 = vpop.permute.xlu0 %7008
    %v7011 = vsel %vm260, %v7007, 0
    %v7014 = vsel %vm332, %v7009, 0
    %7016 = vmatprep.subr.bf16.mxu0 0
    %7017 = vmatpush1.bf16.msra.mxu0 %v7014
    %7018 = vmatprep.subr.bf16.mxu0 0
    %7019 = vmatpush1.bf16.msra.mxu0 0
    %7020 = vmatprep.subr.bf16.mxu0 0
    %7021 = vmatpush1.bf16.msra.mxu0 0
    %7022 = vmatprep.subr.bf16.mxu0 0
    %7023 = vmatpush1.bf16.msra.mxu0 0
    %7024 = vmatprep.subr.bf16.mxu0 0
    %7025 = vmatpush1.bf16.msra.mxu0 0
    %7026 = vmatprep.subr.bf16.mxu0 0
    %7027 = vmatpush1.bf16.msra.mxu0 0
    %7028 = vmatprep.subr.bf16.mxu0 0
    %7029 = vmatpush1.bf16.msra.mxu0 0
    %7030 = vmatprep.subr.bf16.mxu0 0
    %7031 = vmatpush1.bf16.msra.mxu0 0
    %7032 = vmatprep.subr.bf16.mxu0 0
    %7033 = vmatpush1.bf16.msra.mxu0 0
    %7034 = vmatprep.subr.bf16.mxu0 0
    %7035 = vmatpush1.bf16.msra.mxu0 0
    %7036 = vmatprep.subr.bf16.mxu0 0
    %7037 = vmatpush1.bf16.msra.mxu0 0
    %7038 = vmatprep.subr.bf16.mxu0 0
    %7039 = vmatpush1.bf16.msra.mxu0 0
    %7040 = vmatprep.subr.bf16.mxu0 0
    %7041 = vmatpush1.bf16.msra.mxu0 0
    %7042 = vmatprep.subr.bf16.mxu0 0
    %7043 = vmatpush1.bf16.msra.mxu0 0
    %7044 = vmatprep.subr.bf16.mxu0 0
    %7045 = vmatpush1.bf16.msra.mxu0 0
    %7046 = vmatprep.subr.bf16.mxu0 0
    %7047 = vmatpush1.bf16.msra.mxu0 0
    %7048 = vmatprep.mubr.bf16.mxu0 0
    %7049 = vmatmul.mubr.bf16.gmra.mrb[0].mxu0 %v7011
    %v7050 = vpop.f32.mrb[0].mxu0
    %v7051 = vadd.f32 0.0, %v7050
    %v7052 = vpop.f32.mrb[0].mxu0
    %v7053 = vpop.f32.mrb[0].mxu0
    %v7054 = vpop.f32.mrb[0].mxu0
    %7055 = vdwg.mxu0
    %7057 = vrot.lane.b32.xlu0 %v6829, 8
    %v7058 = vpop.permute.xlu0 %7057
    %7061 = vrot.lane.b32.xlu0 %v6940, 16
    %v7062 = vpop.permute.xlu0 %7061
    %7065 = vrot.lane.b32.xlu0 %v7051, 24
    %v7066 = vpop.permute.xlu0 %7065
    %v7068 = vsel %vm260, %v6717, %v7058
    %v7069 = vsel %vm725, %v7068, %v7062
    %v7070 = vsel %vm727, %v7069, %v7066
    %v7071 = vpack.c.bf16 %v6550, %v6550
    %v7072 = vpack.c.bf16 %v6609, %v6609
    %v7074 = vsel %vm260, %v7071, 0
    %v7077 = vsel %vm260, %v7072, 0
    %7079 = vmatprep.subr.bf16.mxu0 0
    %7080 = vmatpush1.bf16.xpose.msra.mxu0 %v7077
    %7081 = vmatprep.subr.bf16.mxu0 0
    %7082 = vmatpush1.bf16.xpose.msra.mxu0 0
    %7083 = vmatprep.subr.bf16.mxu0 0
    %7084 = vmatpush1.bf16.xpose.msra.mxu0 0
    %7085 = vmatprep.subr.bf16.mxu0 0
    %7086 = vmatpush1.bf16.xpose.msra.mxu0 0
    %7087 = vmatprep.subr.bf16.mxu0 0
    %7088 = vmatpush1.bf16.xpose.msra.mxu0 0
    %7089 = vmatprep.subr.bf16.mxu0 0
    %7090 = vmatpush1.bf16.xpose.msra.mxu0 0
    %7091 = vmatprep.subr.bf16.mxu0 0
    %7092 = vmatpush1.bf16.xpose.msra.mxu0 0
    %7093 = vmatprep.subr.bf16.mxu0 0
    %7094 = vmatpush1.bf16.xpose.msra.mxu0 0
    %7095 = vmatprep.subr.bf16.mxu0 0
    %7096 = vmatpush1.bf16.xpose.msra.mxu0 0
    %7097 = vmatprep.subr.bf16.mxu0 0
    %7098 = vmatpush1.bf16.xpose.msra.mxu0 0
    %7099 = vmatprep.subr.bf16.mxu0 0
    %7100 = vmatpush1.bf16.xpose.msra.mxu0 0
    %7101 = vmatprep.subr.bf16.mxu0 0
    %7102 = vmatpush1.bf16.xpose.msra.mxu0 0
    %7103 = vmatprep.subr.bf16.mxu0 0
    %7104 = vmatpush1.bf16.xpose.msra.mxu0 0
    %7105 = vmatprep.subr.bf16.mxu0 0
    %7106 = vmatpush1.bf16.xpose.msra.mxu0 0
    %7107 = vmatprep.subr.bf16.mxu0 0
    %7108 = vmatpush1.bf16.xpose.msra.mxu0 0
    %7109 = vmatprep.subr.bf16.mxu0 0
    %7110 = vmatpush1.bf16.xpose.msra.mxu0 0
    %7111 = vmatprep.mubr.bf16.mxu0 0
    %7112 = vmatmul.mubr.bf16.gmra.mrb[0].mxu0 %v7074
    %v7113 = vpop.f32.mrb[0].mxu0
    %v7114 = vadd.f32 0.0, %v7113
    %v7115 = vpop.f32.mrb[0].mxu0
    %v7116 = vpop.f32.mrb[0].mxu0
    %v7117 = vpop.f32.mrb[0].mxu0
    %7118 = vdwg.mxu0
    %v7119 = vmul.f32 %v7114, 0.35355338
    %v7120 = vsel %vm260, %v7119, -inf
    %7121 = vmax.xlane.f32.xlu0 %v7120
    %v7122 = vpop.xlane.xlu0 %7121
    %v7123 = vsub.f32 %v7119, %v7122
    %v7124 = vmul.f32 %v7123, 1.442695
    %v7125 = vpow.pop %v7124
    %v7126 = vsel %vm260, %v7125, 0.0
    %7127 = vadd.xlane.f32.xlu0 %v7126
    %v7128 = vpop.xlane.xlu0 %7127
    %v7129 = vrcp.pop %v7128
    %v7130 = vmul.f32 %v7125, %v7129
    %v7131 = vpack.c.bf16 %v7130, %v7130
    %7133 = vrot.lane.b32.xlu0 %v7072, 96
    %v7134 = vpop.permute.xlu0 %7133
    %v7136 = vsel %vm260, %v7131, 0
    %v7139 = vsel %vm332, %v7134, 0
    %7141 = vmatprep.subr.bf16.mxu0 0
    %7142 = vmatpush1.bf16.msra.mxu0 %v7139
    %7143 = vmatprep.subr.bf16.mxu0 0
    %7144 = vmatpush1.bf16.msra.mxu0 0
    %7145 = vmatprep.subr.bf16.mxu0 0
    %7146 = vmatpush1.bf16.msra.mxu0 0
    %7147 = vmatprep.subr.bf16.mxu0 0
    %7148 = vmatpush1.bf16.msra.mxu0 0
    %7149 = vmatprep.subr.bf16.mxu0 0
    %7150 = vmatpush1.bf16.msra.mxu0 0
    %7151 = vmatprep.subr.bf16.mxu0 0
    %7152 = vmatpush1.bf16.msra.mxu0 0
    %7153 = vmatprep.subr.bf16.mxu0 0
    %7154 = vmatpush1.bf16.msra.mxu0 0
    %7155 = vmatprep.subr.bf16.mxu0 0
    %7156 = vmatpush1.bf16.msra.mxu0 0
    %7157 = vmatprep.subr.bf16.mxu0 0
    %7158 = vmatpush1.bf16.msra.mxu0 0
    %7159 = vmatprep.subr.bf16.mxu0 0
    %7160 = vmatpush1.bf16.msra.mxu0 0
    %7161 = vmatprep.subr.bf16.mxu0 0
    %7162 = vmatpush1.bf16.msra.mxu0 0
    %7163 = vmatprep.subr.bf16.mxu0 0
    %7164 = vmatpush1.bf16.msra.mxu0 0
    %7165 = vmatprep.subr.bf16.mxu0 0
    %7166 = vmatpush1.bf16.msra.mxu0 0
    %7167 = vmatprep.subr.bf16.mxu0 0
    %7168 = vmatpush1.bf16.msra.mxu0 0
    %7169 = vmatprep.subr.bf16.mxu0 0
    %7170 = vmatpush1.bf16.msra.mxu0 0
    %7171 = vmatprep.subr.bf16.mxu0 0
    %7172 = vmatpush1.bf16.msra.mxu0 0
    %7173 = vmatprep.mubr.bf16.mxu0 0
    %7174 = vmatmul.mubr.bf16.gmra.mrb[0].mxu0 %v7136
    %v7175 = vpop.f32.mrb[0].mxu0
    %v7176 = vadd.f32 0.0, %v7175
    %v7177 = vpop.f32.mrb[0].mxu0
    %v7178 = vpop.f32.mrb[0].mxu0
    %v7179 = vpop.f32.mrb[0].mxu0
    %7180 = vdwg.mxu0
    %7182 = vrot.lane.b32.xlu0 %v7071, 120
    %v7183 = vpop.permute.xlu0 %7182
    %7184 = vrot.lane.b32.xlu0 %v7072, 120
    %v7185 = vpop.permute.xlu0 %7184
    %v7187 = vsel %vm260, %v7183, 0
    %v7190 = vsel %vm260, %v7185, 0
    %7192 = vmatprep.subr.bf16.mxu0 0
    %7193 = vmatpush1.bf16.xpose.msra.mxu0 %v7190
    %7194 = vmatprep.subr.bf16.mxu0 0
    %7195 = vmatpush1.bf16.xpose.msra.mxu0 0
    %7196 = vmatprep.subr.bf16.mxu0 0
    %7197 = vmatpush1.bf16.xpose.msra.mxu0 0
    %7198 = vmatprep.subr.bf16.mxu0 0
    %7199 = vmatpush1.bf16.xpose.msra.mxu0 0
    %7200 = vmatprep.subr.bf16.mxu0 0
    %7201 = vmatpush1.bf16.xpose.msra.mxu0 0
    %7202 = vmatprep.subr.bf16.mxu0 0
    %7203 = vmatpush1.bf16.xpose.msra.mxu0 0
    %7204 = vmatprep.subr.bf16.mxu0 0
    %7205 = vmatpush1.bf16.xpose.msra.mxu0 0
    %7206 = vmatprep.subr.bf16.mxu0 0
    %7207 = vmatpush1.bf16.xpose.msra.mxu0 0
    %7208 = vmatprep.subr.bf16.mxu0 0
    %7209 = vmatpush1.bf16.xpose.msra.mxu0 0
    %7210 = vmatprep.subr.bf16.mxu0 0
    %7211 = vmatpush1.bf16.xpose.msra.mxu0 0
    %7212 = vmatprep.subr.bf16.mxu0 0
    %7213 = vmatpush1.bf16.xpose.msra.mxu0 0
    %7214 = vmatprep.subr.bf16.mxu0 0
    %7215 = vmatpush1.bf16.xpose.msra.mxu0 0
    %7216 = vmatprep.subr.bf16.mxu0 0
    %7217 = vmatpush1.bf16.xpose.msra.mxu0 0
    %7218 = vmatprep.subr.bf16.mxu0 0
    %7219 = vmatpush1.bf16.xpose.msra.mxu0 0
    %7220 = vmatprep.subr.bf16.mxu0 0
    %7221 = vmatpush1.bf16.xpose.msra.mxu0 0
    %7222 = vmatprep.subr.bf16.mxu0 0
    %7223 = vmatpush1.bf16.xpose.msra.mxu0 0
    %7224 = vmatprep.mubr.bf16.mxu0 0
    %7225 = vmatmul.mubr.bf16.gmra.mrb[0].mxu0 %v7187
    %v7226 = vpop.f32.mrb[0].mxu0
    %v7227 = vadd.f32 0.0, %v7226
    %v7228 = vpop.f32.mrb[0].mxu0
    %v7229 = vpop.f32.mrb[0].mxu0
    %v7230 = vpop.f32.mrb[0].mxu0
    %7231 = vdwg.mxu0
    %v7232 = vmul.f32 %v7227, 0.35355338
    %v7233 = vsel %vm260, %v7232, -inf
    %7234 = vmax.xlane.f32.xlu0 %v7233
    %v7235 = vpop.xlane.xlu0 %7234
    %v7236 = vsub.f32 %v7232, %v7235
    %v7237 = vmul.f32 %v7236, 1.442695
    %v7238 = vpow.pop %v7237
    %v7239 = vsel %vm260, %v7238, 0.0
    %7240 = vadd.xlane.f32.xlu0 %v7239
    %v7241 = vpop.xlane.xlu0 %7240
    %v7242 = vrcp.pop %v7241
    %v7243 = vmul.f32 %v7238, %v7242
    %v7244 = vpack.c.bf16 %v7243, %v7243
    %7245 = vrot.lane.b32.xlu0 %v7072, 88
    %v7246 = vpop.permute.xlu0 %7245
    %v7248 = vsel %vm260, %v7244, 0
    %v7251 = vsel %vm332, %v7246, 0
    %7253 = vmatprep.subr.bf16.mxu0 0
    %7254 = vmatpush1.bf16.msra.mxu0 %v7251
    %7255 = vmatprep.subr.bf16.mxu0 0
    %7256 = vmatpush1.bf16.msra.mxu0 0
    %7257 = vmatprep.subr.bf16.mxu0 0
    %7258 = vmatpush1.bf16.msra.mxu0 0
    %7259 = vmatprep.subr.bf16.mxu0 0
    %7260 = vmatpush1.bf16.msra.mxu0 0
    %7261 = vmatprep.subr.bf16.mxu0 0
    %7262 = vmatpush1.bf16.msra.mxu0 0
    %7263 = vmatprep.subr.bf16.mxu0 0
    %7264 = vmatpush1.bf16.msra.mxu0 0
    %7265 = vmatprep.subr.bf16.mxu0 0
    %7266 = vmatpush1.bf16.msra.mxu0 0
    %7267 = vmatprep.subr.bf16.mxu0 0
    %7268 = vmatpush1.bf16.msra.mxu0 0
    %7269 = vmatprep.subr.bf16.mxu0 0
    %7270 = vmatpush1.bf16.msra.mxu0 0
    %7271 = vmatprep.subr.bf16.mxu0 0
    %7272 = vmatpush1.bf16.msra.mxu0 0
    %7273 = vmatprep.subr.bf16.mxu0 0
    %7274 = vmatpush1.bf16.msra.mxu0 0
    %7275 = vmatprep.subr.bf16.mxu0 0
    %7276 = vmatpush1.bf16.msra.mxu0 0
    %7277 = vmatprep.subr.bf16.mxu0 0
    %7278 = vmatpush1.bf16.msra.mxu0 0
    %7279 = vmatprep.subr.bf16.mxu0 0
    %7280 = vmatpush1.bf16.msra.mxu0 0
    %7281 = vmatprep.subr.bf16.mxu0 0
    %7282 = vmatpush1.bf16.msra.mxu0 0
    %7283 = vmatprep.subr.bf16.mxu0 0
    %7284 = vmatpush1.bf16.msra.mxu0 0
    %7285 = vmatprep.mubr.bf16.mxu0 0
    %7286 = vmatmul.mubr.bf16.gmra.mrb[0].mxu0 %v7248
    %v7287 = vpop.f32.mrb[0].mxu0
    %v7288 = vadd.f32 0.0, %v7287
    %v7289 = vpop.f32.mrb[0].mxu0
    %v7290 = vpop.f32.mrb[0].mxu0
    %v7291 = vpop.f32.mrb[0].mxu0
    %7292 = vdwg.mxu0
    %7293 = vrot.lane.b32.xlu0 %v7071, 112
    %v7294 = vpop.permute.xlu0 %7293
    %7295 = vrot.lane.b32.xlu0 %v7072, 112
    %v7296 = vpop.permute.xlu0 %7295
    %v7298 = vsel %vm260, %v7294, 0
    %v7301 = vsel %vm260, %v7296, 0
    %7303 = vmatprep.subr.bf16.mxu0 0
    %7304 = vmatpush1.bf16.xpose.msra.mxu0 %v7301
    %7305 = vmatprep.subr.bf16.mxu0 0
    %7306 = vmatpush1.bf16.xpose.msra.mxu0 0
    %7307 = vmatprep.subr.bf16.mxu0 0
    %7308 = vmatpush1.bf16.xpose.msra.mxu0 0
    %7309 = vmatprep.subr.bf16.mxu0 0
    %7310 = vmatpush1.bf16.xpose.msra.mxu0 0
    %7311 = vmatprep.subr.bf16.mxu0 0
    %7312 = vmatpush1.bf16.xpose.msra.mxu0 0
    %7313 = vmatprep.subr.bf16.mxu0 0
    %7314 = vmatpush1.bf16.xpose.msra.mxu0 0
    %7315 = vmatprep.subr.bf16.mxu0 0
    %7316 = vmatpush1.bf16.xpose.msra.mxu0 0
    %7317 = vmatprep.subr.bf16.mxu0 0
    %7318 = vmatpush1.bf16.xpose.msra.mxu0 0
    %7319 = vmatprep.subr.bf16.mxu0 0
    %7320 = vmatpush1.bf16.xpose.msra.mxu0 0
    %7321 = vmatprep.subr.bf16.mxu0 0
    %7322 = vmatpush1.bf16.xpose.msra.mxu0 0
    %7323 = vmatprep.subr.bf16.mxu0 0
    %7324 = vmatpush1.bf16.xpose.msra.mxu0 0
    %7325 = vmatprep.subr.bf16.mxu0 0
    %7326 = vmatpush1.bf16.xpose.msra.mxu0 0
    %7327 = vmatprep.subr.bf16.mxu0 0
    %7328 = vmatpush1.bf16.xpose.msra.mxu0 0
    %7329 = vmatprep.subr.bf16.mxu0 0
    %7330 = vmatpush1.bf16.xpose.msra.mxu0 0
    %7331 = vmatprep.subr.bf16.mxu0 0
    %7332 = vmatpush1.bf16.xpose.msra.mxu0 0
    %7333 = vmatprep.subr.bf16.mxu0 0
    %7334 = vmatpush1.bf16.xpose.msra.mxu0 0
    %7335 = vmatprep.mubr.bf16.mxu0 0
    %7336 = vmatmul.mubr.bf16.gmra.mrb[0].mxu0 %v7298
    %v7337 = vpop.f32.mrb[0].mxu0
    %v7338 = vadd.f32 0.0, %v7337
    %v7339 = vpop.f32.mrb[0].mxu0
    %v7340 = vpop.f32.mrb[0].mxu0
    %v7341 = vpop.f32.mrb[0].mxu0
    %7342 = vdwg.mxu0
    %v7343 = vmul.f32 %v7338, 0.35355338
    %v7344 = vsel %vm260, %v7343, -inf
    %7345 = vmax.xlane.f32.xlu0 %v7344
    %v7346 = vpop.xlane.xlu0 %7345
    %v7347 = vsub.f32 %v7343, %v7346
    %v7348 = vmul.f32 %v7347, 1.442695
    %v7349 = vpow.pop %v7348
    %v7350 = vsel %vm260, %v7349, 0.0
    %7351 = vadd.xlane.f32.xlu0 %v7350
    %v7352 = vpop.xlane.xlu0 %7351
    %v7353 = vrcp.pop %v7352
    %v7354 = vmul.f32 %v7349, %v7353
    %v7355 = vpack.c.bf16 %v7354, %v7354
    %7356 = vrot.lane.b32.xlu0 %v7072, 80
    %v7357 = vpop.permute.xlu0 %7356
    %v7359 = vsel %vm260, %v7355, 0
    %v7362 = vsel %vm332, %v7357, 0
    %7364 = vmatprep.subr.bf16.mxu0 0
    %7365 = vmatpush1.bf16.msra.mxu0 %v7362
    %7366 = vmatprep.subr.bf16.mxu0 0
    %7367 = vmatpush1.bf16.msra.mxu0 0
    %7368 = vmatprep.subr.bf16.mxu0 0
    %7369 = vmatpush1.bf16.msra.mxu0 0
    %7370 = vmatprep.subr.bf16.mxu0 0
    %7371 = vmatpush1.bf16.msra.mxu0 0
    %7372 = vmatprep.subr.bf16.mxu0 0
    %7373 = vmatpush1.bf16.msra.mxu0 0
    %7374 = vmatprep.subr.bf16.mxu0 0
    %7375 = vmatpush1.bf16.msra.mxu0 0
    %7376 = vmatprep.subr.bf16.mxu0 0
    %7377 = vmatpush1.bf16.msra.mxu0 0
    %7378 = vmatprep.subr.bf16.mxu0 0
    %7379 = vmatpush1.bf16.msra.mxu0 0
    %7380 = vmatprep.subr.bf16.mxu0 0
    %7381 = vmatpush1.bf16.msra.mxu0 0
    %7382 = vmatprep.subr.bf16.mxu0 0
    %7383 = vmatpush1.bf16.msra.mxu0 0
    %7384 = vmatprep.subr.bf16.mxu0 0
    %7385 = vmatpush1.bf16.msra.mxu0 0
    %7386 = vmatprep.subr.bf16.mxu0 0
    %7387 = vmatpush1.bf16.msra.mxu0 0
    %7388 = vmatprep.subr.bf16.mxu0 0
    %7389 = vmatpush1.bf16.msra.mxu0 0
    %7390 = vmatprep.subr.bf16.mxu0 0
    %7391 = vmatpush1.bf16.msra.mxu0 0
    %7392 = vmatprep.subr.bf16.mxu0 0
    %7393 = vmatpush1.bf16.msra.mxu0 0
    %7394 = vmatprep.subr.bf16.mxu0 0
    %7395 = vmatpush1.bf16.msra.mxu0 0
    %7396 = vmatprep.mubr.bf16.mxu0 0
    %7397 = vmatmul.mubr.bf16.gmra.mrb[0].mxu0 %v7359
    %v7398 = vpop.f32.mrb[0].mxu0
    %v7399 = vadd.f32 0.0, %v7398
    %v7400 = vpop.f32.mrb[0].mxu0
    %v7401 = vpop.f32.mrb[0].mxu0
    %v7402 = vpop.f32.mrb[0].mxu0
    %7403 = vdwg.mxu0
    %7404 = vrot.lane.b32.xlu0 %v7071, 104
    %v7405 = vpop.permute.xlu0 %7404
    %7406 = vrot.lane.b32.xlu0 %v7072, 104
    %v7407 = vpop.permute.xlu0 %7406
    %v7409 = vsel %vm260, %v7405, 0
    %v7412 = vsel %vm260, %v7407, 0
    %7414 = vmatprep.subr.bf16.mxu0 0
    %7415 = vmatpush1.bf16.xpose.msra.mxu0 %v7412
    %7416 = vmatprep.subr.bf16.mxu0 0
    %7417 = vmatpush1.bf16.xpose.msra.mxu0 0
    %7418 = vmatprep.subr.bf16.mxu0 0
    %7419 = vmatpush1.bf16.xpose.msra.mxu0 0
    %7420 = vmatprep.subr.bf16.mxu0 0
    %7421 = vmatpush1.bf16.xpose.msra.mxu0 0
    %7422 = vmatprep.subr.bf16.mxu0 0
    %7423 = vmatpush1.bf16.xpose.msra.mxu0 0
    %7424 = vmatprep.subr.bf16.mxu0 0
    %7425 = vmatpush1.bf16.xpose.msra.mxu0 0
    %7426 = vmatprep.subr.bf16.mxu0 0
    %7427 = vmatpush1.bf16.xpose.msra.mxu0 0
    %7428 = vmatprep.subr.bf16.mxu0 0
    %7429 = vmatpush1.bf16.xpose.msra.mxu0 0
    %7430 = vmatprep.subr.bf16.mxu0 0
    %7431 = vmatpush1.bf16.xpose.msra.mxu0 0
    %7432 = vmatprep.subr.bf16.mxu0 0
    %7433 = vmatpush1.bf16.xpose.msra.mxu0 0
    %7434 = vmatprep.subr.bf16.mxu0 0
    %7435 = vmatpush1.bf16.xpose.msra.mxu0 0
    %7436 = vmatprep.subr.bf16.mxu0 0
    %7437 = vmatpush1.bf16.xpose.msra.mxu0 0
    %7438 = vmatprep.subr.bf16.mxu0 0
    %7439 = vmatpush1.bf16.xpose.msra.mxu0 0
    %7440 = vmatprep.subr.bf16.mxu0 0
    %7441 = vmatpush1.bf16.xpose.msra.mxu0 0
    %7442 = vmatprep.subr.bf16.mxu0 0
    %7443 = vmatpush1.bf16.xpose.msra.mxu0 0
    %7444 = vmatprep.subr.bf16.mxu0 0
    %7445 = vmatpush1.bf16.xpose.msra.mxu0 0
    %7446 = vmatprep.mubr.bf16.mxu0 0
    %7447 = vmatmul.mubr.bf16.gmra.mrb[0].mxu0 %v7409
    %v7448 = vpop.f32.mrb[0].mxu0
    %v7449 = vadd.f32 0.0, %v7448
    %v7450 = vpop.f32.mrb[0].mxu0
    %v7451 = vpop.f32.mrb[0].mxu0
    %v7452 = vpop.f32.mrb[0].mxu0
    %7453 = vdwg.mxu0
    %v7454 = vmul.f32 %v7449, 0.35355338
    %v7455 = vsel %vm260, %v7454, -inf
    %7456 = vmax.xlane.f32.xlu0 %v7455
    %v7457 = vpop.xlane.xlu0 %7456
    %v7458 = vsub.f32 %v7454, %v7457
    %v7459 = vmul.f32 %v7458, 1.442695
    %v7460 = vpow.pop %v7459
    %v7461 = vsel %vm260, %v7460, 0.0
    %7462 = vadd.xlane.f32.xlu0 %v7461
    %v7463 = vpop.xlane.xlu0 %7462
    %v7464 = vrcp.pop %v7463
    %v7465 = vmul.f32 %v7460, %v7464
    %v7466 = vpack.c.bf16 %v7465, %v7465
    %7467 = vrot.lane.b32.xlu0 %v7072, 72
    %v7468 = vpop.permute.xlu0 %7467
    %v7470 = vsel %vm260, %v7466, 0
    %v7473 = vsel %vm332, %v7468, 0
    %7475 = vmatprep.subr.bf16.mxu0 0
    %7476 = vmatpush1.bf16.msra.mxu0 %v7473
    %7477 = vmatprep.subr.bf16.mxu0 0
    %7478 = vmatpush1.bf16.msra.mxu0 0
    %7479 = vmatprep.subr.bf16.mxu0 0
    %7480 = vmatpush1.bf16.msra.mxu0 0
    %7481 = vmatprep.subr.bf16.mxu0 0
    %7482 = vmatpush1.bf16.msra.mxu0 0
    %7483 = vmatprep.subr.bf16.mxu0 0
    %7484 = vmatpush1.bf16.msra.mxu0 0
    %7485 = vmatprep.subr.bf16.mxu0 0
    %7486 = vmatpush1.bf16.msra.mxu0 0
    %7487 = vmatprep.subr.bf16.mxu0 0
    %7488 = vmatpush1.bf16.msra.mxu0 0
    %7489 = vmatprep.subr.bf16.mxu0 0
    %7490 = vmatpush1.bf16.msra.mxu0 0
    %7491 = vmatprep.subr.bf16.mxu0 0
    %7492 = vmatpush1.bf16.msra.mxu0 0
    %7493 = vmatprep.subr.bf16.mxu0 0
    %7494 = vmatpush1.bf16.msra.mxu0 0
    %7495 = vmatprep.subr.bf16.mxu0 0
    %7496 = vmatpush1.bf16.msra.mxu0 0
    %7497 = vmatprep.subr.bf16.mxu0 0
    %7498 = vmatpush1.bf16.msra.mxu0 0
    %7499 = vmatprep.subr.bf16.mxu0 0
    %7500 = vmatpush1.bf16.msra.mxu0 0
    %7501 = vmatprep.subr.bf16.mxu0 0
    %7502 = vmatpush1.bf16.msra.mxu0 0
    %7503 = vmatprep.subr.bf16.mxu0 0
    %7504 = vmatpush1.bf16.msra.mxu0 0
    %7505 = vmatprep.subr.bf16.mxu0 0
    %7506 = vmatpush1.bf16.msra.mxu0 0
    %7507 = vmatprep.mubr.bf16.mxu0 0
    %7508 = vmatmul.mubr.bf16.gmra.mrb[0].mxu0 %v7470
    %v7509 = vpop.f32.mrb[0].mxu0
    %v7510 = vadd.f32 0.0, %v7509
    %v7511 = vpop.f32.mrb[0].mxu0
    %v7512 = vpop.f32.mrb[0].mxu0
    %v7513 = vpop.f32.mrb[0].mxu0
    %7514 = vdwg.mxu0
    %7516 = vrot.lane.b32.xlu0 %v7288, 8
    %v7517 = vpop.permute.xlu0 %7516
    %7520 = vrot.lane.b32.xlu0 %v7399, 16
    %v7521 = vpop.permute.xlu0 %7520
    %7524 = vrot.lane.b32.xlu0 %v7510, 24
    %v7525 = vpop.permute.xlu0 %7524
    %v7527 = vsel %vm260, %v7176, %v7517
    %v7528 = vsel %vm725, %v7527, %v7521
    %v7529 = vsel %vm727, %v7528, %v7525
    %v7530 = vpack.c.bf16 %v7529, %v7070
    %v7532 = vlaneseq
    %v7533 = vshrl.u32 %v7532, 7
    %v7534 = vsub.s32 0, %v7533
    %v7535 = vrot.slane %v6489, %v7534
    %v7541 = vunpack.c.l.b16 %v6484
    %v7542 = vunpack.c.l.b16 %v6485
    %v7543 = vunpack.c.l.b16 %v6486
    %v7544 = vunpack.c.l.b16 %v6487
    %v7545 = vpack.c.b16 %v7542, %v7541
    %v7546 = vpack.c.b16 %v7544, %v7543
    %v7550 = vsel %vm211, %v7530, 0
    %7552 = vmatprep.subr.bf16.mxu0 0
    %7553 = vmatpush1.bf16.msra.mxu0 %v7545
    %7554 = vmatprep.subr.bf16.mxu0 0
    %7555 = vmatpush1.bf16.msra.mxu0 %v7546
    %7556 = vmatprep.subr.bf16.mxu0 0
    %7557 = vmatpush1.bf16.msra.mxu0 0
    %7558 = vmatprep.subr.bf16.mxu0 0
    %7559 = vmatpush1.bf16.msra.mxu0 0
    %7560 = vmatprep.subr.bf16.mxu0 0
    %7561 = vmatpush1.bf16.msra.mxu0 0
    %7562 = vmatprep.subr.bf16.mxu0 0
    %7563 = vmatpush1.bf16.msra.mxu0 0
    %7564 = vmatprep.subr.bf16.mxu0 0
    %7565 = vmatpush1.bf16.msra.mxu0 0
    %7566 = vmatprep.subr.bf16.mxu0 0
    %7567 = vmatpush1.bf16.msra.mxu0 0
    %7568 = vmatprep.subr.bf16.mxu0 0
    %7569 = vmatpush1.bf16.msra.mxu0 0
    %7570 = vmatprep.subr.bf16.mxu0 0
    %7571 = vmatpush1.bf16.msra.mxu0 0
    %7572 = vmatprep.subr.bf16.mxu0 0
    %7573 = vmatpush1.bf16.msra.mxu0 0
    %7574 = vmatprep.subr.bf16.mxu0 0
    %7575 = vmatpush1.bf16.msra.mxu0 0
    %7576 = vmatprep.subr.bf16.mxu0 0
    %7577 = vmatpush1.bf16.msra.mxu0 0
    %7578 = vmatprep.subr.bf16.mxu0 0
    %7579 = vmatpush1.bf16.msra.mxu0 0
    %7580 = vmatprep.subr.bf16.mxu0 0
    %7581 = vmatpush1.bf16.msra.mxu0 0
    %7582 = vmatprep.subr.bf16.mxu0 0
    %7583 = vmatpush1.bf16.msra.mxu0 0
    %7584 = vmatprep.mubr.bf16.mxu0 0
    %7585 = vmatmul.mubr.bf16.gmra.mrb[0].mxu0 %v7550
    %v7586 = vpop.f32.mrb[0].mxu0
    %v7587 = vadd.f32 %v7535, %v7586
    %v7588 = vpop.f32.mrb[0].mxu0
    %v7589 = vpop.f32.mrb[0].mxu0
    %v7590 = vadd.f32 %v7535, %v7589
    %v7591 = vpop.f32.mrb[0].mxu0
    %7592 = vdwg.mxu0
    %v7593 = vadd.f32 %v6467, %v7587
    %v7594 = vadd.f32 %v6468, %v7590
    %s7595 = scalar_lea.vmem %s59, 1
    %v7596 = vld [vmem:[%s7595] sm:$0x1]
    %s7597 = scalar_lea.vmem %s61, 1
    %v7598 = vld [vmem:[%s7597] sm:$0x1]
    %v7599 = vsel %vm211, %v7593, 0.0
    %7600 = vadd.xlane.f32.xlu0 %v7599
    %v7601 = vpop.xlane.xlu0 %7600
    %v7602 = vsel %vm211, %v7594, 0.0
    %7603 = vadd.xlane.f32.xlu0 %v7602
    %v7604 = vpop.xlane.xlu0 %7603
    %v7605 = vmul.f32 %v7601, %v1271
    %v7606 = vmul.f32 %v7604, %v1271
    %v7607 = vsub.f32 %v7593, %v7605
    %v7608 = vsub.f32 %v7594, %v7606
    %v7609 = vmul.f32 %v7607, %v7607
    %v7610 = vmul.f32 %v7608, %v7608
    %v7611 = vsel %vm211, %v7609, 0.0
    %7612 = vadd.xlane.f32.xlu0 %v7611
    %v7613 = vpop.xlane.xlu0 %7612
    %v7614 = vsel %vm211, %v7610, 0.0
    %7615 = vadd.xlane.f32.xlu0 %v7614
    %v7616 = vpop.xlane.xlu0 %7615
    %v7617 = vmul.f32 %v7613, %v1271
    %v7618 = vmul.f32 %v7616, %v1271
    %v7619 = vadd.f32 %v7617, 1e-05
    %v7620 = vadd.f32 %v7618, 1e-05
    %v7621 = vrsqrt.pop %v7619
    %v7622 = vrsqrt.pop %v7620
    %v7623 = vmul.f32 %v7607, %v7621
    %v7624 = vmul.f32 %v7608, %v7622
    %v7626 = vlaneseq
    %v7627 = vshrl.u32 %v7626, 7
    %v7628 = vsub.s32 0, %v7627
    %v7629 = vrot.slane %v7596, %v7628
    %v7631 = vmul.f32 %v7623, %v7629
    %v7632 = vmul.f32 %v7624, %v7629
    %v7634 = vlaneseq
    %v7635 = vshrl.u32 %v7634, 7
    %v7636 = vsub.s32 0, %v7635
    %v7637 = vrot.slane %v7598, %v7636
    %v7639 = vadd.f32 %v7631, %v7637
    %v7640 = vadd.f32 %v7632, %v7637
    %s7641 = scalar_lea.vmem %s63, 16
    %v7642 = vld [vmem:[%s7641] sm:$0xf]
    %v7643 = vld [vmem:[%s7641 + $0x4] sm:$0xf]
    %v7644 = vld [vmem:[%s7641 + $0x8] sm:$0xf]
    %v7645 = vld [vmem:[%s7641 + $0xc] sm:$0xf]
    %s7646 = scalar_lea.vmem %s65, 1
    %v7647 = vld [vmem:[%s7646] sm:$0x1]
    %s7648 = scalar_lea.vmem %s67, 32
    %v7649 = vld [vmem:[%s7648] sm:$0xf]
    %v7650 = vld [vmem:[%s7648 + $0x4] sm:$0xf]
    %v7651 = vld [vmem:[%s7648 + $0x8] sm:$0xf]
    %v7652 = vld [vmem:[%s7648 + $0xc] sm:$0xf]
    %v7653 = vld [vmem:[%s7648 + $0x10] sm:$0xf]
    %v7654 = vld [vmem:[%s7648 + $0x14] sm:$0xf]
    %v7655 = vld [vmem:[%s7648 + $0x18] sm:$0xf]
    %v7656 = vld [vmem:[%s7648 + $0x1c] sm:$0xf]
    %s7657 = scalar_lea.vmem %s69, 1
    %v7658 = vld [vmem:[%s7657] sm:$0x1]
    %v7659 = vpack.c.bf16 %v7640, %v7639
    %v7661 = vlaneseq
    %v7662 = vshrl.u32 %v7661, 7
    %v7663 = vsub.s32 0, %v7662
    %v7664 = vrot.slane %v7647, %v7663
    %v7670 = vunpack.c.l.b16 %v7642
    %v7671 = vunpack.c.l.b16 %v7643
    %v7672 = vunpack.c.l.b16 %v7644
    %v7673 = vunpack.c.l.b16 %v7645
    %v7674 = vpack.c.b16 %v7671, %v7670
    %v7675 = vpack.c.b16 %v7673, %v7672
    %v7679 = vsel %vm211, %v7659, 0
    %7681 = vmatprep.subr.bf16.mxu0 0
    %7682 = vmatpush1.bf16.msra.mxu0 %v7674
    %7683 = vmatprep.subr.bf16.mxu0 0
    %7684 = vmatpush1.bf16.msra.mxu0 %v7675
    %7685 = vmatprep.subr.bf16.mxu0 0
    %7686 = vmatpush1.bf16.msra.mxu0 0
    %7687 = vmatprep.subr.bf16.mxu0 0
    %7688 = vmatpush1.bf16.msra.mxu0 0
    %7689 = vmatprep.subr.bf16.mxu0 0
    %7690 = vmatpush1.bf16.msra.mxu0 0
    %7691 = vmatprep.subr.bf16.mxu0 0
    %7692 = vmatpush1.bf16.msra.mxu0 0
    %7693 = vmatprep.subr.bf16.mxu0 0
    %7694 = vmatpush1.bf16.msra.mxu0 0
    %7695 = vmatprep.subr.bf16.mxu0 0
    %7696 = vmatpush1.bf16.msra.mxu0 0
    %7697 = vmatprep.subr.bf16.mxu0 0
    %7698 = vmatpush1.bf16.msra.mxu0 0
    %7699 = vmatprep.subr.bf16.mxu0 0
    %7700 = vmatpush1.bf16.msra.mxu0 0
    %7701 = vmatprep.subr.bf16.mxu0 0
    %7702 = vmatpush1.bf16.msra.mxu0 0
    %7703 = vmatprep.subr.bf16.mxu0 0
    %7704 = vmatpush1.bf16.msra.mxu0 0
    %7705 = vmatprep.subr.bf16.mxu0 0
    %7706 = vmatpush1.bf16.msra.mxu0 0
    %7707 = vmatprep.subr.bf16.mxu0 0
    %7708 = vmatpush1.bf16.msra.mxu0 0
    %7709 = vmatprep.subr.bf16.mxu0 0
    %7710 = vmatpush1.bf16.msra.mxu0 0
    %7711 = vmatprep.subr.bf16.mxu0 0
    %7712 = vmatpush1.bf16.msra.mxu0 0
    %7713 = vmatprep.mubr.bf16.mxu0 0
    %7714 = vmatmul.mubr.bf16.gmra.mrb[0].mxu0 %v7679
    %v7715 = vpop.f32.mrb[0].mxu0
    %v7716 = vadd.f32 %v7664, %v7715
    %v7717 = vpop.f32.mrb[0].mxu0
    %v7718 = vpop.f32.mrb[0].mxu0
    %v7719 = vadd.f32 %v7664, %v7718
    %v7720 = vpop.f32.mrb[0].mxu0
    %7721 = vdwg.mxu0
    %v7722 = vmax.f32 %v7716, 0.0
    %v7723 = vmax.f32 %v7719, 0.0
    %v7724 = vpack.c.bf16 %v7723, %v7722
    %v7726 = vlaneseq
    %v7727 = vshrl.u32 %v7726, 7
    %v7728 = vsub.s32 0, %v7727
    %v7729 = vrot.slane %v7658, %v7728
    %v7739 = vunpack.c.l.b16 %v7649
    %v7740 = vunpack.c.l.b16 %v7650
    %v7741 = vunpack.c.l.b16 %v7651
    %v7742 = vunpack.c.l.b16 %v7652
    %v7743 = vunpack.c.l.b16 %v7653
    %v7744 = vunpack.c.l.b16 %v7654
    %v7745 = vunpack.c.l.b16 %v7655
    %v7746 = vunpack.c.l.b16 %v7656
    %v7747 = vpack.c.b16 %v7740, %v7739
    %v7748 = vpack.c.b16 %v7742, %v7741
    %v7749 = vpack.c.b16 %v7744, %v7743
    %v7750 = vpack.c.b16 %v7746, %v7745
    %v7756 = vsel %vm1418, %v7724, 0
    %7758 = vmatprep.subr.bf16.mxu0 0
    %7759 = vmatpush1.bf16.msra.mxu0 %v7747
    %7760 = vmatprep.subr.bf16.mxu0 0
    %7761 = vmatpush1.bf16.msra.mxu0 %v7748
    %7762 = vmatprep.subr.bf16.mxu0 0
    %7763 = vmatpush1.bf16.msra.mxu0 %v7749
    %7764 = vmatprep.subr.bf16.mxu0 0
    %7765 = vmatpush1.bf16.msra.mxu0 %v7750
    %7766 = vmatprep.subr.bf16.mxu0 0
    %7767 = vmatpush1.bf16.msra.mxu0 0
    %7768 = vmatprep.subr.bf16.mxu0 0
    %7769 = vmatpush1.bf16.msra.mxu0 0
    %7770 = vmatprep.subr.bf16.mxu0 0
    %7771 = vmatpush1.bf16.msra.mxu0 0
    %7772 = vmatprep.subr.bf16.mxu0 0
    %7773 = vmatpush1.bf16.msra.mxu0 0
    %7774 = vmatprep.subr.bf16.mxu0 0
    %7775 = vmatpush1.bf16.msra.mxu0 0
    %7776 = vmatprep.subr.bf16.mxu0 0
    %7777 = vmatpush1.bf16.msra.mxu0 0
    %7778 = vmatprep.subr.bf16.mxu0 0
    %7779 = vmatpush1.bf16.msra.mxu0 0
    %7780 = vmatprep.subr.bf16.mxu0 0
    %7781 = vmatpush1.bf16.msra.mxu0 0
    %7782 = vmatprep.subr.bf16.mxu0 0
    %7783 = vmatpush1.bf16.msra.mxu0 0
    %7784 = vmatprep.subr.bf16.mxu0 0
    %7785 = vmatpush1.bf16.msra.mxu0 0
    %7786 = vmatprep.subr.bf16.mxu0 0
    %7787 = vmatpush1.bf16.msra.mxu0 0
    %7788 = vmatprep.subr.bf16.mxu0 0
    %7789 = vmatpush1.bf16.msra.mxu0 0
    %7790 = vmatprep.mubr.bf16.mxu0 0
    %7791 = vmatmul.mubr.bf16.gmra.mrb[0].mxu0 %v7756
    %v7792 = vpop.f32.mrb[0].mxu0
    %v7793 = vadd.f32 %v7729, %v7792
    %v7794 = vpop.f32.mrb[0].mxu0
    %v7795 = vpop.f32.mrb[0].mxu0
    %v7796 = vadd.f32 %v7729, %v7795
    %v7797 = vpop.f32.mrb[0].mxu0
    %7798 = vdwg.mxu0
    %v7799 = vadd.f32 %v7639, %v7793
    %v7800 = vadd.f32 %v7640, %v7796
    %s7801 = scalar_lea.vmem %s71, 1
    %v7802 = vld [vmem:[%s7801] sm:$0x1]
    %s7803 = scalar_lea.vmem %s73, 1
    %v7804 = vld [vmem:[%s7803] sm:$0x1]
    %v7805 = vsel %vm211, %v7799, 0.0
    %7806 = vadd.xlane.f32.xlu0 %v7805
    %v7807 = vpop.xlane.xlu0 %7806
    %v7808 = vsel %vm211, %v7800, 0.0
    %7809 = vadd.xlane.f32.xlu0 %v7808
    %v7810 = vpop.xlane.xlu0 %7809
    %v7811 = vmul.f32 %v7807, %v1271
    %v7812 = vmul.f32 %v7810, %v1271
    %v7813 = vsub.f32 %v7799, %v7811
    %v7814 = vsub.f32 %v7800, %v7812
    %v7815 = vmul.f32 %v7813, %v7813
    %v7816 = vmul.f32 %v7814, %v7814
    %v7817 = vsel %vm211, %v7815, 0.0
    %7818 = vadd.xlane.f32.xlu0 %v7817
    %v7819 = vpop.xlane.xlu0 %7818
    %v7820 = vsel %vm211, %v7816, 0.0
    %7821 = vadd.xlane.f32.xlu0 %v7820
    %v7822 = vpop.xlane.xlu0 %7821
    %v7823 = vmul.f32 %v7819, %v1271
    %v7824 = vmul.f32 %v7822, %v1271
    %v7825 = vadd.f32 %v7823, 1e-05
    %v7826 = vadd.f32 %v7824, 1e-05
    %v7827 = vrsqrt.pop %v7825
    %v7828 = vrsqrt.pop %v7826
    %v7829 = vmul.f32 %v7813, %v7827
    %v7830 = vmul.f32 %v7814, %v7828
    %v7832 = vlaneseq
    %v7833 = vshrl.u32 %v7832, 7
    %v7834 = vsub.s32 0, %v7833
    %v7835 = vrot.slane %v7802, %v7834
    %v7837 = vmul.f32 %v7829, %v7835
    %v7838 = vmul.f32 %v7830, %v7835
    %v7840 = vlaneseq
    %v7841 = vshrl.u32 %v7840, 7
    %v7842 = vsub.s32 0, %v7841
    %v7843 = vrot.slane %v7804, %v7842
    %v7845 = vadd.f32 %v7837, %v7843
    %v7846 = vadd.f32 %v7838, %v7843
    %v7847 = vld [vmem:[%s75] sm:$0x1]
    %v7848 = vld [vmem:[%s77] sm:$0x1]
    %v7849 = vsel %vm211, %v7845, 0.0
    %7850 = vadd.xlane.f32.xlu0 %v7849
    %v7851 = vpop.xlane.xlu0 %7850
    %v7852 = vsel %vm211, %v7846, 0.0
    %7853 = vadd.xlane.f32.xlu0 %v7852
    %v7854 = vpop.xlane.xlu0 %7853
    %v7855 = vmul.f32 %v7851, %v1271
    %v7856 = vmul.f32 %v7854, %v1271
    %v7857 = vsub.f32 %v7845, %v7855
    %v7858 = vsub.f32 %v7846, %v7856
    %v7859 = vmul.f32 %v7857, %v7857
    %v7860 = vmul.f32 %v7858, %v7858
    %v7861 = vsel %vm211, %v7859, 0.0
    %7862 = vadd.xlane.f32.xlu0 %v7861
    %v7863 = vpop.xlane.xlu0 %7862
    %v7864 = vsel %vm211, %v7860, 0.0
    %7865 = vadd.xlane.f32.xlu0 %v7864
    %v7866 = vpop.xlane.xlu0 %7865
    %v7867 = vmul.f32 %v7863, %v1271
    %v7868 = vmul.f32 %v7866, %v1271
    %v7869 = vadd.f32 %v7867, 1e-05
    %v7870 = vadd.f32 %v7868, 1e-05
    %v7871 = vrsqrt.pop %v7869
    %v7872 = vrsqrt.pop %v7870
    %v7873 = vmul.f32 %v7857, %v7871
    %v7874 = vmul.f32 %v7858, %v7872
    %v7876 = vlaneseq
    %v7877 = vshrl.u32 %v7876, 7
    %v7878 = vsub.s32 0, %v7877
    %v7879 = vrot.slane %v7847, %v7878
    %v7881 = vmul.f32 %v7873, %v7879
    %v7882 = vmul.f32 %v7874, %v7879
    %v7884 = vlaneseq
    %v7885 = vshrl.u32 %v7884, 7
    %v7886 = vsub.s32 0, %v7885
    %v7887 = vrot.slane %v7848, %v7886
    %v7889 = vadd.f32 %v7881, %v7887
    %v7890 = vadd.f32 %v7882, %v7887
    %v7891 = vpack.c.bf16 %v7890, %v7889
    %v7892 = vld [vmem:[%s79] sm:$0xf]
    %v7893 = vld [vmem:[%s79 + $0x4] sm:$0xf]
    %v7894 = vld [vmem:[%s79 + $0x8] sm:$0xf]
    %v7895 = vld [vmem:[%s79 + $0xc] sm:$0xf]
    %v7896 = vld [vmem:[%s81] sm:$0x1]
    %v7898 = vlaneseq
    %v7899 = vshrl.u32 %v7898, 7
    %v7900 = vsub.s32 0, %v7899
    %v7901 = vrot.slane %v7896, %v7900
    %v7907 = vunpack.c.l.b16 %v7892
    %v7908 = vunpack.c.l.b16 %v7893
    %v7909 = vunpack.c.l.b16 %v7894
    %v7910 = vunpack.c.l.b16 %v7895
    %v7911 = vpack.c.b16 %v7908, %v7907
    %v7912 = vpack.c.b16 %v7910, %v7909
    %v7916 = vsel %vm211, %v7891, 0
    %7918 = vmatprep.subr.bf16.mxu0 0
    %7919 = vmatpush1.bf16.msra.mxu0 %v7911
    %7920 = vmatprep.subr.bf16.mxu0 0
    %7921 = vmatpush1.bf16.msra.mxu0 %v7912
    %7922 = vmatprep.subr.bf16.mxu0 0
    %7923 = vmatpush1.bf16.msra.mxu0 0
    %7924 = vmatprep.subr.bf16.mxu0 0
    %7925 = vmatpush1.bf16.msra.mxu0 0
    %7926 = vmatprep.subr.bf16.mxu0 0
    %7927 = vmatpush1.bf16.msra.mxu0 0
    %7928 = vmatprep.subr.bf16.mxu0 0
    %7929 = vmatpush1.bf16.msra.mxu0 0
    %7930 = vmatprep.subr.bf16.mxu0 0
    %7931 = vmatpush1.bf16.msra.mxu0 0
    %7932 = vmatprep.subr.bf16.mxu0 0
    %7933 = vmatpush1.bf16.msra.mxu0 0
    %7934 = vmatprep.subr.bf16.mxu0 0
    %7935 = vmatpush1.bf16.msra.mxu0 0
    %7936 = vmatprep.subr.bf16.mxu0 0
    %7937 = vmatpush1.bf16.msra.mxu0 0
    %7938 = vmatprep.subr.bf16.mxu0 0
    %7939 = vmatpush1.bf16.msra.mxu0 0
    %7940 = vmatprep.subr.bf16.mxu0 0
    %7941 = vmatpush1.bf16.msra.mxu0 0
    %7942 = vmatprep.subr.bf16.mxu0 0
    %7943 = vmatpush1.bf16.msra.mxu0 0
    %7944 = vmatprep.subr.bf16.mxu0 0
    %7945 = vmatpush1.bf16.msra.mxu0 0
    %7946 = vmatprep.subr.bf16.mxu0 0
    %7947 = vmatpush1.bf16.msra.mxu0 0
    %7948 = vmatprep.subr.bf16.mxu0 0
    %7949 = vmatpush1.bf16.msra.mxu0 0
    %7950 = vmatprep.mubr.bf16.mxu0 0
    %7951 = vmatmul.mubr.bf16.gmra.mrb[0].mxu0 %v7916
    %v7952 = vpop.f32.mrb[0].mxu0
    %v7953 = vadd.f32 %v7901, %v7952
    %v7954 = vpop.f32.mrb[0].mxu0
    %v7955 = vpop.f32.mrb[0].mxu0
    %v7956 = vadd.f32 %v7901, %v7955
    %v7957 = vpop.f32.mrb[0].mxu0
    %7958 = vdwg.mxu0
    %7959 = vmax.xlane.f32.xlu0 %v7953
    %v7960 = vpop.xlane.xlu0 %7959
    %7961 = vmax.xlane.f32.xlu0 %v7956
    %v7962 = vpop.xlane.xlu0 %7961
    %vm7963 = vcmp.eq.f32.partialorder %v7953, %v7960
    %vm7964 = vcmp.eq.f32.partialorder %v7956, %v7962
    %v7965 = vsel %vm7963, %v2876, 128
    %v7966 = vsel %vm7964, %v2876, 128
    %v7967 = vand.u32 %v7965, 65535
    %v7968 = vshra.s32 %v7965, 16
    %v7969 = vcvt.s32.f32 %v7967
    %v7970 = vcvt.s32.f32 %v7968
    %7971 = vmin.xlane.f32.xlu0 %v7970
    %v7972 = vpop.xlane.xlu0 %7971
    %vm7973 = vcmp.eq.f32.partialorder %v7970, %v7972
    %v7974 = vsel %vm7973, %v7969, inf
    %7975 = vmin.xlane.f32.xlu0 %v7974
    %v7976 = vpop.xlane.xlu0 %7975
    %v7977 = vcvt.f32.s32 %v7976
    %v7978 = vcvt.f32.s32 %v7972
    %v7979 = vshll.u32 %v7978, 16
    %v7980 = vadd.s32 %v7979, %v7977
    %v7981 = vand.u32 %v7966, 65535
    %v7982 = vshra.s32 %v7966, 16
    %v7983 = vcvt.s32.f32 %v7981
    %v7984 = vcvt.s32.f32 %v7982
    %7985 = vmin.xlane.f32.xlu0 %v7984
    %v7986 = vpop.xlane.xlu0 %7985
    %vm7987 = vcmp.eq.f32.partialorder %v7984, %v7986
    %v7988 = vsel %vm7987, %v7983, inf
    %7989 = vmin.xlane.f32.xlu0 %v7988
    %v7990 = vpop.xlane.xlu0 %7989
    %v7991 = vcvt.f32.s32 %v7990
    %v7992 = vcvt.f32.s32 %v7986
    %v7993 = vshll.u32 %v7992, 16
    %v7994 = vadd.s32 %v7993, %v7991
    %7995 = vst [vmem:[#allocation2] sm:$0xff] %v7953
    %7996 = vst [vmem:[%s85] sm:$0xff] %v7980
    %s7997 = scalar_lea.vmem [#allocation2], 8
    %7998 = vst [vmem:[%s7997] sm:$0xff] %v7956
    %s7999 = scalar_lea.vmem %s85, 8
    %8000 = vst [vmem:[%s7999] sm:$0xff] %v7994
    // Predicated region
    $region166: #{_lambda_.1} parent=1 // pred_check
      _
    $region167: #{_lambda_.1} parent=1 // pred_check_branch
      %8002 = sbr.rel (0) target = $region169
    $region168: #{_lambda_.1} parent=1 // pred_region
      %s8004 = ssub.s32 256, 256
      %8005 = vsyncadd [#allocation3], %s8004
      %s8006 = sshll.u32 [#allocation2], 4
      %s8007 = int_to_ptr.vmem [resolvable:$true] %s8006
      %8012 = dma.vmem_to_hbm [thread:$0]  %s8007, 256, %s83, [#allocation3], 128, 128, 8
    $region169: #{_lambda_.1} parent=1 // pred_fallthru
      _
    // Predicated region
    $region170: #{_lambda_.1} parent=1 // pred_check
      _
    $region171: #{_lambda_.1} parent=1 // pred_check_branch
      %8014 = sbr.rel (0) target = $region173
    $region172: #{_lambda_.1} parent=1 // pred_region
      _
    $region173: #{_lambda_.1} parent=1 // pred_fallthru
      _
    // Predicated region
    $region174: #{_lambda_.1} parent=1 // pred_check
      _
    $region175: #{_lambda_.1} parent=1 // pred_check_branch
      %8016 = sbr.rel (0) target = $region177
    $region176: #{_lambda_.1} parent=1 // pred_region
      %8017 = dma.done [#allocation3], 256
    $region177: #{_lambda_.1} parent=1 // pred_fallthru
      _
    // Predicated region
    $region178: #{_lambda_.1} parent=1 // pred_check
      _
    $region179: #{_lambda_.1} parent=1 // pred_check_branch
      %8019 = sbr.rel (0) target = $region181
    $region180: #{_lambda_.1} parent=1 // pred_region
      _
    $region181: #{_lambda_.1} parent=1 // pred_fallthru
      _
    %8020 = vsyncpa [#allocation3], 1

</llo_original>
